<compile_context>
chip_gen: v7x
topology: tpu7x:2x2x1
jax: 0.10.0
libtpu: 0.0.40
codegen_flags: <defaults>
</compile_context>

<pallas_src>
import math

import jax
import jax.numpy as jnp
from jax import lax
from jax.experimental import pallas as pl
from jax.experimental.pallas import tpu as pltpu


# ----------------------------------------------------------------------------
# Fused kernel
# ----------------------------------------------------------------------------
def _make_kernel(cfgs):
    """cfgs: per conv layer (cin_padded, cout, in_height, in_width)."""

    def kernel(x_ref,
               cw1, cb1, cw2, cb2, cw3, cb3, cw4, cb4, cw5, cb5, cw6, cb6,
               hw1_ref, hb1_ref, hw2_ref, hb2_ref,
               o_ref,
               s1, s2, s3, s4, s5, s6):

        def conv_row(in_ref, taps, bias, h, ci, wo):
            # One conv output row: 3 dots (one per kx tap), K = 3*ci, N = wo.
            r0 = h * ci
            acc = jnp.dot(taps[0], in_ref[pl.ds(r0, 3 * ci), pl.ds(0, wo)],
                          preferred_element_type=jnp.float32)
            acc = acc + jnp.dot(taps[1], in_ref[pl.ds(r0, 3 * ci), pl.ds(1, wo)],
                                preferred_element_type=jnp.float32)
            acc = acc + jnp.dot(taps[2], in_ref[pl.ds(r0, 3 * ci), pl.ds(2, wo)],
                                preferred_element_type=jnp.float32)
            return acc + bias                                   # (cout, wo)

        def conv_stage(in_ref, out_ref, w_ref, b_ref, cfg):
            # conv only (layer 1 has no pool / relu after it)
            ci, co, hi, wi = cfg
            ho, wo = hi - 2, wi - 2
            taps = (w_ref[0], w_ref[1], w_ref[2])
            bias = b_ref[...]

            def body(h, carry):
                y = conv_row(in_ref, taps, bias, h, ci, wo)
                out_ref[pl.ds(h * co, co), pl.ds(0, wo)] = y
                return carry

            lax.fori_loop(0, ho, body, 0)

        def conv_pool_relu_stage(in_ref, out_ref, w_ref, b_ref, cfg):
            # conv -> maxpool(2) -> relu, fused; writes only pooled rows.
            ci, co, hi, wi = cfg
            wo = wi - 2
            wp = wo // 2
            hp = (hi - 2) // 2
            taps = (w_ref[0], w_ref[1], w_ref[2])
            bias = b_ref[...]
            # W-direction 2x2 pooling as two selection matmuls (no strided access).
            widx = lax.broadcasted_iota(jnp.int32, (wo, wp), 0)
            pidx = lax.broadcasted_iota(jnp.int32, (wo, wp), 1)
            sel_even = (widx == 2 * pidx).astype(jnp.float32)
            sel_odd = (widx == 2 * pidx + 1).astype(jnp.float32)

            def body(p, carry):
                ya = conv_row(in_ref, taps, bias, 2 * p, ci, wo)
                yb = conv_row(in_ref, taps, bias, 2 * p + 1, ci, wo)
                z = jnp.maximum(ya, yb)                                  # pool along H
                pe = jnp.dot(z, sel_even, preferred_element_type=jnp.float32)
                po = jnp.dot(z, sel_odd, preferred_element_type=jnp.float32)
                pooled = jnp.maximum(jnp.maximum(pe, po), 0.0)           # pool along W + ReLU
                out_ref[pl.ds(p * co, co), pl.ds(0, wp)] = pooled
                return carry

            lax.fori_loop(0, hp, body, 0)

        conv_stage(x_ref, s1, cw1, cb1, cfgs[0])             # conv1
        conv_pool_relu_stage(s1, s2, cw2, cb2, cfgs[1])      # conv2 + pool + relu
        conv_pool_relu_stage(s2, s3, cw3, cb3, cfgs[2])      # conv3 + pool + relu
        conv_pool_relu_stage(s3, s4, cw4, cb4, cfgs[3])      # conv4 + pool + relu
        conv_pool_relu_stage(s4, s5, cw5, cb5, cfgs[4])      # conv5 + pool + relu
        conv_pool_relu_stage(s5, s6, cw6, cb6, cfgs[5])      # conv6 + pool + relu

        # ---- both regression heads, fused ----------------------------------
        # s6 holds the final 64ch x 4 x 2 map as rows (hp*64 + c), lanes wp.
        # hw1 is pre-permuted outside the kernel so that concat of the two lane
        # columns of s6 is the matching flattened feature vector.
        feat = jnp.concatenate([s6[:, pl.ds(0, 1)], s6[:, pl.ds(1, 1)]], axis=0)   # (512, 1)
        h1 = jnp.dot(hw1_ref[...], feat, preferred_element_type=jnp.float32) + hb1_ref[...]
        h1 = jnp.maximum(h1, 0.0)                                                   # (128, 1)
        y2 = jnp.dot(hw2_ref[...], h1, preferred_element_type=jnp.float32) + hb2_ref[...]
        lin = jnp.maximum(y2[0:1, :], 0.0)                                          # (1, 1)
        ang = y2[1:2, :]                                                            # (1, 1)
        o_ref[...] = jnp.concatenate([lin, ang], axis=1)                            # (1, 2)

    return kernel


# ----------------------------------------------------------------------------
# Wrapper (single pallas_call for the whole forward pass)
# ----------------------------------------------------------------------------
def modelv0_forward(kparams, x):
    n, h_img, w_img, c_img = x.shape
    assert (h_img, w_img, c_img) == (128, 192, 3), "Linear(512,.) fixes input to (N,128,192,3)"
    H, W = w_img, h_img          # conv-space height/width (PyTorch NCHW spatial dims)
    CPAD = 8                     # input channels zero-padded 3 -> 8 (sublane tile)

    # layout plumbing only: (N,128,192,3) -> (N, H*CPAD, W) with row = h*8 + c.
    xt = jnp.transpose(x, (0, 2, 3, 1))                             # (N, H, C, W)
    xt = jnp.pad(xt, ((0, 0), (0, 0), (0, CPAD - c_img), (0, 0)))
    xt = xt.reshape(n, H * CPAD, W)

    cins = [CPAD, 8, 16, 32, 32, 64]
    couts = [8, 16, 32, 32, 64, 64]
    cfgs, srows = [], []
    hi, wi = H, W
    for l in range(6):
        cfgs.append((cins[l], couts[l], hi, wi))
        ho, wo = hi - 2, wi - 2
        hi, wi = (ho, wo) if l == 0 else (ho // 2, wo // 2)
        srows.append(couts[l] * hi)
    assert (couts[-1], hi, wi) == (64, 4, 2)

    kernel = _make_kernel(tuple(cfgs))

    w_names = ["cw1", "cb1", "cw2", "cb2", "cw3", "cb3", "cw4", "cb4",
               "cw5", "cb5", "cw6", "cb6", "hw1", "hb1", "hw2", "hb2"]
    w_ops = [kparams[k] for k in w_names]

    def _const_map(nd):
        return lambda i, _nd=nd: (0,) * _nd

    in_specs = [pl.BlockSpec((None, H * CPAD, W), lambda i: (i, 0, 0))]
    in_specs += [pl.BlockSpec(op.shape, _const_map(op.ndim)) for op in w_ops]

    conv_macs = sum(co * ci * 9 * (ch - 2) * (cw - 2) for (ci, co, ch, cw) in cfgs)
    head_macs = 512 * 128 + 128 * 2
    cost = pl.CostEstimate(
        flops=int(2 * n * (conv_macs + head_macs)),
        transcendentals=0,
        bytes_accessed=int(4 * (xt.size + sum(o.size for o in w_ops)) + 8 * n))

    out = pl.pallas_call(
        kernel,
        out_shape=jax.ShapeDtypeStruct((n, 1, 2), jnp.float32),
        grid=(n,),
        in_specs=in_specs,
        out_specs=pl.BlockSpec((None, 1, 2), lambda i: (i, 0, 0)),
        scratch_shapes=[pltpu.VMEM((r, 128), jnp.float32) for r in srows],
        compiler_params=pltpu.CompilerParams(
            dimension_semantics=("parallel",),
            vmem_limit_bytes=32 * 1024 * 1024),
        cost_estimate=cost,
    )(xt, *w_ops)
    return out[:, 0, 0], out[:, 0, 1]


# ----------------------------------------------------------------------------
# Parameters (canonical, PyTorch-like) and kernel-layout preparation
# ----------------------------------------------------------------------------
def init_canonical_params(key):
    convs = [(3, 8), (8, 16), (16, 32), (32, 32), (32, 64), (64, 64)]
    keys = iter(jax.random.split(key, 2 * len(convs) + 8))
    p = {"conv_w": [], "conv_b": []}
    for cin, cout in convs:
        bound = 1.0 / math.sqrt(cin * 9)
        p["conv_w"].append(jax.random.uniform(next(keys), (cout, cin, 3, 3),
                                              jnp.float32, -bound, bound))
        p["conv_b"].append(jax.random.uniform(next(keys), (cout,),
                                              jnp.float32, -bound, bound))

    def lin(kw, kb, fin, fout):
        bound = 1.0 / math.sqrt(fin)
        return (jax.random.uniform(kw, (fout, fin), jnp.float32, -bound, bound),
                jax.random.uniform(kb, (fout,), jnp.float32, -bound, bound))

    p["w1l"], p["b1l"] = lin(next(keys), next(keys), 512, 64)
    p["w2l"], p["b2l"] = lin(next(keys), next(keys), 64, 1)
    p["w1a"], p["b1a"] = lin(next(keys), next(keys), 512, 64)
    p["w2a"], p["b2a"] = lin(next(keys), next(keys), 64, 1)
    return p


def prepare_kernel_params(p):
    kp = {}
    cins_pad = [8, 8, 16, 32, 32, 64]
    for l in range(6):
        w = p["conv_w"][l]                        # (co, ci, 3, 3)  (PyTorch OIHW)
        co, ci = w.shape[0], w.shape[1]
        cip = cins_pad[l]
        if ci < cip:
            w = jnp.pad(w, ((0, 0), (0, cip - ci), (0, 0), (0, 0)))
        if l == 0:
            w = w * (2.0 / 255.0)                 # fold the x/255*2 input scaling
        # (co, ci, ky, kx) -> (kx, co, ky, ci) -> (3, co, 3*ci): column = ky*ci + c
        kp[f"cw{l + 1}"] = jnp.transpose(w, (3, 0, 2, 1)).reshape(3, co, 3 * cip)
        kp[f"cb{l + 1}"] = p["conv_b"][l].reshape(co, 1)

    # heads: concat lin/ang first layers -> (512, 128) then permute the feature
    # index k = c*8 + hp*2 + wp to the kernel ordering m = wp*256 + hp*64 + c.
    w1cat = jnp.concatenate([p["w1l"].T, p["w1a"].T], axis=1)              # (512, 128)
    kp["hw1"] = jnp.transpose(w1cat.reshape(64, 4, 2, 128),
                              (2, 1, 0, 3)).reshape(512, 128).T            # (128, 512)
    kp["hb1"] = jnp.concatenate([p["b1l"], p["b1a"]]).reshape(128, 1)
    z = jnp.zeros((1, 64), jnp.float32)
    kp["hw2"] = jnp.concatenate(
        [jnp.concatenate([p["w2l"], z], axis=1),
         jnp.concatenate([z, p["w2a"]], axis=1)], axis=0)                  # (2, 128)
    kp["hb2"] = jnp.concatenate([p["b2l"], p["b2a"]]).reshape(2, 1)
    return kp


# ----------------------------------------------------------------------------
# Pure-JAX reference (mirrors the PyTorch module exactly; for checking only)
# ----------------------------------------------------------------------------
def reference_forward(p, x):
    h = jnp.transpose(x, (0, 3, 2, 1)) / 255.0 * 2.0                       # NCHW
    dn = ("NCHW", "OIHW", "NCHW")

    def conv(h, w, b):
        return lax.conv_general_dilated(h, w, (1, 1), "VALID",
                                        dimension_numbers=dn) + b[None, :, None, None]

    def pool_relu(h):
        h = lax.reduce_window(h, -jnp.inf, lax.max, (1, 1, 2, 2), (1, 1, 2, 2), "VALID")
        return jnp.maximum(h, 0.0)

    h = conv(h, p["conv_w"][0], p["conv_b"][0])
    h = conv(h, p["conv_w"][1], p["conv_b"][1]); h = pool_relu(h)
    h = conv(h, p["conv_w"][2], p["conv_b"][2]); h = pool_relu(h)
    h = conv(h, p["conv_w"][3], p["conv_b"][3]); h = pool_relu(h)
    h = conv(h, p["conv_w"][4], p["conv_b"][4]); h = pool_relu(h)
    h = conv(h, p["conv_w"][5], p["conv_b"][5]); h = pool_relu(h)
    feat = h.reshape(h.shape[0], -1)                                       # NCHW flatten
    hl = jnp.maximum(feat @ p["w1l"].T + p["b1l"], 0.0)
    lin = jnp.maximum(hl @ p["w2l"].T + p["b2l"], 0.0)
    ha = jnp.maximum(feat @ p["w1a"].T + p["b1a"], 0.0)
    ang = ha @ p["w2a"].T + p["b2a"]
    return lin[:, 0], ang[:, 0]


if __name__ == "__main__":
    key = jax.random.PRNGKey(0)
    pkey, xkey = jax.random.split(key)
    canon = init_canonical_params(pkey)
    kparams = prepare_kernel_params(canon)

    # Smallest input consistent with Linear(512, .): (N, H, W, C) = (2, 128, 192, 3).
    x = jax.random.uniform(xkey, (2, 128, 192, 3), jnp.float32, 0.0, 255.0)

    lin_vel, ang_vel = jax.jit(modelv0_forward)(kparams, x)
    jax.block_until_ready((lin_vel, ang_vel))

    assert lin_vel.shape == (2,) and ang_vel.shape == (2,)
    lin_ref, ang_ref = reference_forward(canon, x)
    assert jnp.allclose(lin_vel, lin_ref, rtol=1e-3, atol=1e-3)
    assert jnp.allclose(ang_vel, ang_ref, rtol=1e-3, atol=1e-3)

    print("KERNEL_OK")
</pallas_src>

<mosaic_0001>
module attributes {stable_mosaic.version = 11 : i64} {
  func.func @kernel(%arg0: i32, %arg1: memref<1x1536x128xf32, #tpu.memory_space<vmem>>, %arg2: memref<3x8x24xf32, #tpu.memory_space<vmem>>, %arg3: memref<8x1xf32, #tpu.memory_space<vmem>>, %arg4: memref<3x16x24xf32, #tpu.memory_space<vmem>>, %arg5: memref<16x1xf32, #tpu.memory_space<vmem>>, %arg6: memref<3x32x48xf32, #tpu.memory_space<vmem>>, %arg7: memref<32x1xf32, #tpu.memory_space<vmem>>, %arg8: memref<3x32x96xf32, #tpu.memory_space<vmem>>, %arg9: memref<32x1xf32, #tpu.memory_space<vmem>>, %arg10: memref<3x64x96xf32, #tpu.memory_space<vmem>>, %arg11: memref<64x1xf32, #tpu.memory_space<vmem>>, %arg12: memref<3x64x192xf32, #tpu.memory_space<vmem>>, %arg13: memref<64x1xf32, #tpu.memory_space<vmem>>, %arg14: memref<128x512xf32, #tpu.memory_space<vmem>>, %arg15: memref<128x1xf32, #tpu.memory_space<vmem>>, %arg16: memref<2x128xf32, #tpu.memory_space<vmem>>, %arg17: memref<2x1xf32, #tpu.memory_space<vmem>>, %arg18: memref<1x1x2xf32, #tpu.memory_space<vmem>>, %arg19: memref<1520x128xf32, #tpu.memory_space<vmem>>, %arg20: memref<1504x128xf32, #tpu.memory_space<vmem>>, %arg21: memref<1472x128xf32, #tpu.memory_space<vmem>>, %arg22: memref<704x128xf32, #tpu.memory_space<vmem>>, %arg23: memref<640x128xf32, #tpu.memory_space<vmem>>, %arg24: memref<256x128xf32, #tpu.memory_space<vmem>>) attributes {dimension_semantics = [#tpu.dimension_semantics<parallel>], iteration_bounds = array<i64: 2>, scalar_prefetch = 0 : i64, scratch_operands = 6 : i64, tpu.core_type = #tpu.core_type<tc>, window_params = [{transform_indices = @transform_0, window_bounds = array<i64: 1, 1536, 128>}, {pipeline_mode = #tpu.pipeline_mode<synchronous>, transform_indices = @transform_1, window_bounds = array<i64: 3, 8, 24>}, {pipeline_mode = #tpu.pipeline_mode<synchronous>, transform_indices = @transform_2, window_bounds = array<i64: 8, 1>}, {pipeline_mode = #tpu.pipeline_mode<synchronous>, transform_indices = @transform_3, window_bounds = array<i64: 3, 16, 24>}, {pipeline_mode = #tpu.pipeline_mode<synchronous>, transform_indices = @transform_4, window_bounds = array<i64: 16, 1>}, {pipeline_mode = #tpu.pipeline_mode<synchronous>, transform_indices = @transform_5, window_bounds = array<i64: 3, 32, 48>}, {pipeline_mode = #tpu.pipeline_mode<synchronous>, transform_indices = @transform_6, window_bounds = array<i64: 32, 1>}, {pipeline_mode = #tpu.pipeline_mode<synchronous>, transform_indices = @transform_7, window_bounds = array<i64: 3, 32, 96>}, {pipeline_mode = #tpu.pipeline_mode<synchronous>, transform_indices = @transform_8, window_bounds = array<i64: 32, 1>}, {pipeline_mode = #tpu.pipeline_mode<synchronous>, transform_indices = @transform_9, window_bounds = array<i64: 3, 64, 96>}, {pipeline_mode = #tpu.pipeline_mode<synchronous>, transform_indices = @transform_10, window_bounds = array<i64: 64, 1>}, {pipeline_mode = #tpu.pipeline_mode<synchronous>, transform_indices = @transform_11, window_bounds = array<i64: 3, 64, 192>}, {pipeline_mode = #tpu.pipeline_mode<synchronous>, transform_indices = @transform_12, window_bounds = array<i64: 64, 1>}, {pipeline_mode = #tpu.pipeline_mode<synchronous>, transform_indices = @transform_13, window_bounds = array<i64: 128, 512>}, {pipeline_mode = #tpu.pipeline_mode<synchronous>, transform_indices = @transform_14, window_bounds = array<i64: 128, 1>}, {pipeline_mode = #tpu.pipeline_mode<synchronous>, transform_indices = @transform_15, window_bounds = array<i64: 2, 128>}, {pipeline_mode = #tpu.pipeline_mode<synchronous>, transform_indices = @transform_16, window_bounds = array<i64: 2, 1>}, {transform_indices = @transform_17, window_bounds = array<i64: 1, 1, 2>}]} {
    %c0 = arith.constant 0 : index
    %c0_0 = arith.constant 0 : index
    %c0_1 = arith.constant 0 : index
    %0 = vector.load %arg2[%c0, %c0_0, %c0_1] : memref<3x8x24xf32, #tpu.memory_space<vmem>>, vector<1x8x24xf32>
    %1 = vector.shape_cast %0 : vector<1x8x24xf32> to vector<8x24xf32>
    %c1 = arith.constant 1 : index
    %c0_2 = arith.constant 0 : index
    %c0_3 = arith.constant 0 : index
    %2 = vector.load %arg2[%c1, %c0_2, %c0_3] : memref<3x8x24xf32, #tpu.memory_space<vmem>>, vector<1x8x24xf32>
    %3 = vector.shape_cast %2 : vector<1x8x24xf32> to vector<8x24xf32>
    %c2 = arith.constant 2 : index
    %c0_4 = arith.constant 0 : index
    %c0_5 = arith.constant 0 : index
    %4 = vector.load %arg2[%c2, %c0_4, %c0_5] : memref<3x8x24xf32, #tpu.memory_space<vmem>>, vector<1x8x24xf32>
    %5 = vector.shape_cast %4 : vector<1x8x24xf32> to vector<8x24xf32>
    %c0_6 = arith.constant 0 : index
    %c0_7 = arith.constant 0 : index
    %6 = vector.load %arg3[%c0_6, %c0_7] : memref<8x1xf32, #tpu.memory_space<vmem>>, vector<8x1xf32>
    %c0_i32 = arith.constant 0 : i32
    %c190_i32 = arith.constant 190 : i32
    %7 = arith.addi %c0_i32, %c190_i32 : i32
    %c1_i32 = arith.constant 1 : i32
    scf.for %arg25 = %c0_i32 to %7 step %c1_i32  : i32 {
      %c8_i32 = arith.constant 8 : i32
      %139 = arith.muli %arg25, %c8_i32 : i32
      %c0_111 = arith.constant 0 : index
      %140 = arith.index_cast %139 : i32 to index
      %c0_112 = arith.constant 0 : index
      %141 = vector.load %arg1[%c0_111, %140, %c0_112] : memref<1x1536x128xf32, #tpu.memory_space<vmem>>, vector<1x24x126xf32>
      %142 = vector.shape_cast %141 : vector<1x24x126xf32> to vector<24x126xf32>
      %cst_113 = arith.constant dense<0.000000e+00> : vector<8x126xf32>
      %143 = tpu.matmul %1, %142, %cst_113 {dimension_numbers = #tpu.dot_dimension_numbers<[1], [0], [0], [1], [0, 0, 1, 1], [], []>} : vector<8x24xf32>, vector<24x126xf32>, vector<8x126xf32> -> vector<8x126xf32>
      %c0_114 = arith.constant 0 : index
      %144 = arith.index_cast %139 : i32 to index
      %c1_115 = arith.constant 1 : index
      %145 = vector.load %arg1[%c0_114, %144, %c1_115] : memref<1x1536x128xf32, #tpu.memory_space<vmem>>, vector<1x24x126xf32>
      %146 = vector.shape_cast %145 : vector<1x24x126xf32> to vector<24x126xf32>
      %cst_116 = arith.constant dense<0.000000e+00> : vector<8x126xf32>
      %147 = tpu.matmul %3, %146, %cst_116 {dimension_numbers = #tpu.dot_dimension_numbers<[1], [0], [0], [1], [0, 0, 1, 1], [], []>} : vector<8x24xf32>, vector<24x126xf32>, vector<8x126xf32> -> vector<8x126xf32>
      %148 = arith.addf %143, %147 : vector<8x126xf32>
      %c0_117 = arith.constant 0 : index
      %149 = arith.index_cast %139 : i32 to index
      %c2_118 = arith.constant 2 : index
      %150 = vector.load %arg1[%c0_117, %149, %c2_118] : memref<1x1536x128xf32, #tpu.memory_space<vmem>>, vector<1x24x126xf32>
      %151 = vector.shape_cast %150 : vector<1x24x126xf32> to vector<24x126xf32>
      %cst_119 = arith.constant dense<0.000000e+00> : vector<8x126xf32>
      %152 = tpu.matmul %5, %151, %cst_119 {dimension_numbers = #tpu.dot_dimension_numbers<[1], [0], [0], [1], [0, 0, 1, 1], [], []>} : vector<8x24xf32>, vector<24x126xf32>, vector<8x126xf32> -> vector<8x126xf32>
      %153 = arith.addf %148, %152 : vector<8x126xf32>
      %154 = vector.broadcast %6 : vector<8x1xf32> to vector<8x126xf32>
      %155 = arith.addf %153, %154 : vector<8x126xf32>
      %c8_i32_120 = arith.constant 8 : i32
      %156 = arith.muli %arg25, %c8_i32_120 : i32
      %157 = arith.index_cast %156 : i32 to index
      %c0_121 = arith.constant 0 : index
      %158 = vector.load %arg19[%157, %c0_121] : memref<1520x128xf32, #tpu.memory_space<vmem>>, vector<8x126xf32>
      tpu.vector_store %arg19[%157, %c0_121], %155 {strides = array<i32>} : memref<1520x128xf32, #tpu.memory_space<vmem>>, vector<8x126xf32>,
    }
    %c190_i32_8 = arith.constant 190 : i32
    %c0_9 = arith.constant 0 : index
    %c0_10 = arith.constant 0 : index
    %c0_11 = arith.constant 0 : index
    %8 = vector.load %arg4[%c0_9, %c0_10, %c0_11] : memref<3x16x24xf32, #tpu.memory_space<vmem>>, vector<1x16x24xf32>
    %9 = vector.shape_cast %8 : vector<1x16x24xf32> to vector<16x24xf32>
    %c1_12 = arith.constant 1 : index
    %c0_13 = arith.constant 0 : index
    %c0_14 = arith.constant 0 : index
    %10 = vector.load %arg4[%c1_12, %c0_13, %c0_14] : memref<3x16x24xf32, #tpu.memory_space<vmem>>, vector<1x16x24xf32>
    %11 = vector.shape_cast %10 : vector<1x16x24xf32> to vector<16x24xf32>
    %c2_15 = arith.constant 2 : index
    %c0_16 = arith.constant 0 : index
    %c0_17 = arith.constant 0 : index
    %12 = vector.load %arg4[%c2_15, %c0_16, %c0_17] : memref<3x16x24xf32, #tpu.memory_space<vmem>>, vector<1x16x24xf32>
    %13 = vector.shape_cast %12 : vector<1x16x24xf32> to vector<16x24xf32>
    %c0_18 = arith.constant 0 : index
    %c0_19 = arith.constant 0 : index
    %14 = vector.load %arg5[%c0_18, %c0_19] : memref<16x1xf32, #tpu.memory_space<vmem>>, vector<16x1xf32>
    %15 = tpu.iota {dimensions = array<i32: 0>} : vector<124x62xi32>
    %16 = tpu.iota {dimensions = array<i32: 1>} : vector<124x62xi32>
    %c2_i32 = arith.constant 2 : i32
    %17 = vector.broadcast %c2_i32 : i32 to vector<124x62xi32>
    %18 = arith.muli %17, %16 : vector<124x62xi32>
    %19 = arith.cmpi eq, %15, %18 : vector<124x62xi32>
    %20 = arith.extui %19 : vector<124x62xi1> to vector<124x62xi32>
    %21 = arith.sitofp %20 : vector<124x62xi32> to vector<124x62xf32>
    %c2_i32_20 = arith.constant 2 : i32
    %22 = vector.broadcast %c2_i32_20 : i32 to vector<124x62xi32>
    %23 = arith.muli %22, %16 : vector<124x62xi32>
    %c1_i32_21 = arith.constant 1 : i32
    %24 = vector.broadcast %c1_i32_21 : i32 to vector<124x62xi32>
    %25 = arith.addi %23, %24 : vector<124x62xi32>
    %26 = arith.cmpi eq, %15, %25 : vector<124x62xi32>
    %27 = arith.extui %26 : vector<124x62xi1> to vector<124x62xi32>
    %28 = arith.sitofp %27 : vector<124x62xi32> to vector<124x62xf32>
    %c0_i32_22 = arith.constant 0 : i32
    %c94_i32 = arith.constant 94 : i32
    %29 = arith.addi %c0_i32_22, %c94_i32 : i32
    %c1_i32_23 = arith.constant 1 : i32
    scf.for %arg25 = %c0_i32_22 to %29 step %c1_i32_23  : i32 {
      %c2_i32_111 = arith.constant 2 : i32
      %139 = arith.muli %c2_i32_111, %arg25 : i32
      %c8_i32 = arith.constant 8 : i32
      %140 = arith.muli %139, %c8_i32 : i32
      %141 = arith.index_cast %140 : i32 to index
      %c0_112 = arith.constant 0 : index
      %142 = vector.load %arg19[%141, %c0_112] : memref<1520x128xf32, #tpu.memory_space<vmem>>, vector<24x124xf32>
      %cst_113 = arith.constant dense<0.000000e+00> : vector<16x124xf32>
      %143 = tpu.matmul %9, %142, %cst_113 {dimension_numbers = #tpu.dot_dimension_numbers<[1], [0], [0], [1], [0, 0, 1, 1], [], []>} : vector<16x24xf32>, vector<24x124xf32>, vector<16x124xf32> -> vector<16x124xf32>
      %144 = arith.index_cast %140 : i32 to index
      %c1_114 = arith.constant 1 : index
      %145 = vector.load %arg19[%144, %c1_114] : memref<1520x128xf32, #tpu.memory_space<vmem>>, vector<24x124xf32>
      %cst_115 = arith.constant dense<0.000000e+00> : vector<16x124xf32>
      %146 = tpu.matmul %11, %145, %cst_115 {dimension_numbers = #tpu.dot_dimension_numbers<[1], [0], [0], [1], [0, 0, 1, 1], [], []>} : vector<16x24xf32>, vector<24x124xf32>, vector<16x124xf32> -> vector<16x124xf32>
      %147 = arith.addf %143, %146 : vector<16x124xf32>
      %148 = arith.index_cast %140 : i32 to index
      %c2_116 = arith.constant 2 : index
      %149 = vector.load %arg19[%148, %c2_116] : memref<1520x128xf32, #tpu.memory_space<vmem>>, vector<24x124xf32>
      %cst_117 = arith.constant dense<0.000000e+00> : vector<16x124xf32>
      %150 = tpu.matmul %13, %149, %cst_117 {dimension_numbers = #tpu.dot_dimension_numbers<[1], [0], [0], [1], [0, 0, 1, 1], [], []>} : vector<16x24xf32>, vector<24x124xf32>, vector<16x124xf32> -> vector<16x124xf32>
      %151 = arith.addf %147, %150 : vector<16x124xf32>
      %152 = vector.broadcast %14 : vector<16x1xf32> to vector<16x124xf32>
      %153 = arith.addf %151, %152 : vector<16x124xf32>
      %c2_i32_118 = arith.constant 2 : i32
      %154 = arith.muli %c2_i32_118, %arg25 : i32
      %c1_i32_119 = arith.constant 1 : i32
      %155 = arith.addi %154, %c1_i32_119 : i32
      %c8_i32_120 = arith.constant 8 : i32
      %156 = arith.muli %155, %c8_i32_120 : i32
      %157 = arith.index_cast %156 : i32 to index
      %c0_121 = arith.constant 0 : index
      %158 = vector.load %arg19[%157, %c0_121] : memref<1520x128xf32, #tpu.memory_space<vmem>>, vector<24x124xf32>
      %cst_122 = arith.constant dense<0.000000e+00> : vector<16x124xf32>
      %159 = tpu.matmul %9, %158, %cst_122 {dimension_numbers = #tpu.dot_dimension_numbers<[1], [0], [0], [1], [0, 0, 1, 1], [], []>} : vector<16x24xf32>, vector<24x124xf32>, vector<16x124xf32> -> vector<16x124xf32>
      %160 = arith.index_cast %156 : i32 to index
      %c1_123 = arith.constant 1 : index
      %161 = vector.load %arg19[%160, %c1_123] : memref<1520x128xf32, #tpu.memory_space<vmem>>, vector<24x124xf32>
      %cst_124 = arith.constant dense<0.000000e+00> : vector<16x124xf32>
      %162 = tpu.matmul %11, %161, %cst_124 {dimension_numbers = #tpu.dot_dimension_numbers<[1], [0], [0], [1], [0, 0, 1, 1], [], []>} : vector<16x24xf32>, vector<24x124xf32>, vector<16x124xf32> -> vector<16x124xf32>
      %163 = arith.addf %159, %162 : vector<16x124xf32>
      %164 = arith.index_cast %156 : i32 to index
      %c2_125 = arith.constant 2 : index
      %165 = vector.load %arg19[%164, %c2_125] : memref<1520x128xf32, #tpu.memory_space<vmem>>, vector<24x124xf32>
      %cst_126 = arith.constant dense<0.000000e+00> : vector<16x124xf32>
      %166 = tpu.matmul %13, %165, %cst_126 {dimension_numbers = #tpu.dot_dimension_numbers<[1], [0], [0], [1], [0, 0, 1, 1], [], []>} : vector<16x24xf32>, vector<24x124xf32>, vector<16x124xf32> -> vector<16x124xf32>
      %167 = arith.addf %163, %166 : vector<16x124xf32>
      %168 = vector.broadcast %14 : vector<16x1xf32> to vector<16x124xf32>
      %169 = arith.addf %167, %168 : vector<16x124xf32>
      %170 = arith.maximumf %153, %169 : vector<16x124xf32>
      %cst_127 = arith.constant dense<0.000000e+00> : vector<16x62xf32>
      %171 = tpu.matmul %170, %21, %cst_127 {dimension_numbers = #tpu.dot_dimension_numbers<[1], [0], [0], [1], [0, 0, 1, 1], [], []>} : vector<16x124xf32>, vector<124x62xf32>, vector<16x62xf32> -> vector<16x62xf32>
      %cst_128 = arith.constant dense<0.000000e+00> : vector<16x62xf32>
      %172 = tpu.matmul %170, %28, %cst_128 {dimension_numbers = #tpu.dot_dimension_numbers<[1], [0], [0], [1], [0, 0, 1, 1], [], []>} : vector<16x124xf32>, vector<124x62xf32>, vector<16x62xf32> -> vector<16x62xf32>
      %173 = arith.maximumf %171, %172 : vector<16x62xf32>
      %cst_129 = arith.constant 0.000000e+00 : f32
      %174 = vector.broadcast %cst_129 : f32 to vector<16x62xf32>
      %175 = arith.maximumf %173, %174 : vector<16x62xf32>
      %c16_i32 = arith.constant 16 : i32
      %176 = arith.muli %arg25, %c16_i32 : i32
      %177 = arith.index_cast %176 : i32 to index
      %c0_130 = arith.constant 0 : index
      %178 = vector.load %arg20[%177, %c0_130] : memref<1504x128xf32, #tpu.memory_space<vmem>>, vector<16x62xf32>
      tpu.vector_store %arg20[%177, %c0_130], %175 {strides = array<i32>} : memref<1504x128xf32, #tpu.memory_space<vmem>>, vector<16x62xf32>,
    }
    %c94_i32_24 = arith.constant 94 : i32
    %c0_25 = arith.constant 0 : index
    %c0_26 = arith.constant 0 : index
    %c0_27 = arith.constant 0 : index
    %30 = vector.load %arg6[%c0_25, %c0_26, %c0_27] : memref<3x32x48xf32, #tpu.memory_space<vmem>>, vector<1x32x48xf32>
    %31 = vector.shape_cast %30 : vector<1x32x48xf32> to vector<32x48xf32>
    %c1_28 = arith.constant 1 : index
    %c0_29 = arith.constant 0 : index
    %c0_30 = arith.constant 0 : index
    %32 = vector.load %arg6[%c1_28, %c0_29, %c0_30] : memref<3x32x48xf32, #tpu.memory_space<vmem>>, vector<1x32x48xf32>
    %33 = vector.shape_cast %32 : vector<1x32x48xf32> to vector<32x48xf32>
    %c2_31 = arith.constant 2 : index
    %c0_32 = arith.constant 0 : index
    %c0_33 = arith.constant 0 : index
    %34 = vector.load %arg6[%c2_31, %c0_32, %c0_33] : memref<3x32x48xf32, #tpu.memory_space<vmem>>, vector<1x32x48xf32>
    %35 = vector.shape_cast %34 : vector<1x32x48xf32> to vector<32x48xf32>
    %c0_34 = arith.constant 0 : index
    %c0_35 = arith.constant 0 : index
    %36 = vector.load %arg7[%c0_34, %c0_35] : memref<32x1xf32, #tpu.memory_space<vmem>>, vector<32x1xf32>
    %37 = tpu.iota {dimensions = array<i32: 0>} : vector<60x30xi32>
    %38 = tpu.iota {dimensions = array<i32: 1>} : vector<60x30xi32>
    %c2_i32_36 = arith.constant 2 : i32
    %39 = vector.broadcast %c2_i32_36 : i32 to vector<60x30xi32>
    %40 = arith.muli %39, %38 : vector<60x30xi32>
    %41 = arith.cmpi eq, %37, %40 : vector<60x30xi32>
    %42 = arith.extui %41 : vector<60x30xi1> to vector<60x30xi32>
    %43 = arith.sitofp %42 : vector<60x30xi32> to vector<60x30xf32>
    %c2_i32_37 = arith.constant 2 : i32
    %44 = vector.broadcast %c2_i32_37 : i32 to vector<60x30xi32>
    %45 = arith.muli %44, %38 : vector<60x30xi32>
    %c1_i32_38 = arith.constant 1 : i32
    %46 = vector.broadcast %c1_i32_38 : i32 to vector<60x30xi32>
    %47 = arith.addi %45, %46 : vector<60x30xi32>
    %48 = arith.cmpi eq, %37, %47 : vector<60x30xi32>
    %49 = arith.extui %48 : vector<60x30xi1> to vector<60x30xi32>
    %50 = arith.sitofp %49 : vector<60x30xi32> to vector<60x30xf32>
    %c0_i32_39 = arith.constant 0 : i32
    %c46_i32 = arith.constant 46 : i32
    %51 = arith.addi %c0_i32_39, %c46_i32 : i32
    %c1_i32_40 = arith.constant 1 : i32
    scf.for %arg25 = %c0_i32_39 to %51 step %c1_i32_40  : i32 {
      %c2_i32_111 = arith.constant 2 : i32
      %139 = arith.muli %c2_i32_111, %arg25 : i32
      %c16_i32 = arith.constant 16 : i32
      %140 = arith.muli %139, %c16_i32 : i32
      %141 = arith.index_cast %140 : i32 to index
      %c0_112 = arith.constant 0 : index
      %142 = vector.load %arg20[%141, %c0_112] : memref<1504x128xf32, #tpu.memory_space<vmem>>, vector<48x60xf32>
      %cst_113 = arith.constant dense<0.000000e+00> : vector<32x60xf32>
      %143 = tpu.matmul %31, %142, %cst_113 {dimension_numbers = #tpu.dot_dimension_numbers<[1], [0], [0], [1], [0, 0, 1, 1], [], []>} : vector<32x48xf32>, vector<48x60xf32>, vector<32x60xf32> -> vector<32x60xf32>
      %144 = arith.index_cast %140 : i32 to index
      %c1_114 = arith.constant 1 : index
      %145 = vector.load %arg20[%144, %c1_114] : memref<1504x128xf32, #tpu.memory_space<vmem>>, vector<48x60xf32>
      %cst_115 = arith.constant dense<0.000000e+00> : vector<32x60xf32>
      %146 = tpu.matmul %33, %145, %cst_115 {dimension_numbers = #tpu.dot_dimension_numbers<[1], [0], [0], [1], [0, 0, 1, 1], [], []>} : vector<32x48xf32>, vector<48x60xf32>, vector<32x60xf32> -> vector<32x60xf32>
      %147 = arith.addf %143, %146 : vector<32x60xf32>
      %148 = arith.index_cast %140 : i32 to index
      %c2_116 = arith.constant 2 : index
      %149 = vector.load %arg20[%148, %c2_116] : memref<1504x128xf32, #tpu.memory_space<vmem>>, vector<48x60xf32>
      %cst_117 = arith.constant dense<0.000000e+00> : vector<32x60xf32>
      %150 = tpu.matmul %35, %149, %cst_117 {dimension_numbers = #tpu.dot_dimension_numbers<[1], [0], [0], [1], [0, 0, 1, 1], [], []>} : vector<32x48xf32>, vector<48x60xf32>, vector<32x60xf32> -> vector<32x60xf32>
      %151 = arith.addf %147, %150 : vector<32x60xf32>
      %152 = vector.broadcast %36 : vector<32x1xf32> to vector<32x60xf32>
      %153 = arith.addf %151, %152 : vector<32x60xf32>
      %c2_i32_118 = arith.constant 2 : i32
      %154 = arith.muli %c2_i32_118, %arg25 : i32
      %c1_i32_119 = arith.constant 1 : i32
      %155 = arith.addi %154, %c1_i32_119 : i32
      %c16_i32_120 = arith.constant 16 : i32
      %156 = arith.muli %155, %c16_i32_120 : i32
      %157 = arith.index_cast %156 : i32 to index
      %c0_121 = arith.constant 0 : index
      %158 = vector.load %arg20[%157, %c0_121] : memref<1504x128xf32, #tpu.memory_space<vmem>>, vector<48x60xf32>
      %cst_122 = arith.constant dense<0.000000e+00> : vector<32x60xf32>
      %159 = tpu.matmul %31, %158, %cst_122 {dimension_numbers = #tpu.dot_dimension_numbers<[1], [0], [0], [1], [0, 0, 1, 1], [], []>} : vector<32x48xf32>, vector<48x60xf32>, vector<32x60xf32> -> vector<32x60xf32>
      %160 = arith.index_cast %156 : i32 to index
      %c1_123 = arith.constant 1 : index
      %161 = vector.load %arg20[%160, %c1_123] : memref<1504x128xf32, #tpu.memory_space<vmem>>, vector<48x60xf32>
      %cst_124 = arith.constant dense<0.000000e+00> : vector<32x60xf32>
      %162 = tpu.matmul %33, %161, %cst_124 {dimension_numbers = #tpu.dot_dimension_numbers<[1], [0], [0], [1], [0, 0, 1, 1], [], []>} : vector<32x48xf32>, vector<48x60xf32>, vector<32x60xf32> -> vector<32x60xf32>
      %163 = arith.addf %159, %162 : vector<32x60xf32>
      %164 = arith.index_cast %156 : i32 to index
      %c2_125 = arith.constant 2 : index
      %165 = vector.load %arg20[%164, %c2_125] : memref<1504x128xf32, #tpu.memory_space<vmem>>, vector<48x60xf32>
      %cst_126 = arith.constant dense<0.000000e+00> : vector<32x60xf32>
      %166 = tpu.matmul %35, %165, %cst_126 {dimension_numbers = #tpu.dot_dimension_numbers<[1], [0], [0], [1], [0, 0, 1, 1], [], []>} : vector<32x48xf32>, vector<48x60xf32>, vector<32x60xf32> -> vector<32x60xf32>
      %167 = arith.addf %163, %166 : vector<32x60xf32>
      %168 = vector.broadcast %36 : vector<32x1xf32> to vector<32x60xf32>
      %169 = arith.addf %167, %168 : vector<32x60xf32>
      %170 = arith.maximumf %153, %169 : vector<32x60xf32>
      %cst_127 = arith.constant dense<0.000000e+00> : vector<32x30xf32>
      %171 = tpu.matmul %170, %43, %cst_127 {dimension_numbers = #tpu.dot_dimension_numbers<[1], [0], [0], [1], [0, 0, 1, 1], [], []>} : vector<32x60xf32>, vector<60x30xf32>, vector<32x30xf32> -> vector<32x30xf32>
      %cst_128 = arith.constant dense<0.000000e+00> : vector<32x30xf32>
      %172 = tpu.matmul %170, %50, %cst_128 {dimension_numbers = #tpu.dot_dimension_numbers<[1], [0], [0], [1], [0, 0, 1, 1], [], []>} : vector<32x60xf32>, vector<60x30xf32>, vector<32x30xf32> -> vector<32x30xf32>
      %173 = arith.maximumf %171, %172 : vector<32x30xf32>
      %cst_129 = arith.constant 0.000000e+00 : f32
      %174 = vector.broadcast %cst_129 : f32 to vector<32x30xf32>
      %175 = arith.maximumf %173, %174 : vector<32x30xf32>
      %c32_i32 = arith.constant 32 : i32
      %176 = arith.muli %arg25, %c32_i32 : i32
      %177 = arith.index_cast %176 : i32 to index
      %c0_130 = arith.constant 0 : index
      %178 = vector.load %arg21[%177, %c0_130] : memref<1472x128xf32, #tpu.memory_space<vmem>>, vector<32x30xf32>
      tpu.vector_store %arg21[%177, %c0_130], %175 {strides = array<i32>} : memref<1472x128xf32, #tpu.memory_space<vmem>>, vector<32x30xf32>,
    }
    %c46_i32_41 = arith.constant 46 : i32
    %c0_42 = arith.constant 0 : index
    %c0_43 = arith.constant 0 : index
    %c0_44 = arith.constant 0 : index
    %52 = vector.load %arg8[%c0_42, %c0_43, %c0_44] : memref<3x32x96xf32, #tpu.memory_space<vmem>>, vector<1x32x96xf32>
    %53 = vector.shape_cast %52 : vector<1x32x96xf32> to vector<32x96xf32>
    %c1_45 = arith.constant 1 : index
    %c0_46 = arith.constant 0 : index
    %c0_47 = arith.constant 0 : index
    %54 = vector.load %arg8[%c1_45, %c0_46, %c0_47] : memref<3x32x96xf32, #tpu.memory_space<vmem>>, vector<1x32x96xf32>
    %55 = vector.shape_cast %54 : vector<1x32x96xf32> to vector<32x96xf32>
    %c2_48 = arith.constant 2 : index
    %c0_49 = arith.constant 0 : index
    %c0_50 = arith.constant 0 : index
    %56 = vector.load %arg8[%c2_48, %c0_49, %c0_50] : memref<3x32x96xf32, #tpu.memory_space<vmem>>, vector<1x32x96xf32>
    %57 = vector.shape_cast %56 : vector<1x32x96xf32> to vector<32x96xf32>
    %c0_51 = arith.constant 0 : index
    %c0_52 = arith.constant 0 : index
    %58 = vector.load %arg9[%c0_51, %c0_52] : memref<32x1xf32, #tpu.memory_space<vmem>>, vector<32x1xf32>
    %59 = tpu.iota {dimensions = array<i32: 0>} : vector<28x14xi32>
    %60 = tpu.iota {dimensions = array<i32: 1>} : vector<28x14xi32>
    %c2_i32_53 = arith.constant 2 : i32
    %61 = vector.broadcast %c2_i32_53 : i32 to vector<28x14xi32>
    %62 = arith.muli %61, %60 : vector<28x14xi32>
    %63 = arith.cmpi eq, %59, %62 : vector<28x14xi32>
    %64 = arith.extui %63 : vector<28x14xi1> to vector<28x14xi32>
    %65 = arith.sitofp %64 : vector<28x14xi32> to vector<28x14xf32>
    %c2_i32_54 = arith.constant 2 : i32
    %66 = vector.broadcast %c2_i32_54 : i32 to vector<28x14xi32>
    %67 = arith.muli %66, %60 : vector<28x14xi32>
    %c1_i32_55 = arith.constant 1 : i32
    %68 = vector.broadcast %c1_i32_55 : i32 to vector<28x14xi32>
    %69 = arith.addi %67, %68 : vector<28x14xi32>
    %70 = arith.cmpi eq, %59, %69 : vector<28x14xi32>
    %71 = arith.extui %70 : vector<28x14xi1> to vector<28x14xi32>
    %72 = arith.sitofp %71 : vector<28x14xi32> to vector<28x14xf32>
    %c0_i32_56 = arith.constant 0 : i32
    %c22_i32 = arith.constant 22 : i32
    %73 = arith.addi %c0_i32_56, %c22_i32 : i32
    %c1_i32_57 = arith.constant 1 : i32
    scf.for %arg25 = %c0_i32_56 to %73 step %c1_i32_57  : i32 {
      %c2_i32_111 = arith.constant 2 : i32
      %139 = arith.muli %c2_i32_111, %arg25 : i32
      %c32_i32 = arith.constant 32 : i32
      %140 = arith.muli %139, %c32_i32 : i32
      %141 = arith.index_cast %140 : i32 to index
      %c0_112 = arith.constant 0 : index
      %142 = vector.load %arg21[%141, %c0_112] : memref<1472x128xf32, #tpu.memory_space<vmem>>, vector<96x28xf32>
      %cst_113 = arith.constant dense<0.000000e+00> : vector<32x28xf32>
      %143 = tpu.matmul %53, %142, %cst_113 {dimension_numbers = #tpu.dot_dimension_numbers<[1], [0], [0], [1], [0, 0, 1, 1], [], []>} : vector<32x96xf32>, vector<96x28xf32>, vector<32x28xf32> -> vector<32x28xf32>
      %144 = arith.index_cast %140 : i32 to index
      %c1_114 = arith.constant 1 : index
      %145 = vector.load %arg21[%144, %c1_114] : memref<1472x128xf32, #tpu.memory_space<vmem>>, vector<96x28xf32>
      %cst_115 = arith.constant dense<0.000000e+00> : vector<32x28xf32>
      %146 = tpu.matmul %55, %145, %cst_115 {dimension_numbers = #tpu.dot_dimension_numbers<[1], [0], [0], [1], [0, 0, 1, 1], [], []>} : vector<32x96xf32>, vector<96x28xf32>, vector<32x28xf32> -> vector<32x28xf32>
      %147 = arith.addf %143, %146 : vector<32x28xf32>
      %148 = arith.index_cast %140 : i32 to index
      %c2_116 = arith.constant 2 : index
      %149 = vector.load %arg21[%148, %c2_116] : memref<1472x128xf32, #tpu.memory_space<vmem>>, vector<96x28xf32>
      %cst_117 = arith.constant dense<0.000000e+00> : vector<32x28xf32>
      %150 = tpu.matmul %57, %149, %cst_117 {dimension_numbers = #tpu.dot_dimension_numbers<[1], [0], [0], [1], [0, 0, 1, 1], [], []>} : vector<32x96xf32>, vector<96x28xf32>, vector<32x28xf32> -> vector<32x28xf32>
      %151 = arith.addf %147, %150 : vector<32x28xf32>
      %152 = vector.broadcast %58 : vector<32x1xf32> to vector<32x28xf32>
      %153 = arith.addf %151, %152 : vector<32x28xf32>
      %c2_i32_118 = arith.constant 2 : i32
      %154 = arith.muli %c2_i32_118, %arg25 : i32
      %c1_i32_119 = arith.constant 1 : i32
      %155 = arith.addi %154, %c1_i32_119 : i32
      %c32_i32_120 = arith.constant 32 : i32
      %156 = arith.muli %155, %c32_i32_120 : i32
      %157 = arith.index_cast %156 : i32 to index
      %c0_121 = arith.constant 0 : index
      %158 = vector.load %arg21[%157, %c0_121] : memref<1472x128xf32, #tpu.memory_space<vmem>>, vector<96x28xf32>
      %cst_122 = arith.constant dense<0.000000e+00> : vector<32x28xf32>
      %159 = tpu.matmul %53, %158, %cst_122 {dimension_numbers = #tpu.dot_dimension_numbers<[1], [0], [0], [1], [0, 0, 1, 1], [], []>} : vector<32x96xf32>, vector<96x28xf32>, vector<32x28xf32> -> vector<32x28xf32>
      %160 = arith.index_cast %156 : i32 to index
      %c1_123 = arith.constant 1 : index
      %161 = vector.load %arg21[%160, %c1_123] : memref<1472x128xf32, #tpu.memory_space<vmem>>, vector<96x28xf32>
      %cst_124 = arith.constant dense<0.000000e+00> : vector<32x28xf32>
      %162 = tpu.matmul %55, %161, %cst_124 {dimension_numbers = #tpu.dot_dimension_numbers<[1], [0], [0], [1], [0, 0, 1, 1], [], []>} : vector<32x96xf32>, vector<96x28xf32>, vector<32x28xf32> -> vector<32x28xf32>
      %163 = arith.addf %159, %162 : vector<32x28xf32>
      %164 = arith.index_cast %156 : i32 to index
      %c2_125 = arith.constant 2 : index
      %165 = vector.load %arg21[%164, %c2_125] : memref<1472x128xf32, #tpu.memory_space<vmem>>, vector<96x28xf32>
      %cst_126 = arith.constant dense<0.000000e+00> : vector<32x28xf32>
      %166 = tpu.matmul %57, %165, %cst_126 {dimension_numbers = #tpu.dot_dimension_numbers<[1], [0], [0], [1], [0, 0, 1, 1], [], []>} : vector<32x96xf32>, vector<96x28xf32>, vector<32x28xf32> -> vector<32x28xf32>
      %167 = arith.addf %163, %166 : vector<32x28xf32>
      %168 = vector.broadcast %58 : vector<32x1xf32> to vector<32x28xf32>
      %169 = arith.addf %167, %168 : vector<32x28xf32>
      %170 = arith.maximumf %153, %169 : vector<32x28xf32>
      %cst_127 = arith.constant dense<0.000000e+00> : vector<32x14xf32>
      %171 = tpu.matmul %170, %65, %cst_127 {dimension_numbers = #tpu.dot_dimension_numbers<[1], [0], [0], [1], [0, 0, 1, 1], [], []>} : vector<32x28xf32>, vector<28x14xf32>, vector<32x14xf32> -> vector<32x14xf32>
      %cst_128 = arith.constant dense<0.000000e+00> : vector<32x14xf32>
      %172 = tpu.matmul %170, %72, %cst_128 {dimension_numbers = #tpu.dot_dimension_numbers<[1], [0], [0], [1], [0, 0, 1, 1], [], []>} : vector<32x28xf32>, vector<28x14xf32>, vector<32x14xf32> -> vector<32x14xf32>
      %173 = arith.maximumf %171, %172 : vector<32x14xf32>
      %cst_129 = arith.constant 0.000000e+00 : f32
      %174 = vector.broadcast %cst_129 : f32 to vector<32x14xf32>
      %175 = arith.maximumf %173, %174 : vector<32x14xf32>
      %c32_i32_130 = arith.constant 32 : i32
      %176 = arith.muli %arg25, %c32_i32_130 : i32
      %177 = arith.index_cast %176 : i32 to index
      %c0_131 = arith.constant 0 : index
      %178 = vector.load %arg22[%177, %c0_131] : memref<704x128xf32, #tpu.memory_space<vmem>>, vector<32x14xf32>
      tpu.vector_store %arg22[%177, %c0_131], %175 {strides = array<i32>} : memref<704x128xf32, #tpu.memory_space<vmem>>, vector<32x14xf32>,
    }
    %c22_i32_58 = arith.constant 22 : i32
    %c0_59 = arith.constant 0 : index
    %c0_60 = arith.constant 0 : index
    %c0_61 = arith.constant 0 : index
    %74 = vector.load %arg10[%c0_59, %c0_60, %c0_61] : memref<3x64x96xf32, #tpu.memory_space<vmem>>, vector<1x64x96xf32>
    %75 = vector.shape_cast %74 : vector<1x64x96xf32> to vector<64x96xf32>
    %c1_62 = arith.constant 1 : index
    %c0_63 = arith.constant 0 : index
    %c0_64 = arith.constant 0 : index
    %76 = vector.load %arg10[%c1_62, %c0_63, %c0_64] : memref<3x64x96xf32, #tpu.memory_space<vmem>>, vector<1x64x96xf32>
    %77 = vector.shape_cast %76 : vector<1x64x96xf32> to vector<64x96xf32>
    %c2_65 = arith.constant 2 : index
    %c0_66 = arith.constant 0 : index
    %c0_67 = arith.constant 0 : index
    %78 = vector.load %arg10[%c2_65, %c0_66, %c0_67] : memref<3x64x96xf32, #tpu.memory_space<vmem>>, vector<1x64x96xf32>
    %79 = vector.shape_cast %78 : vector<1x64x96xf32> to vector<64x96xf32>
    %c0_68 = arith.constant 0 : index
    %c0_69 = arith.constant 0 : index
    %80 = vector.load %arg11[%c0_68, %c0_69] : memref<64x1xf32, #tpu.memory_space<vmem>>, vector<64x1xf32>
    %81 = tpu.iota {dimensions = array<i32: 0>} : vector<12x6xi32>
    %82 = tpu.iota {dimensions = array<i32: 1>} : vector<12x6xi32>
    %c2_i32_70 = arith.constant 2 : i32
    %83 = vector.broadcast %c2_i32_70 : i32 to vector<12x6xi32>
    %84 = arith.muli %83, %82 : vector<12x6xi32>
    %85 = arith.cmpi eq, %81, %84 : vector<12x6xi32>
    %86 = arith.extui %85 : vector<12x6xi1> to vector<12x6xi32>
    %87 = arith.sitofp %86 : vector<12x6xi32> to vector<12x6xf32>
    %c2_i32_71 = arith.constant 2 : i32
    %88 = vector.broadcast %c2_i32_71 : i32 to vector<12x6xi32>
    %89 = arith.muli %88, %82 : vector<12x6xi32>
    %c1_i32_72 = arith.constant 1 : i32
    %90 = vector.broadcast %c1_i32_72 : i32 to vector<12x6xi32>
    %91 = arith.addi %89, %90 : vector<12x6xi32>
    %92 = arith.cmpi eq, %81, %91 : vector<12x6xi32>
    %93 = arith.extui %92 : vector<12x6xi1> to vector<12x6xi32>
    %94 = arith.sitofp %93 : vector<12x6xi32> to vector<12x6xf32>
    %c0_i32_73 = arith.constant 0 : i32
    %c10_i32 = arith.constant 10 : i32
    %95 = arith.addi %c0_i32_73, %c10_i32 : i32
    %c1_i32_74 = arith.constant 1 : i32
    scf.for %arg25 = %c0_i32_73 to %95 step %c1_i32_74  : i32 {
      %c2_i32_111 = arith.constant 2 : i32
      %139 = arith.muli %c2_i32_111, %arg25 : i32
      %c32_i32 = arith.constant 32 : i32
      %140 = arith.muli %139, %c32_i32 : i32
      %141 = arith.index_cast %140 : i32 to index
      %c0_112 = arith.constant 0 : index
      %142 = vector.load %arg22[%141, %c0_112] : memref<704x128xf32, #tpu.memory_space<vmem>>, vector<96x12xf32>
      %cst_113 = arith.constant dense<0.000000e+00> : vector<64x12xf32>
      %143 = tpu.matmul %75, %142, %cst_113 {dimension_numbers = #tpu.dot_dimension_numbers<[1], [0], [0], [1], [0, 0, 1, 1], [], []>} : vector<64x96xf32>, vector<96x12xf32>, vector<64x12xf32> -> vector<64x12xf32>
      %144 = arith.index_cast %140 : i32 to index
      %c1_114 = arith.constant 1 : index
      %145 = vector.load %arg22[%144, %c1_114] : memref<704x128xf32, #tpu.memory_space<vmem>>, vector<96x12xf32>
      %cst_115 = arith.constant dense<0.000000e+00> : vector<64x12xf32>
      %146 = tpu.matmul %77, %145, %cst_115 {dimension_numbers = #tpu.dot_dimension_numbers<[1], [0], [0], [1], [0, 0, 1, 1], [], []>} : vector<64x96xf32>, vector<96x12xf32>, vector<64x12xf32> -> vector<64x12xf32>
      %147 = arith.addf %143, %146 : vector<64x12xf32>
      %148 = arith.index_cast %140 : i32 to index
      %c2_116 = arith.constant 2 : index
      %149 = vector.load %arg22[%148, %c2_116] : memref<704x128xf32, #tpu.memory_space<vmem>>, vector<96x12xf32>
      %cst_117 = arith.constant dense<0.000000e+00> : vector<64x12xf32>
      %150 = tpu.matmul %79, %149, %cst_117 {dimension_numbers = #tpu.dot_dimension_numbers<[1], [0], [0], [1], [0, 0, 1, 1], [], []>} : vector<64x96xf32>, vector<96x12xf32>, vector<64x12xf32> -> vector<64x12xf32>
      %151 = arith.addf %147, %150 : vector<64x12xf32>
      %152 = vector.broadcast %80 : vector<64x1xf32> to vector<64x12xf32>
      %153 = arith.addf %151, %152 : vector<64x12xf32>
      %c2_i32_118 = arith.constant 2 : i32
      %154 = arith.muli %c2_i32_118, %arg25 : i32
      %c1_i32_119 = arith.constant 1 : i32
      %155 = arith.addi %154, %c1_i32_119 : i32
      %c32_i32_120 = arith.constant 32 : i32
      %156 = arith.muli %155, %c32_i32_120 : i32
      %157 = arith.index_cast %156 : i32 to index
      %c0_121 = arith.constant 0 : index
      %158 = vector.load %arg22[%157, %c0_121] : memref<704x128xf32, #tpu.memory_space<vmem>>, vector<96x12xf32>
      %cst_122 = arith.constant dense<0.000000e+00> : vector<64x12xf32>
      %159 = tpu.matmul %75, %158, %cst_122 {dimension_numbers = #tpu.dot_dimension_numbers<[1], [0], [0], [1], [0, 0, 1, 1], [], []>} : vector<64x96xf32>, vector<96x12xf32>, vector<64x12xf32> -> vector<64x12xf32>
      %160 = arith.index_cast %156 : i32 to index
      %c1_123 = arith.constant 1 : index
      %161 = vector.load %arg22[%160, %c1_123] : memref<704x128xf32, #tpu.memory_space<vmem>>, vector<96x12xf32>
      %cst_124 = arith.constant dense<0.000000e+00> : vector<64x12xf32>
      %162 = tpu.matmul %77, %161, %cst_124 {dimension_numbers = #tpu.dot_dimension_numbers<[1], [0], [0], [1], [0, 0, 1, 1], [], []>} : vector<64x96xf32>, vector<96x12xf32>, vector<64x12xf32> -> vector<64x12xf32>
      %163 = arith.addf %159, %162 : vector<64x12xf32>
      %164 = arith.index_cast %156 : i32 to index
      %c2_125 = arith.constant 2 : index
      %165 = vector.load %arg22[%164, %c2_125] : memref<704x128xf32, #tpu.memory_space<vmem>>, vector<96x12xf32>
      %cst_126 = arith.constant dense<0.000000e+00> : vector<64x12xf32>
      %166 = tpu.matmul %79, %165, %cst_126 {dimension_numbers = #tpu.dot_dimension_numbers<[1], [0], [0], [1], [0, 0, 1, 1], [], []>} : vector<64x96xf32>, vector<96x12xf32>, vector<64x12xf32> -> vector<64x12xf32>
      %167 = arith.addf %163, %166 : vector<64x12xf32>
      %168 = vector.broadcast %80 : vector<64x1xf32> to vector<64x12xf32>
      %169 = arith.addf %167, %168 : vector<64x12xf32>
      %170 = arith.maximumf %153, %169 : vector<64x12xf32>
      %cst_127 = arith.constant dense<0.000000e+00> : vector<64x6xf32>
      %171 = tpu.matmul %170, %87, %cst_127 {dimension_numbers = #tpu.dot_dimension_numbers<[1], [0], [0], [1], [0, 0, 1, 1], [], []>} : vector<64x12xf32>, vector<12x6xf32>, vector<64x6xf32> -> vector<64x6xf32>
      %cst_128 = arith.constant dense<0.000000e+00> : vector<64x6xf32>
      %172 = tpu.matmul %170, %94, %cst_128 {dimension_numbers = #tpu.dot_dimension_numbers<[1], [0], [0], [1], [0, 0, 1, 1], [], []>} : vector<64x12xf32>, vector<12x6xf32>, vector<64x6xf32> -> vector<64x6xf32>
      %173 = arith.maximumf %171, %172 : vector<64x6xf32>
      %cst_129 = arith.constant 0.000000e+00 : f32
      %174 = vector.broadcast %cst_129 : f32 to vector<64x6xf32>
      %175 = arith.maximumf %173, %174 : vector<64x6xf32>
      %c64_i32 = arith.constant 64 : i32
      %176 = arith.muli %arg25, %c64_i32 : i32
      %177 = arith.index_cast %176 : i32 to index
      %c0_130 = arith.constant 0 : index
      %178 = vector.load %arg23[%177, %c0_130] : memref<640x128xf32, #tpu.memory_space<vmem>>, vector<64x6xf32>
      tpu.vector_store %arg23[%177, %c0_130], %175 {strides = array<i32>} : memref<640x128xf32, #tpu.memory_space<vmem>>, vector<64x6xf32>,
    }
    %c10_i32_75 = arith.constant 10 : i32
    %c0_76 = arith.constant 0 : index
    %c0_77 = arith.constant 0 : index
    %c0_78 = arith.constant 0 : index
    %96 = vector.load %arg12[%c0_76, %c0_77, %c0_78] : memref<3x64x192xf32, #tpu.memory_space<vmem>>, vector<1x64x192xf32>
    %97 = vector.shape_cast %96 : vector<1x64x192xf32> to vector<64x192xf32>
    %c1_79 = arith.constant 1 : index
    %c0_80 = arith.constant 0 : index
    %c0_81 = arith.constant 0 : index
    %98 = vector.load %arg12[%c1_79, %c0_80, %c0_81] : memref<3x64x192xf32, #tpu.memory_space<vmem>>, vector<1x64x192xf32>
    %99 = vector.shape_cast %98 : vector<1x64x192xf32> to vector<64x192xf32>
    %c2_82 = arith.constant 2 : index
    %c0_83 = arith.constant 0 : index
    %c0_84 = arith.constant 0 : index
    %100 = vector.load %arg12[%c2_82, %c0_83, %c0_84] : memref<3x64x192xf32, #tpu.memory_space<vmem>>, vector<1x64x192xf32>
    %101 = vector.shape_cast %100 : vector<1x64x192xf32> to vector<64x192xf32>
    %c0_85 = arith.constant 0 : index
    %c0_86 = arith.constant 0 : index
    %102 = vector.load %arg13[%c0_85, %c0_86] : memref<64x1xf32, #tpu.memory_space<vmem>>, vector<64x1xf32>
    %103 = tpu.iota {dimensions = array<i32: 0>} : vector<4x2xi32>
    %104 = tpu.iota {dimensions = array<i32: 1>} : vector<4x2xi32>
    %c2_i32_87 = arith.constant 2 : i32
    %105 = vector.broadcast %c2_i32_87 : i32 to vector<4x2xi32>
    %106 = arith.muli %105, %104 : vector<4x2xi32>
    %107 = arith.cmpi eq, %103, %106 : vector<4x2xi32>
    %108 = arith.extui %107 : vector<4x2xi1> to vector<4x2xi32>
    %109 = arith.sitofp %108 : vector<4x2xi32> to vector<4x2xf32>
    %c2_i32_88 = arith.constant 2 : i32
    %110 = vector.broadcast %c2_i32_88 : i32 to vector<4x2xi32>
    %111 = arith.muli %110, %104 : vector<4x2xi32>
    %c1_i32_89 = arith.constant 1 : i32
    %112 = vector.broadcast %c1_i32_89 : i32 to vector<4x2xi32>
    %113 = arith.addi %111, %112 : vector<4x2xi32>
    %114 = arith.cmpi eq, %103, %113 : vector<4x2xi32>
    %115 = arith.extui %114 : vector<4x2xi1> to vector<4x2xi32>
    %116 = arith.sitofp %115 : vector<4x2xi32> to vector<4x2xf32>
    %c0_i32_90 = arith.constant 0 : i32
    %c4_i32 = arith.constant 4 : i32
    %117 = arith.addi %c0_i32_90, %c4_i32 : i32
    %c1_i32_91 = arith.constant 1 : i32
    scf.for %arg25 = %c0_i32_90 to %117 step %c1_i32_91  : i32 {
      %c2_i32_111 = arith.constant 2 : i32
      %139 = arith.muli %c2_i32_111, %arg25 : i32
      %c64_i32 = arith.constant 64 : i32
      %140 = arith.muli %139, %c64_i32 : i32
      %141 = arith.index_cast %140 : i32 to index
      %c0_112 = arith.constant 0 : index
      %142 = vector.load %arg23[%141, %c0_112] : memref<640x128xf32, #tpu.memory_space<vmem>>, vector<192x4xf32>
      %cst_113 = arith.constant dense<0.000000e+00> : vector<64x4xf32>
      %143 = tpu.matmul %97, %142, %cst_113 {dimension_numbers = #tpu.dot_dimension_numbers<[1], [0], [0], [1], [0, 0, 1, 1], [], []>} : vector<64x192xf32>, vector<192x4xf32>, vector<64x4xf32> -> vector<64x4xf32>
      %144 = arith.index_cast %140 : i32 to index
      %c1_114 = arith.constant 1 : index
      %145 = vector.load %arg23[%144, %c1_114] : memref<640x128xf32, #tpu.memory_space<vmem>>, vector<192x4xf32>
      %cst_115 = arith.constant dense<0.000000e+00> : vector<64x4xf32>
      %146 = tpu.matmul %99, %145, %cst_115 {dimension_numbers = #tpu.dot_dimension_numbers<[1], [0], [0], [1], [0, 0, 1, 1], [], []>} : vector<64x192xf32>, vector<192x4xf32>, vector<64x4xf32> -> vector<64x4xf32>
      %147 = arith.addf %143, %146 : vector<64x4xf32>
      %148 = arith.index_cast %140 : i32 to index
      %c2_116 = arith.constant 2 : index
      %149 = vector.load %arg23[%148, %c2_116] : memref<640x128xf32, #tpu.memory_space<vmem>>, vector<192x4xf32>
      %cst_117 = arith.constant dense<0.000000e+00> : vector<64x4xf32>
      %150 = tpu.matmul %101, %149, %cst_117 {dimension_numbers = #tpu.dot_dimension_numbers<[1], [0], [0], [1], [0, 0, 1, 1], [], []>} : vector<64x192xf32>, vector<192x4xf32>, vector<64x4xf32> -> vector<64x4xf32>
      %151 = arith.addf %147, %150 : vector<64x4xf32>
      %152 = vector.broadcast %102 : vector<64x1xf32> to vector<64x4xf32>
      %153 = arith.addf %151, %152 : vector<64x4xf32>
      %c2_i32_118 = arith.constant 2 : i32
      %154 = arith.muli %c2_i32_118, %arg25 : i32
      %c1_i32_119 = arith.constant 1 : i32
      %155 = arith.addi %154, %c1_i32_119 : i32
      %c64_i32_120 = arith.constant 64 : i32
      %156 = arith.muli %155, %c64_i32_120 : i32
      %157 = arith.index_cast %156 : i32 to index
      %c0_121 = arith.constant 0 : index
      %158 = vector.load %arg23[%157, %c0_121] : memref<640x128xf32, #tpu.memory_space<vmem>>, vector<192x4xf32>
      %cst_122 = arith.constant dense<0.000000e+00> : vector<64x4xf32>
      %159 = tpu.matmul %97, %158, %cst_122 {dimension_numbers = #tpu.dot_dimension_numbers<[1], [0], [0], [1], [0, 0, 1, 1], [], []>} : vector<64x192xf32>, vector<192x4xf32>, vector<64x4xf32> -> vector<64x4xf32>
      %160 = arith.index_cast %156 : i32 to index
      %c1_123 = arith.constant 1 : index
      %161 = vector.load %arg23[%160, %c1_123] : memref<640x128xf32, #tpu.memory_space<vmem>>, vector<192x4xf32>
      %cst_124 = arith.constant dense<0.000000e+00> : vector<64x4xf32>
      %162 = tpu.matmul %99, %161, %cst_124 {dimension_numbers = #tpu.dot_dimension_numbers<[1], [0], [0], [1], [0, 0, 1, 1], [], []>} : vector<64x192xf32>, vector<192x4xf32>, vector<64x4xf32> -> vector<64x4xf32>
      %163 = arith.addf %159, %162 : vector<64x4xf32>
      %164 = arith.index_cast %156 : i32 to index
      %c2_125 = arith.constant 2 : index
      %165 = vector.load %arg23[%164, %c2_125] : memref<640x128xf32, #tpu.memory_space<vmem>>, vector<192x4xf32>
      %cst_126 = arith.constant dense<0.000000e+00> : vector<64x4xf32>
      %166 = tpu.matmul %101, %165, %cst_126 {dimension_numbers = #tpu.dot_dimension_numbers<[1], [0], [0], [1], [0, 0, 1, 1], [], []>} : vector<64x192xf32>, vector<192x4xf32>, vector<64x4xf32> -> vector<64x4xf32>
      %167 = arith.addf %163, %166 : vector<64x4xf32>
      %168 = vector.broadcast %102 : vector<64x1xf32> to vector<64x4xf32>
      %169 = arith.addf %167, %168 : vector<64x4xf32>
      %170 = arith.maximumf %153, %169 : vector<64x4xf32>
      %cst_127 = arith.constant dense<0.000000e+00> : vector<64x2xf32>
      %171 = tpu.matmul %170, %109, %cst_127 {dimension_numbers = #tpu.dot_dimension_numbers<[1], [0], [0], [1], [0, 0, 1, 1], [], []>} : vector<64x4xf32>, vector<4x2xf32>, vector<64x2xf32> -> vector<64x2xf32>
      %cst_128 = arith.constant dense<0.000000e+00> : vector<64x2xf32>
      %172 = tpu.matmul %170, %116, %cst_128 {dimension_numbers = #tpu.dot_dimension_numbers<[1], [0], [0], [1], [0, 0, 1, 1], [], []>} : vector<64x4xf32>, vector<4x2xf32>, vector<64x2xf32> -> vector<64x2xf32>
      %173 = arith.maximumf %171, %172 : vector<64x2xf32>
      %cst_129 = arith.constant 0.000000e+00 : f32
      %174 = vector.broadcast %cst_129 : f32 to vector<64x2xf32>
      %175 = arith.maximumf %173, %174 : vector<64x2xf32>
      %c64_i32_130 = arith.constant 64 : i32
      %176 = arith.muli %arg25, %c64_i32_130 : i32
      %177 = arith.index_cast %176 : i32 to index
      %c0_131 = arith.constant 0 : index
      %178 = vector.load %arg24[%177, %c0_131] : memref<256x128xf32, #tpu.memory_space<vmem>>, vector<64x2xf32>
      tpu.vector_store %arg24[%177, %c0_131], %175 {strides = array<i32>} : memref<256x128xf32, #tpu.memory_space<vmem>>, vector<64x2xf32>,
    }
    %c4_i32_92 = arith.constant 4 : i32
    %c0_93 = arith.constant 0 : index
    %c0_94 = arith.constant 0 : index
    %118 = vector.load %arg24[%c0_93, %c0_94] : memref<256x128xf32, #tpu.memory_space<vmem>>, vector<256x1xf32>
    %c0_95 = arith.constant 0 : index
    %c1_96 = arith.constant 1 : index
    %119 = vector.load %arg24[%c0_95, %c1_96] : memref<256x128xf32, #tpu.memory_space<vmem>>, vector<256x1xf32>
    %120 = tpu.concatenate %118, %119 in 0 : vector<256x1xf32>, vector<256x1xf32> -> vector<512x1xf32>
    %c0_97 = arith.constant 0 : index
    %c0_98 = arith.constant 0 : index
    %121 = vector.load %arg14[%c0_97, %c0_98] : memref<128x512xf32, #tpu.memory_space<vmem>>, vector<128x512xf32>
    %cst = arith.constant dense<0.000000e+00> : vector<128x1xf32>
    %122 = tpu.matmul %121, %120, %cst {dimension_numbers = #tpu.dot_dimension_numbers<[1], [0], [0], [1], [0, 0, 1, 1], [], []>} : vector<128x512xf32>, vector<512x1xf32>, vector<128x1xf32> -> vector<128x1xf32>
    %c0_99 = arith.constant 0 : index
    %c0_100 = arith.constant 0 : index
    %123 = vector.load %arg15[%c0_99, %c0_100] : memref<128x1xf32, #tpu.memory_space<vmem>>, vector<128x1xf32>
    %124 = arith.addf %122, %123 : vector<128x1xf32>
    %cst_101 = arith.constant 0.000000e+00 : f32
    %125 = vector.broadcast %cst_101 : f32 to vector<128x1xf32>
    %126 = arith.maximumf %124, %125 : vector<128x1xf32>
    %c0_102 = arith.constant 0 : index
    %c0_103 = arith.constant 0 : index
    %127 = vector.load %arg16[%c0_102, %c0_103] : memref<2x128xf32, #tpu.memory_space<vmem>>, vector<2x128xf32>
    %cst_104 = arith.constant dense<0.000000e+00> : vector<2x1xf32>
    %128 = tpu.matmul %127, %126, %cst_104 {dimension_numbers = #tpu.dot_dimension_numbers<[1], [0], [0], [1], [0, 0, 1, 1], [], []>} : vector<2x128xf32>, vector<128x1xf32>, vector<2x1xf32> -> vector<2x1xf32>
    %c0_105 = arith.constant 0 : index
    %c0_106 = arith.constant 0 : index
    %129 = vector.load %arg17[%c0_105, %c0_106] : memref<2x1xf32, #tpu.memory_space<vmem>>, vector<2x1xf32>
    %130 = arith.addf %128, %129 : vector<2x1xf32>
    %131 = vector.extract_strided_slice %130 {offsets = [0, 0], sizes = [1, 1], strides = [1, 1]} : vector<2x1xf32> to vector<1x1xf32>
    %cst_107 = arith.constant 0.000000e+00 : f32
    %132 = vector.broadcast %cst_107 : f32 to vector<1x1xf32>
    %133 = arith.maximumf %131, %132 : vector<1x1xf32>
    %134 = vector.extract_strided_slice %130 {offsets = [1, 0], sizes = [1, 1], strides = [1, 1]} : vector<2x1xf32> to vector<1x1xf32>
    %135 = tpu.concatenate %133, %134 in 1 : vector<1x1xf32>, vector<1x1xf32> -> vector<1x2xf32>
    %c0_108 = arith.constant 0 : index
    %c0_109 = arith.constant 0 : index
    %c0_110 = arith.constant 0 : index
    %136 = vector.load %arg18[%c0_108, %c0_109, %c0_110] : memref<1x1x2xf32, #tpu.memory_space<vmem>>, vector<1x1x2xf32>
    %137 = vector.shape_cast %136 : vector<1x1x2xf32> to vector<1x2xf32>
    %138 = vector.shape_cast %135 : vector<1x2xf32> to vector<1x1x2xf32>
    tpu.vector_store %arg18[%c0_108, %c0_109, %c0_110], %138 {strides = array<i32>} : memref<1x1x2xf32, #tpu.memory_space<vmem>>, vector<1x1x2xf32>,
    return
  }
  func.func @transform_0(%arg0: i32) -> (i32, i32, i32) {
    %c0_i32 = arith.constant 0 : i32
    %c0_i32_0 = arith.constant 0 : i32
    %c0_i32_1 = arith.constant 0 : i32
    return %arg0, %c0_i32, %c0_i32_0 : i32, i32, i32
  }
  func.func @transform_1(%arg0: i32) -> (i32, i32, i32) {
    %c0_i32 = arith.constant 0 : i32
    %c0_i32_0 = arith.constant 0 : i32
    %c0_i32_1 = arith.constant 0 : i32
    %c0_i32_2 = arith.constant 0 : i32
    return %c0_i32, %c0_i32_0, %c0_i32_1 : i32, i32, i32
  }
  func.func @transform_2(%arg0: i32) -> (i32, i32) {
    %c0_i32 = arith.constant 0 : i32
    %c0_i32_0 = arith.constant 0 : i32
    %c0_i32_1 = arith.constant 0 : i32
    return %c0_i32, %c0_i32_0 : i32, i32
  }
  func.func @transform_3(%arg0: i32) -> (i32, i32, i32) {
    %c0_i32 = arith.constant 0 : i32
    %c0_i32_0 = arith.constant 0 : i32
    %c0_i32_1 = arith.constant 0 : i32
    %c0_i32_2 = arith.constant 0 : i32
    return %c0_i32, %c0_i32_0, %c0_i32_1 : i32, i32, i32
  }
  func.func @transform_4(%arg0: i32) -> (i32, i32) {
    %c0_i32 = arith.constant 0 : i32
    %c0_i32_0 = arith.constant 0 : i32
    %c0_i32_1 = arith.constant 0 : i32
    return %c0_i32, %c0_i32_0 : i32, i32
  }
  func.func @transform_5(%arg0: i32) -> (i32, i32, i32) {
    %c0_i32 = arith.constant 0 : i32
    %c0_i32_0 = arith.constant 0 : i32
    %c0_i32_1 = arith.constant 0 : i32
    %c0_i32_2 = arith.constant 0 : i32
    return %c0_i32, %c0_i32_0, %c0_i32_1 : i32, i32, i32
  }
  func.func @transform_6(%arg0: i32) -> (i32, i32) {
    %c0_i32 = arith.constant 0 : i32
    %c0_i32_0 = arith.constant 0 : i32
    %c0_i32_1 = arith.constant 0 : i32
    return %c0_i32, %c0_i32_0 : i32, i32
  }
  func.func @transform_7(%arg0: i32) -> (i32, i32, i32) {
    %c0_i32 = arith.constant 0 : i32
    %c0_i32_0 = arith.constant 0 : i32
    %c0_i32_1 = arith.constant 0 : i32
    %c0_i32_2 = arith.constant 0 : i32
    return %c0_i32, %c0_i32_0, %c0_i32_1 : i32, i32, i32
  }
  func.func @transform_8(%arg0: i32) -> (i32, i32) {
    %c0_i32 = arith.constant 0 : i32
    %c0_i32_0 = arith.constant 0 : i32
    %c0_i32_1 = arith.constant 0 : i32
    return %c0_i32, %c0_i32_0 : i32, i32
  }
  func.func @transform_9(%arg0: i32) -> (i32, i32, i32) {
    %c0_i32 = arith.constant 0 : i32
    %c0_i32_0 = arith.constant 0 : i32
    %c0_i32_1 = arith.constant 0 : i32
    %c0_i32_2 = arith.constant 0 : i32
    return %c0_i32, %c0_i32_0, %c0_i32_1 : i32, i32, i32
  }
  func.func @transform_10(%arg0: i32) -> (i32, i32) {
    %c0_i32 = arith.constant 0 : i32
    %c0_i32_0 = arith.constant 0 : i32
    %c0_i32_1 = arith.constant 0 : i32
    return %c0_i32, %c0_i32_0 : i32, i32
  }
  func.func @transform_11(%arg0: i32) -> (i32, i32, i32) {
    %c0_i32 = arith.constant 0 : i32
    %c0_i32_0 = arith.constant 0 : i32
    %c0_i32_1 = arith.constant 0 : i32
    %c0_i32_2 = arith.constant 0 : i32
    return %c0_i32, %c0_i32_0, %c0_i32_1 : i32, i32, i32
  }
  func.func @transform_12(%arg0: i32) -> (i32, i32) {
    %c0_i32 = arith.constant 0 : i32
    %c0_i32_0 = arith.constant 0 : i32
    %c0_i32_1 = arith.constant 0 : i32
    return %c0_i32, %c0_i32_0 : i32, i32
  }
  func.func @transform_13(%arg0: i32) -> (i32, i32) {
    %c0_i32 = arith.constant 0 : i32
    %c0_i32_0 = arith.constant 0 : i32
    %c0_i32_1 = arith.constant 0 : i32
    return %c0_i32, %c0_i32_0 : i32, i32
  }
  func.func @transform_14(%arg0: i32) -> (i32, i32) {
    %c0_i32 = arith.constant 0 : i32
    %c0_i32_0 = arith.constant 0 : i32
    %c0_i32_1 = arith.constant 0 : i32
    return %c0_i32, %c0_i32_0 : i32, i32
  }
  func.func @transform_15(%arg0: i32) -> (i32, i32) {
    %c0_i32 = arith.constant 0 : i32
    %c0_i32_0 = arith.constant 0 : i32
    %c0_i32_1 = arith.constant 0 : i32
    return %c0_i32, %c0_i32_0 : i32, i32
  }
  func.func @transform_16(%arg0: i32) -> (i32, i32) {
    %c0_i32 = arith.constant 0 : i32
    %c0_i32_0 = arith.constant 0 : i32
    %c0_i32_1 = arith.constant 0 : i32
    return %c0_i32, %c0_i32_0 : i32, i32
  }
  func.func @transform_17(%arg0: i32) -> (i32, i32, i32) {
    %c0_i32 = arith.constant 0 : i32
    %c0_i32_0 = arith.constant 0 : i32
    %c0_i32_1 = arith.constant 0 : i32
    return %arg0, %c0_i32, %c0_i32_0 : i32, i32, i32
  }
}

</mosaic_0001>

<llo_original>
// kernel: modelv0_forward.1
$region0: #{modelv0_forward.1}
  #allocation0 [shape = 'u32[]', space=smem, size = 0x4, offset = 0x4, fixed_abs, tag = 'smem constant byte address 0x4 - core index']
  #allocation1 [shape = 'u32[144,128]{1,0:T(1,128)}', space=vmem, size = 0x12000, scoped, tag = 'internal scratch']
  #allocation2 [shape = 'f32[1520,128]{1,0:T(8,128)}', space=vmem, size = 0xbe000, scoped, tag = 'scratch operand']
  #allocation3 [shape = 'f32[1504,128]{1,0:T(8,128)}', space=vmem, size = 0xbc000, scoped, tag = 'scratch operand']
  #allocation4 [shape = 'f32[1472,128]{1,0:T(8,128)}', space=vmem, size = 0xb8000, scoped, tag = 'scratch operand']
  #allocation5 [shape = 'f32[704,128]{1,0:T(8,128)}', space=vmem, size = 0x58000, scoped, tag = 'scratch operand']
  #allocation6 [shape = 'f32[640,128]{1,0:T(8,128)}', space=vmem, size = 0x50000, scoped, tag = 'scratch operand']
  #allocation7 [shape = 'f32[256,128]{1,0:T(8,128)}', space=vmem, size = 0x20000, scoped, tag = 'scratch operand']
  %s0 = inlined_call_operand.vmem [shape: f32[2,1536,128], index: 0, kind: input, shape index: {}]
  %s1 = inlined_call_operand.vmem [shape: f32[3,8,24], index: 1, kind: input, shape index: {}]
  %s2 = inlined_call_operand.vmem [shape: f32[8,1], index: 2, kind: input, shape index: {}]
  %s3 = inlined_call_operand.vmem [shape: f32[3,16,24], index: 3, kind: input, shape index: {}]
  %s4 = inlined_call_operand.vmem [shape: f32[16,1], index: 4, kind: input, shape index: {}]
  %s5 = inlined_call_operand.vmem [shape: f32[3,32,48], index: 5, kind: input, shape index: {}]
  %s6 = inlined_call_operand.vmem [shape: f32[32,1], index: 6, kind: input, shape index: {}]
  %s7 = inlined_call_operand.vmem [shape: f32[3,32,96], index: 7, kind: input, shape index: {}]
  %s8 = inlined_call_operand.vmem [shape: f32[32,1], index: 8, kind: input, shape index: {}]
  %s9 = inlined_call_operand.vmem [shape: f32[3,64,96], index: 9, kind: input, shape index: {}]
  %s10 = inlined_call_operand.vmem [shape: f32[64,1], index: 10, kind: input, shape index: {}]
  %s11 = inlined_call_operand.vmem [shape: f32[3,64,192], index: 11, kind: input, shape index: {}]
  %s12 = inlined_call_operand.vmem [shape: f32[64,1], index: 12, kind: input, shape index: {}]
  %s13 = inlined_call_operand.vmem [shape: f32[128,512], index: 13, kind: input, shape index: {}]
  %s14 = inlined_call_operand.vmem [shape: f32[128,1], index: 14, kind: input, shape index: {}]
  %s15 = inlined_call_operand.vmem [shape: f32[2,128], index: 15, kind: input, shape index: {}]
  %s16 = inlined_call_operand.vmem [shape: f32[2,1], index: 16, kind: input, shape index: {}]
  %s17 = inlined_call_operand.vmem [shape: f32[2,1,2], index: 17, kind: output, shape index: {}]
  %s18 = sld [smem:[#allocation0]]
  $region143: #{modelv0_forward.1} parent=0
    _
  %s20 = ssub.s32 1, %s18
  %s21 = scalar_select 0, %s20, %s18
  loop: start=0, step=1, limit=4
  $region2: #{modelv0_forward.1} parent=0 // loop_pre_header
    _
  $region3: #{modelv0_forward.1} parent=0 // loop_header
    %s23 = sphi 0, %s27
    %p24 = scmp.ge.s32.totalorder %s23, 4
    %s33 = sphi 0, %s35
    %s36 = sphi 0, %s33
    %s37 = sphi 0, %s36
    %s53 = sphi 0, %s37
    %s57 = sphi 0, %s57
    %s59 = sphi 0, %s57
    %s60 = sphi 0, %s59
    %s74 = sphi 0, %s60
    %s78 = sphi 0, %s78
    %s80 = sphi 0, %s78
    %s81 = sphi 0, %s80
    %s95 = sphi 0, %s81
    %s99 = sphi 0, %s99
    %s101 = sphi 0, %s99
    %s102 = sphi 0, %s101
    %s116 = sphi 0, %s102
    %s120 = sphi 0, %s120
    %s122 = sphi 0, %s120
    %s123 = sphi 0, %s122
    %s137 = sphi 0, %s123
    %s141 = sphi 0, %s141
    %s143 = sphi 0, %s141
    %s144 = sphi 0, %s143
    %s158 = sphi 0, %s144
    %s162 = sphi 0, %s162
    %s164 = sphi 0, %s162
    %s165 = sphi 0, %s164
    %s179 = sphi 0, %s165
    %s183 = sphi 0, %s183
    %s185 = sphi 0, %s183
    %s186 = sphi 0, %s185
    %s200 = sphi 0, %s186
    %s204 = sphi 0, %s204
    %s206 = sphi 0, %s204
    %s207 = sphi 0, %s206
    %s221 = sphi 0, %s207
    %s225 = sphi 0, %s225
    %s227 = sphi 0, %s225
    %s228 = sphi 0, %s227
    %s242 = sphi 0, %s228
    %s246 = sphi 0, %s246
    %s248 = sphi 0, %s246
    %s249 = sphi 0, %s248
    %s263 = sphi 0, %s249
    %s267 = sphi 0, %s267
    %s269 = sphi 0, %s267
    %s270 = sphi 0, %s269
    %s284 = sphi 0, %s270
    %s288 = sphi 0, %s288
    %s290 = sphi 0, %s288
    %s291 = sphi 0, %s290
    %s305 = sphi 0, %s291
    %s309 = sphi 0, %s309
    %s311 = sphi 0, %s309
    %s312 = sphi 0, %s311
    %s326 = sphi 0, %s312
    %s330 = sphi 0, %s330
    %s332 = sphi 0, %s330
    %s333 = sphi 0, %s332
    %s347 = sphi 0, %s333
    %s351 = sphi 0, %s351
    %s353 = sphi 0, %s351
    %s354 = sphi 0, %s353
    %s368 = sphi 0, %s354
    %s372 = sphi 0, %s372
    %s374 = sphi 0, %s372
    %s375 = sphi 0, %s374
    %s389 = sphi 0, %s375
    %s395 = sphi 0, %s397
    %s398 = sphi 0, %s395
    %s399 = sphi 0, %s398
    %s415 = sphi 0, %s399
  $region4: #{modelv0_forward.1} parent=0 // loop_header_branch
    %26 = sbr.rel (%p24) target = $region8
  $region5: #{modelv0_forward.1} parent=0 // loop_body
    %s28 = ssub.s32 %s23, 1
    %s29 = ssub.s32 %s23, 2
    %s30 = sadd.s32 %s23, 1
    %s31 = ssub.s32 %s23, %s30
    %p32 = scmp.eq.s32.totalorder %s31, 0
    %s34 = sadd.s32 %s33, 1
    %s35 = scalar_select %p32, %s33, %s34
    %p38 = pneg %p32
    %p39 = scmp.eq.s32.totalorder %s23, 1
    %p40 = por %p38, %p39
    %p41 = scmp.ne.s32.totalorder %s33, %s36
    %p42 = scmp.eq.s32.totalorder %s23, 0
    %p43 = por %p41, %p42
    %p44 = scmp.ne.s32.totalorder %s33, %s36
    %p45 = scmp.eq.s32.totalorder %s28, 1
    %p46 = por %p44, %p45
    %p47 = scmp.ne.s32.totalorder %s36, %s37
    %p48 = scmp.eq.s32.totalorder %s28, 0
    %p49 = por %p47, %p48
    %p50 = scmp.ne.s32.totalorder %s36, %s37
    %p51 = scmp.eq.s32.totalorder %s29, 1
    %p52 = por %p50, %p51
    %p54 = scmp.ne.s32.totalorder %s37, %s53
    %p55 = scmp.eq.s32.totalorder %s29, 0
    %p56 = por %p54, %p55
    %s58 = sadd.s32 %s57, 1
    %p61 = scmp.eq.s32.totalorder %s23, 1
    %p62 = scmp.ne.s32.totalorder %s57, %s59
    %p63 = scmp.eq.s32.totalorder %s23, 0
    %p64 = por %p62, %p63
    %p65 = scmp.ne.s32.totalorder %s57, %s59
    %p66 = scmp.eq.s32.totalorder %s28, 1
    %p67 = por %p65, %p66
    %p68 = scmp.ne.s32.totalorder %s59, %s60
    %p69 = scmp.eq.s32.totalorder %s28, 0
    %p70 = por %p68, %p69
    %p71 = scmp.ne.s32.totalorder %s59, %s60
    %p72 = scmp.eq.s32.totalorder %s29, 1
    %p73 = por %p71, %p72
    %p75 = scmp.ne.s32.totalorder %s60, %s74
    %p76 = scmp.eq.s32.totalorder %s29, 0
    %p77 = por %p75, %p76
    %s79 = sadd.s32 %s78, 1
    %p82 = scmp.eq.s32.totalorder %s23, 1
    %p83 = scmp.ne.s32.totalorder %s78, %s80
    %p84 = scmp.eq.s32.totalorder %s23, 0
    %p85 = por %p83, %p84
    %p86 = scmp.ne.s32.totalorder %s78, %s80
    %p87 = scmp.eq.s32.totalorder %s28, 1
    %p88 = por %p86, %p87
    %p89 = scmp.ne.s32.totalorder %s80, %s81
    %p90 = scmp.eq.s32.totalorder %s28, 0
    %p91 = por %p89, %p90
    %p92 = scmp.ne.s32.totalorder %s80, %s81
    %p93 = scmp.eq.s32.totalorder %s29, 1
    %p94 = por %p92, %p93
    %p96 = scmp.ne.s32.totalorder %s81, %s95
    %p97 = scmp.eq.s32.totalorder %s29, 0
    %p98 = por %p96, %p97
    %s100 = sadd.s32 %s99, 1
    %p103 = scmp.eq.s32.totalorder %s23, 1
    %p104 = scmp.ne.s32.totalorder %s99, %s101
    %p105 = scmp.eq.s32.totalorder %s23, 0
    %p106 = por %p104, %p105
    %p107 = scmp.ne.s32.totalorder %s99, %s101
    %p108 = scmp.eq.s32.totalorder %s28, 1
    %p109 = por %p107, %p108
    %p110 = scmp.ne.s32.totalorder %s101, %s102
    %p111 = scmp.eq.s32.totalorder %s28, 0
    %p112 = por %p110, %p111
    %p113 = scmp.ne.s32.totalorder %s101, %s102
    %p114 = scmp.eq.s32.totalorder %s29, 1
    %p115 = por %p113, %p114
    %p117 = scmp.ne.s32.totalorder %s102, %s116
    %p118 = scmp.eq.s32.totalorder %s29, 0
    %p119 = por %p117, %p118
    %s121 = sadd.s32 %s120, 1
    %p124 = scmp.eq.s32.totalorder %s23, 1
    %p125 = scmp.ne.s32.totalorder %s120, %s122
    %p126 = scmp.eq.s32.totalorder %s23, 0
    %p127 = por %p125, %p126
    %p128 = scmp.ne.s32.totalorder %s120, %s122
    %p129 = scmp.eq.s32.totalorder %s28, 1
    %p130 = por %p128, %p129
    %p131 = scmp.ne.s32.totalorder %s122, %s123
    %p132 = scmp.eq.s32.totalorder %s28, 0
    %p133 = por %p131, %p132
    %p134 = scmp.ne.s32.totalorder %s122, %s123
    %p135 = scmp.eq.s32.totalorder %s29, 1
    %p136 = por %p134, %p135
    %p138 = scmp.ne.s32.totalorder %s123, %s137
    %p139 = scmp.eq.s32.totalorder %s29, 0
    %p140 = por %p138, %p139
    %s142 = sadd.s32 %s141, 1
    %p145 = scmp.eq.s32.totalorder %s23, 1
    %p146 = scmp.ne.s32.totalorder %s141, %s143
    %p147 = scmp.eq.s32.totalorder %s23, 0
    %p148 = por %p146, %p147
    %p149 = scmp.ne.s32.totalorder %s141, %s143
    %p150 = scmp.eq.s32.totalorder %s28, 1
    %p151 = por %p149, %p150
    %p152 = scmp.ne.s32.totalorder %s143, %s144
    %p153 = scmp.eq.s32.totalorder %s28, 0
    %p154 = por %p152, %p153
    %p155 = scmp.ne.s32.totalorder %s143, %s144
    %p156 = scmp.eq.s32.totalorder %s29, 1
    %p157 = por %p155, %p156
    %p159 = scmp.ne.s32.totalorder %s144, %s158
    %p160 = scmp.eq.s32.totalorder %s29, 0
    %p161 = por %p159, %p160
    %s163 = sadd.s32 %s162, 1
    %p166 = scmp.eq.s32.totalorder %s23, 1
    %p167 = scmp.ne.s32.totalorder %s162, %s164
    %p168 = scmp.eq.s32.totalorder %s23, 0
    %p169 = por %p167, %p168
    %p170 = scmp.ne.s32.totalorder %s162, %s164
    %p171 = scmp.eq.s32.totalorder %s28, 1
    %p172 = por %p170, %p171
    %p173 = scmp.ne.s32.totalorder %s164, %s165
    %p174 = scmp.eq.s32.totalorder %s28, 0
    %p175 = por %p173, %p174
    %p176 = scmp.ne.s32.totalorder %s164, %s165
    %p177 = scmp.eq.s32.totalorder %s29, 1
    %p178 = por %p176, %p177
    %p180 = scmp.ne.s32.totalorder %s165, %s179
    %p181 = scmp.eq.s32.totalorder %s29, 0
    %p182 = por %p180, %p181
    %s184 = sadd.s32 %s183, 1
    %p187 = scmp.eq.s32.totalorder %s23, 1
    %p188 = scmp.ne.s32.totalorder %s183, %s185
    %p189 = scmp.eq.s32.totalorder %s23, 0
    %p190 = por %p188, %p189
    %p191 = scmp.ne.s32.totalorder %s183, %s185
    %p192 = scmp.eq.s32.totalorder %s28, 1
    %p193 = por %p191, %p192
    %p194 = scmp.ne.s32.totalorder %s185, %s186
    %p195 = scmp.eq.s32.totalorder %s28, 0
    %p196 = por %p194, %p195
    %p197 = scmp.ne.s32.totalorder %s185, %s186
    %p198 = scmp.eq.s32.totalorder %s29, 1
    %p199 = por %p197, %p198
    %p201 = scmp.ne.s32.totalorder %s186, %s200
    %p202 = scmp.eq.s32.totalorder %s29, 0
    %p203 = por %p201, %p202
    %s205 = sadd.s32 %s204, 1
    %p208 = scmp.eq.s32.totalorder %s23, 1
    %p209 = scmp.ne.s32.totalorder %s204, %s206
    %p210 = scmp.eq.s32.totalorder %s23, 0
    %p211 = por %p209, %p210
    %p212 = scmp.ne.s32.totalorder %s204, %s206
    %p213 = scmp.eq.s32.totalorder %s28, 1
    %p214 = por %p212, %p213
    %p215 = scmp.ne.s32.totalorder %s206, %s207
    %p216 = scmp.eq.s32.totalorder %s28, 0
    %p217 = por %p215, %p216
    %p218 = scmp.ne.s32.totalorder %s206, %s207
    %p219 = scmp.eq.s32.totalorder %s29, 1
    %p220 = por %p218, %p219
    %p222 = scmp.ne.s32.totalorder %s207, %s221
    %p223 = scmp.eq.s32.totalorder %s29, 0
    %p224 = por %p222, %p223
    %s226 = sadd.s32 %s225, 1
    %p229 = scmp.eq.s32.totalorder %s23, 1
    %p230 = scmp.ne.s32.totalorder %s225, %s227
    %p231 = scmp.eq.s32.totalorder %s23, 0
    %p232 = por %p230, %p231
    %p233 = scmp.ne.s32.totalorder %s225, %s227
    %p234 = scmp.eq.s32.totalorder %s28, 1
    %p235 = por %p233, %p234
    %p236 = scmp.ne.s32.totalorder %s227, %s228
    %p237 = scmp.eq.s32.totalorder %s28, 0
    %p238 = por %p236, %p237
    %p239 = scmp.ne.s32.totalorder %s227, %s228
    %p240 = scmp.eq.s32.totalorder %s29, 1
    %p241 = por %p239, %p240
    %p243 = scmp.ne.s32.totalorder %s228, %s242
    %p244 = scmp.eq.s32.totalorder %s29, 0
    %p245 = por %p243, %p244
    %s247 = sadd.s32 %s246, 1
    %p250 = scmp.eq.s32.totalorder %s23, 1
    %p251 = scmp.ne.s32.totalorder %s246, %s248
    %p252 = scmp.eq.s32.totalorder %s23, 0
    %p253 = por %p251, %p252
    %p254 = scmp.ne.s32.totalorder %s246, %s248
    %p255 = scmp.eq.s32.totalorder %s28, 1
    %p256 = por %p254, %p255
    %p257 = scmp.ne.s32.totalorder %s248, %s249
    %p258 = scmp.eq.s32.totalorder %s28, 0
    %p259 = por %p257, %p258
    %p260 = scmp.ne.s32.totalorder %s248, %s249
    %p261 = scmp.eq.s32.totalorder %s29, 1
    %p262 = por %p260, %p261
    %p264 = scmp.ne.s32.totalorder %s249, %s263
    %p265 = scmp.eq.s32.totalorder %s29, 0
    %p266 = por %p264, %p265
    %s268 = sadd.s32 %s267, 1
    %p271 = scmp.eq.s32.totalorder %s23, 1
    %p272 = scmp.ne.s32.totalorder %s267, %s269
    %p273 = scmp.eq.s32.totalorder %s23, 0
    %p274 = por %p272, %p273
    %p275 = scmp.ne.s32.totalorder %s267, %s269
    %p276 = scmp.eq.s32.totalorder %s28, 1
    %p277 = por %p275, %p276
    %p278 = scmp.ne.s32.totalorder %s269, %s270
    %p279 = scmp.eq.s32.totalorder %s28, 0
    %p280 = por %p278, %p279
    %p281 = scmp.ne.s32.totalorder %s269, %s270
    %p282 = scmp.eq.s32.totalorder %s29, 1
    %p283 = por %p281, %p282
    %p285 = scmp.ne.s32.totalorder %s270, %s284
    %p286 = scmp.eq.s32.totalorder %s29, 0
    %p287 = por %p285, %p286
    %s289 = sadd.s32 %s288, 1
    %p292 = scmp.eq.s32.totalorder %s23, 1
    %p293 = scmp.ne.s32.totalorder %s288, %s290
    %p294 = scmp.eq.s32.totalorder %s23, 0
    %p295 = por %p293, %p294
    %p296 = scmp.ne.s32.totalorder %s288, %s290
    %p297 = scmp.eq.s32.totalorder %s28, 1
    %p298 = por %p296, %p297
    %p299 = scmp.ne.s32.totalorder %s290, %s291
    %p300 = scmp.eq.s32.totalorder %s28, 0
    %p301 = por %p299, %p300
    %p302 = scmp.ne.s32.totalorder %s290, %s291
    %p303 = scmp.eq.s32.totalorder %s29, 1
    %p304 = por %p302, %p303
    %p306 = scmp.ne.s32.totalorder %s291, %s305
    %p307 = scmp.eq.s32.totalorder %s29, 0
    %p308 = por %p306, %p307
    %s310 = sadd.s32 %s309, 1
    %p313 = scmp.eq.s32.totalorder %s23, 1
    %p314 = scmp.ne.s32.totalorder %s309, %s311
    %p315 = scmp.eq.s32.totalorder %s23, 0
    %p316 = por %p314, %p315
    %p317 = scmp.ne.s32.totalorder %s309, %s311
    %p318 = scmp.eq.s32.totalorder %s28, 1
    %p319 = por %p317, %p318
    %p320 = scmp.ne.s32.totalorder %s311, %s312
    %p321 = scmp.eq.s32.totalorder %s28, 0
    %p322 = por %p320, %p321
    %p323 = scmp.ne.s32.totalorder %s311, %s312
    %p324 = scmp.eq.s32.totalorder %s29, 1
    %p325 = por %p323, %p324
    %p327 = scmp.ne.s32.totalorder %s312, %s326
    %p328 = scmp.eq.s32.totalorder %s29, 0
    %p329 = por %p327, %p328
    %s331 = sadd.s32 %s330, 1
    %p334 = scmp.eq.s32.totalorder %s23, 1
    %p335 = scmp.ne.s32.totalorder %s330, %s332
    %p336 = scmp.eq.s32.totalorder %s23, 0
    %p337 = por %p335, %p336
    %p338 = scmp.ne.s32.totalorder %s330, %s332
    %p339 = scmp.eq.s32.totalorder %s28, 1
    %p340 = por %p338, %p339
    %p341 = scmp.ne.s32.totalorder %s332, %s333
    %p342 = scmp.eq.s32.totalorder %s28, 0
    %p343 = por %p341, %p342
    %p344 = scmp.ne.s32.totalorder %s332, %s333
    %p345 = scmp.eq.s32.totalorder %s29, 1
    %p346 = por %p344, %p345
    %p348 = scmp.ne.s32.totalorder %s333, %s347
    %p349 = scmp.eq.s32.totalorder %s29, 0
    %p350 = por %p348, %p349
    %s352 = sadd.s32 %s351, 1
    %p355 = scmp.eq.s32.totalorder %s23, 1
    %p356 = scmp.ne.s32.totalorder %s351, %s353
    %p357 = scmp.eq.s32.totalorder %s23, 0
    %p358 = por %p356, %p357
    %p359 = scmp.ne.s32.totalorder %s351, %s353
    %p360 = scmp.eq.s32.totalorder %s28, 1
    %p361 = por %p359, %p360
    %p362 = scmp.ne.s32.totalorder %s353, %s354
    %p363 = scmp.eq.s32.totalorder %s28, 0
    %p364 = por %p362, %p363
    %p365 = scmp.ne.s32.totalorder %s353, %s354
    %p366 = scmp.eq.s32.totalorder %s29, 1
    %p367 = por %p365, %p366
    %p369 = scmp.ne.s32.totalorder %s354, %s368
    %p370 = scmp.eq.s32.totalorder %s29, 0
    %p371 = por %p369, %p370
    %s373 = sadd.s32 %s372, 1
    %p376 = scmp.eq.s32.totalorder %s23, 1
    %p377 = scmp.ne.s32.totalorder %s372, %s374
    %p378 = scmp.eq.s32.totalorder %s23, 0
    %p379 = por %p377, %p378
    %p380 = scmp.ne.s32.totalorder %s372, %s374
    %p381 = scmp.eq.s32.totalorder %s28, 1
    %p382 = por %p380, %p381
    %p383 = scmp.ne.s32.totalorder %s374, %s375
    %p384 = scmp.eq.s32.totalorder %s28, 0
    %p385 = por %p383, %p384
    %p386 = scmp.ne.s32.totalorder %s374, %s375
    %p387 = scmp.eq.s32.totalorder %s29, 1
    %p388 = por %p386, %p387
    %p390 = scmp.ne.s32.totalorder %s375, %s389
    %p391 = scmp.eq.s32.totalorder %s29, 0
    %p392 = por %p390, %p391
    %s393 = ssub.s32 %s23, %s30
    %p394 = scmp.eq.s32.totalorder %s393, 0
    %s396 = sadd.s32 %s395, 1
    %s397 = scalar_select %p394, %s395, %s396
    %p400 = pneg %p394
    %p401 = scmp.eq.s32.totalorder %s23, 1
    %p402 = por %p400, %p401
    %p403 = scmp.ne.s32.totalorder %s395, %s398
    %p404 = scmp.eq.s32.totalorder %s23, 0
    %p405 = por %p403, %p404
    %p406 = scmp.ne.s32.totalorder %s395, %s398
    %p407 = scmp.eq.s32.totalorder %s28, 1
    %p408 = por %p406, %p407
    %p409 = scmp.ne.s32.totalorder %s398, %s399
    %p410 = scmp.eq.s32.totalorder %s28, 0
    %p411 = por %p409, %p410
    %p412 = scmp.ne.s32.totalorder %s398, %s399
    %p413 = scmp.eq.s32.totalorder %s29, 1
    %p414 = por %p412, %p413
    %p416 = scmp.ne.s32.totalorder %s399, %s415
    %p417 = scmp.eq.s32.totalorder %s29, 0
    %p418 = por %p416, %p417
    %p419 = scmp.le.s32.totalorder 1, %s23
    %p420 = scmp.lt.s32.totalorder %s23, 3
    %p421 = pnand %p419, %p420
    %p422 = pneg %p421
    // Predicated region
    $region9: #{modelv0_forward.1} parent=5 // pred_check
      _
    $region10: #{modelv0_forward.1} parent=5 // pred_check_branch
      %424 = sbr.rel (%p421) target = $region12
    $region11: #{modelv0_forward.1} parent=5 // pred_region
      %s425 = ssub.s32 %s23, 1
      // Predicated region
      $region13: #{modelv0_forward.1} parent=11 // pred_check
        %p426 = pneg %p70
      $region14: #{modelv0_forward.1} parent=11 // pred_check_branch
        %428 = sbr.rel (%p426) target = $region16
      $region15: #{modelv0_forward.1} parent=11 // pred_region
        _
      $region16: #{modelv0_forward.1} parent=11 // pred_fallthru
        _
      // Predicated region
      $region17: #{modelv0_forward.1} parent=11 // pred_check
        %p429 = pneg %p91
      $region18: #{modelv0_forward.1} parent=11 // pred_check_branch
        %431 = sbr.rel (%p429) target = $region20
      $region19: #{modelv0_forward.1} parent=11 // pred_region
        _
      $region20: #{modelv0_forward.1} parent=11 // pred_fallthru
        _
      // Predicated region
      $region21: #{modelv0_forward.1} parent=11 // pred_check
        %p432 = pneg %p112
      $region22: #{modelv0_forward.1} parent=11 // pred_check_branch
        %434 = sbr.rel (%p432) target = $region24
      $region23: #{modelv0_forward.1} parent=11 // pred_region
        _
      $region24: #{modelv0_forward.1} parent=11 // pred_fallthru
        _
      // Predicated region
      $region25: #{modelv0_forward.1} parent=11 // pred_check
        %p435 = pneg %p133
      $region26: #{modelv0_forward.1} parent=11 // pred_check_branch
        %437 = sbr.rel (%p435) target = $region28
      $region27: #{modelv0_forward.1} parent=11 // pred_region
        _
      $region28: #{modelv0_forward.1} parent=11 // pred_fallthru
        _
      // Predicated region
      $region29: #{modelv0_forward.1} parent=11 // pred_check
        %p438 = pneg %p154
      $region30: #{modelv0_forward.1} parent=11 // pred_check_branch
        %440 = sbr.rel (%p438) target = $region32
      $region31: #{modelv0_forward.1} parent=11 // pred_region
        _
      $region32: #{modelv0_forward.1} parent=11 // pred_fallthru
        _
      // Predicated region
      $region33: #{modelv0_forward.1} parent=11 // pred_check
        %p441 = pneg %p175
      $region34: #{modelv0_forward.1} parent=11 // pred_check_branch
        %443 = sbr.rel (%p441) target = $region36
      $region35: #{modelv0_forward.1} parent=11 // pred_region
        _
      $region36: #{modelv0_forward.1} parent=11 // pred_fallthru
        _
      // Predicated region
      $region37: #{modelv0_forward.1} parent=11 // pred_check
        %p444 = pneg %p196
      $region38: #{modelv0_forward.1} parent=11 // pred_check_branch
        %446 = sbr.rel (%p444) target = $region40
      $region39: #{modelv0_forward.1} parent=11 // pred_region
        _
      $region40: #{modelv0_forward.1} parent=11 // pred_fallthru
        _
      // Predicated region
      $region41: #{modelv0_forward.1} parent=11 // pred_check
        %p447 = pneg %p217
      $region42: #{modelv0_forward.1} parent=11 // pred_check_branch
        %449 = sbr.rel (%p447) target = $region44
      $region43: #{modelv0_forward.1} parent=11 // pred_region
        _
      $region44: #{modelv0_forward.1} parent=11 // pred_fallthru
        _
      // Predicated region
      $region45: #{modelv0_forward.1} parent=11 // pred_check
        %p450 = pneg %p238
      $region46: #{modelv0_forward.1} parent=11 // pred_check_branch
        %452 = sbr.rel (%p450) target = $region48
      $region47: #{modelv0_forward.1} parent=11 // pred_region
        _
      $region48: #{modelv0_forward.1} parent=11 // pred_fallthru
        _
      // Predicated region
      $region49: #{modelv0_forward.1} parent=11 // pred_check
        %p453 = pneg %p259
      $region50: #{modelv0_forward.1} parent=11 // pred_check_branch
        %455 = sbr.rel (%p453) target = $region52
      $region51: #{modelv0_forward.1} parent=11 // pred_region
        _
      $region52: #{modelv0_forward.1} parent=11 // pred_fallthru
        _
      // Predicated region
      $region53: #{modelv0_forward.1} parent=11 // pred_check
        %p456 = pneg %p280
      $region54: #{modelv0_forward.1} parent=11 // pred_check_branch
        %458 = sbr.rel (%p456) target = $region56
      $region55: #{modelv0_forward.1} parent=11 // pred_region
        _
      $region56: #{modelv0_forward.1} parent=11 // pred_fallthru
        _
      // Predicated region
      $region57: #{modelv0_forward.1} parent=11 // pred_check
        %p459 = pneg %p301
      $region58: #{modelv0_forward.1} parent=11 // pred_check_branch
        %461 = sbr.rel (%p459) target = $region60
      $region59: #{modelv0_forward.1} parent=11 // pred_region
        _
      $region60: #{modelv0_forward.1} parent=11 // pred_fallthru
        _
      // Predicated region
      $region61: #{modelv0_forward.1} parent=11 // pred_check
        %p462 = pneg %p322
      $region62: #{modelv0_forward.1} parent=11 // pred_check_branch
        %464 = sbr.rel (%p462) target = $region64
      $region63: #{modelv0_forward.1} parent=11 // pred_region
        _
      $region64: #{modelv0_forward.1} parent=11 // pred_fallthru
        _
      // Predicated region
      $region65: #{modelv0_forward.1} parent=11 // pred_check
        %p465 = pneg %p343
      $region66: #{modelv0_forward.1} parent=11 // pred_check_branch
        %467 = sbr.rel (%p465) target = $region68
      $region67: #{modelv0_forward.1} parent=11 // pred_region
        _
      $region68: #{modelv0_forward.1} parent=11 // pred_fallthru
        _
      // Predicated region
      $region69: #{modelv0_forward.1} parent=11 // pred_check
        %p468 = pneg %p364
      $region70: #{modelv0_forward.1} parent=11 // pred_check_branch
        %470 = sbr.rel (%p468) target = $region72
      $region71: #{modelv0_forward.1} parent=11 // pred_region
        _
      $region72: #{modelv0_forward.1} parent=11 // pred_fallthru
        _
      // Predicated region
      $region73: #{modelv0_forward.1} parent=11 // pred_check
        %p471 = pneg %p385
      $region74: #{modelv0_forward.1} parent=11 // pred_check_branch
        %473 = sbr.rel (%p471) target = $region76
      $region75: #{modelv0_forward.1} parent=11 // pred_region
        _
      $region76: #{modelv0_forward.1} parent=11 // pred_fallthru
        _
    $region12: #{modelv0_forward.1} parent=5 // pred_fallthru
      _
    %p474 = scmp.lt.s32.totalorder %s23, 2
    // Predicated region
    $region77: #{modelv0_forward.1} parent=5 // pred_check
      %p475 = pneg %p474
    $region78: #{modelv0_forward.1} parent=5 // pred_check_branch
      %477 = sbr.rel (%p475) target = $region80
    $region79: #{modelv0_forward.1} parent=5 // pred_region
      // Predicated region
      $region81: #{modelv0_forward.1} parent=79 // pred_check
        %p478 = pneg %p43
      $region82: #{modelv0_forward.1} parent=79 // pred_check_branch
        %480 = sbr.rel (%p478) target = $region84
      $region83: #{modelv0_forward.1} parent=79 // pred_region
        %p481 = scmp.lt.s32.totalorder %s23, 1
        %s482 = scalar_select %p481, %s23, 1
        %s483 = smul.addr %s482, 192
        %s484 = smul.addr %s483, 8
        %s485 = scalar_lea.vmem %s0, %s484
      $region84: #{modelv0_forward.1} parent=79 // pred_fallthru
        _
    $region80: #{modelv0_forward.1} parent=5 // pred_fallthru
      _
    %p486 = scmp.le.s32.totalorder 1, %s23
    %p487 = scmp.lt.s32.totalorder %s23, 3
    %p488 = pnand %p486, %p487
    %p489 = pneg %p488
    // Predicated region
    $region85: #{modelv0_forward.1} parent=5 // pred_check
      _
    $region86: #{modelv0_forward.1} parent=5 // pred_check_branch
      %491 = sbr.rel (%p488) target = $region88
    $region87: #{modelv0_forward.1} parent=5 // pred_region
      %s492 = ssub.s32 %s23, 1
      %p493 = scmp.lt.s32.totalorder %s28, 1
      %s494 = scalar_select %p493, %s28, 1
      %s495 = smul.addr %s494, 192
      %s496 = smul.addr %s495, 8
      %s497 = scalar_lea.vmem %s0, %s496
      %p498 = pneg %p49
      %p499 = pneg %p46
      %p500 = pneg %p70
      %p501 = pneg %p67
      %p502 = pneg %p91
      %p503 = pneg %p88
      %p504 = pneg %p112
      %p505 = pneg %p109
      %p506 = pneg %p133
      %p507 = pneg %p130
      %p508 = pneg %p154
      %p509 = pneg %p151
      %p510 = pneg %p175
      %p511 = pneg %p172
      %p512 = pneg %p196
      %p513 = pneg %p193
      %p514 = pneg %p217
      %p515 = pneg %p214
      %p516 = pneg %p238
      %p517 = pneg %p235
      %p518 = pneg %p259
      %p519 = pneg %p256
      %p520 = pneg %p280
      %p521 = pneg %p277
      %p522 = pneg %p301
      %p523 = pneg %p298
      %p524 = pneg %p322
      %p525 = pneg %p319
      %p526 = pneg %p343
      %p527 = pneg %p340
      %p528 = pneg %p364
      %p529 = pneg %p361
      %p530 = pneg %p385
      %p531 = pneg %p382
      %p532 = pneg %p411
      %p533 = pneg %p408
      %p534 = scmp.lt.s32.totalorder %s28, 1
      %s535 = scalar_select %p534, %s28, 1
      %s536 = scalar_lea.vmem %s17, %s535
      %p537 = scmp.lt.s32.totalorder %s28, 1
      %s538 = scalar_select %p537, %s28, 1
      %s539 = smul.addr %s538, 192
      %s540 = smul.addr %s539, 8
      %s541 = scalar_lea.vmem %s0, %s540
      %p542 = scmp.lt.s32.totalorder %s28, 1
      %s543 = scalar_select %p542, %s28, 1
      %s544 = scalar_lea.vmem %s17, %s543
      %v545 = vld [vmem:[%s1] sm:$0xff]
      %s546 = scalar_lea.vmem %s1, 8
      %v547 = vld [vmem:[%s546] sm:$0xff]
      %s548 = scalar_lea.vmem %s1, 16
      %v549 = vld [vmem:[%s548] sm:$0xff]
      %v550 = vld [vmem:[%s2] sm:$0xff]
      loop: start=0, step=1, limit=190
      $region89: #{modelv0_forward.1} parent=87 // loop_pre_header
        _
      $region90: #{modelv0_forward.1} parent=87 // loop_header
        %s552 = sphi 0, %s556
        %p553 = scmp.ge.s32.totalorder %s552, 190
      $region91: #{modelv0_forward.1} parent=87 // loop_header_branch
        %555 = sbr.rel (%p553) target = $region95
      $region92: #{modelv0_forward.1} parent=87 // loop_body
        %s557 = smul.u32 %s552, 8
        %s558 = scalar_lea.vmem %s541, %s557
        %v559 = vld [vmem:[%s558] sm:$0xff]
        %v560 = vld [vmem:[%s558 + $0x8] sm:$0xff]
        %v561 = vld [vmem:[%s558 + $0x10] sm:$0xff]
        %565 = vrot.lane.b32.xlu0 %v559, 127
        %v566 = vpop.permute.xlu0 %565
        %567 = vrot.lane.b32.xlu0 %v560, 127
        %v568 = vpop.permute.xlu0 %567
        %569 = vrot.lane.b32.xlu0 %v561, 127
        %v570 = vpop.permute.xlu0 %569
        %vm574 = vcmask 195584
        %v576 = vsel %vm574, %v547, 0
        %578 = vmatprep.subr.mxu0 0.0
        %579 = vmatpush1.msra.mxu0 %v566
        %580 = vmatprep.subr.mxu0 0.0
        %581 = vmatpush1.msra.mxu0 %v568
        %582 = vmatprep.subr.mxu0 0.0
        %583 = vmatpush1.msra.mxu0 %v570
        %584 = vmatprep.subr.mxu0 0.0
        %585 = vmatpush1.msra.mxu0 0.0
        %586 = vmatprep.subr.mxu0 0.0
        %587 = vmatpush1.msra.mxu0 0.0
        %588 = vmatprep.subr.mxu0 0.0
        %589 = vmatpush1.msra.mxu0 0.0
        %590 = vmatprep.subr.mxu0 0.0
        %591 = vmatpush1.msra.mxu0 0.0
        %592 = vmatprep.subr.mxu0 0.0
        %593 = vmatpush1.msra.mxu0 0.0
        %594 = vmatprep.subr.mxu0 0.0
        %595 = vmatpush1.msra.mxu0 0.0
        %596 = vmatprep.subr.mxu0 0.0
        %597 = vmatpush1.msra.mxu0 0.0
        %598 = vmatprep.subr.mxu0 0.0
        %599 = vmatpush1.msra.mxu0 0.0
        %600 = vmatprep.subr.mxu0 0.0
        %601 = vmatpush1.msra.mxu0 0.0
        %602 = vmatprep.subr.mxu0 0.0
        %603 = vmatpush1.msra.mxu0 0.0
        %604 = vmatprep.subr.mxu0 0.0
        %605 = vmatpush1.msra.mxu0 0.0
        %606 = vmatprep.subr.mxu0 0.0
        %607 = vmatpush1.msra.mxu0 0.0
        %608 = vmatprep.subr.mxu0 0.0
        %609 = vmatpush1.msra.mxu0 0.0
        %610 = vmatprep.subr.mxu0 0.0
        %611 = vmatpush1.msra.mxu0 0.0
        %612 = vmatprep.subr.mxu0 0.0
        %613 = vmatpush1.msra.mxu0 0.0
        %614 = vmatprep.subr.mxu0 0.0
        %615 = vmatpush1.msra.mxu0 0.0
        %616 = vmatprep.subr.mxu0 0.0
        %617 = vmatpush1.msra.mxu0 0.0
        %618 = vmatprep.subr.mxu0 0.0
        %619 = vmatpush1.msra.mxu0 0.0
        %620 = vmatprep.subr.mxu0 0.0
        %621 = vmatpush1.msra.mxu0 0.0
        %622 = vmatprep.subr.mxu0 0.0
        %623 = vmatpush1.msra.mxu0 0.0
        %624 = vmatprep.subr.mxu0 0.0
        %625 = vmatpush1.msra.mxu0 0.0
        %626 = vmatprep.subr.mxu0 0.0
        %627 = vmatpush1.msra.mxu0 0.0
        %628 = vmatprep.subr.mxu0 0.0
        %629 = vmatpush1.msra.mxu0 0.0
        %630 = vmatprep.subr.mxu0 0.0
        %631 = vmatpush1.msra.mxu0 0.0
        %632 = vmatprep.subr.mxu0 0.0
        %633 = vmatpush1.msra.mxu0 0.0
        %634 = vmatprep.subr.mxu0 0.0
        %635 = vmatpush1.msra.mxu0 0.0
        %636 = vmatprep.subr.mxu0 0.0
        %637 = vmatpush1.msra.mxu0 0.0
        %638 = vmatprep.subr.mxu0 0.0
        %639 = vmatpush1.msra.mxu0 0.0
        %640 = vmatprep.subr.mxu0 0.0
        %641 = vmatpush1.msra.mxu0 0.0
        %642 = vmatprep.mubr.f32.mxu0 0.0
        %643 = vmatmul.mubr.f32.gmra.mrb[0].mxu0 %v576
        %v644 = vpop.f32.mrb[0].mxu0
        %v645 = vadd.f32 0.0, %v644
        %v646 = vpop.f32.mrb[0].mxu0
        %647 = vdwg.mxu0
        %v649 = vsel %vm574, %v545, 0
        %651 = vmatprep.subr.mxu0 0.0
        %652 = vmatpush1.msra.mxu0 %v559
        %653 = vmatprep.subr.mxu0 0.0
        %654 = vmatpush1.msra.mxu0 %v560
        %655 = vmatprep.subr.mxu0 0.0
        %656 = vmatpush1.msra.mxu0 %v561
        %657 = vmatprep.subr.mxu0 0.0
        %658 = vmatpush1.msra.mxu0 0.0
        %659 = vmatprep.subr.mxu0 0.0
        %660 = vmatpush1.msra.mxu0 0.0
        %661 = vmatprep.subr.mxu0 0.0
        %662 = vmatpush1.msra.mxu0 0.0
        %663 = vmatprep.subr.mxu0 0.0
        %664 = vmatpush1.msra.mxu0 0.0
        %665 = vmatprep.subr.mxu0 0.0
        %666 = vmatpush1.msra.mxu0 0.0
        %667 = vmatprep.subr.mxu0 0.0
        %668 = vmatpush1.msra.mxu0 0.0
        %669 = vmatprep.subr.mxu0 0.0
        %670 = vmatpush1.msra.mxu0 0.0
        %671 = vmatprep.subr.mxu0 0.0
        %672 = vmatpush1.msra.mxu0 0.0
        %673 = vmatprep.subr.mxu0 0.0
        %674 = vmatpush1.msra.mxu0 0.0
        %675 = vmatprep.subr.mxu0 0.0
        %676 = vmatpush1.msra.mxu0 0.0
        %677 = vmatprep.subr.mxu0 0.0
        %678 = vmatpush1.msra.mxu0 0.0
        %679 = vmatprep.subr.mxu0 0.0
        %680 = vmatpush1.msra.mxu0 0.0
        %681 = vmatprep.subr.mxu0 0.0
        %682 = vmatpush1.msra.mxu0 0.0
        %683 = vmatprep.subr.mxu0 0.0
        %684 = vmatpush1.msra.mxu0 0.0
        %685 = vmatprep.subr.mxu0 0.0
        %686 = vmatpush1.msra.mxu0 0.0
        %687 = vmatprep.subr.mxu0 0.0
        %688 = vmatpush1.msra.mxu0 0.0
        %689 = vmatprep.subr.mxu0 0.0
        %690 = vmatpush1.msra.mxu0 0.0
        %691 = vmatprep.subr.mxu0 0.0
        %692 = vmatpush1.msra.mxu0 0.0
        %693 = vmatprep.subr.mxu0 0.0
        %694 = vmatpush1.msra.mxu0 0.0
        %695 = vmatprep.subr.mxu0 0.0
        %696 = vmatpush1.msra.mxu0 0.0
        %697 = vmatprep.subr.mxu0 0.0
        %698 = vmatpush1.msra.mxu0 0.0
        %699 = vmatprep.subr.mxu0 0.0
        %700 = vmatpush1.msra.mxu0 0.0
        %701 = vmatprep.subr.mxu0 0.0
        %702 = vmatpush1.msra.mxu0 0.0
        %703 = vmatprep.subr.mxu0 0.0
        %704 = vmatpush1.msra.mxu0 0.0
        %705 = vmatprep.subr.mxu0 0.0
        %706 = vmatpush1.msra.mxu0 0.0
        %707 = vmatprep.subr.mxu0 0.0
        %708 = vmatpush1.msra.mxu0 0.0
        %709 = vmatprep.subr.mxu0 0.0
        %710 = vmatpush1.msra.mxu0 0.0
        %711 = vmatprep.subr.mxu0 0.0
        %712 = vmatpush1.msra.mxu0 0.0
        %713 = vmatprep.subr.mxu0 0.0
        %714 = vmatpush1.msra.mxu0 0.0
        %715 = vmatprep.mubr.f32.mxu0 0.0
        %716 = vmatmul.mubr.f32.gmra.mrb[0].mxu0 %v649
        %v717 = vpop.f32.mrb[0].mxu0
        %v718 = vadd.f32 %v645, %v717
        %v719 = vpop.f32.mrb[0].mxu0
        %720 = vdwg.mxu0
        %721 = vrot.lane.b32.xlu0 %v559, 126
        %v722 = vpop.permute.xlu0 %721
        %723 = vrot.lane.b32.xlu0 %v560, 126
        %v724 = vpop.permute.xlu0 %723
        %725 = vrot.lane.b32.xlu0 %v561, 126
        %v726 = vpop.permute.xlu0 %725
        %v731 = vsel %vm574, %v549, 0
        %733 = vmatprep.subr.mxu0 0.0
        %734 = vmatpush1.msra.mxu0 %v722
        %735 = vmatprep.subr.mxu0 0.0
        %736 = vmatpush1.msra.mxu0 %v724
        %737 = vmatprep.subr.mxu0 0.0
        %738 = vmatpush1.msra.mxu0 %v726
        %739 = vmatprep.subr.mxu0 0.0
        %740 = vmatpush1.msra.mxu0 0.0
        %741 = vmatprep.subr.mxu0 0.0
        %742 = vmatpush1.msra.mxu0 0.0
        %743 = vmatprep.subr.mxu0 0.0
        %744 = vmatpush1.msra.mxu0 0.0
        %745 = vmatprep.subr.mxu0 0.0
        %746 = vmatpush1.msra.mxu0 0.0
        %747 = vmatprep.subr.mxu0 0.0
        %748 = vmatpush1.msra.mxu0 0.0
        %749 = vmatprep.subr.mxu0 0.0
        %750 = vmatpush1.msra.mxu0 0.0
        %751 = vmatprep.subr.mxu0 0.0
        %752 = vmatpush1.msra.mxu0 0.0
        %753 = vmatprep.subr.mxu0 0.0
        %754 = vmatpush1.msra.mxu0 0.0
        %755 = vmatprep.subr.mxu0 0.0
        %756 = vmatpush1.msra.mxu0 0.0
        %757 = vmatprep.subr.mxu0 0.0
        %758 = vmatpush1.msra.mxu0 0.0
        %759 = vmatprep.subr.mxu0 0.0
        %760 = vmatpush1.msra.mxu0 0.0
        %761 = vmatprep.subr.mxu0 0.0
        %762 = vmatpush1.msra.mxu0 0.0
        %763 = vmatprep.subr.mxu0 0.0
        %764 = vmatpush1.msra.mxu0 0.0
        %765 = vmatprep.subr.mxu0 0.0
        %766 = vmatpush1.msra.mxu0 0.0
        %767 = vmatprep.subr.mxu0 0.0
        %768 = vmatpush1.msra.mxu0 0.0
        %769 = vmatprep.subr.mxu0 0.0
        %770 = vmatpush1.msra.mxu0 0.0
        %771 = vmatprep.subr.mxu0 0.0
        %772 = vmatpush1.msra.mxu0 0.0
        %773 = vmatprep.subr.mxu0 0.0
        %774 = vmatpush1.msra.mxu0 0.0
        %775 = vmatprep.subr.mxu0 0.0
        %776 = vmatpush1.msra.mxu0 0.0
        %777 = vmatprep.subr.mxu0 0.0
        %778 = vmatpush1.msra.mxu0 0.0
        %779 = vmatprep.subr.mxu0 0.0
        %780 = vmatpush1.msra.mxu0 0.0
        %781 = vmatprep.subr.mxu0 0.0
        %782 = vmatpush1.msra.mxu0 0.0
        %783 = vmatprep.subr.mxu0 0.0
        %784 = vmatpush1.msra.mxu0 0.0
        %785 = vmatprep.subr.mxu0 0.0
        %786 = vmatpush1.msra.mxu0 0.0
        %787 = vmatprep.subr.mxu0 0.0
        %788 = vmatpush1.msra.mxu0 0.0
        %789 = vmatprep.subr.mxu0 0.0
        %790 = vmatpush1.msra.mxu0 0.0
        %791 = vmatprep.subr.mxu0 0.0
        %792 = vmatpush1.msra.mxu0 0.0
        %793 = vmatprep.subr.mxu0 0.0
        %794 = vmatpush1.msra.mxu0 0.0
        %795 = vmatprep.subr.mxu0 0.0
        %796 = vmatpush1.msra.mxu0 0.0
        %797 = vmatprep.mubr.f32.mxu0 0.0
        %798 = vmatmul.mubr.f32.gmra.mrb[0].mxu0 %v731
        %v799 = vpop.f32.mrb[0].mxu0
        %v800 = vadd.f32 0.0, %v799
        %v801 = vpop.f32.mrb[0].mxu0
        %802 = vdwg.mxu0
        %v803 = vadd.f32 %v718, %v800
        %805 = vset.pattern.permute.xlu0 0
        %806 = vperm.xlu0 %805, %v550
        %v807 = vpop.permute.xlu0 %806
        %v809 = vadd.f32 %v803, %v807
        %s810 = scalar_lea.vmem [#allocation2], %s557
        %vm811 = vcmask 1031168
        %812 = vst.msk [vmem:[%s810] sm:$0xff] %vm811, %v809
      $region93: #{modelv0_forward.1} parent=87 // loop_footer
        %s556 = sadd.s32 1, %s552
      $region94: #{modelv0_forward.1} parent=87 // loop_footer_branch
        %551 = sbr.rel target = $region90
      $region95: #{modelv0_forward.1} parent=87 // loop_exit
        _
      %v813 = vld [vmem:[%s3] sm:$0xff]
      %v814 = vld [vmem:[%s3 + $0x8] sm:$0xff]
      %s815 = scalar_lea.vmem %s3, 16
      %v816 = vld [vmem:[%s815] sm:$0xff]
      %v817 = vld [vmem:[%s815 + $0x8] sm:$0xff]
      %s818 = scalar_lea.vmem %s3, 32
      %v819 = vld [vmem:[%s818] sm:$0xff]
      %v820 = vld [vmem:[%s818 + $0x8] sm:$0xff]
      %v821 = vld [vmem:[%s4] sm:$0xff]
      %v822 = vld [vmem:[%s4 + $0x8] sm:$0xff]
      %v823 = vlaneseq
      %v824 = vshrl.u32 %v823, 7
      %v825 = vadd.s32 %v824, 8
      %v826 = vadd.s32 %v824, 16
      %v827 = vadd.s32 %v824, 24
      %v828 = vadd.s32 %v824, 32
      %v829 = vadd.s32 %v824, 40
      %v830 = vadd.s32 %v824, 48
      %v831 = vadd.s32 %v824, 56
      %v832 = vadd.s32 %v824, 64
      %v833 = vadd.s32 %v824, 72
      %v834 = vadd.s32 %v824, 80
      %v835 = vadd.s32 %v824, 88
      %v836 = vadd.s32 %v824, 96
      %v837 = vadd.s32 %v824, 104
      %v838 = vadd.s32 %v824, 112
      %v839 = vadd.s32 %v824, 120
      %v840 = vlaneseq
      %v841 = vand.u32 %v840, 127
      %v842 = vmul.u32 %v841, 2
      %vm843 = vcmp.eq.s32.totalorder %v824, %v842
      %vm844 = vcmp.eq.s32.totalorder %v825, %v842
      %vm845 = vcmp.eq.s32.totalorder %v826, %v842
      %vm846 = vcmp.eq.s32.totalorder %v827, %v842
      %vm847 = vcmp.eq.s32.totalorder %v828, %v842
      %vm848 = vcmp.eq.s32.totalorder %v829, %v842
      %vm849 = vcmp.eq.s32.totalorder %v830, %v842
      %vm850 = vcmp.eq.s32.totalorder %v831, %v842
      %vm851 = vcmp.eq.s32.totalorder %v832, %v842
      %vm852 = vcmp.eq.s32.totalorder %v833, %v842
      %vm853 = vcmp.eq.s32.totalorder %v834, %v842
      %vm854 = vcmp.eq.s32.totalorder %v835, %v842
      %vm855 = vcmp.eq.s32.totalorder %v836, %v842
      %vm856 = vcmp.eq.s32.totalorder %v837, %v842
      %vm857 = vcmp.eq.s32.totalorder %v838, %v842
      %vm858 = vcmp.eq.s32.totalorder %v839, %v842
      %v859 = vsel %vm843, 1, 0
      %v860 = vsel %vm844, 1, 0
      %v861 = vsel %vm845, 1, 0
      %v862 = vsel %vm846, 1, 0
      %v863 = vsel %vm847, 1, 0
      %v864 = vsel %vm848, 1, 0
      %v865 = vsel %vm849, 1, 0
      %v866 = vsel %vm850, 1, 0
      %v867 = vsel %vm851, 1, 0
      %v868 = vsel %vm852, 1, 0
      %v869 = vsel %vm853, 1, 0
      %v870 = vsel %vm854, 1, 0
      %v871 = vsel %vm855, 1, 0
      %v872 = vsel %vm856, 1, 0
      %v873 = vsel %vm857, 1, 0
      %v874 = vsel %vm858, 1, 0
      %v875 = vcvt.s32.f32 %v859
      %v876 = vcvt.s32.f32 %v860
      %v877 = vcvt.s32.f32 %v861
      %v878 = vcvt.s32.f32 %v862
      %v879 = vcvt.s32.f32 %v863
      %v880 = vcvt.s32.f32 %v864
      %v881 = vcvt.s32.f32 %v865
      %v882 = vcvt.s32.f32 %v866
      %v883 = vcvt.s32.f32 %v867
      %v884 = vcvt.s32.f32 %v868
      %v885 = vcvt.s32.f32 %v869
      %v886 = vcvt.s32.f32 %v870
      %v887 = vcvt.s32.f32 %v871
      %v888 = vcvt.s32.f32 %v872
      %v889 = vcvt.s32.f32 %v873
      %v890 = vcvt.s32.f32 %v874
      %v891 = vadd.s32 %v842, 1
      %vm892 = vcmp.eq.s32.totalorder %v824, %v891
      %vm893 = vcmp.eq.s32.totalorder %v825, %v891
      %vm894 = vcmp.eq.s32.totalorder %v826, %v891
      %vm895 = vcmp.eq.s32.totalorder %v827, %v891
      %vm896 = vcmp.eq.s32.totalorder %v828, %v891
      %vm897 = vcmp.eq.s32.totalorder %v829, %v891
      %vm898 = vcmp.eq.s32.totalorder %v830, %v891
      %vm899 = vcmp.eq.s32.totalorder %v831, %v891
      %vm900 = vcmp.eq.s32.totalorder %v832, %v891
      %vm901 = vcmp.eq.s32.totalorder %v833, %v891
      %vm902 = vcmp.eq.s32.totalorder %v834, %v891
      %vm903 = vcmp.eq.s32.totalorder %v835, %v891
      %vm904 = vcmp.eq.s32.totalorder %v836, %v891
      %vm905 = vcmp.eq.s32.totalorder %v837, %v891
      %vm906 = vcmp.eq.s32.totalorder %v838, %v891
      %vm907 = vcmp.eq.s32.totalorder %v839, %v891
      %v908 = vsel %vm892, 1, 0
      %v909 = vsel %vm893, 1, 0
      %v910 = vsel %vm894, 1, 0
      %v911 = vsel %vm895, 1, 0
      %v912 = vsel %vm896, 1, 0
      %v913 = vsel %vm897, 1, 0
      %v914 = vsel %vm898, 1, 0
      %v915 = vsel %vm899, 1, 0
      %v916 = vsel %vm900, 1, 0
      %v917 = vsel %vm901, 1, 0
      %v918 = vsel %vm902, 1, 0
      %v919 = vsel %vm903, 1, 0
      %v920 = vsel %vm904, 1, 0
      %v921 = vsel %vm905, 1, 0
      %v922 = vsel %vm906, 1, 0
      %v923 = vsel %vm907, 1, 0
      %v924 = vcvt.s32.f32 %v908
      %v925 = vcvt.s32.f32 %v909
      %v926 = vcvt.s32.f32 %v910
      %v927 = vcvt.s32.f32 %v911
      %v928 = vcvt.s32.f32 %v912
      %v929 = vcvt.s32.f32 %v913
      %v930 = vcvt.s32.f32 %v914
      %v931 = vcvt.s32.f32 %v915
      %v932 = vcvt.s32.f32 %v916
      %v933 = vcvt.s32.f32 %v917
      %v934 = vcvt.s32.f32 %v918
      %v935 = vcvt.s32.f32 %v919
      %v936 = vcvt.s32.f32 %v920
      %v937 = vcvt.s32.f32 %v921
      %v938 = vcvt.s32.f32 %v922
      %v939 = vcvt.s32.f32 %v923
      loop: start=0, step=1, limit=94
      $region96: #{modelv0_forward.1} parent=87 // loop_pre_header
        _
      $region97: #{modelv0_forward.1} parent=87 // loop_header
        %s941 = sphi 0, %s945
        %p942 = scmp.ge.s32.totalorder %s941, 94
      $region98: #{modelv0_forward.1} parent=87 // loop_header_branch
        %944 = sbr.rel (%p942) target = $region102
      $region99: #{modelv0_forward.1} parent=87 // loop_body
        %s946 = smul.u32 %s941, 16
        %s947 = scalar_lea.vmem [#allocation2], %s946
        %v948 = vld [vmem:[%s947] sm:$0xff]
        %v949 = vld [vmem:[%s947 + $0x8] sm:$0xff]
        %v950 = vld [vmem:[%s947 + $0x10] sm:$0xff]
        %954 = vrot.lane.b32.xlu0 %v948, 127
        %v955 = vpop.permute.xlu0 %954
        %956 = vrot.lane.b32.xlu0 %v949, 127
        %v957 = vpop.permute.xlu0 %956
        %958 = vrot.lane.b32.xlu0 %v950, 127
        %v959 = vpop.permute.xlu0 %958
        %vm963 = vcmask 195584
        %v965 = vsel %vm963, %v816, 0
        %v968 = vsel %vm963, %v817, 0
        %970 = vmatprep.subr.mxu0 0.0
        %971 = vmatpush1.msra.mxu0 %v955
        %972 = vmatprep.subr.mxu0 0.0
        %973 = vmatpush1.msra.mxu0 %v957
        %974 = vmatprep.subr.mxu0 0.0
        %975 = vmatpush1.msra.mxu0 %v959
        %976 = vmatprep.subr.mxu0 0.0
        %977 = vmatpush1.msra.mxu0 0.0
        %978 = vmatprep.subr.mxu0 0.0
        %979 = vmatpush1.msra.mxu0 0.0
        %980 = vmatprep.subr.mxu0 0.0
        %981 = vmatpush1.msra.mxu0 0.0
        %982 = vmatprep.subr.mxu0 0.0
        %983 = vmatpush1.msra.mxu0 0.0
        %984 = vmatprep.subr.mxu0 0.0
        %985 = vmatpush1.msra.mxu0 0.0
        %986 = vmatprep.subr.mxu0 0.0
        %987 = vmatpush1.msra.mxu0 0.0
        %988 = vmatprep.subr.mxu0 0.0
        %989 = vmatpush1.msra.mxu0 0.0
        %990 = vmatprep.subr.mxu0 0.0
        %991 = vmatpush1.msra.mxu0 0.0
        %992 = vmatprep.subr.mxu0 0.0
        %993 = vmatpush1.msra.mxu0 0.0
        %994 = vmatprep.subr.mxu0 0.0
        %995 = vmatpush1.msra.mxu0 0.0
        %996 = vmatprep.subr.mxu0 0.0
        %997 = vmatpush1.msra.mxu0 0.0
        %998 = vmatprep.subr.mxu0 0.0
        %999 = vmatpush1.msra.mxu0 0.0
        %1000 = vmatprep.subr.mxu0 0.0
        %1001 = vmatpush1.msra.mxu0 0.0
        %1002 = vmatprep.subr.mxu0 0.0
        %1003 = vmatpush1.msra.mxu0 0.0
        %1004 = vmatprep.subr.mxu0 0.0
        %1005 = vmatpush1.msra.mxu0 0.0
        %1006 = vmatprep.subr.mxu0 0.0
        %1007 = vmatpush1.msra.mxu0 0.0
        %1008 = vmatprep.subr.mxu0 0.0
        %1009 = vmatpush1.msra.mxu0 0.0
        %1010 = vmatprep.subr.mxu0 0.0
        %1011 = vmatpush1.msra.mxu0 0.0
        %1012 = vmatprep.subr.mxu0 0.0
        %1013 = vmatpush1.msra.mxu0 0.0
        %1014 = vmatprep.subr.mxu0 0.0
        %1015 = vmatpush1.msra.mxu0 0.0
        %1016 = vmatprep.subr.mxu0 0.0
        %1017 = vmatpush1.msra.mxu0 0.0
        %1018 = vmatprep.subr.mxu0 0.0
        %1019 = vmatpush1.msra.mxu0 0.0
        %1020 = vmatprep.subr.mxu0 0.0
        %1021 = vmatpush1.msra.mxu0 0.0
        %1022 = vmatprep.subr.mxu0 0.0
        %1023 = vmatpush1.msra.mxu0 0.0
        %1024 = vmatprep.subr.mxu0 0.0
        %1025 = vmatpush1.msra.mxu0 0.0
        %1026 = vmatprep.subr.mxu0 0.0
        %1027 = vmatpush1.msra.mxu0 0.0
        %1028 = vmatprep.subr.mxu0 0.0
        %1029 = vmatpush1.msra.mxu0 0.0
        %1030 = vmatprep.subr.mxu0 0.0
        %1031 = vmatpush1.msra.mxu0 0.0
        %1032 = vmatprep.subr.mxu0 0.0
        %1033 = vmatpush1.msra.mxu0 0.0
        %1034 = vmatprep.mubr.f32.mxu0 0.0
        %1035 = vmatmul.mubr.f32.gmra.mrb[0].mxu0 %v965
        %v1036 = vpop.f32.mrb[0].mxu0
        %v1037 = vadd.f32 0.0, %v1036
        %v1038 = vpop.f32.mrb[0].mxu0
        %1039 = vmatprep.mubr.f32.mxu0 0.0
        %1040 = vmatmul.mubr.f32.gmra.mrb[0].mxu0 %v968
        %v1041 = vpop.f32.mrb[0].mxu0
        %v1042 = vadd.f32 0.0, %v1041
        %v1043 = vpop.f32.mrb[0].mxu0
        %1044 = vdwg.mxu0
        %v1046 = vsel %vm963, %v813, 0
        %v1049 = vsel %vm963, %v814, 0
        %1051 = vmatprep.subr.mxu0 0.0
        %1052 = vmatpush1.msra.mxu0 %v948
        %1053 = vmatprep.subr.mxu0 0.0
        %1054 = vmatpush1.msra.mxu0 %v949
        %1055 = vmatprep.subr.mxu0 0.0
        %1056 = vmatpush1.msra.mxu0 %v950
        %1057 = vmatprep.subr.mxu0 0.0
        %1058 = vmatpush1.msra.mxu0 0.0
        %1059 = vmatprep.subr.mxu0 0.0
        %1060 = vmatpush1.msra.mxu0 0.0
        %1061 = vmatprep.subr.mxu0 0.0
        %1062 = vmatpush1.msra.mxu0 0.0
        %1063 = vmatprep.subr.mxu0 0.0
        %1064 = vmatpush1.msra.mxu0 0.0
        %1065 = vmatprep.subr.mxu0 0.0
        %1066 = vmatpush1.msra.mxu0 0.0
        %1067 = vmatprep.subr.mxu0 0.0
        %1068 = vmatpush1.msra.mxu0 0.0
        %1069 = vmatprep.subr.mxu0 0.0
        %1070 = vmatpush1.msra.mxu0 0.0
        %1071 = vmatprep.subr.mxu0 0.0
        %1072 = vmatpush1.msra.mxu0 0.0
        %1073 = vmatprep.subr.mxu0 0.0
        %1074 = vmatpush1.msra.mxu0 0.0
        %1075 = vmatprep.subr.mxu0 0.0
        %1076 = vmatpush1.msra.mxu0 0.0
        %1077 = vmatprep.subr.mxu0 0.0
        %1078 = vmatpush1.msra.mxu0 0.0
        %1079 = vmatprep.subr.mxu0 0.0
        %1080 = vmatpush1.msra.mxu0 0.0
        %1081 = vmatprep.subr.mxu0 0.0
        %1082 = vmatpush1.msra.mxu0 0.0
        %1083 = vmatprep.subr.mxu0 0.0
        %1084 = vmatpush1.msra.mxu0 0.0
        %1085 = vmatprep.subr.mxu0 0.0
        %1086 = vmatpush1.msra.mxu0 0.0
        %1087 = vmatprep.subr.mxu0 0.0
        %1088 = vmatpush1.msra.mxu0 0.0
        %1089 = vmatprep.subr.mxu0 0.0
        %1090 = vmatpush1.msra.mxu0 0.0
        %1091 = vmatprep.subr.mxu0 0.0
        %1092 = vmatpush1.msra.mxu0 0.0
        %1093 = vmatprep.subr.mxu0 0.0
        %1094 = vmatpush1.msra.mxu0 0.0
        %1095 = vmatprep.subr.mxu0 0.0
        %1096 = vmatpush1.msra.mxu0 0.0
        %1097 = vmatprep.subr.mxu0 0.0
        %1098 = vmatpush1.msra.mxu0 0.0
        %1099 = vmatprep.subr.mxu0 0.0
        %1100 = vmatpush1.msra.mxu0 0.0
        %1101 = vmatprep.subr.mxu0 0.0
        %1102 = vmatpush1.msra.mxu0 0.0
        %1103 = vmatprep.subr.mxu0 0.0
        %1104 = vmatpush1.msra.mxu0 0.0
        %1105 = vmatprep.subr.mxu0 0.0
        %1106 = vmatpush1.msra.mxu0 0.0
        %1107 = vmatprep.subr.mxu0 0.0
        %1108 = vmatpush1.msra.mxu0 0.0
        %1109 = vmatprep.subr.mxu0 0.0
        %1110 = vmatpush1.msra.mxu0 0.0
        %1111 = vmatprep.subr.mxu0 0.0
        %1112 = vmatpush1.msra.mxu0 0.0
        %1113 = vmatprep.subr.mxu0 0.0
        %1114 = vmatpush1.msra.mxu0 0.0
        %1115 = vmatprep.mubr.f32.mxu0 0.0
        %1116 = vmatmul.mubr.f32.gmra.mrb[0].mxu0 %v1046
        %v1117 = vpop.f32.mrb[0].mxu0
        %v1118 = vadd.f32 %v1037, %v1117
        %v1119 = vpop.f32.mrb[0].mxu0
        %1120 = vmatprep.mubr.f32.mxu0 0.0
        %1121 = vmatmul.mubr.f32.gmra.mrb[0].mxu0 %v1049
        %v1122 = vpop.f32.mrb[0].mxu0
        %v1123 = vadd.f32 %v1042, %v1122
        %v1124 = vpop.f32.mrb[0].mxu0
        %1125 = vdwg.mxu0
        %1126 = vrot.lane.b32.xlu0 %v948, 126
        %v1127 = vpop.permute.xlu0 %1126
        %1128 = vrot.lane.b32.xlu0 %v949, 126
        %v1129 = vpop.permute.xlu0 %1128
        %1130 = vrot.lane.b32.xlu0 %v950, 126
        %v1131 = vpop.permute.xlu0 %1130
        %v1136 = vsel %vm963, %v819, 0
        %v1139 = vsel %vm963, %v820, 0
        %1141 = vmatprep.subr.mxu0 0.0
        %1142 = vmatpush1.msra.mxu0 %v1127
        %1143 = vmatprep.subr.mxu0 0.0
        %1144 = vmatpush1.msra.mxu0 %v1129
        %1145 = vmatprep.subr.mxu0 0.0
        %1146 = vmatpush1.msra.mxu0 %v1131
        %1147 = vmatprep.subr.mxu0 0.0
        %1148 = vmatpush1.msra.mxu0 0.0
        %1149 = vmatprep.subr.mxu0 0.0
        %1150 = vmatpush1.msra.mxu0 0.0
        %1151 = vmatprep.subr.mxu0 0.0
        %1152 = vmatpush1.msra.mxu0 0.0
        %1153 = vmatprep.subr.mxu0 0.0
        %1154 = vmatpush1.msra.mxu0 0.0
        %1155 = vmatprep.subr.mxu0 0.0
        %1156 = vmatpush1.msra.mxu0 0.0
        %1157 = vmatprep.subr.mxu0 0.0
        %1158 = vmatpush1.msra.mxu0 0.0
        %1159 = vmatprep.subr.mxu0 0.0
        %1160 = vmatpush1.msra.mxu0 0.0
        %1161 = vmatprep.subr.mxu0 0.0
        %1162 = vmatpush1.msra.mxu0 0.0
        %1163 = vmatprep.subr.mxu0 0.0
        %1164 = vmatpush1.msra.mxu0 0.0
        %1165 = vmatprep.subr.mxu0 0.0
        %1166 = vmatpush1.msra.mxu0 0.0
        %1167 = vmatprep.subr.mxu0 0.0
        %1168 = vmatpush1.msra.mxu0 0.0
        %1169 = vmatprep.subr.mxu0 0.0
        %1170 = vmatpush1.msra.mxu0 0.0
        %1171 = vmatprep.subr.mxu0 0.0
        %1172 = vmatpush1.msra.mxu0 0.0
        %1173 = vmatprep.subr.mxu0 0.0
        %1174 = vmatpush1.msra.mxu0 0.0
        %1175 = vmatprep.subr.mxu0 0.0
        %1176 = vmatpush1.msra.mxu0 0.0
        %1177 = vmatprep.subr.mxu0 0.0
        %1178 = vmatpush1.msra.mxu0 0.0
        %1179 = vmatprep.subr.mxu0 0.0
        %1180 = vmatpush1.msra.mxu0 0.0
        %1181 = vmatprep.subr.mxu0 0.0
        %1182 = vmatpush1.msra.mxu0 0.0
        %1183 = vmatprep.subr.mxu0 0.0
        %1184 = vmatpush1.msra.mxu0 0.0
        %1185 = vmatprep.subr.mxu0 0.0
        %1186 = vmatpush1.msra.mxu0 0.0
        %1187 = vmatprep.subr.mxu0 0.0
        %1188 = vmatpush1.msra.mxu0 0.0
        %1189 = vmatprep.subr.mxu0 0.0
        %1190 = vmatpush1.msra.mxu0 0.0
        %1191 = vmatprep.subr.mxu0 0.0
        %1192 = vmatpush1.msra.mxu0 0.0
        %1193 = vmatprep.subr.mxu0 0.0
        %1194 = vmatpush1.msra.mxu0 0.0
        %1195 = vmatprep.subr.mxu0 0.0
        %1196 = vmatpush1.msra.mxu0 0.0
        %1197 = vmatprep.subr.mxu0 0.0
        %1198 = vmatpush1.msra.mxu0 0.0
        %1199 = vmatprep.subr.mxu0 0.0
        %1200 = vmatpush1.msra.mxu0 0.0
        %1201 = vmatprep.subr.mxu0 0.0
        %1202 = vmatpush1.msra.mxu0 0.0
        %1203 = vmatprep.subr.mxu0 0.0
        %1204 = vmatpush1.msra.mxu0 0.0
        %1205 = vmatprep.mubr.f32.mxu0 0.0
        %1206 = vmatmul.mubr.f32.gmra.mrb[0].mxu0 %v1136
        %v1207 = vpop.f32.mrb[0].mxu0
        %v1208 = vadd.f32 0.0, %v1207
        %v1209 = vpop.f32.mrb[0].mxu0
        %1210 = vmatprep.mubr.f32.mxu0 0.0
        %1211 = vmatmul.mubr.f32.gmra.mrb[0].mxu0 %v1139
        %v1212 = vpop.f32.mrb[0].mxu0
        %v1213 = vadd.f32 0.0, %v1212
        %v1214 = vpop.f32.mrb[0].mxu0
        %1215 = vdwg.mxu0
        %v1216 = vadd.f32 %v1118, %v1208
        %v1217 = vadd.f32 %v1123, %v1213
        %1219 = vset.pattern.permute.xlu0 0
        %1220 = vperm.xlu0 %1219, %v821
        %v1221 = vpop.permute.xlu0 %1220
        %1224 = vset.pattern.permute.xlu0 0
        %1225 = vperm.xlu0 %1224, %v822
        %v1226 = vpop.permute.xlu0 %1225
        %v1228 = vadd.f32 %v1216, %v1221
        %v1229 = vadd.f32 %v1217, %v1226
        %s1230 = smul.u32 %s941, 2
        %s1231 = sadd.s32 %s1230, 1
        %s1232 = smul.u32 %s1231, 8
        %s1233 = scalar_lea.vmem [#allocation2], %s1232
        %v1234 = vld [vmem:[%s1233] sm:$0xff]
        %v1235 = vld [vmem:[%s1233 + $0x8] sm:$0xff]
        %v1236 = vld [vmem:[%s1233 + $0x10] sm:$0xff]
        %1240 = vrot.lane.b32.xlu0 %v1234, 127
        %v1241 = vpop.permute.xlu0 %1240
        %1242 = vrot.lane.b32.xlu0 %v1235, 127
        %v1243 = vpop.permute.xlu0 %1242
        %1244 = vrot.lane.b32.xlu0 %v1236, 127
        %v1245 = vpop.permute.xlu0 %1244
        %1249 = vmatprep.subr.mxu0 0.0
        %1250 = vmatpush1.msra.mxu0 %v1241
        %1251 = vmatprep.subr.mxu0 0.0
        %1252 = vmatpush1.msra.mxu0 %v1243
        %1253 = vmatprep.subr.mxu0 0.0
        %1254 = vmatpush1.msra.mxu0 %v1245
        %1255 = vmatprep.subr.mxu0 0.0
        %1256 = vmatpush1.msra.mxu0 0.0
        %1257 = vmatprep.subr.mxu0 0.0
        %1258 = vmatpush1.msra.mxu0 0.0
        %1259 = vmatprep.subr.mxu0 0.0
        %1260 = vmatpush1.msra.mxu0 0.0
        %1261 = vmatprep.subr.mxu0 0.0
        %1262 = vmatpush1.msra.mxu0 0.0
        %1263 = vmatprep.subr.mxu0 0.0
        %1264 = vmatpush1.msra.mxu0 0.0
        %1265 = vmatprep.subr.mxu0 0.0
        %1266 = vmatpush1.msra.mxu0 0.0
        %1267 = vmatprep.subr.mxu0 0.0
        %1268 = vmatpush1.msra.mxu0 0.0
        %1269 = vmatprep.subr.mxu0 0.0
        %1270 = vmatpush1.msra.mxu0 0.0
        %1271 = vmatprep.subr.mxu0 0.0
        %1272 = vmatpush1.msra.mxu0 0.0
        %1273 = vmatprep.subr.mxu0 0.0
        %1274 = vmatpush1.msra.mxu0 0.0
        %1275 = vmatprep.subr.mxu0 0.0
        %1276 = vmatpush1.msra.mxu0 0.0
        %1277 = vmatprep.subr.mxu0 0.0
        %1278 = vmatpush1.msra.mxu0 0.0
        %1279 = vmatprep.subr.mxu0 0.0
        %1280 = vmatpush1.msra.mxu0 0.0
        %1281 = vmatprep.subr.mxu0 0.0
        %1282 = vmatpush1.msra.mxu0 0.0
        %1283 = vmatprep.subr.mxu0 0.0
        %1284 = vmatpush1.msra.mxu0 0.0
        %1285 = vmatprep.subr.mxu0 0.0
        %1286 = vmatpush1.msra.mxu0 0.0
        %1287 = vmatprep.subr.mxu0 0.0
        %1288 = vmatpush1.msra.mxu0 0.0
        %1289 = vmatprep.subr.mxu0 0.0
        %1290 = vmatpush1.msra.mxu0 0.0
        %1291 = vmatprep.subr.mxu0 0.0
        %1292 = vmatpush1.msra.mxu0 0.0
        %1293 = vmatprep.subr.mxu0 0.0
        %1294 = vmatpush1.msra.mxu0 0.0
        %1295 = vmatprep.subr.mxu0 0.0
        %1296 = vmatpush1.msra.mxu0 0.0
        %1297 = vmatprep.subr.mxu0 0.0
        %1298 = vmatpush1.msra.mxu0 0.0
        %1299 = vmatprep.subr.mxu0 0.0
        %1300 = vmatpush1.msra.mxu0 0.0
        %1301 = vmatprep.subr.mxu0 0.0
        %1302 = vmatpush1.msra.mxu0 0.0
        %1303 = vmatprep.subr.mxu0 0.0
        %1304 = vmatpush1.msra.mxu0 0.0
        %1305 = vmatprep.subr.mxu0 0.0
        %1306 = vmatpush1.msra.mxu0 0.0
        %1307 = vmatprep.subr.mxu0 0.0
        %1308 = vmatpush1.msra.mxu0 0.0
        %1309 = vmatprep.subr.mxu0 0.0
        %1310 = vmatpush1.msra.mxu0 0.0
        %1311 = vmatprep.subr.mxu0 0.0
        %1312 = vmatpush1.msra.mxu0 0.0
        %1313 = vmatprep.mubr.f32.mxu0 0.0
        %1314 = vmatmul.mubr.f32.gmra.mrb[0].mxu0 %v965
        %v1315 = vpop.f32.mrb[0].mxu0
        %v1316 = vadd.f32 0.0, %v1315
        %v1317 = vpop.f32.mrb[0].mxu0
        %1318 = vmatprep.mubr.f32.mxu0 0.0
        %1319 = vmatmul.mubr.f32.gmra.mrb[0].mxu0 %v968
        %v1320 = vpop.f32.mrb[0].mxu0
        %v1321 = vadd.f32 0.0, %v1320
        %v1322 = vpop.f32.mrb[0].mxu0
        %1323 = vdwg.mxu0
        %1324 = vmatprep.subr.mxu0 0.0
        %1325 = vmatpush1.msra.mxu0 %v1234
        %1326 = vmatprep.subr.mxu0 0.0
        %1327 = vmatpush1.msra.mxu0 %v1235
        %1328 = vmatprep.subr.mxu0 0.0
        %1329 = vmatpush1.msra.mxu0 %v1236
        %1330 = vmatprep.subr.mxu0 0.0
        %1331 = vmatpush1.msra.mxu0 0.0
        %1332 = vmatprep.subr.mxu0 0.0
        %1333 = vmatpush1.msra.mxu0 0.0
        %1334 = vmatprep.subr.mxu0 0.0
        %1335 = vmatpush1.msra.mxu0 0.0
        %1336 = vmatprep.subr.mxu0 0.0
        %1337 = vmatpush1.msra.mxu0 0.0
        %1338 = vmatprep.subr.mxu0 0.0
        %1339 = vmatpush1.msra.mxu0 0.0
        %1340 = vmatprep.subr.mxu0 0.0
        %1341 = vmatpush1.msra.mxu0 0.0
        %1342 = vmatprep.subr.mxu0 0.0
        %1343 = vmatpush1.msra.mxu0 0.0
        %1344 = vmatprep.subr.mxu0 0.0
        %1345 = vmatpush1.msra.mxu0 0.0
        %1346 = vmatprep.subr.mxu0 0.0
        %1347 = vmatpush1.msra.mxu0 0.0
        %1348 = vmatprep.subr.mxu0 0.0
        %1349 = vmatpush1.msra.mxu0 0.0
        %1350 = vmatprep.subr.mxu0 0.0
        %1351 = vmatpush1.msra.mxu0 0.0
        %1352 = vmatprep.subr.mxu0 0.0
        %1353 = vmatpush1.msra.mxu0 0.0
        %1354 = vmatprep.subr.mxu0 0.0
        %1355 = vmatpush1.msra.mxu0 0.0
        %1356 = vmatprep.subr.mxu0 0.0
        %1357 = vmatpush1.msra.mxu0 0.0
        %1358 = vmatprep.subr.mxu0 0.0
        %1359 = vmatpush1.msra.mxu0 0.0
        %1360 = vmatprep.subr.mxu0 0.0
        %1361 = vmatpush1.msra.mxu0 0.0
        %1362 = vmatprep.subr.mxu0 0.0
        %1363 = vmatpush1.msra.mxu0 0.0
        %1364 = vmatprep.subr.mxu0 0.0
        %1365 = vmatpush1.msra.mxu0 0.0
        %1366 = vmatprep.subr.mxu0 0.0
        %1367 = vmatpush1.msra.mxu0 0.0
        %1368 = vmatprep.subr.mxu0 0.0
        %1369 = vmatpush1.msra.mxu0 0.0
        %1370 = vmatprep.subr.mxu0 0.0
        %1371 = vmatpush1.msra.mxu0 0.0
        %1372 = vmatprep.subr.mxu0 0.0
        %1373 = vmatpush1.msra.mxu0 0.0
        %1374 = vmatprep.subr.mxu0 0.0
        %1375 = vmatpush1.msra.mxu0 0.0
        %1376 = vmatprep.subr.mxu0 0.0
        %1377 = vmatpush1.msra.mxu0 0.0
        %1378 = vmatprep.subr.mxu0 0.0
        %1379 = vmatpush1.msra.mxu0 0.0
        %1380 = vmatprep.subr.mxu0 0.0
        %1381 = vmatpush1.msra.mxu0 0.0
        %1382 = vmatprep.subr.mxu0 0.0
        %1383 = vmatpush1.msra.mxu0 0.0
        %1384 = vmatprep.subr.mxu0 0.0
        %1385 = vmatpush1.msra.mxu0 0.0
        %1386 = vmatprep.subr.mxu0 0.0
        %1387 = vmatpush1.msra.mxu0 0.0
        %1388 = vmatprep.mubr.f32.mxu0 0.0
        %1389 = vmatmul.mubr.f32.gmra.mrb[0].mxu0 %v1046
        %v1390 = vpop.f32.mrb[0].mxu0
        %v1391 = vadd.f32 %v1316, %v1390
        %v1392 = vpop.f32.mrb[0].mxu0
        %1393 = vmatprep.mubr.f32.mxu0 0.0
        %1394 = vmatmul.mubr.f32.gmra.mrb[0].mxu0 %v1049
        %v1395 = vpop.f32.mrb[0].mxu0
        %v1396 = vadd.f32 %v1321, %v1395
        %v1397 = vpop.f32.mrb[0].mxu0
        %1398 = vdwg.mxu0
        %1399 = vrot.lane.b32.xlu0 %v1234, 126
        %v1400 = vpop.permute.xlu0 %1399
        %1401 = vrot.lane.b32.xlu0 %v1235, 126
        %v1402 = vpop.permute.xlu0 %1401
        %1403 = vrot.lane.b32.xlu0 %v1236, 126
        %v1404 = vpop.permute.xlu0 %1403
        %1408 = vmatprep.subr.mxu0 0.0
        %1409 = vmatpush1.msra.mxu0 %v1400
        %1410 = vmatprep.subr.mxu0 0.0
        %1411 = vmatpush1.msra.mxu0 %v1402
        %1412 = vmatprep.subr.mxu0 0.0
        %1413 = vmatpush1.msra.mxu0 %v1404
        %1414 = vmatprep.subr.mxu0 0.0
        %1415 = vmatpush1.msra.mxu0 0.0
        %1416 = vmatprep.subr.mxu0 0.0
        %1417 = vmatpush1.msra.mxu0 0.0
        %1418 = vmatprep.subr.mxu0 0.0
        %1419 = vmatpush1.msra.mxu0 0.0
        %1420 = vmatprep.subr.mxu0 0.0
        %1421 = vmatpush1.msra.mxu0 0.0
        %1422 = vmatprep.subr.mxu0 0.0
        %1423 = vmatpush1.msra.mxu0 0.0
        %1424 = vmatprep.subr.mxu0 0.0
        %1425 = vmatpush1.msra.mxu0 0.0
        %1426 = vmatprep.subr.mxu0 0.0
        %1427 = vmatpush1.msra.mxu0 0.0
        %1428 = vmatprep.subr.mxu0 0.0
        %1429 = vmatpush1.msra.mxu0 0.0
        %1430 = vmatprep.subr.mxu0 0.0
        %1431 = vmatpush1.msra.mxu0 0.0
        %1432 = vmatprep.subr.mxu0 0.0
        %1433 = vmatpush1.msra.mxu0 0.0
        %1434 = vmatprep.subr.mxu0 0.0
        %1435 = vmatpush1.msra.mxu0 0.0
        %1436 = vmatprep.subr.mxu0 0.0
        %1437 = vmatpush1.msra.mxu0 0.0
        %1438 = vmatprep.subr.mxu0 0.0
        %1439 = vmatpush1.msra.mxu0 0.0
        %1440 = vmatprep.subr.mxu0 0.0
        %1441 = vmatpush1.msra.mxu0 0.0
        %1442 = vmatprep.subr.mxu0 0.0
        %1443 = vmatpush1.msra.mxu0 0.0
        %1444 = vmatprep.subr.mxu0 0.0
        %1445 = vmatpush1.msra.mxu0 0.0
        %1446 = vmatprep.subr.mxu0 0.0
        %1447 = vmatpush1.msra.mxu0 0.0
        %1448 = vmatprep.subr.mxu0 0.0
        %1449 = vmatpush1.msra.mxu0 0.0
        %1450 = vmatprep.subr.mxu0 0.0
        %1451 = vmatpush1.msra.mxu0 0.0
        %1452 = vmatprep.subr.mxu0 0.0
        %1453 = vmatpush1.msra.mxu0 0.0
        %1454 = vmatprep.subr.mxu0 0.0
        %1455 = vmatpush1.msra.mxu0 0.0
        %1456 = vmatprep.subr.mxu0 0.0
        %1457 = vmatpush1.msra.mxu0 0.0
        %1458 = vmatprep.subr.mxu0 0.0
        %1459 = vmatpush1.msra.mxu0 0.0
        %1460 = vmatprep.subr.mxu0 0.0
        %1461 = vmatpush1.msra.mxu0 0.0
        %1462 = vmatprep.subr.mxu0 0.0
        %1463 = vmatpush1.msra.mxu0 0.0
        %1464 = vmatprep.subr.mxu0 0.0
        %1465 = vmatpush1.msra.mxu0 0.0
        %1466 = vmatprep.subr.mxu0 0.0
        %1467 = vmatpush1.msra.mxu0 0.0
        %1468 = vmatprep.subr.mxu0 0.0
        %1469 = vmatpush1.msra.mxu0 0.0
        %1470 = vmatprep.subr.mxu0 0.0
        %1471 = vmatpush1.msra.mxu0 0.0
        %1472 = vmatprep.mubr.f32.mxu0 0.0
        %1473 = vmatmul.mubr.f32.gmra.mrb[0].mxu0 %v1136
        %v1474 = vpop.f32.mrb[0].mxu0
        %v1475 = vadd.f32 0.0, %v1474
        %v1476 = vpop.f32.mrb[0].mxu0
        %1477 = vmatprep.mubr.f32.mxu0 0.0
        %1478 = vmatmul.mubr.f32.gmra.mrb[0].mxu0 %v1139
        %v1479 = vpop.f32.mrb[0].mxu0
        %v1480 = vadd.f32 0.0, %v1479
        %v1481 = vpop.f32.mrb[0].mxu0
        %1482 = vdwg.mxu0
        %v1483 = vadd.f32 %v1391, %v1475
        %v1484 = vadd.f32 %v1396, %v1480
        %v1485 = vadd.f32 %v1483, %v1221
        %v1486 = vadd.f32 %v1484, %v1226
        %v1487 = vmax.f32 %v1228, %v1485
        %v1488 = vmax.f32 %v1229, %v1486
        %vm1489 = vcmask 1014784
        %v1491 = vsel %vm1489, %v1487, 0
        %v1494 = vsel %vm1489, %v1488, 0
        %vm1496 = vcmask 1043456
        %v1498 = vsel %vm1496, %v890, 0
        %1500 = vmatprep.subr.mxu0 0.0
        %1501 = vmatpush1.msra.mxu0 %v875
        %1502 = vmatprep.subr.mxu0 0.0
        %1503 = vmatpush1.msra.mxu0 %v876
        %1504 = vmatprep.subr.mxu0 0.0
        %1505 = vmatpush1.msra.mxu0 %v877
        %1506 = vmatprep.subr.mxu0 0.0
        %1507 = vmatpush1.msra.mxu0 %v878
        %1508 = vmatprep.subr.mxu0 0.0
        %1509 = vmatpush1.msra.mxu0 %v879
        %1510 = vmatprep.subr.mxu0 0.0
        %1511 = vmatpush1.msra.mxu0 %v880
        %1512 = vmatprep.subr.mxu0 0.0
        %1513 = vmatpush1.msra.mxu0 %v881
        %1514 = vmatprep.subr.mxu0 0.0
        %1515 = vmatpush1.msra.mxu0 %v882
        %1516 = vmatprep.subr.mxu0 0.0
        %1517 = vmatpush1.msra.mxu0 %v883
        %1518 = vmatprep.subr.mxu0 0.0
        %1519 = vmatpush1.msra.mxu0 %v884
        %1520 = vmatprep.subr.mxu0 0.0
        %1521 = vmatpush1.msra.mxu0 %v885
        %1522 = vmatprep.subr.mxu0 0.0
        %1523 = vmatpush1.msra.mxu0 %v886
        %1524 = vmatprep.subr.mxu0 0.0
        %1525 = vmatpush1.msra.mxu0 %v887
        %1526 = vmatprep.subr.mxu0 0.0
        %1527 = vmatpush1.msra.mxu0 %v888
        %1528 = vmatprep.subr.mxu0 0.0
        %1529 = vmatpush1.msra.mxu0 %v889
        %1530 = vmatprep.subr.mxu0 0.0
        %1531 = vmatpush1.msra.mxu0 %v1498
        %1532 = vmatprep.subr.mxu0 0.0
        %1533 = vmatpush1.msra.mxu0 0.0
        %1534 = vmatprep.subr.mxu0 0.0
        %1535 = vmatpush1.msra.mxu0 0.0
        %1536 = vmatprep.subr.mxu0 0.0
        %1537 = vmatpush1.msra.mxu0 0.0
        %1538 = vmatprep.subr.mxu0 0.0
        %1539 = vmatpush1.msra.mxu0 0.0
        %1540 = vmatprep.subr.mxu0 0.0
        %1541 = vmatpush1.msra.mxu0 0.0
        %1542 = vmatprep.subr.mxu0 0.0
        %1543 = vmatpush1.msra.mxu0 0.0
        %1544 = vmatprep.subr.mxu0 0.0
        %1545 = vmatpush1.msra.mxu0 0.0
        %1546 = vmatprep.subr.mxu0 0.0
        %1547 = vmatpush1.msra.mxu0 0.0
        %1548 = vmatprep.subr.mxu0 0.0
        %1549 = vmatpush1.msra.mxu0 0.0
        %1550 = vmatprep.subr.mxu0 0.0
        %1551 = vmatpush1.msra.mxu0 0.0
        %1552 = vmatprep.subr.mxu0 0.0
        %1553 = vmatpush1.msra.mxu0 0.0
        %1554 = vmatprep.subr.mxu0 0.0
        %1555 = vmatpush1.msra.mxu0 0.0
        %1556 = vmatprep.subr.mxu0 0.0
        %1557 = vmatpush1.msra.mxu0 0.0
        %1558 = vmatprep.subr.mxu0 0.0
        %1559 = vmatpush1.msra.mxu0 0.0
        %1560 = vmatprep.subr.mxu0 0.0
        %1561 = vmatpush1.msra.mxu0 0.0
        %1562 = vmatprep.subr.mxu0 0.0
        %1563 = vmatpush1.msra.mxu0 0.0
        %1564 = vmatprep.mubr.f32.mxu0 0.0
        %1565 = vmatmul.mubr.f32.gmra.mrb[0].mxu0 %v1491
        %v1566 = vpop.f32.mrb[0].mxu0
        %v1567 = vadd.f32 0.0, %v1566
        %v1568 = vpop.f32.mrb[0].mxu0
        %1569 = vmatprep.mubr.f32.mxu0 0.0
        %1570 = vmatmul.mubr.f32.gmra.mrb[0].mxu0 %v1494
        %v1571 = vpop.f32.mrb[0].mxu0
        %v1572 = vadd.f32 0.0, %v1571
        %v1573 = vpop.f32.mrb[0].mxu0
        %1574 = vdwg.mxu0
        %v1576 = vsel %vm1496, %v939, 0
        %1578 = vmatprep.subr.mxu0 0.0
        %1579 = vmatpush1.msra.mxu0 %v924
        %1580 = vmatprep.subr.mxu0 0.0
        %1581 = vmatpush1.msra.mxu0 %v925
        %1582 = vmatprep.subr.mxu0 0.0
        %1583 = vmatpush1.msra.mxu0 %v926
        %1584 = vmatprep.subr.mxu0 0.0
        %1585 = vmatpush1.msra.mxu0 %v927
        %1586 = vmatprep.subr.mxu0 0.0
        %1587 = vmatpush1.msra.mxu0 %v928
        %1588 = vmatprep.subr.mxu0 0.0
        %1589 = vmatpush1.msra.mxu0 %v929
        %1590 = vmatprep.subr.mxu0 0.0
        %1591 = vmatpush1.msra.mxu0 %v930
        %1592 = vmatprep.subr.mxu0 0.0
        %1593 = vmatpush1.msra.mxu0 %v931
        %1594 = vmatprep.subr.mxu0 0.0
        %1595 = vmatpush1.msra.mxu0 %v932
        %1596 = vmatprep.subr.mxu0 0.0
        %1597 = vmatpush1.msra.mxu0 %v933
        %1598 = vmatprep.subr.mxu0 0.0
        %1599 = vmatpush1.msra.mxu0 %v934
        %1600 = vmatprep.subr.mxu0 0.0
        %1601 = vmatpush1.msra.mxu0 %v935
        %1602 = vmatprep.subr.mxu0 0.0
        %1603 = vmatpush1.msra.mxu0 %v936
        %1604 = vmatprep.subr.mxu0 0.0
        %1605 = vmatpush1.msra.mxu0 %v937
        %1606 = vmatprep.subr.mxu0 0.0
        %1607 = vmatpush1.msra.mxu0 %v938
        %1608 = vmatprep.subr.mxu0 0.0
        %1609 = vmatpush1.msra.mxu0 %v1576
        %1610 = vmatprep.subr.mxu0 0.0
        %1611 = vmatpush1.msra.mxu0 0.0
        %1612 = vmatprep.subr.mxu0 0.0
        %1613 = vmatpush1.msra.mxu0 0.0
        %1614 = vmatprep.subr.mxu0 0.0
        %1615 = vmatpush1.msra.mxu0 0.0
        %1616 = vmatprep.subr.mxu0 0.0
        %1617 = vmatpush1.msra.mxu0 0.0
        %1618 = vmatprep.subr.mxu0 0.0
        %1619 = vmatpush1.msra.mxu0 0.0
        %1620 = vmatprep.subr.mxu0 0.0
        %1621 = vmatpush1.msra.mxu0 0.0
        %1622 = vmatprep.subr.mxu0 0.0
        %1623 = vmatpush1.msra.mxu0 0.0
        %1624 = vmatprep.subr.mxu0 0.0
        %1625 = vmatpush1.msra.mxu0 0.0
        %1626 = vmatprep.subr.mxu0 0.0
        %1627 = vmatpush1.msra.mxu0 0.0
        %1628 = vmatprep.subr.mxu0 0.0
        %1629 = vmatpush1.msra.mxu0 0.0
        %1630 = vmatprep.subr.mxu0 0.0
        %1631 = vmatpush1.msra.mxu0 0.0
        %1632 = vmatprep.subr.mxu0 0.0
        %1633 = vmatpush1.msra.mxu0 0.0
        %1634 = vmatprep.subr.mxu0 0.0
        %1635 = vmatpush1.msra.mxu0 0.0
        %1636 = vmatprep.subr.mxu0 0.0
        %1637 = vmatpush1.msra.mxu0 0.0
        %1638 = vmatprep.subr.mxu0 0.0
        %1639 = vmatpush1.msra.mxu0 0.0
        %1640 = vmatprep.subr.mxu0 0.0
        %1641 = vmatpush1.msra.mxu0 0.0
        %1642 = vmatprep.mubr.f32.mxu0 0.0
        %1643 = vmatmul.mubr.f32.gmra.mrb[0].mxu0 %v1491
        %v1644 = vpop.f32.mrb[0].mxu0
        %v1645 = vadd.f32 0.0, %v1644
        %v1646 = vpop.f32.mrb[0].mxu0
        %1647 = vmatprep.mubr.f32.mxu0 0.0
        %1648 = vmatmul.mubr.f32.gmra.mrb[0].mxu0 %v1494
        %v1649 = vpop.f32.mrb[0].mxu0
        %v1650 = vadd.f32 0.0, %v1649
        %v1651 = vpop.f32.mrb[0].mxu0
        %1652 = vdwg.mxu0
        %v1653 = vmax.f32 %v1567, %v1645
        %v1654 = vmax.f32 %v1572, %v1650
        %v1655 = vmax.f32 %v1653, 0.0
        %v1656 = vmax.f32 %v1654, 0.0
        %s1657 = scalar_lea.vmem [#allocation3], %s946
        %vm1658 = vcmask 506880
        %1659 = vst.msk [vmem:[%s1657] sm:$0xff] %vm1658, %v1655
        %1660 = vst.msk [vmem:[%s1657 + $0x8] sm:$0xff] %vm1658, %v1656
      $region100: #{modelv0_forward.1} parent=87 // loop_footer
        %s945 = sadd.s32 1, %s941
      $region101: #{modelv0_forward.1} parent=87 // loop_footer_branch
        %940 = sbr.rel target = $region97
      $region102: #{modelv0_forward.1} parent=87 // loop_exit
        _
      %v1661 = vld [vmem:[%s5] sm:$0xff]
      %v1662 = vld [vmem:[%s5 + $0x8] sm:$0xff]
      %v1663 = vld [vmem:[%s5 + $0x10] sm:$0xff]
      %v1664 = vld [vmem:[%s5 + $0x18] sm:$0xff]
      %s1665 = scalar_lea.vmem %s5, 32
      %v1666 = vld [vmem:[%s1665] sm:$0xff]
      %v1667 = vld [vmem:[%s1665 + $0x8] sm:$0xff]
      %v1668 = vld [vmem:[%s1665 + $0x10] sm:$0xff]
      %v1669 = vld [vmem:[%s1665 + $0x18] sm:$0xff]
      %s1670 = scalar_lea.vmem %s5, 64
      %v1671 = vld [vmem:[%s1670] sm:$0xff]
      %v1672 = vld [vmem:[%s1670 + $0x8] sm:$0xff]
      %v1673 = vld [vmem:[%s1670 + $0x10] sm:$0xff]
      %v1674 = vld [vmem:[%s1670 + $0x18] sm:$0xff]
      %v1675 = vld [vmem:[%s6] sm:$0xff]
      %v1676 = vld [vmem:[%s6 + $0x8] sm:$0xff]
      %v1677 = vld [vmem:[%s6 + $0x10] sm:$0xff]
      %v1678 = vld [vmem:[%s6 + $0x18] sm:$0xff]
      loop: start=0, step=1, limit=46
      $region103: #{modelv0_forward.1} parent=87 // loop_pre_header
        _
      $region104: #{modelv0_forward.1} parent=87 // loop_header
        %s1680 = sphi 0, %s1684
        %p1681 = scmp.ge.s32.totalorder %s1680, 46
      $region105: #{modelv0_forward.1} parent=87 // loop_header_branch
        %1683 = sbr.rel (%p1681) target = $region109
      $region106: #{modelv0_forward.1} parent=87 // loop_body
        %s1685 = smul.u32 %s1680, 32
        %s1686 = scalar_lea.vmem [#allocation3], %s1685
        %v1687 = vld [vmem:[%s1686] sm:$0xff]
        %v1688 = vld [vmem:[%s1686 + $0x8] sm:$0xff]
        %v1689 = vld [vmem:[%s1686 + $0x10] sm:$0xff]
        %v1690 = vld [vmem:[%s1686 + $0x18] sm:$0xff]
        %v1691 = vld [vmem:[%s1686 + $0x20] sm:$0xff]
        %v1692 = vld [vmem:[%s1686 + $0x28] sm:$0xff]
        %1699 = vrot.lane.b32.xlu0 %v1687, 127
        %v1700 = vpop.permute.xlu0 %1699
        %1701 = vrot.lane.b32.xlu0 %v1688, 127
        %v1702 = vpop.permute.xlu0 %1701
        %1703 = vrot.lane.b32.xlu0 %v1689, 127
        %v1704 = vpop.permute.xlu0 %1703
        %1705 = vrot.lane.b32.xlu0 %v1690, 127
        %v1706 = vpop.permute.xlu0 %1705
        %1707 = vrot.lane.b32.xlu0 %v1691, 127
        %v1708 = vpop.permute.xlu0 %1707
        %1709 = vrot.lane.b32.xlu0 %v1692, 127
        %v1710 = vpop.permute.xlu0 %1709
        %vm1717 = vcmask 392192
        %v1719 = vsel %vm1717, %v1666, 0
        %v1722 = vsel %vm1717, %v1667, 0
        %v1725 = vsel %vm1717, %v1668, 0
        %v1728 = vsel %vm1717, %v1669, 0
        %1730 = vmatprep.subr.mxu0 0.0
        %1731 = vmatpush1.msra.mxu0 %v1700
        %1732 = vmatprep.subr.mxu0 0.0
        %1733 = vmatpush1.msra.mxu0 %v1702
        %1734 = vmatprep.subr.mxu0 0.0
        %1735 = vmatpush1.msra.mxu0 %v1704
        %1736 = vmatprep.subr.mxu0 0.0
        %1737 = vmatpush1.msra.mxu0 %v1706
        %1738 = vmatprep.subr.mxu0 0.0
        %1739 = vmatpush1.msra.mxu0 %v1708
        %1740 = vmatprep.subr.mxu0 0.0
        %1741 = vmatpush1.msra.mxu0 %v1710
        %1742 = vmatprep.subr.mxu0 0.0
        %1743 = vmatpush1.msra.mxu0 0.0
        %1744 = vmatprep.subr.mxu0 0.0
        %1745 = vmatpush1.msra.mxu0 0.0
        %1746 = vmatprep.subr.mxu0 0.0
        %1747 = vmatpush1.msra.mxu0 0.0
        %1748 = vmatprep.subr.mxu0 0.0
        %1749 = vmatpush1.msra.mxu0 0.0
        %1750 = vmatprep.subr.mxu0 0.0
        %1751 = vmatpush1.msra.mxu0 0.0
        %1752 = vmatprep.subr.mxu0 0.0
        %1753 = vmatpush1.msra.mxu0 0.0
        %1754 = vmatprep.subr.mxu0 0.0
        %1755 = vmatpush1.msra.mxu0 0.0
        %1756 = vmatprep.subr.mxu0 0.0
        %1757 = vmatpush1.msra.mxu0 0.0
        %1758 = vmatprep.subr.mxu0 0.0
        %1759 = vmatpush1.msra.mxu0 0.0
        %1760 = vmatprep.subr.mxu0 0.0
        %1761 = vmatpush1.msra.mxu0 0.0
        %1762 = vmatprep.subr.mxu0 0.0
        %1763 = vmatpush1.msra.mxu0 0.0
        %1764 = vmatprep.subr.mxu0 0.0
        %1765 = vmatpush1.msra.mxu0 0.0
        %1766 = vmatprep.subr.mxu0 0.0
        %1767 = vmatpush1.msra.mxu0 0.0
        %1768 = vmatprep.subr.mxu0 0.0
        %1769 = vmatpush1.msra.mxu0 0.0
        %1770 = vmatprep.subr.mxu0 0.0
        %1771 = vmatpush1.msra.mxu0 0.0
        %1772 = vmatprep.subr.mxu0 0.0
        %1773 = vmatpush1.msra.mxu0 0.0
        %1774 = vmatprep.subr.mxu0 0.0
        %1775 = vmatpush1.msra.mxu0 0.0
        %1776 = vmatprep.subr.mxu0 0.0
        %1777 = vmatpush1.msra.mxu0 0.0
        %1778 = vmatprep.subr.mxu0 0.0
        %1779 = vmatpush1.msra.mxu0 0.0
        %1780 = vmatprep.subr.mxu0 0.0
        %1781 = vmatpush1.msra.mxu0 0.0
        %1782 = vmatprep.subr.mxu0 0.0
        %1783 = vmatpush1.msra.mxu0 0.0
        %1784 = vmatprep.subr.mxu0 0.0
        %1785 = vmatpush1.msra.mxu0 0.0
        %1786 = vmatprep.subr.mxu0 0.0
        %1787 = vmatpush1.msra.mxu0 0.0
        %1788 = vmatprep.subr.mxu0 0.0
        %1789 = vmatpush1.msra.mxu0 0.0
        %1790 = vmatprep.subr.mxu0 0.0
        %1791 = vmatpush1.msra.mxu0 0.0
        %1792 = vmatprep.subr.mxu0 0.0
        %1793 = vmatpush1.msra.mxu0 0.0
        %1794 = vmatprep.mubr.f32.mxu0 0.0
        %1795 = vmatmul.mubr.f32.gmra.mrb[0].mxu0 %v1719
        %v1796 = vpop.f32.mrb[0].mxu0
        %v1797 = vadd.f32 0.0, %v1796
        %v1798 = vpop.f32.mrb[0].mxu0
        %1799 = vmatprep.mubr.f32.mxu0 0.0
        %1800 = vmatmul.mubr.f32.gmra.mrb[0].mxu0 %v1722
        %v1801 = vpop.f32.mrb[0].mxu0
        %v1802 = vadd.f32 0.0, %v1801
        %v1803 = vpop.f32.mrb[0].mxu0
        %1804 = vmatprep.mubr.f32.mxu0 0.0
        %1805 = vmatmul.mubr.f32.gmra.mrb[0].mxu0 %v1725
        %v1806 = vpop.f32.mrb[0].mxu0
        %v1807 = vadd.f32 0.0, %v1806
        %v1808 = vpop.f32.mrb[0].mxu0
        %1809 = vmatprep.mubr.f32.mxu0 0.0
        %1810 = vmatmul.mubr.f32.gmra.mrb[0].mxu0 %v1728
        %v1811 = vpop.f32.mrb[0].mxu0
        %v1812 = vadd.f32 0.0, %v1811
        %v1813 = vpop.f32.mrb[0].mxu0
        %1814 = vdwg.mxu0
        %v1816 = vsel %vm1717, %v1661, 0
        %v1819 = vsel %vm1717, %v1662, 0
        %v1822 = vsel %vm1717, %v1663, 0
        %v1825 = vsel %vm1717, %v1664, 0
        %1827 = vmatprep.subr.mxu0 0.0
        %1828 = vmatpush1.msra.mxu0 %v1687
        %1829 = vmatprep.subr.mxu0 0.0
        %1830 = vmatpush1.msra.mxu0 %v1688
        %1831 = vmatprep.subr.mxu0 0.0
        %1832 = vmatpush1.msra.mxu0 %v1689
        %1833 = vmatprep.subr.mxu0 0.0
        %1834 = vmatpush1.msra.mxu0 %v1690
        %1835 = vmatprep.subr.mxu0 0.0
        %1836 = vmatpush1.msra.mxu0 %v1691
        %1837 = vmatprep.subr.mxu0 0.0
        %1838 = vmatpush1.msra.mxu0 %v1692
        %1839 = vmatprep.subr.mxu0 0.0
        %1840 = vmatpush1.msra.mxu0 0.0
        %1841 = vmatprep.subr.mxu0 0.0
        %1842 = vmatpush1.msra.mxu0 0.0
        %1843 = vmatprep.subr.mxu0 0.0
        %1844 = vmatpush1.msra.mxu0 0.0
        %1845 = vmatprep.subr.mxu0 0.0
        %1846 = vmatpush1.msra.mxu0 0.0
        %1847 = vmatprep.subr.mxu0 0.0
        %1848 = vmatpush1.msra.mxu0 0.0
        %1849 = vmatprep.subr.mxu0 0.0
        %1850 = vmatpush1.msra.mxu0 0.0
        %1851 = vmatprep.subr.mxu0 0.0
        %1852 = vmatpush1.msra.mxu0 0.0
        %1853 = vmatprep.subr.mxu0 0.0
        %1854 = vmatpush1.msra.mxu0 0.0
        %1855 = vmatprep.subr.mxu0 0.0
        %1856 = vmatpush1.msra.mxu0 0.0
        %1857 = vmatprep.subr.mxu0 0.0
        %1858 = vmatpush1.msra.mxu0 0.0
        %1859 = vmatprep.subr.mxu0 0.0
        %1860 = vmatpush1.msra.mxu0 0.0
        %1861 = vmatprep.subr.mxu0 0.0
        %1862 = vmatpush1.msra.mxu0 0.0
        %1863 = vmatprep.subr.mxu0 0.0
        %1864 = vmatpush1.msra.mxu0 0.0
        %1865 = vmatprep.subr.mxu0 0.0
        %1866 = vmatpush1.msra.mxu0 0.0
        %1867 = vmatprep.subr.mxu0 0.0
        %1868 = vmatpush1.msra.mxu0 0.0
        %1869 = vmatprep.subr.mxu0 0.0
        %1870 = vmatpush1.msra.mxu0 0.0
        %1871 = vmatprep.subr.mxu0 0.0
        %1872 = vmatpush1.msra.mxu0 0.0
        %1873 = vmatprep.subr.mxu0 0.0
        %1874 = vmatpush1.msra.mxu0 0.0
        %1875 = vmatprep.subr.mxu0 0.0
        %1876 = vmatpush1.msra.mxu0 0.0
        %1877 = vmatprep.subr.mxu0 0.0
        %1878 = vmatpush1.msra.mxu0 0.0
        %1879 = vmatprep.subr.mxu0 0.0
        %1880 = vmatpush1.msra.mxu0 0.0
        %1881 = vmatprep.subr.mxu0 0.0
        %1882 = vmatpush1.msra.mxu0 0.0
        %1883 = vmatprep.subr.mxu0 0.0
        %1884 = vmatpush1.msra.mxu0 0.0
        %1885 = vmatprep.subr.mxu0 0.0
        %1886 = vmatpush1.msra.mxu0 0.0
        %1887 = vmatprep.subr.mxu0 0.0
        %1888 = vmatpush1.msra.mxu0 0.0
        %1889 = vmatprep.subr.mxu0 0.0
        %1890 = vmatpush1.msra.mxu0 0.0
        %1891 = vmatprep.mubr.f32.mxu0 0.0
        %1892 = vmatmul.mubr.f32.gmra.mrb[0].mxu0 %v1816
        %v1893 = vpop.f32.mrb[0].mxu0
        %v1894 = vadd.f32 %v1797, %v1893
        %v1895 = vpop.f32.mrb[0].mxu0
        %1896 = vmatprep.mubr.f32.mxu0 0.0
        %1897 = vmatmul.mubr.f32.gmra.mrb[0].mxu0 %v1819
        %v1898 = vpop.f32.mrb[0].mxu0
        %v1899 = vadd.f32 %v1802, %v1898
        %v1900 = vpop.f32.mrb[0].mxu0
        %1901 = vmatprep.mubr.f32.mxu0 0.0
        %1902 = vmatmul.mubr.f32.gmra.mrb[0].mxu0 %v1822
        %v1903 = vpop.f32.mrb[0].mxu0
        %v1904 = vadd.f32 %v1807, %v1903
        %v1905 = vpop.f32.mrb[0].mxu0
        %1906 = vmatprep.mubr.f32.mxu0 0.0
        %1907 = vmatmul.mubr.f32.gmra.mrb[0].mxu0 %v1825
        %v1908 = vpop.f32.mrb[0].mxu0
        %v1909 = vadd.f32 %v1812, %v1908
        %v1910 = vpop.f32.mrb[0].mxu0
        %1911 = vdwg.mxu0
        %1912 = vrot.lane.b32.xlu0 %v1687, 126
        %v1913 = vpop.permute.xlu0 %1912
        %1914 = vrot.lane.b32.xlu0 %v1688, 126
        %v1915 = vpop.permute.xlu0 %1914
        %1916 = vrot.lane.b32.xlu0 %v1689, 126
        %v1917 = vpop.permute.xlu0 %1916
        %1918 = vrot.lane.b32.xlu0 %v1690, 126
        %v1919 = vpop.permute.xlu0 %1918
        %1920 = vrot.lane.b32.xlu0 %v1691, 126
        %v1921 = vpop.permute.xlu0 %1920
        %1922 = vrot.lane.b32.xlu0 %v1692, 126
        %v1923 = vpop.permute.xlu0 %1922
        %v1931 = vsel %vm1717, %v1671, 0
        %v1934 = vsel %vm1717, %v1672, 0
        %v1937 = vsel %vm1717, %v1673, 0
        %v1940 = vsel %vm1717, %v1674, 0
        %1942 = vmatprep.subr.mxu0 0.0
        %1943 = vmatpush1.msra.mxu0 %v1913
        %1944 = vmatprep.subr.mxu0 0.0
        %1945 = vmatpush1.msra.mxu0 %v1915
        %1946 = vmatprep.subr.mxu0 0.0
        %1947 = vmatpush1.msra.mxu0 %v1917
        %1948 = vmatprep.subr.mxu0 0.0
        %1949 = vmatpush1.msra.mxu0 %v1919
        %1950 = vmatprep.subr.mxu0 0.0
        %1951 = vmatpush1.msra.mxu0 %v1921
        %1952 = vmatprep.subr.mxu0 0.0
        %1953 = vmatpush1.msra.mxu0 %v1923
        %1954 = vmatprep.subr.mxu0 0.0
        %1955 = vmatpush1.msra.mxu0 0.0
        %1956 = vmatprep.subr.mxu0 0.0
        %1957 = vmatpush1.msra.mxu0 0.0
        %1958 = vmatprep.subr.mxu0 0.0
        %1959 = vmatpush1.msra.mxu0 0.0
        %1960 = vmatprep.subr.mxu0 0.0
        %1961 = vmatpush1.msra.mxu0 0.0
        %1962 = vmatprep.subr.mxu0 0.0
        %1963 = vmatpush1.msra.mxu0 0.0
        %1964 = vmatprep.subr.mxu0 0.0
        %1965 = vmatpush1.msra.mxu0 0.0
        %1966 = vmatprep.subr.mxu0 0.0
        %1967 = vmatpush1.msra.mxu0 0.0
        %1968 = vmatprep.subr.mxu0 0.0
        %1969 = vmatpush1.msra.mxu0 0.0
        %1970 = vmatprep.subr.mxu0 0.0
        %1971 = vmatpush1.msra.mxu0 0.0
        %1972 = vmatprep.subr.mxu0 0.0
        %1973 = vmatpush1.msra.mxu0 0.0
        %1974 = vmatprep.subr.mxu0 0.0
        %1975 = vmatpush1.msra.mxu0 0.0
        %1976 = vmatprep.subr.mxu0 0.0
        %1977 = vmatpush1.msra.mxu0 0.0
        %1978 = vmatprep.subr.mxu0 0.0
        %1979 = vmatpush1.msra.mxu0 0.0
        %1980 = vmatprep.subr.mxu0 0.0
        %1981 = vmatpush1.msra.mxu0 0.0
        %1982 = vmatprep.subr.mxu0 0.0
        %1983 = vmatpush1.msra.mxu0 0.0
        %1984 = vmatprep.subr.mxu0 0.0
        %1985 = vmatpush1.msra.mxu0 0.0
        %1986 = vmatprep.subr.mxu0 0.0
        %1987 = vmatpush1.msra.mxu0 0.0
        %1988 = vmatprep.subr.mxu0 0.0
        %1989 = vmatpush1.msra.mxu0 0.0
        %1990 = vmatprep.subr.mxu0 0.0
        %1991 = vmatpush1.msra.mxu0 0.0
        %1992 = vmatprep.subr.mxu0 0.0
        %1993 = vmatpush1.msra.mxu0 0.0
        %1994 = vmatprep.subr.mxu0 0.0
        %1995 = vmatpush1.msra.mxu0 0.0
        %1996 = vmatprep.subr.mxu0 0.0
        %1997 = vmatpush1.msra.mxu0 0.0
        %1998 = vmatprep.subr.mxu0 0.0
        %1999 = vmatpush1.msra.mxu0 0.0
        %2000 = vmatprep.subr.mxu0 0.0
        %2001 = vmatpush1.msra.mxu0 0.0
        %2002 = vmatprep.subr.mxu0 0.0
        %2003 = vmatpush1.msra.mxu0 0.0
        %2004 = vmatprep.subr.mxu0 0.0
        %2005 = vmatpush1.msra.mxu0 0.0
        %2006 = vmatprep.mubr.f32.mxu0 0.0
        %2007 = vmatmul.mubr.f32.gmra.mrb[0].mxu0 %v1931
        %v2008 = vpop.f32.mrb[0].mxu0
        %v2009 = vadd.f32 0.0, %v2008
        %v2010 = vpop.f32.mrb[0].mxu0
        %2011 = vmatprep.mubr.f32.mxu0 0.0
        %2012 = vmatmul.mubr.f32.gmra.mrb[0].mxu0 %v1934
        %v2013 = vpop.f32.mrb[0].mxu0
        %v2014 = vadd.f32 0.0, %v2013
        %v2015 = vpop.f32.mrb[0].mxu0
        %2016 = vmatprep.mubr.f32.mxu0 0.0
        %2017 = vmatmul.mubr.f32.gmra.mrb[0].mxu0 %v1937
        %v2018 = vpop.f32.mrb[0].mxu0
        %v2019 = vadd.f32 0.0, %v2018
        %v2020 = vpop.f32.mrb[0].mxu0
        %2021 = vmatprep.mubr.f32.mxu0 0.0
        %2022 = vmatmul.mubr.f32.gmra.mrb[0].mxu0 %v1940
        %v2023 = vpop.f32.mrb[0].mxu0
        %v2024 = vadd.f32 0.0, %v2023
        %v2025 = vpop.f32.mrb[0].mxu0
        %2026 = vdwg.mxu0
        %v2027 = vadd.f32 %v1894, %v2009
        %v2028 = vadd.f32 %v1899, %v2014
        %v2029 = vadd.f32 %v1904, %v2019
        %v2030 = vadd.f32 %v1909, %v2024
        %2032 = vset.pattern.permute.xlu0 0
        %2033 = vperm.xlu0 %2032, %v1675
        %v2034 = vpop.permute.xlu0 %2033
        %2037 = vset.pattern.permute.xlu0 0
        %2038 = vperm.xlu0 %2037, %v1676
        %v2039 = vpop.permute.xlu0 %2038
        %2042 = vset.pattern.permute.xlu0 0
        %2043 = vperm.xlu0 %2042, %v1677
        %v2044 = vpop.permute.xlu0 %2043
        %2047 = vset.pattern.permute.xlu0 0
        %2048 = vperm.xlu0 %2047, %v1678
        %v2049 = vpop.permute.xlu0 %2048
        %v2051 = vadd.f32 %v2027, %v2034
        %v2052 = vadd.f32 %v2028, %v2039
        %v2053 = vadd.f32 %v2029, %v2044
        %v2054 = vadd.f32 %v2030, %v2049
        %s2055 = smul.u32 %s1680, 2
        %s2056 = sadd.s32 %s2055, 1
        %s2057 = smul.u32 %s2056, 16
        %s2058 = scalar_lea.vmem [#allocation3], %s2057
        %v2059 = vld [vmem:[%s2058] sm:$0xff]
        %v2060 = vld [vmem:[%s2058 + $0x8] sm:$0xff]
        %v2061 = vld [vmem:[%s2058 + $0x10] sm:$0xff]
        %v2062 = vld [vmem:[%s2058 + $0x18] sm:$0xff]
        %v2063 = vld [vmem:[%s2058 + $0x20] sm:$0xff]
        %v2064 = vld [vmem:[%s2058 + $0x28] sm:$0xff]
        %2071 = vrot.lane.b32.xlu0 %v2059, 127
        %v2072 = vpop.permute.xlu0 %2071
        %2073 = vrot.lane.b32.xlu0 %v2060, 127
        %v2074 = vpop.permute.xlu0 %2073
        %2075 = vrot.lane.b32.xlu0 %v2061, 127
        %v2076 = vpop.permute.xlu0 %2075
        %2077 = vrot.lane.b32.xlu0 %v2062, 127
        %v2078 = vpop.permute.xlu0 %2077
        %2079 = vrot.lane.b32.xlu0 %v2063, 127
        %v2080 = vpop.permute.xlu0 %2079
        %2081 = vrot.lane.b32.xlu0 %v2064, 127
        %v2082 = vpop.permute.xlu0 %2081
        %2089 = vmatprep.subr.mxu0 0.0
        %2090 = vmatpush1.msra.mxu0 %v2072
        %2091 = vmatprep.subr.mxu0 0.0
        %2092 = vmatpush1.msra.mxu0 %v2074
        %2093 = vmatprep.subr.mxu0 0.0
        %2094 = vmatpush1.msra.mxu0 %v2076
        %2095 = vmatprep.subr.mxu0 0.0
        %2096 = vmatpush1.msra.mxu0 %v2078
        %2097 = vmatprep.subr.mxu0 0.0
        %2098 = vmatpush1.msra.mxu0 %v2080
        %2099 = vmatprep.subr.mxu0 0.0
        %2100 = vmatpush1.msra.mxu0 %v2082
        %2101 = vmatprep.subr.mxu0 0.0
        %2102 = vmatpush1.msra.mxu0 0.0
        %2103 = vmatprep.subr.mxu0 0.0
        %2104 = vmatpush1.msra.mxu0 0.0
        %2105 = vmatprep.subr.mxu0 0.0
        %2106 = vmatpush1.msra.mxu0 0.0
        %2107 = vmatprep.subr.mxu0 0.0
        %2108 = vmatpush1.msra.mxu0 0.0
        %2109 = vmatprep.subr.mxu0 0.0
        %2110 = vmatpush1.msra.mxu0 0.0
        %2111 = vmatprep.subr.mxu0 0.0
        %2112 = vmatpush1.msra.mxu0 0.0
        %2113 = vmatprep.subr.mxu0 0.0
        %2114 = vmatpush1.msra.mxu0 0.0
        %2115 = vmatprep.subr.mxu0 0.0
        %2116 = vmatpush1.msra.mxu0 0.0
        %2117 = vmatprep.subr.mxu0 0.0
        %2118 = vmatpush1.msra.mxu0 0.0
        %2119 = vmatprep.subr.mxu0 0.0
        %2120 = vmatpush1.msra.mxu0 0.0
        %2121 = vmatprep.subr.mxu0 0.0
        %2122 = vmatpush1.msra.mxu0 0.0
        %2123 = vmatprep.subr.mxu0 0.0
        %2124 = vmatpush1.msra.mxu0 0.0
        %2125 = vmatprep.subr.mxu0 0.0
        %2126 = vmatpush1.msra.mxu0 0.0
        %2127 = vmatprep.subr.mxu0 0.0
        %2128 = vmatpush1.msra.mxu0 0.0
        %2129 = vmatprep.subr.mxu0 0.0
        %2130 = vmatpush1.msra.mxu0 0.0
        %2131 = vmatprep.subr.mxu0 0.0
        %2132 = vmatpush1.msra.mxu0 0.0
        %2133 = vmatprep.subr.mxu0 0.0
        %2134 = vmatpush1.msra.mxu0 0.0
        %2135 = vmatprep.subr.mxu0 0.0
        %2136 = vmatpush1.msra.mxu0 0.0
        %2137 = vmatprep.subr.mxu0 0.0
        %2138 = vmatpush1.msra.mxu0 0.0
        %2139 = vmatprep.subr.mxu0 0.0
        %2140 = vmatpush1.msra.mxu0 0.0
        %2141 = vmatprep.subr.mxu0 0.0
        %2142 = vmatpush1.msra.mxu0 0.0
        %2143 = vmatprep.subr.mxu0 0.0
        %2144 = vmatpush1.msra.mxu0 0.0
        %2145 = vmatprep.subr.mxu0 0.0
        %2146 = vmatpush1.msra.mxu0 0.0
        %2147 = vmatprep.subr.mxu0 0.0
        %2148 = vmatpush1.msra.mxu0 0.0
        %2149 = vmatprep.subr.mxu0 0.0
        %2150 = vmatpush1.msra.mxu0 0.0
        %2151 = vmatprep.subr.mxu0 0.0
        %2152 = vmatpush1.msra.mxu0 0.0
        %2153 = vmatprep.mubr.f32.mxu0 0.0
        %2154 = vmatmul.mubr.f32.gmra.mrb[0].mxu0 %v1719
        %v2155 = vpop.f32.mrb[0].mxu0
        %v2156 = vadd.f32 0.0, %v2155
        %v2157 = vpop.f32.mrb[0].mxu0
        %2158 = vmatprep.mubr.f32.mxu0 0.0
        %2159 = vmatmul.mubr.f32.gmra.mrb[0].mxu0 %v1722
        %v2160 = vpop.f32.mrb[0].mxu0
        %v2161 = vadd.f32 0.0, %v2160
        %v2162 = vpop.f32.mrb[0].mxu0
        %2163 = vmatprep.mubr.f32.mxu0 0.0
        %2164 = vmatmul.mubr.f32.gmra.mrb[0].mxu0 %v1725
        %v2165 = vpop.f32.mrb[0].mxu0
        %v2166 = vadd.f32 0.0, %v2165
        %v2167 = vpop.f32.mrb[0].mxu0
        %2168 = vmatprep.mubr.f32.mxu0 0.0
        %2169 = vmatmul.mubr.f32.gmra.mrb[0].mxu0 %v1728
        %v2170 = vpop.f32.mrb[0].mxu0
        %v2171 = vadd.f32 0.0, %v2170
        %v2172 = vpop.f32.mrb[0].mxu0
        %2173 = vdwg.mxu0
        %2174 = vmatprep.subr.mxu0 0.0
        %2175 = vmatpush1.msra.mxu0 %v2059
        %2176 = vmatprep.subr.mxu0 0.0
        %2177 = vmatpush1.msra.mxu0 %v2060
        %2178 = vmatprep.subr.mxu0 0.0
        %2179 = vmatpush1.msra.mxu0 %v2061
        %2180 = vmatprep.subr.mxu0 0.0
        %2181 = vmatpush1.msra.mxu0 %v2062
        %2182 = vmatprep.subr.mxu0 0.0
        %2183 = vmatpush1.msra.mxu0 %v2063
        %2184 = vmatprep.subr.mxu0 0.0
        %2185 = vmatpush1.msra.mxu0 %v2064
        %2186 = vmatprep.subr.mxu0 0.0
        %2187 = vmatpush1.msra.mxu0 0.0
        %2188 = vmatprep.subr.mxu0 0.0
        %2189 = vmatpush1.msra.mxu0 0.0
        %2190 = vmatprep.subr.mxu0 0.0
        %2191 = vmatpush1.msra.mxu0 0.0
        %2192 = vmatprep.subr.mxu0 0.0
        %2193 = vmatpush1.msra.mxu0 0.0
        %2194 = vmatprep.subr.mxu0 0.0
        %2195 = vmatpush1.msra.mxu0 0.0
        %2196 = vmatprep.subr.mxu0 0.0
        %2197 = vmatpush1.msra.mxu0 0.0
        %2198 = vmatprep.subr.mxu0 0.0
        %2199 = vmatpush1.msra.mxu0 0.0
        %2200 = vmatprep.subr.mxu0 0.0
        %2201 = vmatpush1.msra.mxu0 0.0
        %2202 = vmatprep.subr.mxu0 0.0
        %2203 = vmatpush1.msra.mxu0 0.0
        %2204 = vmatprep.subr.mxu0 0.0
        %2205 = vmatpush1.msra.mxu0 0.0
        %2206 = vmatprep.subr.mxu0 0.0
        %2207 = vmatpush1.msra.mxu0 0.0
        %2208 = vmatprep.subr.mxu0 0.0
        %2209 = vmatpush1.msra.mxu0 0.0
        %2210 = vmatprep.subr.mxu0 0.0
        %2211 = vmatpush1.msra.mxu0 0.0
        %2212 = vmatprep.subr.mxu0 0.0
        %2213 = vmatpush1.msra.mxu0 0.0
        %2214 = vmatprep.subr.mxu0 0.0
        %2215 = vmatpush1.msra.mxu0 0.0
        %2216 = vmatprep.subr.mxu0 0.0
        %2217 = vmatpush1.msra.mxu0 0.0
        %2218 = vmatprep.subr.mxu0 0.0
        %2219 = vmatpush1.msra.mxu0 0.0
        %2220 = vmatprep.subr.mxu0 0.0
        %2221 = vmatpush1.msra.mxu0 0.0
        %2222 = vmatprep.subr.mxu0 0.0
        %2223 = vmatpush1.msra.mxu0 0.0
        %2224 = vmatprep.subr.mxu0 0.0
        %2225 = vmatpush1.msra.mxu0 0.0
        %2226 = vmatprep.subr.mxu0 0.0
        %2227 = vmatpush1.msra.mxu0 0.0
        %2228 = vmatprep.subr.mxu0 0.0
        %2229 = vmatpush1.msra.mxu0 0.0
        %2230 = vmatprep.subr.mxu0 0.0
        %2231 = vmatpush1.msra.mxu0 0.0
        %2232 = vmatprep.subr.mxu0 0.0
        %2233 = vmatpush1.msra.mxu0 0.0
        %2234 = vmatprep.subr.mxu0 0.0
        %2235 = vmatpush1.msra.mxu0 0.0
        %2236 = vmatprep.subr.mxu0 0.0
        %2237 = vmatpush1.msra.mxu0 0.0
        %2238 = vmatprep.mubr.f32.mxu0 0.0
        %2239 = vmatmul.mubr.f32.gmra.mrb[0].mxu0 %v1816
        %v2240 = vpop.f32.mrb[0].mxu0
        %v2241 = vadd.f32 %v2156, %v2240
        %v2242 = vpop.f32.mrb[0].mxu0
        %2243 = vmatprep.mubr.f32.mxu0 0.0
        %2244 = vmatmul.mubr.f32.gmra.mrb[0].mxu0 %v1819
        %v2245 = vpop.f32.mrb[0].mxu0
        %v2246 = vadd.f32 %v2161, %v2245
        %v2247 = vpop.f32.mrb[0].mxu0
        %2248 = vmatprep.mubr.f32.mxu0 0.0
        %2249 = vmatmul.mubr.f32.gmra.mrb[0].mxu0 %v1822
        %v2250 = vpop.f32.mrb[0].mxu0
        %v2251 = vadd.f32 %v2166, %v2250
        %v2252 = vpop.f32.mrb[0].mxu0
        %2253 = vmatprep.mubr.f32.mxu0 0.0
        %2254 = vmatmul.mubr.f32.gmra.mrb[0].mxu0 %v1825
        %v2255 = vpop.f32.mrb[0].mxu0
        %v2256 = vadd.f32 %v2171, %v2255
        %v2257 = vpop.f32.mrb[0].mxu0
        %2258 = vdwg.mxu0
        %2259 = vrot.lane.b32.xlu0 %v2059, 126
        %v2260 = vpop.permute.xlu0 %2259
        %2261 = vrot.lane.b32.xlu0 %v2060, 126
        %v2262 = vpop.permute.xlu0 %2261
        %2263 = vrot.lane.b32.xlu0 %v2061, 126
        %v2264 = vpop.permute.xlu0 %2263
        %2265 = vrot.lane.b32.xlu0 %v2062, 126
        %v2266 = vpop.permute.xlu0 %2265
        %2267 = vrot.lane.b32.xlu0 %v2063, 126
        %v2268 = vpop.permute.xlu0 %2267
        %2269 = vrot.lane.b32.xlu0 %v2064, 126
        %v2270 = vpop.permute.xlu0 %2269
        %2277 = vmatprep.subr.mxu0 0.0
        %2278 = vmatpush1.msra.mxu0 %v2260
        %2279 = vmatprep.subr.mxu0 0.0
        %2280 = vmatpush1.msra.mxu0 %v2262
        %2281 = vmatprep.subr.mxu0 0.0
        %2282 = vmatpush1.msra.mxu0 %v2264
        %2283 = vmatprep.subr.mxu0 0.0
        %2284 = vmatpush1.msra.mxu0 %v2266
        %2285 = vmatprep.subr.mxu0 0.0
        %2286 = vmatpush1.msra.mxu0 %v2268
        %2287 = vmatprep.subr.mxu0 0.0
        %2288 = vmatpush1.msra.mxu0 %v2270
        %2289 = vmatprep.subr.mxu0 0.0
        %2290 = vmatpush1.msra.mxu0 0.0
        %2291 = vmatprep.subr.mxu0 0.0
        %2292 = vmatpush1.msra.mxu0 0.0
        %2293 = vmatprep.subr.mxu0 0.0
        %2294 = vmatpush1.msra.mxu0 0.0
        %2295 = vmatprep.subr.mxu0 0.0
        %2296 = vmatpush1.msra.mxu0 0.0
        %2297 = vmatprep.subr.mxu0 0.0
        %2298 = vmatpush1.msra.mxu0 0.0
        %2299 = vmatprep.subr.mxu0 0.0
        %2300 = vmatpush1.msra.mxu0 0.0
        %2301 = vmatprep.subr.mxu0 0.0
        %2302 = vmatpush1.msra.mxu0 0.0
        %2303 = vmatprep.subr.mxu0 0.0
        %2304 = vmatpush1.msra.mxu0 0.0
        %2305 = vmatprep.subr.mxu0 0.0
        %2306 = vmatpush1.msra.mxu0 0.0
        %2307 = vmatprep.subr.mxu0 0.0
        %2308 = vmatpush1.msra.mxu0 0.0
        %2309 = vmatprep.subr.mxu0 0.0
        %2310 = vmatpush1.msra.mxu0 0.0
        %2311 = vmatprep.subr.mxu0 0.0
        %2312 = vmatpush1.msra.mxu0 0.0
        %2313 = vmatprep.subr.mxu0 0.0
        %2314 = vmatpush1.msra.mxu0 0.0
        %2315 = vmatprep.subr.mxu0 0.0
        %2316 = vmatpush1.msra.mxu0 0.0
        %2317 = vmatprep.subr.mxu0 0.0
        %2318 = vmatpush1.msra.mxu0 0.0
        %2319 = vmatprep.subr.mxu0 0.0
        %2320 = vmatpush1.msra.mxu0 0.0
        %2321 = vmatprep.subr.mxu0 0.0
        %2322 = vmatpush1.msra.mxu0 0.0
        %2323 = vmatprep.subr.mxu0 0.0
        %2324 = vmatpush1.msra.mxu0 0.0
        %2325 = vmatprep.subr.mxu0 0.0
        %2326 = vmatpush1.msra.mxu0 0.0
        %2327 = vmatprep.subr.mxu0 0.0
        %2328 = vmatpush1.msra.mxu0 0.0
        %2329 = vmatprep.subr.mxu0 0.0
        %2330 = vmatpush1.msra.mxu0 0.0
        %2331 = vmatprep.subr.mxu0 0.0
        %2332 = vmatpush1.msra.mxu0 0.0
        %2333 = vmatprep.subr.mxu0 0.0
        %2334 = vmatpush1.msra.mxu0 0.0
        %2335 = vmatprep.subr.mxu0 0.0
        %2336 = vmatpush1.msra.mxu0 0.0
        %2337 = vmatprep.subr.mxu0 0.0
        %2338 = vmatpush1.msra.mxu0 0.0
        %2339 = vmatprep.subr.mxu0 0.0
        %2340 = vmatpush1.msra.mxu0 0.0
        %2341 = vmatprep.mubr.f32.mxu0 0.0
        %2342 = vmatmul.mubr.f32.gmra.mrb[0].mxu0 %v1931
        %v2343 = vpop.f32.mrb[0].mxu0
        %v2344 = vadd.f32 0.0, %v2343
        %v2345 = vpop.f32.mrb[0].mxu0
        %2346 = vmatprep.mubr.f32.mxu0 0.0
        %2347 = vmatmul.mubr.f32.gmra.mrb[0].mxu0 %v1934
        %v2348 = vpop.f32.mrb[0].mxu0
        %v2349 = vadd.f32 0.0, %v2348
        %v2350 = vpop.f32.mrb[0].mxu0
        %2351 = vmatprep.mubr.f32.mxu0 0.0
        %2352 = vmatmul.mubr.f32.gmra.mrb[0].mxu0 %v1937
        %v2353 = vpop.f32.mrb[0].mxu0
        %v2354 = vadd.f32 0.0, %v2353
        %v2355 = vpop.f32.mrb[0].mxu0
        %2356 = vmatprep.mubr.f32.mxu0 0.0
        %2357 = vmatmul.mubr.f32.gmra.mrb[0].mxu0 %v1940
        %v2358 = vpop.f32.mrb[0].mxu0
        %v2359 = vadd.f32 0.0, %v2358
        %v2360 = vpop.f32.mrb[0].mxu0
        %2361 = vdwg.mxu0
        %v2362 = vadd.f32 %v2241, %v2344
        %v2363 = vadd.f32 %v2246, %v2349
        %v2364 = vadd.f32 %v2251, %v2354
        %v2365 = vadd.f32 %v2256, %v2359
        %v2366 = vadd.f32 %v2362, %v2034
        %v2367 = vadd.f32 %v2363, %v2039
        %v2368 = vadd.f32 %v2364, %v2044
        %v2369 = vadd.f32 %v2365, %v2049
        %v2370 = vmax.f32 %v2051, %v2366
        %v2371 = vmax.f32 %v2052, %v2367
        %v2372 = vmax.f32 %v2053, %v2368
        %v2373 = vmax.f32 %v2054, %v2369
        %vm2374 = vcmask 490496
        %v2376 = vsel %vm2374, %v2370, 0
        %v2379 = vsel %vm2374, %v2371, 0
        %v2382 = vsel %vm2374, %v2372, 0
        %v2385 = vsel %vm2374, %v2373, 0
        %vm2387 = vcmask 1043456
        %v2389 = vsel %vm2387, %v882, 0
        %2391 = vmatprep.subr.mxu0 0.0
        %2392 = vmatpush1.msra.mxu0 %v875
        %2393 = vmatprep.subr.mxu0 0.0
        %2394 = vmatpush1.msra.mxu0 %v876
        %2395 = vmatprep.subr.mxu0 0.0
        %2396 = vmatpush1.msra.mxu0 %v877
        %2397 = vmatprep.subr.mxu0 0.0
        %2398 = vmatpush1.msra.mxu0 %v878
        %2399 = vmatprep.subr.mxu0 0.0
        %2400 = vmatpush1.msra.mxu0 %v879
        %2401 = vmatprep.subr.mxu0 0.0
        %2402 = vmatpush1.msra.mxu0 %v880
        %2403 = vmatprep.subr.mxu0 0.0
        %2404 = vmatpush1.msra.mxu0 %v881
        %2405 = vmatprep.subr.mxu0 0.0
        %2406 = vmatpush1.msra.mxu0 %v2389
        %2407 = vmatprep.subr.mxu0 0.0
        %2408 = vmatpush1.msra.mxu0 0.0
        %2409 = vmatprep.subr.mxu0 0.0
        %2410 = vmatpush1.msra.mxu0 0.0
        %2411 = vmatprep.subr.mxu0 0.0
        %2412 = vmatpush1.msra.mxu0 0.0
        %2413 = vmatprep.subr.mxu0 0.0
        %2414 = vmatpush1.msra.mxu0 0.0
        %2415 = vmatprep.subr.mxu0 0.0
        %2416 = vmatpush1.msra.mxu0 0.0
        %2417 = vmatprep.subr.mxu0 0.0
        %2418 = vmatpush1.msra.mxu0 0.0
        %2419 = vmatprep.subr.mxu0 0.0
        %2420 = vmatpush1.msra.mxu0 0.0
        %2421 = vmatprep.subr.mxu0 0.0
        %2422 = vmatpush1.msra.mxu0 0.0
        %2423 = vmatprep.subr.mxu0 0.0
        %2424 = vmatpush1.msra.mxu0 0.0
        %2425 = vmatprep.subr.mxu0 0.0
        %2426 = vmatpush1.msra.mxu0 0.0
        %2427 = vmatprep.subr.mxu0 0.0
        %2428 = vmatpush1.msra.mxu0 0.0
        %2429 = vmatprep.subr.mxu0 0.0
        %2430 = vmatpush1.msra.mxu0 0.0
        %2431 = vmatprep.subr.mxu0 0.0
        %2432 = vmatpush1.msra.mxu0 0.0
        %2433 = vmatprep.subr.mxu0 0.0
        %2434 = vmatpush1.msra.mxu0 0.0
        %2435 = vmatprep.subr.mxu0 0.0
        %2436 = vmatpush1.msra.mxu0 0.0
        %2437 = vmatprep.subr.mxu0 0.0
        %2438 = vmatpush1.msra.mxu0 0.0
        %2439 = vmatprep.subr.mxu0 0.0
        %2440 = vmatpush1.msra.mxu0 0.0
        %2441 = vmatprep.subr.mxu0 0.0
        %2442 = vmatpush1.msra.mxu0 0.0
        %2443 = vmatprep.subr.mxu0 0.0
        %2444 = vmatpush1.msra.mxu0 0.0
        %2445 = vmatprep.subr.mxu0 0.0
        %2446 = vmatpush1.msra.mxu0 0.0
        %2447 = vmatprep.subr.mxu0 0.0
        %2448 = vmatpush1.msra.mxu0 0.0
        %2449 = vmatprep.subr.mxu0 0.0
        %2450 = vmatpush1.msra.mxu0 0.0
        %2451 = vmatprep.subr.mxu0 0.0
        %2452 = vmatpush1.msra.mxu0 0.0
        %2453 = vmatprep.subr.mxu0 0.0
        %2454 = vmatpush1.msra.mxu0 0.0
        %2455 = vmatprep.mubr.f32.mxu0 0.0
        %2456 = vmatmul.mubr.f32.gmra.mrb[0].mxu0 %v2376
        %v2457 = vpop.f32.mrb[0].mxu0
        %v2458 = vadd.f32 0.0, %v2457
        %v2459 = vpop.f32.mrb[0].mxu0
        %2460 = vmatprep.mubr.f32.mxu0 0.0
        %2461 = vmatmul.mubr.f32.gmra.mrb[0].mxu0 %v2379
        %v2462 = vpop.f32.mrb[0].mxu0
        %v2463 = vadd.f32 0.0, %v2462
        %v2464 = vpop.f32.mrb[0].mxu0
        %2465 = vmatprep.mubr.f32.mxu0 0.0
        %2466 = vmatmul.mubr.f32.gmra.mrb[0].mxu0 %v2382
        %v2467 = vpop.f32.mrb[0].mxu0
        %v2468 = vadd.f32 0.0, %v2467
        %v2469 = vpop.f32.mrb[0].mxu0
        %2470 = vmatprep.mubr.f32.mxu0 0.0
        %2471 = vmatmul.mubr.f32.gmra.mrb[0].mxu0 %v2385
        %v2472 = vpop.f32.mrb[0].mxu0
        %v2473 = vadd.f32 0.0, %v2472
        %v2474 = vpop.f32.mrb[0].mxu0
        %2475 = vdwg.mxu0
        %v2477 = vsel %vm2387, %v931, 0
        %2479 = vmatprep.subr.mxu0 0.0
        %2480 = vmatpush1.msra.mxu0 %v924
        %2481 = vmatprep.subr.mxu0 0.0
        %2482 = vmatpush1.msra.mxu0 %v925
        %2483 = vmatprep.subr.mxu0 0.0
        %2484 = vmatpush1.msra.mxu0 %v926
        %2485 = vmatprep.subr.mxu0 0.0
        %2486 = vmatpush1.msra.mxu0 %v927
        %2487 = vmatprep.subr.mxu0 0.0
        %2488 = vmatpush1.msra.mxu0 %v928
        %2489 = vmatprep.subr.mxu0 0.0
        %2490 = vmatpush1.msra.mxu0 %v929
        %2491 = vmatprep.subr.mxu0 0.0
        %2492 = vmatpush1.msra.mxu0 %v930
        %2493 = vmatprep.subr.mxu0 0.0
        %2494 = vmatpush1.msra.mxu0 %v2477
        %2495 = vmatprep.subr.mxu0 0.0
        %2496 = vmatpush1.msra.mxu0 0.0
        %2497 = vmatprep.subr.mxu0 0.0
        %2498 = vmatpush1.msra.mxu0 0.0
        %2499 = vmatprep.subr.mxu0 0.0
        %2500 = vmatpush1.msra.mxu0 0.0
        %2501 = vmatprep.subr.mxu0 0.0
        %2502 = vmatpush1.msra.mxu0 0.0
        %2503 = vmatprep.subr.mxu0 0.0
        %2504 = vmatpush1.msra.mxu0 0.0
        %2505 = vmatprep.subr.mxu0 0.0
        %2506 = vmatpush1.msra.mxu0 0.0
        %2507 = vmatprep.subr.mxu0 0.0
        %2508 = vmatpush1.msra.mxu0 0.0
        %2509 = vmatprep.subr.mxu0 0.0
        %2510 = vmatpush1.msra.mxu0 0.0
        %2511 = vmatprep.subr.mxu0 0.0
        %2512 = vmatpush1.msra.mxu0 0.0
        %2513 = vmatprep.subr.mxu0 0.0
        %2514 = vmatpush1.msra.mxu0 0.0
        %2515 = vmatprep.subr.mxu0 0.0
        %2516 = vmatpush1.msra.mxu0 0.0
        %2517 = vmatprep.subr.mxu0 0.0
        %2518 = vmatpush1.msra.mxu0 0.0
        %2519 = vmatprep.subr.mxu0 0.0
        %2520 = vmatpush1.msra.mxu0 0.0
        %2521 = vmatprep.subr.mxu0 0.0
        %2522 = vmatpush1.msra.mxu0 0.0
        %2523 = vmatprep.subr.mxu0 0.0
        %2524 = vmatpush1.msra.mxu0 0.0
        %2525 = vmatprep.subr.mxu0 0.0
        %2526 = vmatpush1.msra.mxu0 0.0
        %2527 = vmatprep.subr.mxu0 0.0
        %2528 = vmatpush1.msra.mxu0 0.0
        %2529 = vmatprep.subr.mxu0 0.0
        %2530 = vmatpush1.msra.mxu0 0.0
        %2531 = vmatprep.subr.mxu0 0.0
        %2532 = vmatpush1.msra.mxu0 0.0
        %2533 = vmatprep.subr.mxu0 0.0
        %2534 = vmatpush1.msra.mxu0 0.0
        %2535 = vmatprep.subr.mxu0 0.0
        %2536 = vmatpush1.msra.mxu0 0.0
        %2537 = vmatprep.subr.mxu0 0.0
        %2538 = vmatpush1.msra.mxu0 0.0
        %2539 = vmatprep.subr.mxu0 0.0
        %2540 = vmatpush1.msra.mxu0 0.0
        %2541 = vmatprep.subr.mxu0 0.0
        %2542 = vmatpush1.msra.mxu0 0.0
        %2543 = vmatprep.mubr.f32.mxu0 0.0
        %2544 = vmatmul.mubr.f32.gmra.mrb[0].mxu0 %v2376
        %v2545 = vpop.f32.mrb[0].mxu0
        %v2546 = vadd.f32 0.0, %v2545
        %v2547 = vpop.f32.mrb[0].mxu0
        %2548 = vmatprep.mubr.f32.mxu0 0.0
        %2549 = vmatmul.mubr.f32.gmra.mrb[0].mxu0 %v2379
        %v2550 = vpop.f32.mrb[0].mxu0
        %v2551 = vadd.f32 0.0, %v2550
        %v2552 = vpop.f32.mrb[0].mxu0
        %2553 = vmatprep.mubr.f32.mxu0 0.0
        %2554 = vmatmul.mubr.f32.gmra.mrb[0].mxu0 %v2382
        %v2555 = vpop.f32.mrb[0].mxu0
        %v2556 = vadd.f32 0.0, %v2555
        %v2557 = vpop.f32.mrb[0].mxu0
        %2558 = vmatprep.mubr.f32.mxu0 0.0
        %2559 = vmatmul.mubr.f32.gmra.mrb[0].mxu0 %v2385
        %v2560 = vpop.f32.mrb[0].mxu0
        %v2561 = vadd.f32 0.0, %v2560
        %v2562 = vpop.f32.mrb[0].mxu0
        %2563 = vdwg.mxu0
        %v2564 = vmax.f32 %v2458, %v2546
        %v2565 = vmax.f32 %v2463, %v2551
        %v2566 = vmax.f32 %v2468, %v2556
        %v2567 = vmax.f32 %v2473, %v2561
        %v2568 = vmax.f32 %v2564, 0.0
        %v2569 = vmax.f32 %v2565, 0.0
        %v2570 = vmax.f32 %v2566, 0.0
        %v2571 = vmax.f32 %v2567, 0.0
        %s2572 = scalar_lea.vmem [#allocation4], %s1685
        %vm2573 = vcmask 244736
        %2574 = vst.msk [vmem:[%s2572] sm:$0xff] %vm2573, %v2568
        %2575 = vst.msk [vmem:[%s2572 + $0x8] sm:$0xff] %vm2573, %v2569
        %2576 = vst.msk [vmem:[%s2572 + $0x10] sm:$0xff] %vm2573, %v2570
        %2577 = vst.msk [vmem:[%s2572 + $0x18] sm:$0xff] %vm2573, %v2571
      $region107: #{modelv0_forward.1} parent=87 // loop_footer
        %s1684 = sadd.s32 1, %s1680
      $region108: #{modelv0_forward.1} parent=87 // loop_footer_branch
        %1679 = sbr.rel target = $region104
      $region109: #{modelv0_forward.1} parent=87 // loop_exit
        _
      %v2578 = vld [vmem:[%s7] sm:$0xff]
      %v2579 = vld [vmem:[%s7 + $0x8] sm:$0xff]
      %v2580 = vld [vmem:[%s7 + $0x10] sm:$0xff]
      %v2581 = vld [vmem:[%s7 + $0x18] sm:$0xff]
      %s2582 = scalar_lea.vmem %s7, 32
      %v2583 = vld [vmem:[%s2582] sm:$0xff]
      %v2584 = vld [vmem:[%s2582 + $0x8] sm:$0xff]
      %v2585 = vld [vmem:[%s2582 + $0x10] sm:$0xff]
      %v2586 = vld [vmem:[%s2582 + $0x18] sm:$0xff]
      %s2587 = scalar_lea.vmem %s7, 64
      %v2588 = vld [vmem:[%s2587] sm:$0xff]
      %v2589 = vld [vmem:[%s2587 + $0x8] sm:$0xff]
      %v2590 = vld [vmem:[%s2587 + $0x10] sm:$0xff]
      %v2591 = vld [vmem:[%s2587 + $0x18] sm:$0xff]
      %v2592 = vld [vmem:[%s8] sm:$0xff]
      %v2593 = vld [vmem:[%s8 + $0x8] sm:$0xff]
      %v2594 = vld [vmem:[%s8 + $0x10] sm:$0xff]
      %v2595 = vld [vmem:[%s8 + $0x18] sm:$0xff]
      loop: start=0, step=1, limit=22
      $region110: #{modelv0_forward.1} parent=87 // loop_pre_header
        _
      $region111: #{modelv0_forward.1} parent=87 // loop_header
        %s2597 = sphi 0, %s2601
        %p2598 = scmp.ge.s32.totalorder %s2597, 22
      $region112: #{modelv0_forward.1} parent=87 // loop_header_branch
        %2600 = sbr.rel (%p2598) target = $region116
      $region113: #{modelv0_forward.1} parent=87 // loop_body
        %s2602 = smul.u32 %s2597, 64
        %s2603 = scalar_lea.vmem [#allocation4], %s2602
        %v2604 = vld [vmem:[%s2603] sm:$0xff]
        %v2605 = vld [vmem:[%s2603 + $0x8] sm:$0xff]
        %v2606 = vld [vmem:[%s2603 + $0x10] sm:$0xff]
        %v2607 = vld [vmem:[%s2603 + $0x18] sm:$0xff]
        %v2608 = vld [vmem:[%s2603 + $0x20] sm:$0xff]
        %v2609 = vld [vmem:[%s2603 + $0x28] sm:$0xff]
        %v2610 = vld [vmem:[%s2603 + $0x30] sm:$0xff]
        %v2611 = vld [vmem:[%s2603 + $0x38] sm:$0xff]
        %v2612 = vld [vmem:[%s2603 + $0x40] sm:$0xff]
        %v2613 = vld [vmem:[%s2603 + $0x48] sm:$0xff]
        %v2614 = vld [vmem:[%s2603 + $0x50] sm:$0xff]
        %v2615 = vld [vmem:[%s2603 + $0x58] sm:$0xff]
        %2628 = vrot.lane.b32.xlu0 %v2604, 127
        %v2629 = vpop.permute.xlu0 %2628
        %2630 = vrot.lane.b32.xlu0 %v2605, 127
        %v2631 = vpop.permute.xlu0 %2630
        %2632 = vrot.lane.b32.xlu0 %v2606, 127
        %v2633 = vpop.permute.xlu0 %2632
        %2634 = vrot.lane.b32.xlu0 %v2607, 127
        %v2635 = vpop.permute.xlu0 %2634
        %2636 = vrot.lane.b32.xlu0 %v2608, 127
        %v2637 = vpop.permute.xlu0 %2636
        %2638 = vrot.lane.b32.xlu0 %v2609, 127
        %v2639 = vpop.permute.xlu0 %2638
        %2640 = vrot.lane.b32.xlu0 %v2610, 127
        %v2641 = vpop.permute.xlu0 %2640
        %2642 = vrot.lane.b32.xlu0 %v2611, 127
        %v2643 = vpop.permute.xlu0 %2642
        %2644 = vrot.lane.b32.xlu0 %v2612, 127
        %v2645 = vpop.permute.xlu0 %2644
        %2646 = vrot.lane.b32.xlu0 %v2613, 127
        %v2647 = vpop.permute.xlu0 %2646
        %2648 = vrot.lane.b32.xlu0 %v2614, 127
        %v2649 = vpop.permute.xlu0 %2648
        %2650 = vrot.lane.b32.xlu0 %v2615, 127
        %v2651 = vpop.permute.xlu0 %2650
        %vm2664 = vcmask 785408
        %v2666 = vsel %vm2664, %v2583, 0
        %v2669 = vsel %vm2664, %v2584, 0
        %v2672 = vsel %vm2664, %v2585, 0
        %v2675 = vsel %vm2664, %v2586, 0
        %2677 = vmatprep.subr.mxu0 0.0
        %2678 = vmatpush1.msra.mxu0 %v2629
        %2679 = vmatprep.subr.mxu0 0.0
        %2680 = vmatpush1.msra.mxu0 %v2631
        %2681 = vmatprep.subr.mxu0 0.0
        %2682 = vmatpush1.msra.mxu0 %v2633
        %2683 = vmatprep.subr.mxu0 0.0
        %2684 = vmatpush1.msra.mxu0 %v2635
        %2685 = vmatprep.subr.mxu0 0.0
        %2686 = vmatpush1.msra.mxu0 %v2637
        %2687 = vmatprep.subr.mxu0 0.0
        %2688 = vmatpush1.msra.mxu0 %v2639
        %2689 = vmatprep.subr.mxu0 0.0
        %2690 = vmatpush1.msra.mxu0 %v2641
        %2691 = vmatprep.subr.mxu0 0.0
        %2692 = vmatpush1.msra.mxu0 %v2643
        %2693 = vmatprep.subr.mxu0 0.0
        %2694 = vmatpush1.msra.mxu0 %v2645
        %2695 = vmatprep.subr.mxu0 0.0
        %2696 = vmatpush1.msra.mxu0 %v2647
        %2697 = vmatprep.subr.mxu0 0.0
        %2698 = vmatpush1.msra.mxu0 %v2649
        %2699 = vmatprep.subr.mxu0 0.0
        %2700 = vmatpush1.msra.mxu0 %v2651
        %2701 = vmatprep.subr.mxu0 0.0
        %2702 = vmatpush1.msra.mxu0 0.0
        %2703 = vmatprep.subr.mxu0 0.0
        %2704 = vmatpush1.msra.mxu0 0.0
        %2705 = vmatprep.subr.mxu0 0.0
        %2706 = vmatpush1.msra.mxu0 0.0
        %2707 = vmatprep.subr.mxu0 0.0
        %2708 = vmatpush1.msra.mxu0 0.0
        %2709 = vmatprep.subr.mxu0 0.0
        %2710 = vmatpush1.msra.mxu0 0.0
        %2711 = vmatprep.subr.mxu0 0.0
        %2712 = vmatpush1.msra.mxu0 0.0
        %2713 = vmatprep.subr.mxu0 0.0
        %2714 = vmatpush1.msra.mxu0 0.0
        %2715 = vmatprep.subr.mxu0 0.0
        %2716 = vmatpush1.msra.mxu0 0.0
        %2717 = vmatprep.subr.mxu0 0.0
        %2718 = vmatpush1.msra.mxu0 0.0
        %2719 = vmatprep.subr.mxu0 0.0
        %2720 = vmatpush1.msra.mxu0 0.0
        %2721 = vmatprep.subr.mxu0 0.0
        %2722 = vmatpush1.msra.mxu0 0.0
        %2723 = vmatprep.subr.mxu0 0.0
        %2724 = vmatpush1.msra.mxu0 0.0
        %2725 = vmatprep.subr.mxu0 0.0
        %2726 = vmatpush1.msra.mxu0 0.0
        %2727 = vmatprep.subr.mxu0 0.0
        %2728 = vmatpush1.msra.mxu0 0.0
        %2729 = vmatprep.subr.mxu0 0.0
        %2730 = vmatpush1.msra.mxu0 0.0
        %2731 = vmatprep.subr.mxu0 0.0
        %2732 = vmatpush1.msra.mxu0 0.0
        %2733 = vmatprep.subr.mxu0 0.0
        %2734 = vmatpush1.msra.mxu0 0.0
        %2735 = vmatprep.subr.mxu0 0.0
        %2736 = vmatpush1.msra.mxu0 0.0
        %2737 = vmatprep.subr.mxu0 0.0
        %2738 = vmatpush1.msra.mxu0 0.0
        %2739 = vmatprep.subr.mxu0 0.0
        %2740 = vmatpush1.msra.mxu0 0.0
        %2741 = vmatprep.mubr.f32.mxu0 0.0
        %2742 = vmatmul.mubr.f32.gmra.mrb[0].mxu0 %v2666
        %v2743 = vpop.f32.mrb[0].mxu0
        %v2744 = vadd.f32 0.0, %v2743
        %v2745 = vpop.f32.mrb[0].mxu0
        %2746 = vmatprep.mubr.f32.mxu0 0.0
        %2747 = vmatmul.mubr.f32.gmra.mrb[0].mxu0 %v2669
        %v2748 = vpop.f32.mrb[0].mxu0
        %v2749 = vadd.f32 0.0, %v2748
        %v2750 = vpop.f32.mrb[0].mxu0
        %2751 = vmatprep.mubr.f32.mxu0 0.0
        %2752 = vmatmul.mubr.f32.gmra.mrb[0].mxu0 %v2672
        %v2753 = vpop.f32.mrb[0].mxu0
        %v2754 = vadd.f32 0.0, %v2753
        %v2755 = vpop.f32.mrb[0].mxu0
        %2756 = vmatprep.mubr.f32.mxu0 0.0
        %2757 = vmatmul.mubr.f32.gmra.mrb[0].mxu0 %v2675
        %v2758 = vpop.f32.mrb[0].mxu0
        %v2759 = vadd.f32 0.0, %v2758
        %v2760 = vpop.f32.mrb[0].mxu0
        %2761 = vdwg.mxu0
        %v2763 = vsel %vm2664, %v2578, 0
        %v2766 = vsel %vm2664, %v2579, 0
        %v2769 = vsel %vm2664, %v2580, 0
        %v2772 = vsel %vm2664, %v2581, 0
        %2774 = vmatprep.subr.mxu0 0.0
        %2775 = vmatpush1.msra.mxu0 %v2604
        %2776 = vmatprep.subr.mxu0 0.0
        %2777 = vmatpush1.msra.mxu0 %v2605
        %2778 = vmatprep.subr.mxu0 0.0
        %2779 = vmatpush1.msra.mxu0 %v2606
        %2780 = vmatprep.subr.mxu0 0.0
        %2781 = vmatpush1.msra.mxu0 %v2607
        %2782 = vmatprep.subr.mxu0 0.0
        %2783 = vmatpush1.msra.mxu0 %v2608
        %2784 = vmatprep.subr.mxu0 0.0
        %2785 = vmatpush1.msra.mxu0 %v2609
        %2786 = vmatprep.subr.mxu0 0.0
        %2787 = vmatpush1.msra.mxu0 %v2610
        %2788 = vmatprep.subr.mxu0 0.0
        %2789 = vmatpush1.msra.mxu0 %v2611
        %2790 = vmatprep.subr.mxu0 0.0
        %2791 = vmatpush1.msra.mxu0 %v2612
        %2792 = vmatprep.subr.mxu0 0.0
        %2793 = vmatpush1.msra.mxu0 %v2613
        %2794 = vmatprep.subr.mxu0 0.0
        %2795 = vmatpush1.msra.mxu0 %v2614
        %2796 = vmatprep.subr.mxu0 0.0
        %2797 = vmatpush1.msra.mxu0 %v2615
        %2798 = vmatprep.subr.mxu0 0.0
        %2799 = vmatpush1.msra.mxu0 0.0
        %2800 = vmatprep.subr.mxu0 0.0
        %2801 = vmatpush1.msra.mxu0 0.0
        %2802 = vmatprep.subr.mxu0 0.0
        %2803 = vmatpush1.msra.mxu0 0.0
        %2804 = vmatprep.subr.mxu0 0.0
        %2805 = vmatpush1.msra.mxu0 0.0
        %2806 = vmatprep.subr.mxu0 0.0
        %2807 = vmatpush1.msra.mxu0 0.0
        %2808 = vmatprep.subr.mxu0 0.0
        %2809 = vmatpush1.msra.mxu0 0.0
        %2810 = vmatprep.subr.mxu0 0.0
        %2811 = vmatpush1.msra.mxu0 0.0
        %2812 = vmatprep.subr.mxu0 0.0
        %2813 = vmatpush1.msra.mxu0 0.0
        %2814 = vmatprep.subr.mxu0 0.0
        %2815 = vmatpush1.msra.mxu0 0.0
        %2816 = vmatprep.subr.mxu0 0.0
        %2817 = vmatpush1.msra.mxu0 0.0
        %2818 = vmatprep.subr.mxu0 0.0
        %2819 = vmatpush1.msra.mxu0 0.0
        %2820 = vmatprep.subr.mxu0 0.0
        %2821 = vmatpush1.msra.mxu0 0.0
        %2822 = vmatprep.subr.mxu0 0.0
        %2823 = vmatpush1.msra.mxu0 0.0
        %2824 = vmatprep.subr.mxu0 0.0
        %2825 = vmatpush1.msra.mxu0 0.0
        %2826 = vmatprep.subr.mxu0 0.0
        %2827 = vmatpush1.msra.mxu0 0.0
        %2828 = vmatprep.subr.mxu0 0.0
        %2829 = vmatpush1.msra.mxu0 0.0
        %2830 = vmatprep.subr.mxu0 0.0
        %2831 = vmatpush1.msra.mxu0 0.0
        %2832 = vmatprep.subr.mxu0 0.0
        %2833 = vmatpush1.msra.mxu0 0.0
        %2834 = vmatprep.subr.mxu0 0.0
        %2835 = vmatpush1.msra.mxu0 0.0
        %2836 = vmatprep.subr.mxu0 0.0
        %2837 = vmatpush1.msra.mxu0 0.0
        %2838 = vmatprep.mubr.f32.mxu0 0.0
        %2839 = vmatmul.mubr.f32.gmra.mrb[0].mxu0 %v2763
        %v2840 = vpop.f32.mrb[0].mxu0
        %v2841 = vadd.f32 %v2744, %v2840
        %v2842 = vpop.f32.mrb[0].mxu0
        %2843 = vmatprep.mubr.f32.mxu0 0.0
        %2844 = vmatmul.mubr.f32.gmra.mrb[0].mxu0 %v2766
        %v2845 = vpop.f32.mrb[0].mxu0
        %v2846 = vadd.f32 %v2749, %v2845
        %v2847 = vpop.f32.mrb[0].mxu0
        %2848 = vmatprep.mubr.f32.mxu0 0.0
        %2849 = vmatmul.mubr.f32.gmra.mrb[0].mxu0 %v2769
        %v2850 = vpop.f32.mrb[0].mxu0
        %v2851 = vadd.f32 %v2754, %v2850
        %v2852 = vpop.f32.mrb[0].mxu0
        %2853 = vmatprep.mubr.f32.mxu0 0.0
        %2854 = vmatmul.mubr.f32.gmra.mrb[0].mxu0 %v2772
        %v2855 = vpop.f32.mrb[0].mxu0
        %v2856 = vadd.f32 %v2759, %v2855
        %v2857 = vpop.f32.mrb[0].mxu0
        %2858 = vdwg.mxu0
        %2859 = vrot.lane.b32.xlu0 %v2604, 126
        %v2860 = vpop.permute.xlu0 %2859
        %2861 = vrot.lane.b32.xlu0 %v2605, 126
        %v2862 = vpop.permute.xlu0 %2861
        %2863 = vrot.lane.b32.xlu0 %v2606, 126
        %v2864 = vpop.permute.xlu0 %2863
        %2865 = vrot.lane.b32.xlu0 %v2607, 126
        %v2866 = vpop.permute.xlu0 %2865
        %2867 = vrot.lane.b32.xlu0 %v2608, 126
        %v2868 = vpop.permute.xlu0 %2867
        %2869 = vrot.lane.b32.xlu0 %v2609, 126
        %v2870 = vpop.permute.xlu0 %2869
        %2871 = vrot.lane.b32.xlu0 %v2610, 126
        %v2872 = vpop.permute.xlu0 %2871
        %2873 = vrot.lane.b32.xlu0 %v2611, 126
        %v2874 = vpop.permute.xlu0 %2873
        %2875 = vrot.lane.b32.xlu0 %v2612, 126
        %v2876 = vpop.permute.xlu0 %2875
        %2877 = vrot.lane.b32.xlu0 %v2613, 126
        %v2878 = vpop.permute.xlu0 %2877
        %2879 = vrot.lane.b32.xlu0 %v2614, 126
        %v2880 = vpop.permute.xlu0 %2879
        %2881 = vrot.lane.b32.xlu0 %v2615, 126
        %v2882 = vpop.permute.xlu0 %2881
        %v2896 = vsel %vm2664, %v2588, 0
        %v2899 = vsel %vm2664, %v2589, 0
        %v2902 = vsel %vm2664, %v2590, 0
        %v2905 = vsel %vm2664, %v2591, 0
        %2907 = vmatprep.subr.mxu0 0.0
        %2908 = vmatpush1.msra.mxu0 %v2860
        %2909 = vmatprep.subr.mxu0 0.0
        %2910 = vmatpush1.msra.mxu0 %v2862
        %2911 = vmatprep.subr.mxu0 0.0
        %2912 = vmatpush1.msra.mxu0 %v2864
        %2913 = vmatprep.subr.mxu0 0.0
        %2914 = vmatpush1.msra.mxu0 %v2866
        %2915 = vmatprep.subr.mxu0 0.0
        %2916 = vmatpush1.msra.mxu0 %v2868
        %2917 = vmatprep.subr.mxu0 0.0
        %2918 = vmatpush1.msra.mxu0 %v2870
        %2919 = vmatprep.subr.mxu0 0.0
        %2920 = vmatpush1.msra.mxu0 %v2872
        %2921 = vmatprep.subr.mxu0 0.0
        %2922 = vmatpush1.msra.mxu0 %v2874
        %2923 = vmatprep.subr.mxu0 0.0
        %2924 = vmatpush1.msra.mxu0 %v2876
        %2925 = vmatprep.subr.mxu0 0.0
        %2926 = vmatpush1.msra.mxu0 %v2878
        %2927 = vmatprep.subr.mxu0 0.0
        %2928 = vmatpush1.msra.mxu0 %v2880
        %2929 = vmatprep.subr.mxu0 0.0
        %2930 = vmatpush1.msra.mxu0 %v2882
        %2931 = vmatprep.subr.mxu0 0.0
        %2932 = vmatpush1.msra.mxu0 0.0
        %2933 = vmatprep.subr.mxu0 0.0
        %2934 = vmatpush1.msra.mxu0 0.0
        %2935 = vmatprep.subr.mxu0 0.0
        %2936 = vmatpush1.msra.mxu0 0.0
        %2937 = vmatprep.subr.mxu0 0.0
        %2938 = vmatpush1.msra.mxu0 0.0
        %2939 = vmatprep.subr.mxu0 0.0
        %2940 = vmatpush1.msra.mxu0 0.0
        %2941 = vmatprep.subr.mxu0 0.0
        %2942 = vmatpush1.msra.mxu0 0.0
        %2943 = vmatprep.subr.mxu0 0.0
        %2944 = vmatpush1.msra.mxu0 0.0
        %2945 = vmatprep.subr.mxu0 0.0
        %2946 = vmatpush1.msra.mxu0 0.0
        %2947 = vmatprep.subr.mxu0 0.0
        %2948 = vmatpush1.msra.mxu0 0.0
        %2949 = vmatprep.subr.mxu0 0.0
        %2950 = vmatpush1.msra.mxu0 0.0
        %2951 = vmatprep.subr.mxu0 0.0
        %2952 = vmatpush1.msra.mxu0 0.0
        %2953 = vmatprep.subr.mxu0 0.0
        %2954 = vmatpush1.msra.mxu0 0.0
        %2955 = vmatprep.subr.mxu0 0.0
        %2956 = vmatpush1.msra.mxu0 0.0
        %2957 = vmatprep.subr.mxu0 0.0
        %2958 = vmatpush1.msra.mxu0 0.0
        %2959 = vmatprep.subr.mxu0 0.0
        %2960 = vmatpush1.msra.mxu0 0.0
        %2961 = vmatprep.subr.mxu0 0.0
        %2962 = vmatpush1.msra.mxu0 0.0
        %2963 = vmatprep.subr.mxu0 0.0
        %2964 = vmatpush1.msra.mxu0 0.0
        %2965 = vmatprep.subr.mxu0 0.0
        %2966 = vmatpush1.msra.mxu0 0.0
        %2967 = vmatprep.subr.mxu0 0.0
        %2968 = vmatpush1.msra.mxu0 0.0
        %2969 = vmatprep.subr.mxu0 0.0
        %2970 = vmatpush1.msra.mxu0 0.0
        %2971 = vmatprep.mubr.f32.mxu0 0.0
        %2972 = vmatmul.mubr.f32.gmra.mrb[0].mxu0 %v2896
        %v2973 = vpop.f32.mrb[0].mxu0
        %v2974 = vadd.f32 0.0, %v2973
        %v2975 = vpop.f32.mrb[0].mxu0
        %2976 = vmatprep.mubr.f32.mxu0 0.0
        %2977 = vmatmul.mubr.f32.gmra.mrb[0].mxu0 %v2899
        %v2978 = vpop.f32.mrb[0].mxu0
        %v2979 = vadd.f32 0.0, %v2978
        %v2980 = vpop.f32.mrb[0].mxu0
        %2981 = vmatprep.mubr.f32.mxu0 0.0
        %2982 = vmatmul.mubr.f32.gmra.mrb[0].mxu0 %v2902
        %v2983 = vpop.f32.mrb[0].mxu0
        %v2984 = vadd.f32 0.0, %v2983
        %v2985 = vpop.f32.mrb[0].mxu0
        %2986 = vmatprep.mubr.f32.mxu0 0.0
        %2987 = vmatmul.mubr.f32.gmra.mrb[0].mxu0 %v2905
        %v2988 = vpop.f32.mrb[0].mxu0
        %v2989 = vadd.f32 0.0, %v2988
        %v2990 = vpop.f32.mrb[0].mxu0
        %2991 = vdwg.mxu0
        %v2992 = vadd.f32 %v2841, %v2974
        %v2993 = vadd.f32 %v2846, %v2979
        %v2994 = vadd.f32 %v2851, %v2984
        %v2995 = vadd.f32 %v2856, %v2989
        %2997 = vset.pattern.permute.xlu0 0
        %2998 = vperm.xlu0 %2997, %v2592
        %v2999 = vpop.permute.xlu0 %2998
        %3002 = vset.pattern.permute.xlu0 0
        %3003 = vperm.xlu0 %3002, %v2593
        %v3004 = vpop.permute.xlu0 %3003
        %3007 = vset.pattern.permute.xlu0 0
        %3008 = vperm.xlu0 %3007, %v2594
        %v3009 = vpop.permute.xlu0 %3008
        %3012 = vset.pattern.permute.xlu0 0
        %3013 = vperm.xlu0 %3012, %v2595
        %v3014 = vpop.permute.xlu0 %3013
        %v3016 = vadd.f32 %v2992, %v2999
        %v3017 = vadd.f32 %v2993, %v3004
        %v3018 = vadd.f32 %v2994, %v3009
        %v3019 = vadd.f32 %v2995, %v3014
        %s3020 = smul.u32 %s2597, 2
        %s3021 = sadd.s32 %s3020, 1
        %s3022 = smul.u32 %s3021, 32
        %s3023 = scalar_lea.vmem [#allocation4], %s3022
        %v3024 = vld [vmem:[%s3023] sm:$0xff]
        %v3025 = vld [vmem:[%s3023 + $0x8] sm:$0xff]
        %v3026 = vld [vmem:[%s3023 + $0x10] sm:$0xff]
        %v3027 = vld [vmem:[%s3023 + $0x18] sm:$0xff]
        %v3028 = vld [vmem:[%s3023 + $0x20] sm:$0xff]
        %v3029 = vld [vmem:[%s3023 + $0x28] sm:$0xff]
        %v3030 = vld [vmem:[%s3023 + $0x30] sm:$0xff]
        %v3031 = vld [vmem:[%s3023 + $0x38] sm:$0xff]
        %v3032 = vld [vmem:[%s3023 + $0x40] sm:$0xff]
        %v3033 = vld [vmem:[%s3023 + $0x48] sm:$0xff]
        %v3034 = vld [vmem:[%s3023 + $0x50] sm:$0xff]
        %v3035 = vld [vmem:[%s3023 + $0x58] sm:$0xff]
        %3048 = vrot.lane.b32.xlu0 %v3024, 127
        %v3049 = vpop.permute.xlu0 %3048
        %3050 = vrot.lane.b32.xlu0 %v3025, 127
        %v3051 = vpop.permute.xlu0 %3050
        %3052 = vrot.lane.b32.xlu0 %v3026, 127
        %v3053 = vpop.permute.xlu0 %3052
        %3054 = vrot.lane.b32.xlu0 %v3027, 127
        %v3055 = vpop.permute.xlu0 %3054
        %3056 = vrot.lane.b32.xlu0 %v3028, 127
        %v3057 = vpop.permute.xlu0 %3056
        %3058 = vrot.lane.b32.xlu0 %v3029, 127
        %v3059 = vpop.permute.xlu0 %3058
        %3060 = vrot.lane.b32.xlu0 %v3030, 127
        %v3061 = vpop.permute.xlu0 %3060
        %3062 = vrot.lane.b32.xlu0 %v3031, 127
        %v3063 = vpop.permute.xlu0 %3062
        %3064 = vrot.lane.b32.xlu0 %v3032, 127
        %v3065 = vpop.permute.xlu0 %3064
        %3066 = vrot.lane.b32.xlu0 %v3033, 127
        %v3067 = vpop.permute.xlu0 %3066
        %3068 = vrot.lane.b32.xlu0 %v3034, 127
        %v3069 = vpop.permute.xlu0 %3068
        %3070 = vrot.lane.b32.xlu0 %v3035, 127
        %v3071 = vpop.permute.xlu0 %3070
        %3084 = vmatprep.subr.mxu0 0.0
        %3085 = vmatpush1.msra.mxu0 %v3049
        %3086 = vmatprep.subr.mxu0 0.0
        %3087 = vmatpush1.msra.mxu0 %v3051
        %3088 = vmatprep.subr.mxu0 0.0
        %3089 = vmatpush1.msra.mxu0 %v3053
        %3090 = vmatprep.subr.mxu0 0.0
        %3091 = vmatpush1.msra.mxu0 %v3055
        %3092 = vmatprep.subr.mxu0 0.0
        %3093 = vmatpush1.msra.mxu0 %v3057
        %3094 = vmatprep.subr.mxu0 0.0
        %3095 = vmatpush1.msra.mxu0 %v3059
        %3096 = vmatprep.subr.mxu0 0.0
        %3097 = vmatpush1.msra.mxu0 %v3061
        %3098 = vmatprep.subr.mxu0 0.0
        %3099 = vmatpush1.msra.mxu0 %v3063
        %3100 = vmatprep.subr.mxu0 0.0
        %3101 = vmatpush1.msra.mxu0 %v3065
        %3102 = vmatprep.subr.mxu0 0.0
        %3103 = vmatpush1.msra.mxu0 %v3067
        %3104 = vmatprep.subr.mxu0 0.0
        %3105 = vmatpush1.msra.mxu0 %v3069
        %3106 = vmatprep.subr.mxu0 0.0
        %3107 = vmatpush1.msra.mxu0 %v3071
        %3108 = vmatprep.subr.mxu0 0.0
        %3109 = vmatpush1.msra.mxu0 0.0
        %3110 = vmatprep.subr.mxu0 0.0
        %3111 = vmatpush1.msra.mxu0 0.0
        %3112 = vmatprep.subr.mxu0 0.0
        %3113 = vmatpush1.msra.mxu0 0.0
        %3114 = vmatprep.subr.mxu0 0.0
        %3115 = vmatpush1.msra.mxu0 0.0
        %3116 = vmatprep.subr.mxu0 0.0
        %3117 = vmatpush1.msra.mxu0 0.0
        %3118 = vmatprep.subr.mxu0 0.0
        %3119 = vmatpush1.msra.mxu0 0.0
        %3120 = vmatprep.subr.mxu0 0.0
        %3121 = vmatpush1.msra.mxu0 0.0
        %3122 = vmatprep.subr.mxu0 0.0
        %3123 = vmatpush1.msra.mxu0 0.0
        %3124 = vmatprep.subr.mxu0 0.0
        %3125 = vmatpush1.msra.mxu0 0.0
        %3126 = vmatprep.subr.mxu0 0.0
        %3127 = vmatpush1.msra.mxu0 0.0
        %3128 = vmatprep.subr.mxu0 0.0
        %3129 = vmatpush1.msra.mxu0 0.0
        %3130 = vmatprep.subr.mxu0 0.0
        %3131 = vmatpush1.msra.mxu0 0.0
        %3132 = vmatprep.subr.mxu0 0.0
        %3133 = vmatpush1.msra.mxu0 0.0
        %3134 = vmatprep.subr.mxu0 0.0
        %3135 = vmatpush1.msra.mxu0 0.0
        %3136 = vmatprep.subr.mxu0 0.0
        %3137 = vmatpush1.msra.mxu0 0.0
        %3138 = vmatprep.subr.mxu0 0.0
        %3139 = vmatpush1.msra.mxu0 0.0
        %3140 = vmatprep.subr.mxu0 0.0
        %3141 = vmatpush1.msra.mxu0 0.0
        %3142 = vmatprep.subr.mxu0 0.0
        %3143 = vmatpush1.msra.mxu0 0.0
        %3144 = vmatprep.subr.mxu0 0.0
        %3145 = vmatpush1.msra.mxu0 0.0
        %3146 = vmatprep.subr.mxu0 0.0
        %3147 = vmatpush1.msra.mxu0 0.0
        %3148 = vmatprep.mubr.f32.mxu0 0.0
        %3149 = vmatmul.mubr.f32.gmra.mrb[0].mxu0 %v2666
        %v3150 = vpop.f32.mrb[0].mxu0
        %v3151 = vadd.f32 0.0, %v3150
        %v3152 = vpop.f32.mrb[0].mxu0
        %3153 = vmatprep.mubr.f32.mxu0 0.0
        %3154 = vmatmul.mubr.f32.gmra.mrb[0].mxu0 %v2669
        %v3155 = vpop.f32.mrb[0].mxu0
        %v3156 = vadd.f32 0.0, %v3155
        %v3157 = vpop.f32.mrb[0].mxu0
        %3158 = vmatprep.mubr.f32.mxu0 0.0
        %3159 = vmatmul.mubr.f32.gmra.mrb[0].mxu0 %v2672
        %v3160 = vpop.f32.mrb[0].mxu0
        %v3161 = vadd.f32 0.0, %v3160
        %v3162 = vpop.f32.mrb[0].mxu0
        %3163 = vmatprep.mubr.f32.mxu0 0.0
        %3164 = vmatmul.mubr.f32.gmra.mrb[0].mxu0 %v2675
        %v3165 = vpop.f32.mrb[0].mxu0
        %v3166 = vadd.f32 0.0, %v3165
        %v3167 = vpop.f32.mrb[0].mxu0
        %3168 = vdwg.mxu0
        %3169 = vmatprep.subr.mxu0 0.0
        %3170 = vmatpush1.msra.mxu0 %v3024
        %3171 = vmatprep.subr.mxu0 0.0
        %3172 = vmatpush1.msra.mxu0 %v3025
        %3173 = vmatprep.subr.mxu0 0.0
        %3174 = vmatpush1.msra.mxu0 %v3026
        %3175 = vmatprep.subr.mxu0 0.0
        %3176 = vmatpush1.msra.mxu0 %v3027
        %3177 = vmatprep.subr.mxu0 0.0
        %3178 = vmatpush1.msra.mxu0 %v3028
        %3179 = vmatprep.subr.mxu0 0.0
        %3180 = vmatpush1.msra.mxu0 %v3029
        %3181 = vmatprep.subr.mxu0 0.0
        %3182 = vmatpush1.msra.mxu0 %v3030
        %3183 = vmatprep.subr.mxu0 0.0
        %3184 = vmatpush1.msra.mxu0 %v3031
        %3185 = vmatprep.subr.mxu0 0.0
        %3186 = vmatpush1.msra.mxu0 %v3032
        %3187 = vmatprep.subr.mxu0 0.0
        %3188 = vmatpush1.msra.mxu0 %v3033
        %3189 = vmatprep.subr.mxu0 0.0
        %3190 = vmatpush1.msra.mxu0 %v3034
        %3191 = vmatprep.subr.mxu0 0.0
        %3192 = vmatpush1.msra.mxu0 %v3035
        %3193 = vmatprep.subr.mxu0 0.0
        %3194 = vmatpush1.msra.mxu0 0.0
        %3195 = vmatprep.subr.mxu0 0.0
        %3196 = vmatpush1.msra.mxu0 0.0
        %3197 = vmatprep.subr.mxu0 0.0
        %3198 = vmatpush1.msra.mxu0 0.0
        %3199 = vmatprep.subr.mxu0 0.0
        %3200 = vmatpush1.msra.mxu0 0.0
        %3201 = vmatprep.subr.mxu0 0.0
        %3202 = vmatpush1.msra.mxu0 0.0
        %3203 = vmatprep.subr.mxu0 0.0
        %3204 = vmatpush1.msra.mxu0 0.0
        %3205 = vmatprep.subr.mxu0 0.0
        %3206 = vmatpush1.msra.mxu0 0.0
        %3207 = vmatprep.subr.mxu0 0.0
        %3208 = vmatpush1.msra.mxu0 0.0
        %3209 = vmatprep.subr.mxu0 0.0
        %3210 = vmatpush1.msra.mxu0 0.0
        %3211 = vmatprep.subr.mxu0 0.0
        %3212 = vmatpush1.msra.mxu0 0.0
        %3213 = vmatprep.subr.mxu0 0.0
        %3214 = vmatpush1.msra.mxu0 0.0
        %3215 = vmatprep.subr.mxu0 0.0
        %3216 = vmatpush1.msra.mxu0 0.0
        %3217 = vmatprep.subr.mxu0 0.0
        %3218 = vmatpush1.msra.mxu0 0.0
        %3219 = vmatprep.subr.mxu0 0.0
        %3220 = vmatpush1.msra.mxu0 0.0
        %3221 = vmatprep.subr.mxu0 0.0
        %3222 = vmatpush1.msra.mxu0 0.0
        %3223 = vmatprep.subr.mxu0 0.0
        %3224 = vmatpush1.msra.mxu0 0.0
        %3225 = vmatprep.subr.mxu0 0.0
        %3226 = vmatpush1.msra.mxu0 0.0
        %3227 = vmatprep.subr.mxu0 0.0
        %3228 = vmatpush1.msra.mxu0 0.0
        %3229 = vmatprep.subr.mxu0 0.0
        %3230 = vmatpush1.msra.mxu0 0.0
        %3231 = vmatprep.subr.mxu0 0.0
        %3232 = vmatpush1.msra.mxu0 0.0
        %3233 = vmatprep.mubr.f32.mxu0 0.0
        %3234 = vmatmul.mubr.f32.gmra.mrb[0].mxu0 %v2763
        %v3235 = vpop.f32.mrb[0].mxu0
        %v3236 = vadd.f32 %v3151, %v3235
        %v3237 = vpop.f32.mrb[0].mxu0
        %3238 = vmatprep.mubr.f32.mxu0 0.0
        %3239 = vmatmul.mubr.f32.gmra.mrb[0].mxu0 %v2766
        %v3240 = vpop.f32.mrb[0].mxu0
        %v3241 = vadd.f32 %v3156, %v3240
        %v3242 = vpop.f32.mrb[0].mxu0
        %3243 = vmatprep.mubr.f32.mxu0 0.0
        %3244 = vmatmul.mubr.f32.gmra.mrb[0].mxu0 %v2769
        %v3245 = vpop.f32.mrb[0].mxu0
        %v3246 = vadd.f32 %v3161, %v3245
        %v3247 = vpop.f32.mrb[0].mxu0
        %3248 = vmatprep.mubr.f32.mxu0 0.0
        %3249 = vmatmul.mubr.f32.gmra.mrb[0].mxu0 %v2772
        %v3250 = vpop.f32.mrb[0].mxu0
        %v3251 = vadd.f32 %v3166, %v3250
        %v3252 = vpop.f32.mrb[0].mxu0
        %3253 = vdwg.mxu0
        %3254 = vrot.lane.b32.xlu0 %v3024, 126
        %v3255 = vpop.permute.xlu0 %3254
        %3256 = vrot.lane.b32.xlu0 %v3025, 126
        %v3257 = vpop.permute.xlu0 %3256
        %3258 = vrot.lane.b32.xlu0 %v3026, 126
        %v3259 = vpop.permute.xlu0 %3258
        %3260 = vrot.lane.b32.xlu0 %v3027, 126
        %v3261 = vpop.permute.xlu0 %3260
        %3262 = vrot.lane.b32.xlu0 %v3028, 126
        %v3263 = vpop.permute.xlu0 %3262
        %3264 = vrot.lane.b32.xlu0 %v3029, 126
        %v3265 = vpop.permute.xlu0 %3264
        %3266 = vrot.lane.b32.xlu0 %v3030, 126
        %v3267 = vpop.permute.xlu0 %3266
        %3268 = vrot.lane.b32.xlu0 %v3031, 126
        %v3269 = vpop.permute.xlu0 %3268
        %3270 = vrot.lane.b32.xlu0 %v3032, 126
        %v3271 = vpop.permute.xlu0 %3270
        %3272 = vrot.lane.b32.xlu0 %v3033, 126
        %v3273 = vpop.permute.xlu0 %3272
        %3274 = vrot.lane.b32.xlu0 %v3034, 126
        %v3275 = vpop.permute.xlu0 %3274
        %3276 = vrot.lane.b32.xlu0 %v3035, 126
        %v3277 = vpop.permute.xlu0 %3276
        %3290 = vmatprep.subr.mxu0 0.0
        %3291 = vmatpush1.msra.mxu0 %v3255
        %3292 = vmatprep.subr.mxu0 0.0
        %3293 = vmatpush1.msra.mxu0 %v3257
        %3294 = vmatprep.subr.mxu0 0.0
        %3295 = vmatpush1.msra.mxu0 %v3259
        %3296 = vmatprep.subr.mxu0 0.0
        %3297 = vmatpush1.msra.mxu0 %v3261
        %3298 = vmatprep.subr.mxu0 0.0
        %3299 = vmatpush1.msra.mxu0 %v3263
        %3300 = vmatprep.subr.mxu0 0.0
        %3301 = vmatpush1.msra.mxu0 %v3265
        %3302 = vmatprep.subr.mxu0 0.0
        %3303 = vmatpush1.msra.mxu0 %v3267
        %3304 = vmatprep.subr.mxu0 0.0
        %3305 = vmatpush1.msra.mxu0 %v3269
        %3306 = vmatprep.subr.mxu0 0.0
        %3307 = vmatpush1.msra.mxu0 %v3271
        %3308 = vmatprep.subr.mxu0 0.0
        %3309 = vmatpush1.msra.mxu0 %v3273
        %3310 = vmatprep.subr.mxu0 0.0
        %3311 = vmatpush1.msra.mxu0 %v3275
        %3312 = vmatprep.subr.mxu0 0.0
        %3313 = vmatpush1.msra.mxu0 %v3277
        %3314 = vmatprep.subr.mxu0 0.0
        %3315 = vmatpush1.msra.mxu0 0.0
        %3316 = vmatprep.subr.mxu0 0.0
        %3317 = vmatpush1.msra.mxu0 0.0
        %3318 = vmatprep.subr.mxu0 0.0
        %3319 = vmatpush1.msra.mxu0 0.0
        %3320 = vmatprep.subr.mxu0 0.0
        %3321 = vmatpush1.msra.mxu0 0.0
        %3322 = vmatprep.subr.mxu0 0.0
        %3323 = vmatpush1.msra.mxu0 0.0
        %3324 = vmatprep.subr.mxu0 0.0
        %3325 = vmatpush1.msra.mxu0 0.0
        %3326 = vmatprep.subr.mxu0 0.0
        %3327 = vmatpush1.msra.mxu0 0.0
        %3328 = vmatprep.subr.mxu0 0.0
        %3329 = vmatpush1.msra.mxu0 0.0
        %3330 = vmatprep.subr.mxu0 0.0
        %3331 = vmatpush1.msra.mxu0 0.0
        %3332 = vmatprep.subr.mxu0 0.0
        %3333 = vmatpush1.msra.mxu0 0.0
        %3334 = vmatprep.subr.mxu0 0.0
        %3335 = vmatpush1.msra.mxu0 0.0
        %3336 = vmatprep.subr.mxu0 0.0
        %3337 = vmatpush1.msra.mxu0 0.0
        %3338 = vmatprep.subr.mxu0 0.0
        %3339 = vmatpush1.msra.mxu0 0.0
        %3340 = vmatprep.subr.mxu0 0.0
        %3341 = vmatpush1.msra.mxu0 0.0
        %3342 = vmatprep.subr.mxu0 0.0
        %3343 = vmatpush1.msra.mxu0 0.0
        %3344 = vmatprep.subr.mxu0 0.0
        %3345 = vmatpush1.msra.mxu0 0.0
        %3346 = vmatprep.subr.mxu0 0.0
        %3347 = vmatpush1.msra.mxu0 0.0
        %3348 = vmatprep.subr.mxu0 0.0
        %3349 = vmatpush1.msra.mxu0 0.0
        %3350 = vmatprep.subr.mxu0 0.0
        %3351 = vmatpush1.msra.mxu0 0.0
        %3352 = vmatprep.subr.mxu0 0.0
        %3353 = vmatpush1.msra.mxu0 0.0
        %3354 = vmatprep.mubr.f32.mxu0 0.0
        %3355 = vmatmul.mubr.f32.gmra.mrb[0].mxu0 %v2896
        %v3356 = vpop.f32.mrb[0].mxu0
        %v3357 = vadd.f32 0.0, %v3356
        %v3358 = vpop.f32.mrb[0].mxu0
        %3359 = vmatprep.mubr.f32.mxu0 0.0
        %3360 = vmatmul.mubr.f32.gmra.mrb[0].mxu0 %v2899
        %v3361 = vpop.f32.mrb[0].mxu0
        %v3362 = vadd.f32 0.0, %v3361
        %v3363 = vpop.f32.mrb[0].mxu0
        %3364 = vmatprep.mubr.f32.mxu0 0.0
        %3365 = vmatmul.mubr.f32.gmra.mrb[0].mxu0 %v2902
        %v3366 = vpop.f32.mrb[0].mxu0
        %v3367 = vadd.f32 0.0, %v3366
        %v3368 = vpop.f32.mrb[0].mxu0
        %3369 = vmatprep.mubr.f32.mxu0 0.0
        %3370 = vmatmul.mubr.f32.gmra.mrb[0].mxu0 %v2905
        %v3371 = vpop.f32.mrb[0].mxu0
        %v3372 = vadd.f32 0.0, %v3371
        %v3373 = vpop.f32.mrb[0].mxu0
        %3374 = vdwg.mxu0
        %v3375 = vadd.f32 %v3236, %v3357
        %v3376 = vadd.f32 %v3241, %v3362
        %v3377 = vadd.f32 %v3246, %v3367
        %v3378 = vadd.f32 %v3251, %v3372
        %v3379 = vadd.f32 %v3375, %v2999
        %v3380 = vadd.f32 %v3376, %v3004
        %v3381 = vadd.f32 %v3377, %v3009
        %v3382 = vadd.f32 %v3378, %v3014
        %v3383 = vmax.f32 %v3016, %v3379
        %v3384 = vmax.f32 %v3017, %v3380
        %v3385 = vmax.f32 %v3018, %v3381
        %v3386 = vmax.f32 %v3019, %v3382
        %vm3387 = vcmask 228352
        %v3389 = vsel %vm3387, %v3383, 0
        %v3392 = vsel %vm3387, %v3384, 0
        %v3395 = vsel %vm3387, %v3385, 0
        %v3398 = vsel %vm3387, %v3386, 0
        %vm3400 = vcmask 1043456
        %v3402 = vsel %vm3400, %v878, 0
        %3404 = vmatprep.subr.mxu0 0.0
        %3405 = vmatpush1.msra.mxu0 %v875
        %3406 = vmatprep.subr.mxu0 0.0
        %3407 = vmatpush1.msra.mxu0 %v876
        %3408 = vmatprep.subr.mxu0 0.0
        %3409 = vmatpush1.msra.mxu0 %v877
        %3410 = vmatprep.subr.mxu0 0.0
        %3411 = vmatpush1.msra.mxu0 %v3402
        %3412 = vmatprep.subr.mxu0 0.0
        %3413 = vmatpush1.msra.mxu0 0.0
        %3414 = vmatprep.subr.mxu0 0.0
        %3415 = vmatpush1.msra.mxu0 0.0
        %3416 = vmatprep.subr.mxu0 0.0
        %3417 = vmatpush1.msra.mxu0 0.0
        %3418 = vmatprep.subr.mxu0 0.0
        %3419 = vmatpush1.msra.mxu0 0.0
        %3420 = vmatprep.subr.mxu0 0.0
        %3421 = vmatpush1.msra.mxu0 0.0
        %3422 = vmatprep.subr.mxu0 0.0
        %3423 = vmatpush1.msra.mxu0 0.0
        %3424 = vmatprep.subr.mxu0 0.0
        %3425 = vmatpush1.msra.mxu0 0.0
        %3426 = vmatprep.subr.mxu0 0.0
        %3427 = vmatpush1.msra.mxu0 0.0
        %3428 = vmatprep.subr.mxu0 0.0
        %3429 = vmatpush1.msra.mxu0 0.0
        %3430 = vmatprep.subr.mxu0 0.0
        %3431 = vmatpush1.msra.mxu0 0.0
        %3432 = vmatprep.subr.mxu0 0.0
        %3433 = vmatpush1.msra.mxu0 0.0
        %3434 = vmatprep.subr.mxu0 0.0
        %3435 = vmatpush1.msra.mxu0 0.0
        %3436 = vmatprep.subr.mxu0 0.0
        %3437 = vmatpush1.msra.mxu0 0.0
        %3438 = vmatprep.subr.mxu0 0.0
        %3439 = vmatpush1.msra.mxu0 0.0
        %3440 = vmatprep.subr.mxu0 0.0
        %3441 = vmatpush1.msra.mxu0 0.0
        %3442 = vmatprep.subr.mxu0 0.0
        %3443 = vmatpush1.msra.mxu0 0.0
        %3444 = vmatprep.subr.mxu0 0.0
        %3445 = vmatpush1.msra.mxu0 0.0
        %3446 = vmatprep.subr.mxu0 0.0
        %3447 = vmatpush1.msra.mxu0 0.0
        %3448 = vmatprep.subr.mxu0 0.0
        %3449 = vmatpush1.msra.mxu0 0.0
        %3450 = vmatprep.subr.mxu0 0.0
        %3451 = vmatpush1.msra.mxu0 0.0
        %3452 = vmatprep.subr.mxu0 0.0
        %3453 = vmatpush1.msra.mxu0 0.0
        %3454 = vmatprep.subr.mxu0 0.0
        %3455 = vmatpush1.msra.mxu0 0.0
        %3456 = vmatprep.subr.mxu0 0.0
        %3457 = vmatpush1.msra.mxu0 0.0
        %3458 = vmatprep.subr.mxu0 0.0
        %3459 = vmatpush1.msra.mxu0 0.0
        %3460 = vmatprep.subr.mxu0 0.0
        %3461 = vmatpush1.msra.mxu0 0.0
        %3462 = vmatprep.subr.mxu0 0.0
        %3463 = vmatpush1.msra.mxu0 0.0
        %3464 = vmatprep.subr.mxu0 0.0
        %3465 = vmatpush1.msra.mxu0 0.0
        %3466 = vmatprep.subr.mxu0 0.0
        %3467 = vmatpush1.msra.mxu0 0.0
        %3468 = vmatprep.mubr.f32.mxu0 0.0
        %3469 = vmatmul.mubr.f32.gmra.mrb[0].mxu0 %v3389
        %v3470 = vpop.f32.mrb[0].mxu0
        %v3471 = vadd.f32 0.0, %v3470
        %v3472 = vpop.f32.mrb[0].mxu0
        %3473 = vmatprep.mubr.f32.mxu0 0.0
        %3474 = vmatmul.mubr.f32.gmra.mrb[0].mxu0 %v3392
        %v3475 = vpop.f32.mrb[0].mxu0
        %v3476 = vadd.f32 0.0, %v3475
        %v3477 = vpop.f32.mrb[0].mxu0
        %3478 = vmatprep.mubr.f32.mxu0 0.0
        %3479 = vmatmul.mubr.f32.gmra.mrb[0].mxu0 %v3395
        %v3480 = vpop.f32.mrb[0].mxu0
        %v3481 = vadd.f32 0.0, %v3480
        %v3482 = vpop.f32.mrb[0].mxu0
        %3483 = vmatprep.mubr.f32.mxu0 0.0
        %3484 = vmatmul.mubr.f32.gmra.mrb[0].mxu0 %v3398
        %v3485 = vpop.f32.mrb[0].mxu0
        %v3486 = vadd.f32 0.0, %v3485
        %v3487 = vpop.f32.mrb[0].mxu0
        %3488 = vdwg.mxu0
        %v3490 = vsel %vm3400, %v927, 0
        %3492 = vmatprep.subr.mxu0 0.0
        %3493 = vmatpush1.msra.mxu0 %v924
        %3494 = vmatprep.subr.mxu0 0.0
        %3495 = vmatpush1.msra.mxu0 %v925
        %3496 = vmatprep.subr.mxu0 0.0
        %3497 = vmatpush1.msra.mxu0 %v926
        %3498 = vmatprep.subr.mxu0 0.0
        %3499 = vmatpush1.msra.mxu0 %v3490
        %3500 = vmatprep.subr.mxu0 0.0
        %3501 = vmatpush1.msra.mxu0 0.0
        %3502 = vmatprep.subr.mxu0 0.0
        %3503 = vmatpush1.msra.mxu0 0.0
        %3504 = vmatprep.subr.mxu0 0.0
        %3505 = vmatpush1.msra.mxu0 0.0
        %3506 = vmatprep.subr.mxu0 0.0
        %3507 = vmatpush1.msra.mxu0 0.0
        %3508 = vmatprep.subr.mxu0 0.0
        %3509 = vmatpush1.msra.mxu0 0.0
        %3510 = vmatprep.subr.mxu0 0.0
        %3511 = vmatpush1.msra.mxu0 0.0
        %3512 = vmatprep.subr.mxu0 0.0
        %3513 = vmatpush1.msra.mxu0 0.0
        %3514 = vmatprep.subr.mxu0 0.0
        %3515 = vmatpush1.msra.mxu0 0.0
        %3516 = vmatprep.subr.mxu0 0.0
        %3517 = vmatpush1.msra.mxu0 0.0
        %3518 = vmatprep.subr.mxu0 0.0
        %3519 = vmatpush1.msra.mxu0 0.0
        %3520 = vmatprep.subr.mxu0 0.0
        %3521 = vmatpush1.msra.mxu0 0.0
        %3522 = vmatprep.subr.mxu0 0.0
        %3523 = vmatpush1.msra.mxu0 0.0
        %3524 = vmatprep.subr.mxu0 0.0
        %3525 = vmatpush1.msra.mxu0 0.0
        %3526 = vmatprep.subr.mxu0 0.0
        %3527 = vmatpush1.msra.mxu0 0.0
        %3528 = vmatprep.subr.mxu0 0.0
        %3529 = vmatpush1.msra.mxu0 0.0
        %3530 = vmatprep.subr.mxu0 0.0
        %3531 = vmatpush1.msra.mxu0 0.0
        %3532 = vmatprep.subr.mxu0 0.0
        %3533 = vmatpush1.msra.mxu0 0.0
        %3534 = vmatprep.subr.mxu0 0.0
        %3535 = vmatpush1.msra.mxu0 0.0
        %3536 = vmatprep.subr.mxu0 0.0
        %3537 = vmatpush1.msra.mxu0 0.0
        %3538 = vmatprep.subr.mxu0 0.0
        %3539 = vmatpush1.msra.mxu0 0.0
        %3540 = vmatprep.subr.mxu0 0.0
        %3541 = vmatpush1.msra.mxu0 0.0
        %3542 = vmatprep.subr.mxu0 0.0
        %3543 = vmatpush1.msra.mxu0 0.0
        %3544 = vmatprep.subr.mxu0 0.0
        %3545 = vmatpush1.msra.mxu0 0.0
        %3546 = vmatprep.subr.mxu0 0.0
        %3547 = vmatpush1.msra.mxu0 0.0
        %3548 = vmatprep.subr.mxu0 0.0
        %3549 = vmatpush1.msra.mxu0 0.0
        %3550 = vmatprep.subr.mxu0 0.0
        %3551 = vmatpush1.msra.mxu0 0.0
        %3552 = vmatprep.subr.mxu0 0.0
        %3553 = vmatpush1.msra.mxu0 0.0
        %3554 = vmatprep.subr.mxu0 0.0
        %3555 = vmatpush1.msra.mxu0 0.0
        %3556 = vmatprep.mubr.f32.mxu0 0.0
        %3557 = vmatmul.mubr.f32.gmra.mrb[0].mxu0 %v3389
        %v3558 = vpop.f32.mrb[0].mxu0
        %v3559 = vadd.f32 0.0, %v3558
        %v3560 = vpop.f32.mrb[0].mxu0
        %3561 = vmatprep.mubr.f32.mxu0 0.0
        %3562 = vmatmul.mubr.f32.gmra.mrb[0].mxu0 %v3392
        %v3563 = vpop.f32.mrb[0].mxu0
        %v3564 = vadd.f32 0.0, %v3563
        %v3565 = vpop.f32.mrb[0].mxu0
        %3566 = vmatprep.mubr.f32.mxu0 0.0
        %3567 = vmatmul.mubr.f32.gmra.mrb[0].mxu0 %v3395
        %v3568 = vpop.f32.mrb[0].mxu0
        %v3569 = vadd.f32 0.0, %v3568
        %v3570 = vpop.f32.mrb[0].mxu0
        %3571 = vmatprep.mubr.f32.mxu0 0.0
        %3572 = vmatmul.mubr.f32.gmra.mrb[0].mxu0 %v3398
        %v3573 = vpop.f32.mrb[0].mxu0
        %v3574 = vadd.f32 0.0, %v3573
        %v3575 = vpop.f32.mrb[0].mxu0
        %3576 = vdwg.mxu0
        %v3577 = vmax.f32 %v3471, %v3559
        %v3578 = vmax.f32 %v3476, %v3564
        %v3579 = vmax.f32 %v3481, %v3569
        %v3580 = vmax.f32 %v3486, %v3574
        %v3581 = vmax.f32 %v3577, 0.0
        %v3582 = vmax.f32 %v3578, 0.0
        %v3583 = vmax.f32 %v3579, 0.0
        %v3584 = vmax.f32 %v3580, 0.0
        %s3585 = smul.u32 %s2597, 32
        %s3586 = scalar_lea.vmem [#allocation5], %s3585
        %vm3587 = vcmask 113664
        %3588 = vst.msk [vmem:[%s3586] sm:$0xff] %vm3587, %v3581
        %3589 = vst.msk [vmem:[%s3586 + $0x8] sm:$0xff] %vm3587, %v3582
        %3590 = vst.msk [vmem:[%s3586 + $0x10] sm:$0xff] %vm3587, %v3583
        %3591 = vst.msk [vmem:[%s3586 + $0x18] sm:$0xff] %vm3587, %v3584
      $region114: #{modelv0_forward.1} parent=87 // loop_footer
        %s2601 = sadd.s32 1, %s2597
      $region115: #{modelv0_forward.1} parent=87 // loop_footer_branch
        %2596 = sbr.rel target = $region111
      $region116: #{modelv0_forward.1} parent=87 // loop_exit
        _
      %v3592 = vld [vmem:[%s9] sm:$0xff]
      %v3593 = vld [vmem:[%s9 + $0x8] sm:$0xff]
      %v3594 = vld [vmem:[%s9 + $0x10] sm:$0xff]
      %v3595 = vld [vmem:[%s9 + $0x18] sm:$0xff]
      %v3596 = vld [vmem:[%s9 + $0x20] sm:$0xff]
      %v3597 = vld [vmem:[%s9 + $0x28] sm:$0xff]
      %v3598 = vld [vmem:[%s9 + $0x30] sm:$0xff]
      %v3599 = vld [vmem:[%s9 + $0x38] sm:$0xff]
      %s3600 = scalar_lea.vmem %s9, 64
      %v3601 = vld [vmem:[%s3600] sm:$0xff]
      %v3602 = vld [vmem:[%s3600 + $0x8] sm:$0xff]
      %v3603 = vld [vmem:[%s3600 + $0x10] sm:$0xff]
      %v3604 = vld [vmem:[%s3600 + $0x18] sm:$0xff]
      %v3605 = vld [vmem:[%s3600 + $0x20] sm:$0xff]
      %v3606 = vld [vmem:[%s3600 + $0x28] sm:$0xff]
      %v3607 = vld [vmem:[%s3600 + $0x30] sm:$0xff]
      %v3608 = vld [vmem:[%s3600 + $0x38] sm:$0xff]
      %s3609 = scalar_lea.vmem %s9, 128
      %v3610 = vld [vmem:[%s3609] sm:$0xff]
      %v3611 = vld [vmem:[%s3609 + $0x8] sm:$0xff]
      %v3612 = vld [vmem:[%s3609 + $0x10] sm:$0xff]
      %v3613 = vld [vmem:[%s3609 + $0x18] sm:$0xff]
      %v3614 = vld [vmem:[%s3609 + $0x20] sm:$0xff]
      %v3615 = vld [vmem:[%s3609 + $0x28] sm:$0xff]
      %v3616 = vld [vmem:[%s3609 + $0x30] sm:$0xff]
      %v3617 = vld [vmem:[%s3609 + $0x38] sm:$0xff]
      %v3618 = vld [vmem:[%s10] sm:$0xff]
      %v3619 = vld [vmem:[%s10 + $0x8] sm:$0xff]
      %v3620 = vld [vmem:[%s10 + $0x10] sm:$0xff]
      %v3621 = vld [vmem:[%s10 + $0x18] sm:$0xff]
      %v3622 = vld [vmem:[%s10 + $0x20] sm:$0xff]
      %v3623 = vld [vmem:[%s10 + $0x28] sm:$0xff]
      %v3624 = vld [vmem:[%s10 + $0x30] sm:$0xff]
      %v3625 = vld [vmem:[%s10 + $0x38] sm:$0xff]
      loop: start=0, step=1, limit=10
      $region117: #{modelv0_forward.1} parent=87 // loop_pre_header
        _
      $region118: #{modelv0_forward.1} parent=87 // loop_header
        %s3627 = sphi 0, %s3631
        %p3628 = scmp.ge.s32.totalorder %s3627, 10
      $region119: #{modelv0_forward.1} parent=87 // loop_header_branch
        %3630 = sbr.rel (%p3628) target = $region123
      $region120: #{modelv0_forward.1} parent=87 // loop_body
        %s3632 = smul.u32 %s3627, 64
        %s3633 = scalar_lea.vmem [#allocation5], %s3632
        %v3634 = vld [vmem:[%s3633] sm:$0xff]
        %v3635 = vld [vmem:[%s3633 + $0x8] sm:$0xff]
        %v3636 = vld [vmem:[%s3633 + $0x10] sm:$0xff]
        %v3637 = vld [vmem:[%s3633 + $0x18] sm:$0xff]
        %v3638 = vld [vmem:[%s3633 + $0x20] sm:$0xff]
        %v3639 = vld [vmem:[%s3633 + $0x28] sm:$0xff]
        %v3640 = vld [vmem:[%s3633 + $0x30] sm:$0xff]
        %v3641 = vld [vmem:[%s3633 + $0x38] sm:$0xff]
        %v3642 = vld [vmem:[%s3633 + $0x40] sm:$0xff]
        %v3643 = vld [vmem:[%s3633 + $0x48] sm:$0xff]
        %v3644 = vld [vmem:[%s3633 + $0x50] sm:$0xff]
        %v3645 = vld [vmem:[%s3633 + $0x58] sm:$0xff]
        %3658 = vrot.lane.b32.xlu0 %v3634, 127
        %v3659 = vpop.permute.xlu0 %3658
        %3660 = vrot.lane.b32.xlu0 %v3635, 127
        %v3661 = vpop.permute.xlu0 %3660
        %3662 = vrot.lane.b32.xlu0 %v3636, 127
        %v3663 = vpop.permute.xlu0 %3662
        %3664 = vrot.lane.b32.xlu0 %v3637, 127
        %v3665 = vpop.permute.xlu0 %3664
        %3666 = vrot.lane.b32.xlu0 %v3638, 127
        %v3667 = vpop.permute.xlu0 %3666
        %3668 = vrot.lane.b32.xlu0 %v3639, 127
        %v3669 = vpop.permute.xlu0 %3668
        %3670 = vrot.lane.b32.xlu0 %v3640, 127
        %v3671 = vpop.permute.xlu0 %3670
        %3672 = vrot.lane.b32.xlu0 %v3641, 127
        %v3673 = vpop.permute.xlu0 %3672
        %3674 = vrot.lane.b32.xlu0 %v3642, 127
        %v3675 = vpop.permute.xlu0 %3674
        %3676 = vrot.lane.b32.xlu0 %v3643, 127
        %v3677 = vpop.permute.xlu0 %3676
        %3678 = vrot.lane.b32.xlu0 %v3644, 127
        %v3679 = vpop.permute.xlu0 %3678
        %3680 = vrot.lane.b32.xlu0 %v3645, 127
        %v3681 = vpop.permute.xlu0 %3680
        %vm3694 = vcmask 785408
        %v3696 = vsel %vm3694, %v3601, 0
        %v3699 = vsel %vm3694, %v3602, 0
        %v3702 = vsel %vm3694, %v3603, 0
        %v3705 = vsel %vm3694, %v3604, 0
        %v3708 = vsel %vm3694, %v3605, 0
        %v3711 = vsel %vm3694, %v3606, 0
        %v3714 = vsel %vm3694, %v3607, 0
        %v3717 = vsel %vm3694, %v3608, 0
        %3719 = vmatprep.subr.mxu0 0.0
        %3720 = vmatpush1.msra.mxu0 %v3659
        %3721 = vmatprep.subr.mxu0 0.0
        %3722 = vmatpush1.msra.mxu0 %v3661
        %3723 = vmatprep.subr.mxu0 0.0
        %3724 = vmatpush1.msra.mxu0 %v3663
        %3725 = vmatprep.subr.mxu0 0.0
        %3726 = vmatpush1.msra.mxu0 %v3665
        %3727 = vmatprep.subr.mxu0 0.0
        %3728 = vmatpush1.msra.mxu0 %v3667
        %3729 = vmatprep.subr.mxu0 0.0
        %3730 = vmatpush1.msra.mxu0 %v3669
        %3731 = vmatprep.subr.mxu0 0.0
        %3732 = vmatpush1.msra.mxu0 %v3671
        %3733 = vmatprep.subr.mxu0 0.0
        %3734 = vmatpush1.msra.mxu0 %v3673
        %3735 = vmatprep.subr.mxu0 0.0
        %3736 = vmatpush1.msra.mxu0 %v3675
        %3737 = vmatprep.subr.mxu0 0.0
        %3738 = vmatpush1.msra.mxu0 %v3677
        %3739 = vmatprep.subr.mxu0 0.0
        %3740 = vmatpush1.msra.mxu0 %v3679
        %3741 = vmatprep.subr.mxu0 0.0
        %3742 = vmatpush1.msra.mxu0 %v3681
        %3743 = vmatprep.subr.mxu0 0.0
        %3744 = vmatpush1.msra.mxu0 0.0
        %3745 = vmatprep.subr.mxu0 0.0
        %3746 = vmatpush1.msra.mxu0 0.0
        %3747 = vmatprep.subr.mxu0 0.0
        %3748 = vmatpush1.msra.mxu0 0.0
        %3749 = vmatprep.subr.mxu0 0.0
        %3750 = vmatpush1.msra.mxu0 0.0
        %3751 = vmatprep.subr.mxu0 0.0
        %3752 = vmatpush1.msra.mxu0 0.0
        %3753 = vmatprep.subr.mxu0 0.0
        %3754 = vmatpush1.msra.mxu0 0.0
        %3755 = vmatprep.subr.mxu0 0.0
        %3756 = vmatpush1.msra.mxu0 0.0
        %3757 = vmatprep.subr.mxu0 0.0
        %3758 = vmatpush1.msra.mxu0 0.0
        %3759 = vmatprep.subr.mxu0 0.0
        %3760 = vmatpush1.msra.mxu0 0.0
        %3761 = vmatprep.subr.mxu0 0.0
        %3762 = vmatpush1.msra.mxu0 0.0
        %3763 = vmatprep.subr.mxu0 0.0
        %3764 = vmatpush1.msra.mxu0 0.0
        %3765 = vmatprep.subr.mxu0 0.0
        %3766 = vmatpush1.msra.mxu0 0.0
        %3767 = vmatprep.subr.mxu0 0.0
        %3768 = vmatpush1.msra.mxu0 0.0
        %3769 = vmatprep.subr.mxu0 0.0
        %3770 = vmatpush1.msra.mxu0 0.0
        %3771 = vmatprep.subr.mxu0 0.0
        %3772 = vmatpush1.msra.mxu0 0.0
        %3773 = vmatprep.subr.mxu0 0.0
        %3774 = vmatpush1.msra.mxu0 0.0
        %3775 = vmatprep.subr.mxu0 0.0
        %3776 = vmatpush1.msra.mxu0 0.0
        %3777 = vmatprep.subr.mxu0 0.0
        %3778 = vmatpush1.msra.mxu0 0.0
        %3779 = vmatprep.subr.mxu0 0.0
        %3780 = vmatpush1.msra.mxu0 0.0
        %3781 = vmatprep.subr.mxu0 0.0
        %3782 = vmatpush1.msra.mxu0 0.0
        %3783 = vmatprep.mubr.f32.mxu0 0.0
        %3784 = vmatmul.mubr.f32.gmra.mrb[0].mxu0 %v3696
        %v3785 = vpop.f32.mrb[0].mxu0
        %v3786 = vadd.f32 0.0, %v3785
        %v3787 = vpop.f32.mrb[0].mxu0
        %3788 = vmatprep.mubr.f32.mxu0 0.0
        %3789 = vmatmul.mubr.f32.gmra.mrb[0].mxu0 %v3699
        %v3790 = vpop.f32.mrb[0].mxu0
        %v3791 = vadd.f32 0.0, %v3790
        %v3792 = vpop.f32.mrb[0].mxu0
        %3793 = vmatprep.mubr.f32.mxu0 0.0
        %3794 = vmatmul.mubr.f32.gmra.mrb[0].mxu0 %v3702
        %v3795 = vpop.f32.mrb[0].mxu0
        %v3796 = vadd.f32 0.0, %v3795
        %v3797 = vpop.f32.mrb[0].mxu0
        %3798 = vmatprep.mubr.f32.mxu0 0.0
        %3799 = vmatmul.mubr.f32.gmra.mrb[0].mxu0 %v3705
        %v3800 = vpop.f32.mrb[0].mxu0
        %v3801 = vadd.f32 0.0, %v3800
        %v3802 = vpop.f32.mrb[0].mxu0
        %3803 = vmatprep.mubr.f32.mxu0 0.0
        %3804 = vmatmul.mubr.f32.gmra.mrb[0].mxu0 %v3708
        %v3805 = vpop.f32.mrb[0].mxu0
        %v3806 = vadd.f32 0.0, %v3805
        %v3807 = vpop.f32.mrb[0].mxu0
        %3808 = vmatprep.mubr.f32.mxu0 0.0
        %3809 = vmatmul.mubr.f32.gmra.mrb[0].mxu0 %v3711
        %v3810 = vpop.f32.mrb[0].mxu0
        %v3811 = vadd.f32 0.0, %v3810
        %v3812 = vpop.f32.mrb[0].mxu0
        %3813 = vmatprep.mubr.f32.mxu0 0.0
        %3814 = vmatmul.mubr.f32.gmra.mrb[0].mxu0 %v3714
        %v3815 = vpop.f32.mrb[0].mxu0
        %v3816 = vadd.f32 0.0, %v3815
        %v3817 = vpop.f32.mrb[0].mxu0
        %3818 = vmatprep.mubr.f32.mxu0 0.0
        %3819 = vmatmul.mubr.f32.gmra.mrb[0].mxu0 %v3717
        %v3820 = vpop.f32.mrb[0].mxu0
        %v3821 = vadd.f32 0.0, %v3820
        %v3822 = vpop.f32.mrb[0].mxu0
        %3823 = vdwg.mxu0
        %v3825 = vsel %vm3694, %v3592, 0
        %v3828 = vsel %vm3694, %v3593, 0
        %v3831 = vsel %vm3694, %v3594, 0
        %v3834 = vsel %vm3694, %v3595, 0
        %v3837 = vsel %vm3694, %v3596, 0
        %v3840 = vsel %vm3694, %v3597, 0
        %v3843 = vsel %vm3694, %v3598, 0
        %v3846 = vsel %vm3694, %v3599, 0
        %3848 = vmatprep.subr.mxu0 0.0
        %3849 = vmatpush1.msra.mxu0 %v3634
        %3850 = vmatprep.subr.mxu0 0.0
        %3851 = vmatpush1.msra.mxu0 %v3635
        %3852 = vmatprep.subr.mxu0 0.0
        %3853 = vmatpush1.msra.mxu0 %v3636
        %3854 = vmatprep.subr.mxu0 0.0
        %3855 = vmatpush1.msra.mxu0 %v3637
        %3856 = vmatprep.subr.mxu0 0.0
        %3857 = vmatpush1.msra.mxu0 %v3638
        %3858 = vmatprep.subr.mxu0 0.0
        %3859 = vmatpush1.msra.mxu0 %v3639
        %3860 = vmatprep.subr.mxu0 0.0
        %3861 = vmatpush1.msra.mxu0 %v3640
        %3862 = vmatprep.subr.mxu0 0.0
        %3863 = vmatpush1.msra.mxu0 %v3641
        %3864 = vmatprep.subr.mxu0 0.0
        %3865 = vmatpush1.msra.mxu0 %v3642
        %3866 = vmatprep.subr.mxu0 0.0
        %3867 = vmatpush1.msra.mxu0 %v3643
        %3868 = vmatprep.subr.mxu0 0.0
        %3869 = vmatpush1.msra.mxu0 %v3644
        %3870 = vmatprep.subr.mxu0 0.0
        %3871 = vmatpush1.msra.mxu0 %v3645
        %3872 = vmatprep.subr.mxu0 0.0
        %3873 = vmatpush1.msra.mxu0 0.0
        %3874 = vmatprep.subr.mxu0 0.0
        %3875 = vmatpush1.msra.mxu0 0.0
        %3876 = vmatprep.subr.mxu0 0.0
        %3877 = vmatpush1.msra.mxu0 0.0
        %3878 = vmatprep.subr.mxu0 0.0
        %3879 = vmatpush1.msra.mxu0 0.0
        %3880 = vmatprep.subr.mxu0 0.0
        %3881 = vmatpush1.msra.mxu0 0.0
        %3882 = vmatprep.subr.mxu0 0.0
        %3883 = vmatpush1.msra.mxu0 0.0
        %3884 = vmatprep.subr.mxu0 0.0
        %3885 = vmatpush1.msra.mxu0 0.0
        %3886 = vmatprep.subr.mxu0 0.0
        %3887 = vmatpush1.msra.mxu0 0.0
        %3888 = vmatprep.subr.mxu0 0.0
        %3889 = vmatpush1.msra.mxu0 0.0
        %3890 = vmatprep.subr.mxu0 0.0
        %3891 = vmatpush1.msra.mxu0 0.0
        %3892 = vmatprep.subr.mxu0 0.0
        %3893 = vmatpush1.msra.mxu0 0.0
        %3894 = vmatprep.subr.mxu0 0.0
        %3895 = vmatpush1.msra.mxu0 0.0
        %3896 = vmatprep.subr.mxu0 0.0
        %3897 = vmatpush1.msra.mxu0 0.0
        %3898 = vmatprep.subr.mxu0 0.0
        %3899 = vmatpush1.msra.mxu0 0.0
        %3900 = vmatprep.subr.mxu0 0.0
        %3901 = vmatpush1.msra.mxu0 0.0
        %3902 = vmatprep.subr.mxu0 0.0
        %3903 = vmatpush1.msra.mxu0 0.0
        %3904 = vmatprep.subr.mxu0 0.0
        %3905 = vmatpush1.msra.mxu0 0.0
        %3906 = vmatprep.subr.mxu0 0.0
        %3907 = vmatpush1.msra.mxu0 0.0
        %3908 = vmatprep.subr.mxu0 0.0
        %3909 = vmatpush1.msra.mxu0 0.0
        %3910 = vmatprep.subr.mxu0 0.0
        %3911 = vmatpush1.msra.mxu0 0.0
        %3912 = vmatprep.mubr.f32.mxu0 0.0
        %3913 = vmatmul.mubr.f32.gmra.mrb[0].mxu0 %v3825
        %v3914 = vpop.f32.mrb[0].mxu0
        %v3915 = vadd.f32 %v3786, %v3914
        %v3916 = vpop.f32.mrb[0].mxu0
        %3917 = vmatprep.mubr.f32.mxu0 0.0
        %3918 = vmatmul.mubr.f32.gmra.mrb[0].mxu0 %v3828
        %v3919 = vpop.f32.mrb[0].mxu0
        %v3920 = vadd.f32 %v3791, %v3919
        %v3921 = vpop.f32.mrb[0].mxu0
        %3922 = vmatprep.mubr.f32.mxu0 0.0
        %3923 = vmatmul.mubr.f32.gmra.mrb[0].mxu0 %v3831
        %v3924 = vpop.f32.mrb[0].mxu0
        %v3925 = vadd.f32 %v3796, %v3924
        %v3926 = vpop.f32.mrb[0].mxu0
        %3927 = vmatprep.mubr.f32.mxu0 0.0
        %3928 = vmatmul.mubr.f32.gmra.mrb[0].mxu0 %v3834
        %v3929 = vpop.f32.mrb[0].mxu0
        %v3930 = vadd.f32 %v3801, %v3929
        %v3931 = vpop.f32.mrb[0].mxu0
        %3932 = vmatprep.mubr.f32.mxu0 0.0
        %3933 = vmatmul.mubr.f32.gmra.mrb[0].mxu0 %v3837
        %v3934 = vpop.f32.mrb[0].mxu0
        %v3935 = vadd.f32 %v3806, %v3934
        %v3936 = vpop.f32.mrb[0].mxu0
        %3937 = vmatprep.mubr.f32.mxu0 0.0
        %3938 = vmatmul.mubr.f32.gmra.mrb[0].mxu0 %v3840
        %v3939 = vpop.f32.mrb[0].mxu0
        %v3940 = vadd.f32 %v3811, %v3939
        %v3941 = vpop.f32.mrb[0].mxu0
        %3942 = vmatprep.mubr.f32.mxu0 0.0
        %3943 = vmatmul.mubr.f32.gmra.mrb[0].mxu0 %v3843
        %v3944 = vpop.f32.mrb[0].mxu0
        %v3945 = vadd.f32 %v3816, %v3944
        %v3946 = vpop.f32.mrb[0].mxu0
        %3947 = vmatprep.mubr.f32.mxu0 0.0
        %3948 = vmatmul.mubr.f32.gmra.mrb[0].mxu0 %v3846
        %v3949 = vpop.f32.mrb[0].mxu0
        %v3950 = vadd.f32 %v3821, %v3949
        %v3951 = vpop.f32.mrb[0].mxu0
        %3952 = vdwg.mxu0
        %3953 = vrot.lane.b32.xlu0 %v3634, 126
        %v3954 = vpop.permute.xlu0 %3953
        %3955 = vrot.lane.b32.xlu0 %v3635, 126
        %v3956 = vpop.permute.xlu0 %3955
        %3957 = vrot.lane.b32.xlu0 %v3636, 126
        %v3958 = vpop.permute.xlu0 %3957
        %3959 = vrot.lane.b32.xlu0 %v3637, 126
        %v3960 = vpop.permute.xlu0 %3959
        %3961 = vrot.lane.b32.xlu0 %v3638, 126
        %v3962 = vpop.permute.xlu0 %3961
        %3963 = vrot.lane.b32.xlu0 %v3639, 126
        %v3964 = vpop.permute.xlu0 %3963
        %3965 = vrot.lane.b32.xlu0 %v3640, 126
        %v3966 = vpop.permute.xlu0 %3965
        %3967 = vrot.lane.b32.xlu0 %v3641, 126
        %v3968 = vpop.permute.xlu0 %3967
        %3969 = vrot.lane.b32.xlu0 %v3642, 126
        %v3970 = vpop.permute.xlu0 %3969
        %3971 = vrot.lane.b32.xlu0 %v3643, 126
        %v3972 = vpop.permute.xlu0 %3971
        %3973 = vrot.lane.b32.xlu0 %v3644, 126
        %v3974 = vpop.permute.xlu0 %3973
        %3975 = vrot.lane.b32.xlu0 %v3645, 126
        %v3976 = vpop.permute.xlu0 %3975
        %v3990 = vsel %vm3694, %v3610, 0
        %v3993 = vsel %vm3694, %v3611, 0
        %v3996 = vsel %vm3694, %v3612, 0
        %v3999 = vsel %vm3694, %v3613, 0
        %v4002 = vsel %vm3694, %v3614, 0
        %v4005 = vsel %vm3694, %v3615, 0
        %v4008 = vsel %vm3694, %v3616, 0
        %v4011 = vsel %vm3694, %v3617, 0
        %4013 = vmatprep.subr.mxu0 0.0
        %4014 = vmatpush1.msra.mxu0 %v3954
        %4015 = vmatprep.subr.mxu0 0.0
        %4016 = vmatpush1.msra.mxu0 %v3956
        %4017 = vmatprep.subr.mxu0 0.0
        %4018 = vmatpush1.msra.mxu0 %v3958
        %4019 = vmatprep.subr.mxu0 0.0
        %4020 = vmatpush1.msra.mxu0 %v3960
        %4021 = vmatprep.subr.mxu0 0.0
        %4022 = vmatpush1.msra.mxu0 %v3962
        %4023 = vmatprep.subr.mxu0 0.0
        %4024 = vmatpush1.msra.mxu0 %v3964
        %4025 = vmatprep.subr.mxu0 0.0
        %4026 = vmatpush1.msra.mxu0 %v3966
        %4027 = vmatprep.subr.mxu0 0.0
        %4028 = vmatpush1.msra.mxu0 %v3968
        %4029 = vmatprep.subr.mxu0 0.0
        %4030 = vmatpush1.msra.mxu0 %v3970
        %4031 = vmatprep.subr.mxu0 0.0
        %4032 = vmatpush1.msra.mxu0 %v3972
        %4033 = vmatprep.subr.mxu0 0.0
        %4034 = vmatpush1.msra.mxu0 %v3974
        %4035 = vmatprep.subr.mxu0 0.0
        %4036 = vmatpush1.msra.mxu0 %v3976
        %4037 = vmatprep.subr.mxu0 0.0
        %4038 = vmatpush1.msra.mxu0 0.0
        %4039 = vmatprep.subr.mxu0 0.0
        %4040 = vmatpush1.msra.mxu0 0.0
        %4041 = vmatprep.subr.mxu0 0.0
        %4042 = vmatpush1.msra.mxu0 0.0
        %4043 = vmatprep.subr.mxu0 0.0
        %4044 = vmatpush1.msra.mxu0 0.0
        %4045 = vmatprep.subr.mxu0 0.0
        %4046 = vmatpush1.msra.mxu0 0.0
        %4047 = vmatprep.subr.mxu0 0.0
        %4048 = vmatpush1.msra.mxu0 0.0
        %4049 = vmatprep.subr.mxu0 0.0
        %4050 = vmatpush1.msra.mxu0 0.0
        %4051 = vmatprep.subr.mxu0 0.0
        %4052 = vmatpush1.msra.mxu0 0.0
        %4053 = vmatprep.subr.mxu0 0.0
        %4054 = vmatpush1.msra.mxu0 0.0
        %4055 = vmatprep.subr.mxu0 0.0
        %4056 = vmatpush1.msra.mxu0 0.0
        %4057 = vmatprep.subr.mxu0 0.0
        %4058 = vmatpush1.msra.mxu0 0.0
        %4059 = vmatprep.subr.mxu0 0.0
        %4060 = vmatpush1.msra.mxu0 0.0
        %4061 = vmatprep.subr.mxu0 0.0
        %4062 = vmatpush1.msra.mxu0 0.0
        %4063 = vmatprep.subr.mxu0 0.0
        %4064 = vmatpush1.msra.mxu0 0.0
        %4065 = vmatprep.subr.mxu0 0.0
        %4066 = vmatpush1.msra.mxu0 0.0
        %4067 = vmatprep.subr.mxu0 0.0
        %4068 = vmatpush1.msra.mxu0 0.0
        %4069 = vmatprep.subr.mxu0 0.0
        %4070 = vmatpush1.msra.mxu0 0.0
        %4071 = vmatprep.subr.mxu0 0.0
        %4072 = vmatpush1.msra.mxu0 0.0
        %4073 = vmatprep.subr.mxu0 0.0
        %4074 = vmatpush1.msra.mxu0 0.0
        %4075 = vmatprep.subr.mxu0 0.0
        %4076 = vmatpush1.msra.mxu0 0.0
        %4077 = vmatprep.mubr.f32.mxu0 0.0
        %4078 = vmatmul.mubr.f32.gmra.mrb[0].mxu0 %v3990
        %v4079 = vpop.f32.mrb[0].mxu0
        %v4080 = vadd.f32 0.0, %v4079
        %v4081 = vpop.f32.mrb[0].mxu0
        %4082 = vmatprep.mubr.f32.mxu0 0.0
        %4083 = vmatmul.mubr.f32.gmra.mrb[0].mxu0 %v3993
        %v4084 = vpop.f32.mrb[0].mxu0
        %v4085 = vadd.f32 0.0, %v4084
        %v4086 = vpop.f32.mrb[0].mxu0
        %4087 = vmatprep.mubr.f32.mxu0 0.0
        %4088 = vmatmul.mubr.f32.gmra.mrb[0].mxu0 %v3996
        %v4089 = vpop.f32.mrb[0].mxu0
        %v4090 = vadd.f32 0.0, %v4089
        %v4091 = vpop.f32.mrb[0].mxu0
        %4092 = vmatprep.mubr.f32.mxu0 0.0
        %4093 = vmatmul.mubr.f32.gmra.mrb[0].mxu0 %v3999
        %v4094 = vpop.f32.mrb[0].mxu0
        %v4095 = vadd.f32 0.0, %v4094
        %v4096 = vpop.f32.mrb[0].mxu0
        %4097 = vmatprep.mubr.f32.mxu0 0.0
        %4098 = vmatmul.mubr.f32.gmra.mrb[0].mxu0 %v4002
        %v4099 = vpop.f32.mrb[0].mxu0
        %v4100 = vadd.f32 0.0, %v4099
        %v4101 = vpop.f32.mrb[0].mxu0
        %4102 = vmatprep.mubr.f32.mxu0 0.0
        %4103 = vmatmul.mubr.f32.gmra.mrb[0].mxu0 %v4005
        %v4104 = vpop.f32.mrb[0].mxu0
        %v4105 = vadd.f32 0.0, %v4104
        %v4106 = vpop.f32.mrb[0].mxu0
        %4107 = vmatprep.mubr.f32.mxu0 0.0
        %4108 = vmatmul.mubr.f32.gmra.mrb[0].mxu0 %v4008
        %v4109 = vpop.f32.mrb[0].mxu0
        %v4110 = vadd.f32 0.0, %v4109
        %v4111 = vpop.f32.mrb[0].mxu0
        %4112 = vmatprep.mubr.f32.mxu0 0.0
        %4113 = vmatmul.mubr.f32.gmra.mrb[0].mxu0 %v4011
        %v4114 = vpop.f32.mrb[0].mxu0
        %v4115 = vadd.f32 0.0, %v4114
        %v4116 = vpop.f32.mrb[0].mxu0
        %4117 = vdwg.mxu0
        %v4118 = vadd.f32 %v3915, %v4080
        %v4119 = vadd.f32 %v3920, %v4085
        %v4120 = vadd.f32 %v3925, %v4090
        %v4121 = vadd.f32 %v3930, %v4095
        %v4122 = vadd.f32 %v3935, %v4100
        %v4123 = vadd.f32 %v3940, %v4105
        %v4124 = vadd.f32 %v3945, %v4110
        %v4125 = vadd.f32 %v3950, %v4115
        %4127 = vset.pattern.permute.xlu0 0
        %4128 = vperm.xlu0 %4127, %v3618
        %v4129 = vpop.permute.xlu0 %4128
        %4132 = vset.pattern.permute.xlu0 0
        %4133 = vperm.xlu0 %4132, %v3619
        %v4134 = vpop.permute.xlu0 %4133
        %4137 = vset.pattern.permute.xlu0 0
        %4138 = vperm.xlu0 %4137, %v3620
        %v4139 = vpop.permute.xlu0 %4138
        %4142 = vset.pattern.permute.xlu0 0
        %4143 = vperm.xlu0 %4142, %v3621
        %v4144 = vpop.permute.xlu0 %4143
        %4147 = vset.pattern.permute.xlu0 0
        %4148 = vperm.xlu0 %4147, %v3622
        %v4149 = vpop.permute.xlu0 %4148
        %4152 = vset.pattern.permute.xlu0 0
        %4153 = vperm.xlu0 %4152, %v3623
        %v4154 = vpop.permute.xlu0 %4153
        %4157 = vset.pattern.permute.xlu0 0
        %4158 = vperm.xlu0 %4157, %v3624
        %v4159 = vpop.permute.xlu0 %4158
        %4162 = vset.pattern.permute.xlu0 0
        %4163 = vperm.xlu0 %4162, %v3625
        %v4164 = vpop.permute.xlu0 %4163
        %v4166 = vadd.f32 %v4118, %v4129
        %v4167 = vadd.f32 %v4119, %v4134
        %v4168 = vadd.f32 %v4120, %v4139
        %v4169 = vadd.f32 %v4121, %v4144
        %v4170 = vadd.f32 %v4122, %v4149
        %v4171 = vadd.f32 %v4123, %v4154
        %v4172 = vadd.f32 %v4124, %v4159
        %v4173 = vadd.f32 %v4125, %v4164
        %s4174 = smul.u32 %s3627, 2
        %s4175 = sadd.s32 %s4174, 1
        %s4176 = smul.u32 %s4175, 32
        %s4177 = scalar_lea.vmem [#allocation5], %s4176
        %v4178 = vld [vmem:[%s4177] sm:$0xff]
        %v4179 = vld [vmem:[%s4177 + $0x8] sm:$0xff]
        %v4180 = vld [vmem:[%s4177 + $0x10] sm:$0xff]
        %v4181 = vld [vmem:[%s4177 + $0x18] sm:$0xff]
        %v4182 = vld [vmem:[%s4177 + $0x20] sm:$0xff]
        %v4183 = vld [vmem:[%s4177 + $0x28] sm:$0xff]
        %v4184 = vld [vmem:[%s4177 + $0x30] sm:$0xff]
        %v4185 = vld [vmem:[%s4177 + $0x38] sm:$0xff]
        %v4186 = vld [vmem:[%s4177 + $0x40] sm:$0xff]
        %v4187 = vld [vmem:[%s4177 + $0x48] sm:$0xff]
        %v4188 = vld [vmem:[%s4177 + $0x50] sm:$0xff]
        %v4189 = vld [vmem:[%s4177 + $0x58] sm:$0xff]
        %4202 = vrot.lane.b32.xlu0 %v4178, 127
        %v4203 = vpop.permute.xlu0 %4202
        %4204 = vrot.lane.b32.xlu0 %v4179, 127
        %v4205 = vpop.permute.xlu0 %4204
        %4206 = vrot.lane.b32.xlu0 %v4180, 127
        %v4207 = vpop.permute.xlu0 %4206
        %4208 = vrot.lane.b32.xlu0 %v4181, 127
        %v4209 = vpop.permute.xlu0 %4208
        %4210 = vrot.lane.b32.xlu0 %v4182, 127
        %v4211 = vpop.permute.xlu0 %4210
        %4212 = vrot.lane.b32.xlu0 %v4183, 127
        %v4213 = vpop.permute.xlu0 %4212
        %4214 = vrot.lane.b32.xlu0 %v4184, 127
        %v4215 = vpop.permute.xlu0 %4214
        %4216 = vrot.lane.b32.xlu0 %v4185, 127
        %v4217 = vpop.permute.xlu0 %4216
        %4218 = vrot.lane.b32.xlu0 %v4186, 127
        %v4219 = vpop.permute.xlu0 %4218
        %4220 = vrot.lane.b32.xlu0 %v4187, 127
        %v4221 = vpop.permute.xlu0 %4220
        %4222 = vrot.lane.b32.xlu0 %v4188, 127
        %v4223 = vpop.permute.xlu0 %4222
        %4224 = vrot.lane.b32.xlu0 %v4189, 127
        %v4225 = vpop.permute.xlu0 %4224
        %4238 = vmatprep.subr.mxu0 0.0
        %4239 = vmatpush1.msra.mxu0 %v4203
        %4240 = vmatprep.subr.mxu0 0.0
        %4241 = vmatpush1.msra.mxu0 %v4205
        %4242 = vmatprep.subr.mxu0 0.0
        %4243 = vmatpush1.msra.mxu0 %v4207
        %4244 = vmatprep.subr.mxu0 0.0
        %4245 = vmatpush1.msra.mxu0 %v4209
        %4246 = vmatprep.subr.mxu0 0.0
        %4247 = vmatpush1.msra.mxu0 %v4211
        %4248 = vmatprep.subr.mxu0 0.0
        %4249 = vmatpush1.msra.mxu0 %v4213
        %4250 = vmatprep.subr.mxu0 0.0
        %4251 = vmatpush1.msra.mxu0 %v4215
        %4252 = vmatprep.subr.mxu0 0.0
        %4253 = vmatpush1.msra.mxu0 %v4217
        %4254 = vmatprep.subr.mxu0 0.0
        %4255 = vmatpush1.msra.mxu0 %v4219
        %4256 = vmatprep.subr.mxu0 0.0
        %4257 = vmatpush1.msra.mxu0 %v4221
        %4258 = vmatprep.subr.mxu0 0.0
        %4259 = vmatpush1.msra.mxu0 %v4223
        %4260 = vmatprep.subr.mxu0 0.0
        %4261 = vmatpush1.msra.mxu0 %v4225
        %4262 = vmatprep.subr.mxu0 0.0
        %4263 = vmatpush1.msra.mxu0 0.0
        %4264 = vmatprep.subr.mxu0 0.0
        %4265 = vmatpush1.msra.mxu0 0.0
        %4266 = vmatprep.subr.mxu0 0.0
        %4267 = vmatpush1.msra.mxu0 0.0
        %4268 = vmatprep.subr.mxu0 0.0
        %4269 = vmatpush1.msra.mxu0 0.0
        %4270 = vmatprep.subr.mxu0 0.0
        %4271 = vmatpush1.msra.mxu0 0.0
        %4272 = vmatprep.subr.mxu0 0.0
        %4273 = vmatpush1.msra.mxu0 0.0
        %4274 = vmatprep.subr.mxu0 0.0
        %4275 = vmatpush1.msra.mxu0 0.0
        %4276 = vmatprep.subr.mxu0 0.0
        %4277 = vmatpush1.msra.mxu0 0.0
        %4278 = vmatprep.subr.mxu0 0.0
        %4279 = vmatpush1.msra.mxu0 0.0
        %4280 = vmatprep.subr.mxu0 0.0
        %4281 = vmatpush1.msra.mxu0 0.0
        %4282 = vmatprep.subr.mxu0 0.0
        %4283 = vmatpush1.msra.mxu0 0.0
        %4284 = vmatprep.subr.mxu0 0.0
        %4285 = vmatpush1.msra.mxu0 0.0
        %4286 = vmatprep.subr.mxu0 0.0
        %4287 = vmatpush1.msra.mxu0 0.0
        %4288 = vmatprep.subr.mxu0 0.0
        %4289 = vmatpush1.msra.mxu0 0.0
        %4290 = vmatprep.subr.mxu0 0.0
        %4291 = vmatpush1.msra.mxu0 0.0
        %4292 = vmatprep.subr.mxu0 0.0
        %4293 = vmatpush1.msra.mxu0 0.0
        %4294 = vmatprep.subr.mxu0 0.0
        %4295 = vmatpush1.msra.mxu0 0.0
        %4296 = vmatprep.subr.mxu0 0.0
        %4297 = vmatpush1.msra.mxu0 0.0
        %4298 = vmatprep.subr.mxu0 0.0
        %4299 = vmatpush1.msra.mxu0 0.0
        %4300 = vmatprep.subr.mxu0 0.0
        %4301 = vmatpush1.msra.mxu0 0.0
        %4302 = vmatprep.mubr.f32.mxu0 0.0
        %4303 = vmatmul.mubr.f32.gmra.mrb[0].mxu0 %v3696
        %v4304 = vpop.f32.mrb[0].mxu0
        %v4305 = vadd.f32 0.0, %v4304
        %v4306 = vpop.f32.mrb[0].mxu0
        %4307 = vmatprep.mubr.f32.mxu0 0.0
        %4308 = vmatmul.mubr.f32.gmra.mrb[0].mxu0 %v3699
        %v4309 = vpop.f32.mrb[0].mxu0
        %v4310 = vadd.f32 0.0, %v4309
        %v4311 = vpop.f32.mrb[0].mxu0
        %4312 = vmatprep.mubr.f32.mxu0 0.0
        %4313 = vmatmul.mubr.f32.gmra.mrb[0].mxu0 %v3702
        %v4314 = vpop.f32.mrb[0].mxu0
        %v4315 = vadd.f32 0.0, %v4314
        %v4316 = vpop.f32.mrb[0].mxu0
        %4317 = vmatprep.mubr.f32.mxu0 0.0
        %4318 = vmatmul.mubr.f32.gmra.mrb[0].mxu0 %v3705
        %v4319 = vpop.f32.mrb[0].mxu0
        %v4320 = vadd.f32 0.0, %v4319
        %v4321 = vpop.f32.mrb[0].mxu0
        %4322 = vmatprep.mubr.f32.mxu0 0.0
        %4323 = vmatmul.mubr.f32.gmra.mrb[0].mxu0 %v3708
        %v4324 = vpop.f32.mrb[0].mxu0
        %v4325 = vadd.f32 0.0, %v4324
        %v4326 = vpop.f32.mrb[0].mxu0
        %4327 = vmatprep.mubr.f32.mxu0 0.0
        %4328 = vmatmul.mubr.f32.gmra.mrb[0].mxu0 %v3711
        %v4329 = vpop.f32.mrb[0].mxu0
        %v4330 = vadd.f32 0.0, %v4329
        %v4331 = vpop.f32.mrb[0].mxu0
        %4332 = vmatprep.mubr.f32.mxu0 0.0
        %4333 = vmatmul.mubr.f32.gmra.mrb[0].mxu0 %v3714
        %v4334 = vpop.f32.mrb[0].mxu0
        %v4335 = vadd.f32 0.0, %v4334
        %v4336 = vpop.f32.mrb[0].mxu0
        %4337 = vmatprep.mubr.f32.mxu0 0.0
        %4338 = vmatmul.mubr.f32.gmra.mrb[0].mxu0 %v3717
        %v4339 = vpop.f32.mrb[0].mxu0
        %v4340 = vadd.f32 0.0, %v4339
        %v4341 = vpop.f32.mrb[0].mxu0
        %4342 = vdwg.mxu0
        %4343 = vmatprep.subr.mxu0 0.0
        %4344 = vmatpush1.msra.mxu0 %v4178
        %4345 = vmatprep.subr.mxu0 0.0
        %4346 = vmatpush1.msra.mxu0 %v4179
        %4347 = vmatprep.subr.mxu0 0.0
        %4348 = vmatpush1.msra.mxu0 %v4180
        %4349 = vmatprep.subr.mxu0 0.0
        %4350 = vmatpush1.msra.mxu0 %v4181
        %4351 = vmatprep.subr.mxu0 0.0
        %4352 = vmatpush1.msra.mxu0 %v4182
        %4353 = vmatprep.subr.mxu0 0.0
        %4354 = vmatpush1.msra.mxu0 %v4183
        %4355 = vmatprep.subr.mxu0 0.0
        %4356 = vmatpush1.msra.mxu0 %v4184
        %4357 = vmatprep.subr.mxu0 0.0
        %4358 = vmatpush1.msra.mxu0 %v4185
        %4359 = vmatprep.subr.mxu0 0.0
        %4360 = vmatpush1.msra.mxu0 %v4186
        %4361 = vmatprep.subr.mxu0 0.0
        %4362 = vmatpush1.msra.mxu0 %v4187
        %4363 = vmatprep.subr.mxu0 0.0
        %4364 = vmatpush1.msra.mxu0 %v4188
        %4365 = vmatprep.subr.mxu0 0.0
        %4366 = vmatpush1.msra.mxu0 %v4189
        %4367 = vmatprep.subr.mxu0 0.0
        %4368 = vmatpush1.msra.mxu0 0.0
        %4369 = vmatprep.subr.mxu0 0.0
        %4370 = vmatpush1.msra.mxu0 0.0
        %4371 = vmatprep.subr.mxu0 0.0
        %4372 = vmatpush1.msra.mxu0 0.0
        %4373 = vmatprep.subr.mxu0 0.0
        %4374 = vmatpush1.msra.mxu0 0.0
        %4375 = vmatprep.subr.mxu0 0.0
        %4376 = vmatpush1.msra.mxu0 0.0
        %4377 = vmatprep.subr.mxu0 0.0
        %4378 = vmatpush1.msra.mxu0 0.0
        %4379 = vmatprep.subr.mxu0 0.0
        %4380 = vmatpush1.msra.mxu0 0.0
        %4381 = vmatprep.subr.mxu0 0.0
        %4382 = vmatpush1.msra.mxu0 0.0
        %4383 = vmatprep.subr.mxu0 0.0
        %4384 = vmatpush1.msra.mxu0 0.0
        %4385 = vmatprep.subr.mxu0 0.0
        %4386 = vmatpush1.msra.mxu0 0.0
        %4387 = vmatprep.subr.mxu0 0.0
        %4388 = vmatpush1.msra.mxu0 0.0
        %4389 = vmatprep.subr.mxu0 0.0
        %4390 = vmatpush1.msra.mxu0 0.0
        %4391 = vmatprep.subr.mxu0 0.0
        %4392 = vmatpush1.msra.mxu0 0.0
        %4393 = vmatprep.subr.mxu0 0.0
        %4394 = vmatpush1.msra.mxu0 0.0
        %4395 = vmatprep.subr.mxu0 0.0
        %4396 = vmatpush1.msra.mxu0 0.0
        %4397 = vmatprep.subr.mxu0 0.0
        %4398 = vmatpush1.msra.mxu0 0.0
        %4399 = vmatprep.subr.mxu0 0.0
        %4400 = vmatpush1.msra.mxu0 0.0
        %4401 = vmatprep.subr.mxu0 0.0
        %4402 = vmatpush1.msra.mxu0 0.0
        %4403 = vmatprep.subr.mxu0 0.0
        %4404 = vmatpush1.msra.mxu0 0.0
        %4405 = vmatprep.subr.mxu0 0.0
        %4406 = vmatpush1.msra.mxu0 0.0
        %4407 = vmatprep.mubr.f32.mxu0 0.0
        %4408 = vmatmul.mubr.f32.gmra.mrb[0].mxu0 %v3825
        %v4409 = vpop.f32.mrb[0].mxu0
        %v4410 = vadd.f32 %v4305, %v4409
        %v4411 = vpop.f32.mrb[0].mxu0
        %4412 = vmatprep.mubr.f32.mxu0 0.0
        %4413 = vmatmul.mubr.f32.gmra.mrb[0].mxu0 %v3828
        %v4414 = vpop.f32.mrb[0].mxu0
        %v4415 = vadd.f32 %v4310, %v4414
        %v4416 = vpop.f32.mrb[0].mxu0
        %4417 = vmatprep.mubr.f32.mxu0 0.0
        %4418 = vmatmul.mubr.f32.gmra.mrb[0].mxu0 %v3831
        %v4419 = vpop.f32.mrb[0].mxu0
        %v4420 = vadd.f32 %v4315, %v4419
        %v4421 = vpop.f32.mrb[0].mxu0
        %4422 = vmatprep.mubr.f32.mxu0 0.0
        %4423 = vmatmul.mubr.f32.gmra.mrb[0].mxu0 %v3834
        %v4424 = vpop.f32.mrb[0].mxu0
        %v4425 = vadd.f32 %v4320, %v4424
        %v4426 = vpop.f32.mrb[0].mxu0
        %4427 = vmatprep.mubr.f32.mxu0 0.0
        %4428 = vmatmul.mubr.f32.gmra.mrb[0].mxu0 %v3837
        %v4429 = vpop.f32.mrb[0].mxu0
        %v4430 = vadd.f32 %v4325, %v4429
        %v4431 = vpop.f32.mrb[0].mxu0
        %4432 = vmatprep.mubr.f32.mxu0 0.0
        %4433 = vmatmul.mubr.f32.gmra.mrb[0].mxu0 %v3840
        %v4434 = vpop.f32.mrb[0].mxu0
        %v4435 = vadd.f32 %v4330, %v4434
        %v4436 = vpop.f32.mrb[0].mxu0
        %4437 = vmatprep.mubr.f32.mxu0 0.0
        %4438 = vmatmul.mubr.f32.gmra.mrb[0].mxu0 %v3843
        %v4439 = vpop.f32.mrb[0].mxu0
        %v4440 = vadd.f32 %v4335, %v4439
        %v4441 = vpop.f32.mrb[0].mxu0
        %4442 = vmatprep.mubr.f32.mxu0 0.0
        %4443 = vmatmul.mubr.f32.gmra.mrb[0].mxu0 %v3846
        %v4444 = vpop.f32.mrb[0].mxu0
        %v4445 = vadd.f32 %v4340, %v4444
        %v4446 = vpop.f32.mrb[0].mxu0
        %4447 = vdwg.mxu0
        %4448 = vrot.lane.b32.xlu0 %v4178, 126
        %v4449 = vpop.permute.xlu0 %4448
        %4450 = vrot.lane.b32.xlu0 %v4179, 126
        %v4451 = vpop.permute.xlu0 %4450
        %4452 = vrot.lane.b32.xlu0 %v4180, 126
        %v4453 = vpop.permute.xlu0 %4452
        %4454 = vrot.lane.b32.xlu0 %v4181, 126
        %v4455 = vpop.permute.xlu0 %4454
        %4456 = vrot.lane.b32.xlu0 %v4182, 126
        %v4457 = vpop.permute.xlu0 %4456
        %4458 = vrot.lane.b32.xlu0 %v4183, 126
        %v4459 = vpop.permute.xlu0 %4458
        %4460 = vrot.lane.b32.xlu0 %v4184, 126
        %v4461 = vpop.permute.xlu0 %4460
        %4462 = vrot.lane.b32.xlu0 %v4185, 126
        %v4463 = vpop.permute.xlu0 %4462
        %4464 = vrot.lane.b32.xlu0 %v4186, 126
        %v4465 = vpop.permute.xlu0 %4464
        %4466 = vrot.lane.b32.xlu0 %v4187, 126
        %v4467 = vpop.permute.xlu0 %4466
        %4468 = vrot.lane.b32.xlu0 %v4188, 126
        %v4469 = vpop.permute.xlu0 %4468
        %4470 = vrot.lane.b32.xlu0 %v4189, 126
        %v4471 = vpop.permute.xlu0 %4470
        %4484 = vmatprep.subr.mxu0 0.0
        %4485 = vmatpush1.msra.mxu0 %v4449
        %4486 = vmatprep.subr.mxu0 0.0
        %4487 = vmatpush1.msra.mxu0 %v4451
        %4488 = vmatprep.subr.mxu0 0.0
        %4489 = vmatpush1.msra.mxu0 %v4453
        %4490 = vmatprep.subr.mxu0 0.0
        %4491 = vmatpush1.msra.mxu0 %v4455
        %4492 = vmatprep.subr.mxu0 0.0
        %4493 = vmatpush1.msra.mxu0 %v4457
        %4494 = vmatprep.subr.mxu0 0.0
        %4495 = vmatpush1.msra.mxu0 %v4459
        %4496 = vmatprep.subr.mxu0 0.0
        %4497 = vmatpush1.msra.mxu0 %v4461
        %4498 = vmatprep.subr.mxu0 0.0
        %4499 = vmatpush1.msra.mxu0 %v4463
        %4500 = vmatprep.subr.mxu0 0.0
        %4501 = vmatpush1.msra.mxu0 %v4465
        %4502 = vmatprep.subr.mxu0 0.0
        %4503 = vmatpush1.msra.mxu0 %v4467
        %4504 = vmatprep.subr.mxu0 0.0
        %4505 = vmatpush1.msra.mxu0 %v4469
        %4506 = vmatprep.subr.mxu0 0.0
        %4507 = vmatpush1.msra.mxu0 %v4471
        %4508 = vmatprep.subr.mxu0 0.0
        %4509 = vmatpush1.msra.mxu0 0.0
        %4510 = vmatprep.subr.mxu0 0.0
        %4511 = vmatpush1.msra.mxu0 0.0
        %4512 = vmatprep.subr.mxu0 0.0
        %4513 = vmatpush1.msra.mxu0 0.0
        %4514 = vmatprep.subr.mxu0 0.0
        %4515 = vmatpush1.msra.mxu0 0.0
        %4516 = vmatprep.subr.mxu0 0.0
        %4517 = vmatpush1.msra.mxu0 0.0
        %4518 = vmatprep.subr.mxu0 0.0
        %4519 = vmatpush1.msra.mxu0 0.0
        %4520 = vmatprep.subr.mxu0 0.0
        %4521 = vmatpush1.msra.mxu0 0.0
        %4522 = vmatprep.subr.mxu0 0.0
        %4523 = vmatpush1.msra.mxu0 0.0
        %4524 = vmatprep.subr.mxu0 0.0
        %4525 = vmatpush1.msra.mxu0 0.0
        %4526 = vmatprep.subr.mxu0 0.0
        %4527 = vmatpush1.msra.mxu0 0.0
        %4528 = vmatprep.subr.mxu0 0.0
        %4529 = vmatpush1.msra.mxu0 0.0
        %4530 = vmatprep.subr.mxu0 0.0
        %4531 = vmatpush1.msra.mxu0 0.0
        %4532 = vmatprep.subr.mxu0 0.0
        %4533 = vmatpush1.msra.mxu0 0.0
        %4534 = vmatprep.subr.mxu0 0.0
        %4535 = vmatpush1.msra.mxu0 0.0
        %4536 = vmatprep.subr.mxu0 0.0
        %4537 = vmatpush1.msra.mxu0 0.0
        %4538 = vmatprep.subr.mxu0 0.0
        %4539 = vmatpush1.msra.mxu0 0.0
        %4540 = vmatprep.subr.mxu0 0.0
        %4541 = vmatpush1.msra.mxu0 0.0
        %4542 = vmatprep.subr.mxu0 0.0
        %4543 = vmatpush1.msra.mxu0 0.0
        %4544 = vmatprep.subr.mxu0 0.0
        %4545 = vmatpush1.msra.mxu0 0.0
        %4546 = vmatprep.subr.mxu0 0.0
        %4547 = vmatpush1.msra.mxu0 0.0
        %4548 = vmatprep.mubr.f32.mxu0 0.0
        %4549 = vmatmul.mubr.f32.gmra.mrb[0].mxu0 %v3990
        %v4550 = vpop.f32.mrb[0].mxu0
        %v4551 = vadd.f32 0.0, %v4550
        %v4552 = vpop.f32.mrb[0].mxu0
        %4553 = vmatprep.mubr.f32.mxu0 0.0
        %4554 = vmatmul.mubr.f32.gmra.mrb[0].mxu0 %v3993
        %v4555 = vpop.f32.mrb[0].mxu0
        %v4556 = vadd.f32 0.0, %v4555
        %v4557 = vpop.f32.mrb[0].mxu0
        %4558 = vmatprep.mubr.f32.mxu0 0.0
        %4559 = vmatmul.mubr.f32.gmra.mrb[0].mxu0 %v3996
        %v4560 = vpop.f32.mrb[0].mxu0
        %v4561 = vadd.f32 0.0, %v4560
        %v4562 = vpop.f32.mrb[0].mxu0
        %4563 = vmatprep.mubr.f32.mxu0 0.0
        %4564 = vmatmul.mubr.f32.gmra.mrb[0].mxu0 %v3999
        %v4565 = vpop.f32.mrb[0].mxu0
        %v4566 = vadd.f32 0.0, %v4565
        %v4567 = vpop.f32.mrb[0].mxu0
        %4568 = vmatprep.mubr.f32.mxu0 0.0
        %4569 = vmatmul.mubr.f32.gmra.mrb[0].mxu0 %v4002
        %v4570 = vpop.f32.mrb[0].mxu0
        %v4571 = vadd.f32 0.0, %v4570
        %v4572 = vpop.f32.mrb[0].mxu0
        %4573 = vmatprep.mubr.f32.mxu0 0.0
        %4574 = vmatmul.mubr.f32.gmra.mrb[0].mxu0 %v4005
        %v4575 = vpop.f32.mrb[0].mxu0
        %v4576 = vadd.f32 0.0, %v4575
        %v4577 = vpop.f32.mrb[0].mxu0
        %4578 = vmatprep.mubr.f32.mxu0 0.0
        %4579 = vmatmul.mubr.f32.gmra.mrb[0].mxu0 %v4008
        %v4580 = vpop.f32.mrb[0].mxu0
        %v4581 = vadd.f32 0.0, %v4580
        %v4582 = vpop.f32.mrb[0].mxu0
        %4583 = vmatprep.mubr.f32.mxu0 0.0
        %4584 = vmatmul.mubr.f32.gmra.mrb[0].mxu0 %v4011
        %v4585 = vpop.f32.mrb[0].mxu0
        %v4586 = vadd.f32 0.0, %v4585
        %v4587 = vpop.f32.mrb[0].mxu0
        %4588 = vdwg.mxu0
        %v4589 = vadd.f32 %v4410, %v4551
        %v4590 = vadd.f32 %v4415, %v4556
        %v4591 = vadd.f32 %v4420, %v4561
        %v4592 = vadd.f32 %v4425, %v4566
        %v4593 = vadd.f32 %v4430, %v4571
        %v4594 = vadd.f32 %v4435, %v4576
        %v4595 = vadd.f32 %v4440, %v4581
        %v4596 = vadd.f32 %v4445, %v4586
        %v4597 = vadd.f32 %v4589, %v4129
        %v4598 = vadd.f32 %v4590, %v4134
        %v4599 = vadd.f32 %v4591, %v4139
        %v4600 = vadd.f32 %v4592, %v4144
        %v4601 = vadd.f32 %v4593, %v4149
        %v4602 = vadd.f32 %v4594, %v4154
        %v4603 = vadd.f32 %v4595, %v4159
        %v4604 = vadd.f32 %v4596, %v4164
        %v4605 = vmax.f32 %v4166, %v4597
        %v4606 = vmax.f32 %v4167, %v4598
        %v4607 = vmax.f32 %v4168, %v4599
        %v4608 = vmax.f32 %v4169, %v4600
        %v4609 = vmax.f32 %v4170, %v4601
        %v4610 = vmax.f32 %v4171, %v4602
        %v4611 = vmax.f32 %v4172, %v4603
        %v4612 = vmax.f32 %v4173, %v4604
        %vm4613 = vcmask 97280
        %v4615 = vsel %vm4613, %v4605, 0
        %v4618 = vsel %vm4613, %v4606, 0
        %v4621 = vsel %vm4613, %v4607, 0
        %v4624 = vsel %vm4613, %v4608, 0
        %v4627 = vsel %vm4613, %v4609, 0
        %v4630 = vsel %vm4613, %v4610, 0
        %v4633 = vsel %vm4613, %v4611, 0
        %v4636 = vsel %vm4613, %v4612, 0
        %vm4638 = vcmask 1043456
        %v4640 = vsel %vm4638, %v876, 0
        %4642 = vmatprep.subr.mxu0 0.0
        %4643 = vmatpush1.msra.mxu0 %v875
        %4644 = vmatprep.subr.mxu0 0.0
        %4645 = vmatpush1.msra.mxu0 %v4640
        %4646 = vmatprep.subr.mxu0 0.0
        %4647 = vmatpush1.msra.mxu0 0.0
        %4648 = vmatprep.subr.mxu0 0.0
        %4649 = vmatpush1.msra.mxu0 0.0
        %4650 = vmatprep.subr.mxu0 0.0
        %4651 = vmatpush1.msra.mxu0 0.0
        %4652 = vmatprep.subr.mxu0 0.0
        %4653 = vmatpush1.msra.mxu0 0.0
        %4654 = vmatprep.subr.mxu0 0.0
        %4655 = vmatpush1.msra.mxu0 0.0
        %4656 = vmatprep.subr.mxu0 0.0
        %4657 = vmatpush1.msra.mxu0 0.0
        %4658 = vmatprep.subr.mxu0 0.0
        %4659 = vmatpush1.msra.mxu0 0.0
        %4660 = vmatprep.subr.mxu0 0.0
        %4661 = vmatpush1.msra.mxu0 0.0
        %4662 = vmatprep.subr.mxu0 0.0
        %4663 = vmatpush1.msra.mxu0 0.0
        %4664 = vmatprep.subr.mxu0 0.0
        %4665 = vmatpush1.msra.mxu0 0.0
        %4666 = vmatprep.subr.mxu0 0.0
        %4667 = vmatpush1.msra.mxu0 0.0
        %4668 = vmatprep.subr.mxu0 0.0
        %4669 = vmatpush1.msra.mxu0 0.0
        %4670 = vmatprep.subr.mxu0 0.0
        %4671 = vmatpush1.msra.mxu0 0.0
        %4672 = vmatprep.subr.mxu0 0.0
        %4673 = vmatpush1.msra.mxu0 0.0
        %4674 = vmatprep.subr.mxu0 0.0
        %4675 = vmatpush1.msra.mxu0 0.0
        %4676 = vmatprep.subr.mxu0 0.0
        %4677 = vmatpush1.msra.mxu0 0.0
        %4678 = vmatprep.subr.mxu0 0.0
        %4679 = vmatpush1.msra.mxu0 0.0
        %4680 = vmatprep.subr.mxu0 0.0
        %4681 = vmatpush1.msra.mxu0 0.0
        %4682 = vmatprep.subr.mxu0 0.0
        %4683 = vmatpush1.msra.mxu0 0.0
        %4684 = vmatprep.subr.mxu0 0.0
        %4685 = vmatpush1.msra.mxu0 0.0
        %4686 = vmatprep.subr.mxu0 0.0
        %4687 = vmatpush1.msra.mxu0 0.0
        %4688 = vmatprep.subr.mxu0 0.0
        %4689 = vmatpush1.msra.mxu0 0.0
        %4690 = vmatprep.subr.mxu0 0.0
        %4691 = vmatpush1.msra.mxu0 0.0
        %4692 = vmatprep.subr.mxu0 0.0
        %4693 = vmatpush1.msra.mxu0 0.0
        %4694 = vmatprep.subr.mxu0 0.0
        %4695 = vmatpush1.msra.mxu0 0.0
        %4696 = vmatprep.subr.mxu0 0.0
        %4697 = vmatpush1.msra.mxu0 0.0
        %4698 = vmatprep.subr.mxu0 0.0
        %4699 = vmatpush1.msra.mxu0 0.0
        %4700 = vmatprep.subr.mxu0 0.0
        %4701 = vmatpush1.msra.mxu0 0.0
        %4702 = vmatprep.subr.mxu0 0.0
        %4703 = vmatpush1.msra.mxu0 0.0
        %4704 = vmatprep.subr.mxu0 0.0
        %4705 = vmatpush1.msra.mxu0 0.0
        %4706 = vmatprep.mubr.f32.mxu0 0.0
        %4707 = vmatmul.mubr.f32.gmra.mrb[0].mxu0 %v4615
        %v4708 = vpop.f32.mrb[0].mxu0
        %v4709 = vadd.f32 0.0, %v4708
        %v4710 = vpop.f32.mrb[0].mxu0
        %4711 = vmatprep.mubr.f32.mxu0 0.0
        %4712 = vmatmul.mubr.f32.gmra.mrb[0].mxu0 %v4618
        %v4713 = vpop.f32.mrb[0].mxu0
        %v4714 = vadd.f32 0.0, %v4713
        %v4715 = vpop.f32.mrb[0].mxu0
        %4716 = vmatprep.mubr.f32.mxu0 0.0
        %4717 = vmatmul.mubr.f32.gmra.mrb[0].mxu0 %v4621
        %v4718 = vpop.f32.mrb[0].mxu0
        %v4719 = vadd.f32 0.0, %v4718
        %v4720 = vpop.f32.mrb[0].mxu0
        %4721 = vmatprep.mubr.f32.mxu0 0.0
        %4722 = vmatmul.mubr.f32.gmra.mrb[0].mxu0 %v4624
        %v4723 = vpop.f32.mrb[0].mxu0
        %v4724 = vadd.f32 0.0, %v4723
        %v4725 = vpop.f32.mrb[0].mxu0
        %4726 = vmatprep.mubr.f32.mxu0 0.0
        %4727 = vmatmul.mubr.f32.gmra.mrb[0].mxu0 %v4627
        %v4728 = vpop.f32.mrb[0].mxu0
        %v4729 = vadd.f32 0.0, %v4728
        %v4730 = vpop.f32.mrb[0].mxu0
        %4731 = vmatprep.mubr.f32.mxu0 0.0
        %4732 = vmatmul.mubr.f32.gmra.mrb[0].mxu0 %v4630
        %v4733 = vpop.f32.mrb[0].mxu0
        %v4734 = vadd.f32 0.0, %v4733
        %v4735 = vpop.f32.mrb[0].mxu0
        %4736 = vmatprep.mubr.f32.mxu0 0.0
        %4737 = vmatmul.mubr.f32.gmra.mrb[0].mxu0 %v4633
        %v4738 = vpop.f32.mrb[0].mxu0
        %v4739 = vadd.f32 0.0, %v4738
        %v4740 = vpop.f32.mrb[0].mxu0
        %4741 = vmatprep.mubr.f32.mxu0 0.0
        %4742 = vmatmul.mubr.f32.gmra.mrb[0].mxu0 %v4636
        %v4743 = vpop.f32.mrb[0].mxu0
        %v4744 = vadd.f32 0.0, %v4743
        %v4745 = vpop.f32.mrb[0].mxu0
        %4746 = vdwg.mxu0
        %v4748 = vsel %vm4638, %v925, 0
        %4750 = vmatprep.subr.mxu0 0.0
        %4751 = vmatpush1.msra.mxu0 %v924
        %4752 = vmatprep.subr.mxu0 0.0
        %4753 = vmatpush1.msra.mxu0 %v4748
        %4754 = vmatprep.subr.mxu0 0.0
        %4755 = vmatpush1.msra.mxu0 0.0
        %4756 = vmatprep.subr.mxu0 0.0
        %4757 = vmatpush1.msra.mxu0 0.0
        %4758 = vmatprep.subr.mxu0 0.0
        %4759 = vmatpush1.msra.mxu0 0.0
        %4760 = vmatprep.subr.mxu0 0.0
        %4761 = vmatpush1.msra.mxu0 0.0
        %4762 = vmatprep.subr.mxu0 0.0
        %4763 = vmatpush1.msra.mxu0 0.0
        %4764 = vmatprep.subr.mxu0 0.0
        %4765 = vmatpush1.msra.mxu0 0.0
        %4766 = vmatprep.subr.mxu0 0.0
        %4767 = vmatpush1.msra.mxu0 0.0
        %4768 = vmatprep.subr.mxu0 0.0
        %4769 = vmatpush1.msra.mxu0 0.0
        %4770 = vmatprep.subr.mxu0 0.0
        %4771 = vmatpush1.msra.mxu0 0.0
        %4772 = vmatprep.subr.mxu0 0.0
        %4773 = vmatpush1.msra.mxu0 0.0
        %4774 = vmatprep.subr.mxu0 0.0
        %4775 = vmatpush1.msra.mxu0 0.0
        %4776 = vmatprep.subr.mxu0 0.0
        %4777 = vmatpush1.msra.mxu0 0.0
        %4778 = vmatprep.subr.mxu0 0.0
        %4779 = vmatpush1.msra.mxu0 0.0
        %4780 = vmatprep.subr.mxu0 0.0
        %4781 = vmatpush1.msra.mxu0 0.0
        %4782 = vmatprep.subr.mxu0 0.0
        %4783 = vmatpush1.msra.mxu0 0.0
        %4784 = vmatprep.subr.mxu0 0.0
        %4785 = vmatpush1.msra.mxu0 0.0
        %4786 = vmatprep.subr.mxu0 0.0
        %4787 = vmatpush1.msra.mxu0 0.0
        %4788 = vmatprep.subr.mxu0 0.0
        %4789 = vmatpush1.msra.mxu0 0.0
        %4790 = vmatprep.subr.mxu0 0.0
        %4791 = vmatpush1.msra.mxu0 0.0
        %4792 = vmatprep.subr.mxu0 0.0
        %4793 = vmatpush1.msra.mxu0 0.0
        %4794 = vmatprep.subr.mxu0 0.0
        %4795 = vmatpush1.msra.mxu0 0.0
        %4796 = vmatprep.subr.mxu0 0.0
        %4797 = vmatpush1.msra.mxu0 0.0
        %4798 = vmatprep.subr.mxu0 0.0
        %4799 = vmatpush1.msra.mxu0 0.0
        %4800 = vmatprep.subr.mxu0 0.0
        %4801 = vmatpush1.msra.mxu0 0.0
        %4802 = vmatprep.subr.mxu0 0.0
        %4803 = vmatpush1.msra.mxu0 0.0
        %4804 = vmatprep.subr.mxu0 0.0
        %4805 = vmatpush1.msra.mxu0 0.0
        %4806 = vmatprep.subr.mxu0 0.0
        %4807 = vmatpush1.msra.mxu0 0.0
        %4808 = vmatprep.subr.mxu0 0.0
        %4809 = vmatpush1.msra.mxu0 0.0
        %4810 = vmatprep.subr.mxu0 0.0
        %4811 = vmatpush1.msra.mxu0 0.0
        %4812 = vmatprep.subr.mxu0 0.0
        %4813 = vmatpush1.msra.mxu0 0.0
        %4814 = vmatprep.mubr.f32.mxu0 0.0
        %4815 = vmatmul.mubr.f32.gmra.mrb[0].mxu0 %v4615
        %v4816 = vpop.f32.mrb[0].mxu0
        %v4817 = vadd.f32 0.0, %v4816
        %v4818 = vpop.f32.mrb[0].mxu0
        %4819 = vmatprep.mubr.f32.mxu0 0.0
        %4820 = vmatmul.mubr.f32.gmra.mrb[0].mxu0 %v4618
        %v4821 = vpop.f32.mrb[0].mxu0
        %v4822 = vadd.f32 0.0, %v4821
        %v4823 = vpop.f32.mrb[0].mxu0
        %4824 = vmatprep.mubr.f32.mxu0 0.0
        %4825 = vmatmul.mubr.f32.gmra.mrb[0].mxu0 %v4621
        %v4826 = vpop.f32.mrb[0].mxu0
        %v4827 = vadd.f32 0.0, %v4826
        %v4828 = vpop.f32.mrb[0].mxu0
        %4829 = vmatprep.mubr.f32.mxu0 0.0
        %4830 = vmatmul.mubr.f32.gmra.mrb[0].mxu0 %v4624
        %v4831 = vpop.f32.mrb[0].mxu0
        %v4832 = vadd.f32 0.0, %v4831
        %v4833 = vpop.f32.mrb[0].mxu0
        %4834 = vmatprep.mubr.f32.mxu0 0.0
        %4835 = vmatmul.mubr.f32.gmra.mrb[0].mxu0 %v4627
        %v4836 = vpop.f32.mrb[0].mxu0
        %v4837 = vadd.f32 0.0, %v4836
        %v4838 = vpop.f32.mrb[0].mxu0
        %4839 = vmatprep.mubr.f32.mxu0 0.0
        %4840 = vmatmul.mubr.f32.gmra.mrb[0].mxu0 %v4630
        %v4841 = vpop.f32.mrb[0].mxu0
        %v4842 = vadd.f32 0.0, %v4841
        %v4843 = vpop.f32.mrb[0].mxu0
        %4844 = vmatprep.mubr.f32.mxu0 0.0
        %4845 = vmatmul.mubr.f32.gmra.mrb[0].mxu0 %v4633
        %v4846 = vpop.f32.mrb[0].mxu0
        %v4847 = vadd.f32 0.0, %v4846
        %v4848 = vpop.f32.mrb[0].mxu0
        %4849 = vmatprep.mubr.f32.mxu0 0.0
        %4850 = vmatmul.mubr.f32.gmra.mrb[0].mxu0 %v4636
        %v4851 = vpop.f32.mrb[0].mxu0
        %v4852 = vadd.f32 0.0, %v4851
        %v4853 = vpop.f32.mrb[0].mxu0
        %4854 = vdwg.mxu0
        %v4855 = vmax.f32 %v4709, %v4817
        %v4856 = vmax.f32 %v4714, %v4822
        %v4857 = vmax.f32 %v4719, %v4827
        %v4858 = vmax.f32 %v4724, %v4832
        %v4859 = vmax.f32 %v4729, %v4837
        %v4860 = vmax.f32 %v4734, %v4842
        %v4861 = vmax.f32 %v4739, %v4847
        %v4862 = vmax.f32 %v4744, %v4852
        %v4863 = vmax.f32 %v4855, 0.0
        %v4864 = vmax.f32 %v4856, 0.0
        %v4865 = vmax.f32 %v4857, 0.0
        %v4866 = vmax.f32 %v4858, 0.0
        %v4867 = vmax.f32 %v4859, 0.0
        %v4868 = vmax.f32 %v4860, 0.0
        %v4869 = vmax.f32 %v4861, 0.0
        %v4870 = vmax.f32 %v4862, 0.0
        %s4871 = scalar_lea.vmem [#allocation6], %s3632
        %vm4872 = vcmask 48128
        %4873 = vst.msk [vmem:[%s4871] sm:$0xff] %vm4872, %v4863
        %4874 = vst.msk [vmem:[%s4871 + $0x8] sm:$0xff] %vm4872, %v4864
        %4875 = vst.msk [vmem:[%s4871 + $0x10] sm:$0xff] %vm4872, %v4865
        %4876 = vst.msk [vmem:[%s4871 + $0x18] sm:$0xff] %vm4872, %v4866
        %4877 = vst.msk [vmem:[%s4871 + $0x20] sm:$0xff] %vm4872, %v4867
        %4878 = vst.msk [vmem:[%s4871 + $0x28] sm:$0xff] %vm4872, %v4868
        %4879 = vst.msk [vmem:[%s4871 + $0x30] sm:$0xff] %vm4872, %v4869
        %4880 = vst.msk [vmem:[%s4871 + $0x38] sm:$0xff] %vm4872, %v4870
      $region121: #{modelv0_forward.1} parent=87 // loop_footer
        %s3631 = sadd.s32 1, %s3627
      $region122: #{modelv0_forward.1} parent=87 // loop_footer_branch
        %3626 = sbr.rel target = $region118
      $region123: #{modelv0_forward.1} parent=87 // loop_exit
        _
      %v4881 = vld [vmem:[%s11] sm:$0xff]
      %v4882 = vld [vmem:[%s11 + $0x8] sm:$0xff]
      %v4883 = vld [vmem:[%s11 + $0x10] sm:$0xff]
      %v4884 = vld [vmem:[%s11 + $0x18] sm:$0xff]
      %v4885 = vld [vmem:[%s11 + $0x20] sm:$0xff]
      %v4886 = vld [vmem:[%s11 + $0x28] sm:$0xff]
      %v4887 = vld [vmem:[%s11 + $0x30] sm:$0xff]
      %v4888 = vld [vmem:[%s11 + $0x38] sm:$0xff]
      %v4889 = vld [vmem:[%s11 + $0x40] sm:$0xff]
      %v4890 = vld [vmem:[%s11 + $0x48] sm:$0xff]
      %v4891 = vld [vmem:[%s11 + $0x50] sm:$0xff]
      %v4892 = vld [vmem:[%s11 + $0x58] sm:$0xff]
      %v4893 = vld [vmem:[%s11 + $0x60] sm:$0xff]
      %v4894 = vld [vmem:[%s11 + $0x68] sm:$0xff]
      %v4895 = vld [vmem:[%s11 + $0x70] sm:$0xff]
      %v4896 = vld [vmem:[%s11 + $0x78] sm:$0xff]
      %s4897 = scalar_lea.vmem %s11, 128
      %v4898 = vld [vmem:[%s4897] sm:$0xff]
      %v4899 = vld [vmem:[%s4897 + $0x8] sm:$0xff]
      %v4900 = vld [vmem:[%s4897 + $0x10] sm:$0xff]
      %v4901 = vld [vmem:[%s4897 + $0x18] sm:$0xff]
      %v4902 = vld [vmem:[%s4897 + $0x20] sm:$0xff]
      %v4903 = vld [vmem:[%s4897 + $0x28] sm:$0xff]
      %v4904 = vld [vmem:[%s4897 + $0x30] sm:$0xff]
      %v4905 = vld [vmem:[%s4897 + $0x38] sm:$0xff]
      %v4906 = vld [vmem:[%s4897 + $0x40] sm:$0xff]
      %v4907 = vld [vmem:[%s4897 + $0x48] sm:$0xff]
      %v4908 = vld [vmem:[%s4897 + $0x50] sm:$0xff]
      %v4909 = vld [vmem:[%s4897 + $0x58] sm:$0xff]
      %v4910 = vld [vmem:[%s4897 + $0x60] sm:$0xff]
      %v4911 = vld [vmem:[%s4897 + $0x68] sm:$0xff]
      %v4912 = vld [vmem:[%s4897 + $0x70] sm:$0xff]
      %v4913 = vld [vmem:[%s4897 + $0x78] sm:$0xff]
      %s4914 = scalar_lea.vmem %s11, 256
      %v4915 = vld [vmem:[%s4914] sm:$0xff]
      %v4916 = vld [vmem:[%s4914 + $0x8] sm:$0xff]
      %v4917 = vld [vmem:[%s4914 + $0x10] sm:$0xff]
      %v4918 = vld [vmem:[%s4914 + $0x18] sm:$0xff]
      %v4919 = vld [vmem:[%s4914 + $0x20] sm:$0xff]
      %v4920 = vld [vmem:[%s4914 + $0x28] sm:$0xff]
      %v4921 = vld [vmem:[%s4914 + $0x30] sm:$0xff]
      %v4922 = vld [vmem:[%s4914 + $0x38] sm:$0xff]
      %v4923 = vld [vmem:[%s4914 + $0x40] sm:$0xff]
      %v4924 = vld [vmem:[%s4914 + $0x48] sm:$0xff]
      %v4925 = vld [vmem:[%s4914 + $0x50] sm:$0xff]
      %v4926 = vld [vmem:[%s4914 + $0x58] sm:$0xff]
      %v4927 = vld [vmem:[%s4914 + $0x60] sm:$0xff]
      %v4928 = vld [vmem:[%s4914 + $0x68] sm:$0xff]
      %v4929 = vld [vmem:[%s4914 + $0x70] sm:$0xff]
      %v4930 = vld [vmem:[%s4914 + $0x78] sm:$0xff]
      %v4931 = vld [vmem:[%s12] sm:$0xff]
      %v4932 = vld [vmem:[%s12 + $0x8] sm:$0xff]
      %v4933 = vld [vmem:[%s12 + $0x10] sm:$0xff]
      %v4934 = vld [vmem:[%s12 + $0x18] sm:$0xff]
      %v4935 = vld [vmem:[%s12 + $0x20] sm:$0xff]
      %v4936 = vld [vmem:[%s12 + $0x28] sm:$0xff]
      %v4937 = vld [vmem:[%s12 + $0x30] sm:$0xff]
      %v4938 = vld [vmem:[%s12 + $0x38] sm:$0xff]
      loop: start=0, step=1, limit=4
      $region124: #{modelv0_forward.1} parent=87 // loop_pre_header
        _
      $region125: #{modelv0_forward.1} parent=87 // loop_header
        %s4940 = sphi 0, %s4944
        %p4941 = scmp.ge.s32.totalorder %s4940, 4
      $region126: #{modelv0_forward.1} parent=87 // loop_header_branch
        %4943 = sbr.rel (%p4941) target = $region130
      $region127: #{modelv0_forward.1} parent=87 // loop_body
        %s4945 = smul.u32 %s4940, 128
        %s4946 = scalar_lea.vmem [#allocation6], %s4945
        %v4947 = vld [vmem:[%s4946] sm:$0xff]
        %v4948 = vld [vmem:[%s4946 + $0x8] sm:$0xff]
        %v4949 = vld [vmem:[%s4946 + $0x10] sm:$0xff]
        %v4950 = vld [vmem:[%s4946 + $0x18] sm:$0xff]
        %v4951 = vld [vmem:[%s4946 + $0x20] sm:$0xff]
        %v4952 = vld [vmem:[%s4946 + $0x28] sm:$0xff]
        %v4953 = vld [vmem:[%s4946 + $0x30] sm:$0xff]
        %v4954 = vld [vmem:[%s4946 + $0x38] sm:$0xff]
        %v4955 = vld [vmem:[%s4946 + $0x40] sm:$0xff]
        %v4956 = vld [vmem:[%s4946 + $0x48] sm:$0xff]
        %v4957 = vld [vmem:[%s4946 + $0x50] sm:$0xff]
        %v4958 = vld [vmem:[%s4946 + $0x58] sm:$0xff]
        %v4959 = vld [vmem:[%s4946 + $0x60] sm:$0xff]
        %v4960 = vld [vmem:[%s4946 + $0x68] sm:$0xff]
        %v4961 = vld [vmem:[%s4946 + $0x70] sm:$0xff]
        %v4962 = vld [vmem:[%s4946 + $0x78] sm:$0xff]
        %v4963 = vld [vmem:[%s4946 + $0x80] sm:$0xff]
        %v4964 = vld [vmem:[%s4946 + $0x88] sm:$0xff]
        %v4965 = vld [vmem:[%s4946 + $0x90] sm:$0xff]
        %v4966 = vld [vmem:[%s4946 + $0x98] sm:$0xff]
        %v4967 = vld [vmem:[%s4946 + $0xa0] sm:$0xff]
        %v4968 = vld [vmem:[%s4946 + $0xa8] sm:$0xff]
        %v4969 = vld [vmem:[%s4946 + $0xb0] sm:$0xff]
        %v4970 = vld [vmem:[%s4946 + $0xb8] sm:$0xff]
        %4995 = vrot.lane.b32.xlu0 %v4947, 127
        %v4996 = vpop.permute.xlu0 %4995
        %4997 = vrot.lane.b32.xlu0 %v4948, 127
        %v4998 = vpop.permute.xlu0 %4997
        %4999 = vrot.lane.b32.xlu0 %v4949, 127
        %v5000 = vpop.permute.xlu0 %4999
        %5001 = vrot.lane.b32.xlu0 %v4950, 127
        %v5002 = vpop.permute.xlu0 %5001
        %5003 = vrot.lane.b32.xlu0 %v4951, 127
        %v5004 = vpop.permute.xlu0 %5003
        %5005 = vrot.lane.b32.xlu0 %v4952, 127
        %v5006 = vpop.permute.xlu0 %5005
        %5007 = vrot.lane.b32.xlu0 %v4953, 127
        %v5008 = vpop.permute.xlu0 %5007
        %5009 = vrot.lane.b32.xlu0 %v4954, 127
        %v5010 = vpop.permute.xlu0 %5009
        %5011 = vrot.lane.b32.xlu0 %v4955, 127
        %v5012 = vpop.permute.xlu0 %5011
        %5013 = vrot.lane.b32.xlu0 %v4956, 127
        %v5014 = vpop.permute.xlu0 %5013
        %5015 = vrot.lane.b32.xlu0 %v4957, 127
        %v5016 = vpop.permute.xlu0 %5015
        %5017 = vrot.lane.b32.xlu0 %v4958, 127
        %v5018 = vpop.permute.xlu0 %5017
        %5019 = vrot.lane.b32.xlu0 %v4959, 127
        %v5020 = vpop.permute.xlu0 %5019
        %5021 = vrot.lane.b32.xlu0 %v4960, 127
        %v5022 = vpop.permute.xlu0 %5021
        %5023 = vrot.lane.b32.xlu0 %v4961, 127
        %v5024 = vpop.permute.xlu0 %5023
        %5025 = vrot.lane.b32.xlu0 %v4962, 127
        %v5026 = vpop.permute.xlu0 %5025
        %5027 = vrot.lane.b32.xlu0 %v4963, 127
        %v5028 = vpop.permute.xlu0 %5027
        %5029 = vrot.lane.b32.xlu0 %v4964, 127
        %v5030 = vpop.permute.xlu0 %5029
        %5031 = vrot.lane.b32.xlu0 %v4965, 127
        %v5032 = vpop.permute.xlu0 %5031
        %5033 = vrot.lane.b32.xlu0 %v4966, 127
        %v5034 = vpop.permute.xlu0 %5033
        %5035 = vrot.lane.b32.xlu0 %v4967, 127
        %v5036 = vpop.permute.xlu0 %5035
        %5037 = vrot.lane.b32.xlu0 %v4968, 127
        %v5038 = vpop.permute.xlu0 %5037
        %5039 = vrot.lane.b32.xlu0 %v4969, 127
        %v5040 = vpop.permute.xlu0 %5039
        %5041 = vrot.lane.b32.xlu0 %v4970, 127
        %v5042 = vpop.permute.xlu0 %5041
        %vm5067 = vcmask 523264
        %v5069 = vsel %vm5067, %v4899, 0
        %v5072 = vsel %vm5067, %v4901, 0
        %v5075 = vsel %vm5067, %v4903, 0
        %v5078 = vsel %vm5067, %v4905, 0
        %v5081 = vsel %vm5067, %v4907, 0
        %v5084 = vsel %vm5067, %v4909, 0
        %v5087 = vsel %vm5067, %v4911, 0
        %v5090 = vsel %vm5067, %v4913, 0
        %5092 = vmatprep.subr.mxu0 0.0
        %5093 = vmatpush1.msra.mxu0 %v4996
        %5094 = vmatprep.subr.mxu0 0.0
        %5095 = vmatpush1.msra.mxu0 %v4998
        %5096 = vmatprep.subr.mxu0 0.0
        %5097 = vmatpush1.msra.mxu0 %v5000
        %5098 = vmatprep.subr.mxu0 0.0
        %5099 = vmatpush1.msra.mxu0 %v5002
        %5100 = vmatprep.subr.mxu0 0.0
        %5101 = vmatpush1.msra.mxu0 %v5004
        %5102 = vmatprep.subr.mxu0 0.0
        %5103 = vmatpush1.msra.mxu0 %v5006
        %5104 = vmatprep.subr.mxu0 0.0
        %5105 = vmatpush1.msra.mxu0 %v5008
        %5106 = vmatprep.subr.mxu0 0.0
        %5107 = vmatpush1.msra.mxu0 %v5010
        %5108 = vmatprep.subr.mxu0 0.0
        %5109 = vmatpush1.msra.mxu0 %v5012
        %5110 = vmatprep.subr.mxu0 0.0
        %5111 = vmatpush1.msra.mxu0 %v5014
        %5112 = vmatprep.subr.mxu0 0.0
        %5113 = vmatpush1.msra.mxu0 %v5016
        %5114 = vmatprep.subr.mxu0 0.0
        %5115 = vmatpush1.msra.mxu0 %v5018
        %5116 = vmatprep.subr.mxu0 0.0
        %5117 = vmatpush1.msra.mxu0 %v5020
        %5118 = vmatprep.subr.mxu0 0.0
        %5119 = vmatpush1.msra.mxu0 %v5022
        %5120 = vmatprep.subr.mxu0 0.0
        %5121 = vmatpush1.msra.mxu0 %v5024
        %5122 = vmatprep.subr.mxu0 0.0
        %5123 = vmatpush1.msra.mxu0 %v5026
        %5124 = vmatprep.subr.mxu0 0.0
        %5125 = vmatpush1.msra.mxu0 %v5028
        %5126 = vmatprep.subr.mxu0 0.0
        %5127 = vmatpush1.msra.mxu0 %v5030
        %5128 = vmatprep.subr.mxu0 0.0
        %5129 = vmatpush1.msra.mxu0 %v5032
        %5130 = vmatprep.subr.mxu0 0.0
        %5131 = vmatpush1.msra.mxu0 %v5034
        %5132 = vmatprep.subr.mxu0 0.0
        %5133 = vmatpush1.msra.mxu0 %v5036
        %5134 = vmatprep.subr.mxu0 0.0
        %5135 = vmatpush1.msra.mxu0 %v5038
        %5136 = vmatprep.subr.mxu0 0.0
        %5137 = vmatpush1.msra.mxu0 %v5040
        %5138 = vmatprep.subr.mxu0 0.0
        %5139 = vmatpush1.msra.mxu0 %v5042
        %5140 = vmatprep.subr.mxu0 0.0
        %5141 = vmatpush1.msra.mxu0 0.0
        %5142 = vmatprep.subr.mxu0 0.0
        %5143 = vmatpush1.msra.mxu0 0.0
        %5144 = vmatprep.subr.mxu0 0.0
        %5145 = vmatpush1.msra.mxu0 0.0
        %5146 = vmatprep.subr.mxu0 0.0
        %5147 = vmatpush1.msra.mxu0 0.0
        %5148 = vmatprep.subr.mxu0 0.0
        %5149 = vmatpush1.msra.mxu0 0.0
        %5150 = vmatprep.subr.mxu0 0.0
        %5151 = vmatpush1.msra.mxu0 0.0
        %5152 = vmatprep.subr.mxu0 0.0
        %5153 = vmatpush1.msra.mxu0 0.0
        %5154 = vmatprep.subr.mxu0 0.0
        %5155 = vmatpush1.msra.mxu0 0.0
        %5156 = vmatprep.mubr.f32.mxu0 %v5069
        %5157 = vmatmul.mubr.f32.gmra.mrb[0].mxu0 %v4898
        %v5158 = vpop.f32.mrb[0].mxu0
        %v5159 = vadd.f32 0.0, %v5158
        %v5160 = vpop.f32.mrb[0].mxu0
        %5161 = vmatprep.mubr.f32.mxu0 %v5072
        %5162 = vmatmul.mubr.f32.gmra.mrb[0].mxu0 %v4900
        %v5163 = vpop.f32.mrb[0].mxu0
        %v5164 = vadd.f32 0.0, %v5163
        %v5165 = vpop.f32.mrb[0].mxu0
        %5166 = vmatprep.mubr.f32.mxu0 %v5075
        %5167 = vmatmul.mubr.f32.gmra.mrb[0].mxu0 %v4902
        %v5168 = vpop.f32.mrb[0].mxu0
        %v5169 = vadd.f32 0.0, %v5168
        %v5170 = vpop.f32.mrb[0].mxu0
        %5171 = vmatprep.mubr.f32.mxu0 %v5078
        %5172 = vmatmul.mubr.f32.gmra.mrb[0].mxu0 %v4904
        %v5173 = vpop.f32.mrb[0].mxu0
        %v5174 = vadd.f32 0.0, %v5173
        %v5175 = vpop.f32.mrb[0].mxu0
        %5176 = vmatprep.mubr.f32.mxu0 %v5081
        %5177 = vmatmul.mubr.f32.gmra.mrb[0].mxu0 %v4906
        %v5178 = vpop.f32.mrb[0].mxu0
        %v5179 = vadd.f32 0.0, %v5178
        %v5180 = vpop.f32.mrb[0].mxu0
        %5181 = vmatprep.mubr.f32.mxu0 %v5084
        %5182 = vmatmul.mubr.f32.gmra.mrb[0].mxu0 %v4908
        %v5183 = vpop.f32.mrb[0].mxu0
        %v5184 = vadd.f32 0.0, %v5183
        %v5185 = vpop.f32.mrb[0].mxu0
        %5186 = vmatprep.mubr.f32.mxu0 %v5087
        %5187 = vmatmul.mubr.f32.gmra.mrb[0].mxu0 %v4910
        %v5188 = vpop.f32.mrb[0].mxu0
        %v5189 = vadd.f32 0.0, %v5188
        %v5190 = vpop.f32.mrb[0].mxu0
        %5191 = vmatprep.mubr.f32.mxu0 %v5090
        %5192 = vmatmul.mubr.f32.gmra.mrb[0].mxu0 %v4912
        %v5193 = vpop.f32.mrb[0].mxu0
        %v5194 = vadd.f32 0.0, %v5193
        %v5195 = vpop.f32.mrb[0].mxu0
        %5196 = vdwg.mxu0
        %v5198 = vsel %vm5067, %v4882, 0
        %v5201 = vsel %vm5067, %v4884, 0
        %v5204 = vsel %vm5067, %v4886, 0
        %v5207 = vsel %vm5067, %v4888, 0
        %v5210 = vsel %vm5067, %v4890, 0
        %v5213 = vsel %vm5067, %v4892, 0
        %v5216 = vsel %vm5067, %v4894, 0
        %v5219 = vsel %vm5067, %v4896, 0
        %5221 = vmatprep.subr.mxu0 0.0
        %5222 = vmatpush1.msra.mxu0 %v4947
        %5223 = vmatprep.subr.mxu0 0.0
        %5224 = vmatpush1.msra.mxu0 %v4948
        %5225 = vmatprep.subr.mxu0 0.0
        %5226 = vmatpush1.msra.mxu0 %v4949
        %5227 = vmatprep.subr.mxu0 0.0
        %5228 = vmatpush1.msra.mxu0 %v4950
        %5229 = vmatprep.subr.mxu0 0.0
        %5230 = vmatpush1.msra.mxu0 %v4951
        %5231 = vmatprep.subr.mxu0 0.0
        %5232 = vmatpush1.msra.mxu0 %v4952
        %5233 = vmatprep.subr.mxu0 0.0
        %5234 = vmatpush1.msra.mxu0 %v4953
        %5235 = vmatprep.subr.mxu0 0.0
        %5236 = vmatpush1.msra.mxu0 %v4954
        %5237 = vmatprep.subr.mxu0 0.0
        %5238 = vmatpush1.msra.mxu0 %v4955
        %5239 = vmatprep.subr.mxu0 0.0
        %5240 = vmatpush1.msra.mxu0 %v4956
        %5241 = vmatprep.subr.mxu0 0.0
        %5242 = vmatpush1.msra.mxu0 %v4957
        %5243 = vmatprep.subr.mxu0 0.0
        %5244 = vmatpush1.msra.mxu0 %v4958
        %5245 = vmatprep.subr.mxu0 0.0
        %5246 = vmatpush1.msra.mxu0 %v4959
        %5247 = vmatprep.subr.mxu0 0.0
        %5248 = vmatpush1.msra.mxu0 %v4960
        %5249 = vmatprep.subr.mxu0 0.0
        %5250 = vmatpush1.msra.mxu0 %v4961
        %5251 = vmatprep.subr.mxu0 0.0
        %5252 = vmatpush1.msra.mxu0 %v4962
        %5253 = vmatprep.subr.mxu0 0.0
        %5254 = vmatpush1.msra.mxu0 %v4963
        %5255 = vmatprep.subr.mxu0 0.0
        %5256 = vmatpush1.msra.mxu0 %v4964
        %5257 = vmatprep.subr.mxu0 0.0
        %5258 = vmatpush1.msra.mxu0 %v4965
        %5259 = vmatprep.subr.mxu0 0.0
        %5260 = vmatpush1.msra.mxu0 %v4966
        %5261 = vmatprep.subr.mxu0 0.0
        %5262 = vmatpush1.msra.mxu0 %v4967
        %5263 = vmatprep.subr.mxu0 0.0
        %5264 = vmatpush1.msra.mxu0 %v4968
        %5265 = vmatprep.subr.mxu0 0.0
        %5266 = vmatpush1.msra.mxu0 %v4969
        %5267 = vmatprep.subr.mxu0 0.0
        %5268 = vmatpush1.msra.mxu0 %v4970
        %5269 = vmatprep.subr.mxu0 0.0
        %5270 = vmatpush1.msra.mxu0 0.0
        %5271 = vmatprep.subr.mxu0 0.0
        %5272 = vmatpush1.msra.mxu0 0.0
        %5273 = vmatprep.subr.mxu0 0.0
        %5274 = vmatpush1.msra.mxu0 0.0
        %5275 = vmatprep.subr.mxu0 0.0
        %5276 = vmatpush1.msra.mxu0 0.0
        %5277 = vmatprep.subr.mxu0 0.0
        %5278 = vmatpush1.msra.mxu0 0.0
        %5279 = vmatprep.subr.mxu0 0.0
        %5280 = vmatpush1.msra.mxu0 0.0
        %5281 = vmatprep.subr.mxu0 0.0
        %5282 = vmatpush1.msra.mxu0 0.0
        %5283 = vmatprep.subr.mxu0 0.0
        %5284 = vmatpush1.msra.mxu0 0.0
        %5285 = vmatprep.mubr.f32.mxu0 %v5198
        %5286 = vmatmul.mubr.f32.gmra.mrb[0].mxu0 %v4881
        %v5287 = vpop.f32.mrb[0].mxu0
        %v5288 = vadd.f32 %v5159, %v5287
        %v5289 = vpop.f32.mrb[0].mxu0
        %5290 = vmatprep.mubr.f32.mxu0 %v5201
        %5291 = vmatmul.mubr.f32.gmra.mrb[0].mxu0 %v4883
        %v5292 = vpop.f32.mrb[0].mxu0
        %v5293 = vadd.f32 %v5164, %v5292
        %v5294 = vpop.f32.mrb[0].mxu0
        %5295 = vmatprep.mubr.f32.mxu0 %v5204
        %5296 = vmatmul.mubr.f32.gmra.mrb[0].mxu0 %v4885
        %v5297 = vpop.f32.mrb[0].mxu0
        %v5298 = vadd.f32 %v5169, %v5297
        %v5299 = vpop.f32.mrb[0].mxu0
        %5300 = vmatprep.mubr.f32.mxu0 %v5207
        %5301 = vmatmul.mubr.f32.gmra.mrb[0].mxu0 %v4887
        %v5302 = vpop.f32.mrb[0].mxu0
        %v5303 = vadd.f32 %v5174, %v5302
        %v5304 = vpop.f32.mrb[0].mxu0
        %5305 = vmatprep.mubr.f32.mxu0 %v5210
        %5306 = vmatmul.mubr.f32.gmra.mrb[0].mxu0 %v4889
        %v5307 = vpop.f32.mrb[0].mxu0
        %v5308 = vadd.f32 %v5179, %v5307
        %v5309 = vpop.f32.mrb[0].mxu0
        %5310 = vmatprep.mubr.f32.mxu0 %v5213
        %5311 = vmatmul.mubr.f32.gmra.mrb[0].mxu0 %v4891
        %v5312 = vpop.f32.mrb[0].mxu0
        %v5313 = vadd.f32 %v5184, %v5312
        %v5314 = vpop.f32.mrb[0].mxu0
        %5315 = vmatprep.mubr.f32.mxu0 %v5216
        %5316 = vmatmul.mubr.f32.gmra.mrb[0].mxu0 %v4893
        %v5317 = vpop.f32.mrb[0].mxu0
        %v5318 = vadd.f32 %v5189, %v5317
        %v5319 = vpop.f32.mrb[0].mxu0
        %5320 = vmatprep.mubr.f32.mxu0 %v5219
        %5321 = vmatmul.mubr.f32.gmra.mrb[0].mxu0 %v4895
        %v5322 = vpop.f32.mrb[0].mxu0
        %v5323 = vadd.f32 %v5194, %v5322
        %v5324 = vpop.f32.mrb[0].mxu0
        %5325 = vdwg.mxu0
        %5326 = vrot.lane.b32.xlu0 %v4947, 126
        %v5327 = vpop.permute.xlu0 %5326
        %5328 = vrot.lane.b32.xlu0 %v4948, 126
        %v5329 = vpop.permute.xlu0 %5328
        %5330 = vrot.lane.b32.xlu0 %v4949, 126
        %v5331 = vpop.permute.xlu0 %5330
        %5332 = vrot.lane.b32.xlu0 %v4950, 126
        %v5333 = vpop.permute.xlu0 %5332
        %5334 = vrot.lane.b32.xlu0 %v4951, 126
        %v5335 = vpop.permute.xlu0 %5334
        %5336 = vrot.lane.b32.xlu0 %v4952, 126
        %v5337 = vpop.permute.xlu0 %5336
        %5338 = vrot.lane.b32.xlu0 %v4953, 126
        %v5339 = vpop.permute.xlu0 %5338
        %5340 = vrot.lane.b32.xlu0 %v4954, 126
        %v5341 = vpop.permute.xlu0 %5340
        %5342 = vrot.lane.b32.xlu0 %v4955, 126
        %v5343 = vpop.permute.xlu0 %5342
        %5344 = vrot.lane.b32.xlu0 %v4956, 126
        %v5345 = vpop.permute.xlu0 %5344
        %5346 = vrot.lane.b32.xlu0 %v4957, 126
        %v5347 = vpop.permute.xlu0 %5346
        %5348 = vrot.lane.b32.xlu0 %v4958, 126
        %v5349 = vpop.permute.xlu0 %5348
        %5350 = vrot.lane.b32.xlu0 %v4959, 126
        %v5351 = vpop.permute.xlu0 %5350
        %5352 = vrot.lane.b32.xlu0 %v4960, 126
        %v5353 = vpop.permute.xlu0 %5352
        %5354 = vrot.lane.b32.xlu0 %v4961, 126
        %v5355 = vpop.permute.xlu0 %5354
        %5356 = vrot.lane.b32.xlu0 %v4962, 126
        %v5357 = vpop.permute.xlu0 %5356
        %5358 = vrot.lane.b32.xlu0 %v4963, 126
        %v5359 = vpop.permute.xlu0 %5358
        %5360 = vrot.lane.b32.xlu0 %v4964, 126
        %v5361 = vpop.permute.xlu0 %5360
        %5362 = vrot.lane.b32.xlu0 %v4965, 126
        %v5363 = vpop.permute.xlu0 %5362
        %5364 = vrot.lane.b32.xlu0 %v4966, 126
        %v5365 = vpop.permute.xlu0 %5364
        %5366 = vrot.lane.b32.xlu0 %v4967, 126
        %v5367 = vpop.permute.xlu0 %5366
        %5368 = vrot.lane.b32.xlu0 %v4968, 126
        %v5369 = vpop.permute.xlu0 %5368
        %5370 = vrot.lane.b32.xlu0 %v4969, 126
        %v5371 = vpop.permute.xlu0 %5370
        %5372 = vrot.lane.b32.xlu0 %v4970, 126
        %v5373 = vpop.permute.xlu0 %5372
        %v5399 = vsel %vm5067, %v4916, 0
        %v5402 = vsel %vm5067, %v4918, 0
        %v5405 = vsel %vm5067, %v4920, 0
        %v5408 = vsel %vm5067, %v4922, 0
        %v5411 = vsel %vm5067, %v4924, 0
        %v5414 = vsel %vm5067, %v4926, 0
        %v5417 = vsel %vm5067, %v4928, 0
        %v5420 = vsel %vm5067, %v4930, 0
        %5422 = vmatprep.subr.mxu0 0.0
        %5423 = vmatpush1.msra.mxu0 %v5327
        %5424 = vmatprep.subr.mxu0 0.0
        %5425 = vmatpush1.msra.mxu0 %v5329
        %5426 = vmatprep.subr.mxu0 0.0
        %5427 = vmatpush1.msra.mxu0 %v5331
        %5428 = vmatprep.subr.mxu0 0.0
        %5429 = vmatpush1.msra.mxu0 %v5333
        %5430 = vmatprep.subr.mxu0 0.0
        %5431 = vmatpush1.msra.mxu0 %v5335
        %5432 = vmatprep.subr.mxu0 0.0
        %5433 = vmatpush1.msra.mxu0 %v5337
        %5434 = vmatprep.subr.mxu0 0.0
        %5435 = vmatpush1.msra.mxu0 %v5339
        %5436 = vmatprep.subr.mxu0 0.0
        %5437 = vmatpush1.msra.mxu0 %v5341
        %5438 = vmatprep.subr.mxu0 0.0
        %5439 = vmatpush1.msra.mxu0 %v5343
        %5440 = vmatprep.subr.mxu0 0.0
        %5441 = vmatpush1.msra.mxu0 %v5345
        %5442 = vmatprep.subr.mxu0 0.0
        %5443 = vmatpush1.msra.mxu0 %v5347
        %5444 = vmatprep.subr.mxu0 0.0
        %5445 = vmatpush1.msra.mxu0 %v5349
        %5446 = vmatprep.subr.mxu0 0.0
        %5447 = vmatpush1.msra.mxu0 %v5351
        %5448 = vmatprep.subr.mxu0 0.0
        %5449 = vmatpush1.msra.mxu0 %v5353
        %5450 = vmatprep.subr.mxu0 0.0
        %5451 = vmatpush1.msra.mxu0 %v5355
        %5452 = vmatprep.subr.mxu0 0.0
        %5453 = vmatpush1.msra.mxu0 %v5357
        %5454 = vmatprep.subr.mxu0 0.0
        %5455 = vmatpush1.msra.mxu0 %v5359
        %5456 = vmatprep.subr.mxu0 0.0
        %5457 = vmatpush1.msra.mxu0 %v5361
        %5458 = vmatprep.subr.mxu0 0.0
        %5459 = vmatpush1.msra.mxu0 %v5363
        %5460 = vmatprep.subr.mxu0 0.0
        %5461 = vmatpush1.msra.mxu0 %v5365
        %5462 = vmatprep.subr.mxu0 0.0
        %5463 = vmatpush1.msra.mxu0 %v5367
        %5464 = vmatprep.subr.mxu0 0.0
        %5465 = vmatpush1.msra.mxu0 %v5369
        %5466 = vmatprep.subr.mxu0 0.0
        %5467 = vmatpush1.msra.mxu0 %v5371
        %5468 = vmatprep.subr.mxu0 0.0
        %5469 = vmatpush1.msra.mxu0 %v5373
        %5470 = vmatprep.subr.mxu0 0.0
        %5471 = vmatpush1.msra.mxu0 0.0
        %5472 = vmatprep.subr.mxu0 0.0
        %5473 = vmatpush1.msra.mxu0 0.0
        %5474 = vmatprep.subr.mxu0 0.0
        %5475 = vmatpush1.msra.mxu0 0.0
        %5476 = vmatprep.subr.mxu0 0.0
        %5477 = vmatpush1.msra.mxu0 0.0
        %5478 = vmatprep.subr.mxu0 0.0
        %5479 = vmatpush1.msra.mxu0 0.0
        %5480 = vmatprep.subr.mxu0 0.0
        %5481 = vmatpush1.msra.mxu0 0.0
        %5482 = vmatprep.subr.mxu0 0.0
        %5483 = vmatpush1.msra.mxu0 0.0
        %5484 = vmatprep.subr.mxu0 0.0
        %5485 = vmatpush1.msra.mxu0 0.0
        %5486 = vmatprep.mubr.f32.mxu0 %v5399
        %5487 = vmatmul.mubr.f32.gmra.mrb[0].mxu0 %v4915
        %v5488 = vpop.f32.mrb[0].mxu0
        %v5489 = vadd.f32 0.0, %v5488
        %v5490 = vpop.f32.mrb[0].mxu0
        %5491 = vmatprep.mubr.f32.mxu0 %v5402
        %5492 = vmatmul.mubr.f32.gmra.mrb[0].mxu0 %v4917
        %v5493 = vpop.f32.mrb[0].mxu0
        %v5494 = vadd.f32 0.0, %v5493
        %v5495 = vpop.f32.mrb[0].mxu0
        %5496 = vmatprep.mubr.f32.mxu0 %v5405
        %5497 = vmatmul.mubr.f32.gmra.mrb[0].mxu0 %v4919
        %v5498 = vpop.f32.mrb[0].mxu0
        %v5499 = vadd.f32 0.0, %v5498
        %v5500 = vpop.f32.mrb[0].mxu0
        %5501 = vmatprep.mubr.f32.mxu0 %v5408
        %5502 = vmatmul.mubr.f32.gmra.mrb[0].mxu0 %v4921
        %v5503 = vpop.f32.mrb[0].mxu0
        %v5504 = vadd.f32 0.0, %v5503
        %v5505 = vpop.f32.mrb[0].mxu0
        %5506 = vmatprep.mubr.f32.mxu0 %v5411
        %5507 = vmatmul.mubr.f32.gmra.mrb[0].mxu0 %v4923
        %v5508 = vpop.f32.mrb[0].mxu0
        %v5509 = vadd.f32 0.0, %v5508
        %v5510 = vpop.f32.mrb[0].mxu0
        %5511 = vmatprep.mubr.f32.mxu0 %v5414
        %5512 = vmatmul.mubr.f32.gmra.mrb[0].mxu0 %v4925
        %v5513 = vpop.f32.mrb[0].mxu0
        %v5514 = vadd.f32 0.0, %v5513
        %v5515 = vpop.f32.mrb[0].mxu0
        %5516 = vmatprep.mubr.f32.mxu0 %v5417
        %5517 = vmatmul.mubr.f32.gmra.mrb[0].mxu0 %v4927
        %v5518 = vpop.f32.mrb[0].mxu0
        %v5519 = vadd.f32 0.0, %v5518
        %v5520 = vpop.f32.mrb[0].mxu0
        %5521 = vmatprep.mubr.f32.mxu0 %v5420
        %5522 = vmatmul.mubr.f32.gmra.mrb[0].mxu0 %v4929
        %v5523 = vpop.f32.mrb[0].mxu0
        %v5524 = vadd.f32 0.0, %v5523
        %v5525 = vpop.f32.mrb[0].mxu0
        %5526 = vdwg.mxu0
        %v5527 = vadd.f32 %v5288, %v5489
        %v5528 = vadd.f32 %v5293, %v5494
        %v5529 = vadd.f32 %v5298, %v5499
        %v5530 = vadd.f32 %v5303, %v5504
        %v5531 = vadd.f32 %v5308, %v5509
        %v5532 = vadd.f32 %v5313, %v5514
        %v5533 = vadd.f32 %v5318, %v5519
        %v5534 = vadd.f32 %v5323, %v5524
        %5536 = vset.pattern.permute.xlu0 0
        %5537 = vperm.xlu0 %5536, %v4931
        %v5538 = vpop.permute.xlu0 %5537
        %5541 = vset.pattern.permute.xlu0 0
        %5542 = vperm.xlu0 %5541, %v4932
        %v5543 = vpop.permute.xlu0 %5542
        %5546 = vset.pattern.permute.xlu0 0
        %5547 = vperm.xlu0 %5546, %v4933
        %v5548 = vpop.permute.xlu0 %5547
        %5551 = vset.pattern.permute.xlu0 0
        %5552 = vperm.xlu0 %5551, %v4934
        %v5553 = vpop.permute.xlu0 %5552
        %5556 = vset.pattern.permute.xlu0 0
        %5557 = vperm.xlu0 %5556, %v4935
        %v5558 = vpop.permute.xlu0 %5557
        %5561 = vset.pattern.permute.xlu0 0
        %5562 = vperm.xlu0 %5561, %v4936
        %v5563 = vpop.permute.xlu0 %5562
        %5566 = vset.pattern.permute.xlu0 0
        %5567 = vperm.xlu0 %5566, %v4937
        %v5568 = vpop.permute.xlu0 %5567
        %5571 = vset.pattern.permute.xlu0 0
        %5572 = vperm.xlu0 %5571, %v4938
        %v5573 = vpop.permute.xlu0 %5572
        %v5575 = vadd.f32 %v5527, %v5538
        %v5576 = vadd.f32 %v5528, %v5543
        %v5577 = vadd.f32 %v5529, %v5548
        %v5578 = vadd.f32 %v5530, %v5553
        %v5579 = vadd.f32 %v5531, %v5558
        %v5580 = vadd.f32 %v5532, %v5563
        %v5581 = vadd.f32 %v5533, %v5568
        %v5582 = vadd.f32 %v5534, %v5573
        %s5583 = smul.u32 %s4940, 2
        %s5584 = sadd.s32 %s5583, 1
        %s5585 = smul.u32 %s5584, 64
        %s5586 = scalar_lea.vmem [#allocation6], %s5585
        %v5587 = vld [vmem:[%s5586] sm:$0xff]
        %v5588 = vld [vmem:[%s5586 + $0x8] sm:$0xff]
        %v5589 = vld [vmem:[%s5586 + $0x10] sm:$0xff]
        %v5590 = vld [vmem:[%s5586 + $0x18] sm:$0xff]
        %v5591 = vld [vmem:[%s5586 + $0x20] sm:$0xff]
        %v5592 = vld [vmem:[%s5586 + $0x28] sm:$0xff]
        %v5593 = vld [vmem:[%s5586 + $0x30] sm:$0xff]
        %v5594 = vld [vmem:[%s5586 + $0x38] sm:$0xff]
        %v5595 = vld [vmem:[%s5586 + $0x40] sm:$0xff]
        %v5596 = vld [vmem:[%s5586 + $0x48] sm:$0xff]
        %v5597 = vld [vmem:[%s5586 + $0x50] sm:$0xff]
        %v5598 = vld [vmem:[%s5586 + $0x58] sm:$0xff]
        %v5599 = vld [vmem:[%s5586 + $0x60] sm:$0xff]
        %v5600 = vld [vmem:[%s5586 + $0x68] sm:$0xff]
        %v5601 = vld [vmem:[%s5586 + $0x70] sm:$0xff]
        %v5602 = vld [vmem:[%s5586 + $0x78] sm:$0xff]
        %v5603 = vld [vmem:[%s5586 + $0x80] sm:$0xff]
        %v5604 = vld [vmem:[%s5586 + $0x88] sm:$0xff]
        %v5605 = vld [vmem:[%s5586 + $0x90] sm:$0xff]
        %v5606 = vld [vmem:[%s5586 + $0x98] sm:$0xff]
        %v5607 = vld [vmem:[%s5586 + $0xa0] sm:$0xff]
        %v5608 = vld [vmem:[%s5586 + $0xa8] sm:$0xff]
        %v5609 = vld [vmem:[%s5586 + $0xb0] sm:$0xff]
        %v5610 = vld [vmem:[%s5586 + $0xb8] sm:$0xff]
        %5635 = vrot.lane.b32.xlu0 %v5587, 127
        %v5636 = vpop.permute.xlu0 %5635
        %5637 = vrot.lane.b32.xlu0 %v5588, 127
        %v5638 = vpop.permute.xlu0 %5637
        %5639 = vrot.lane.b32.xlu0 %v5589, 127
        %v5640 = vpop.permute.xlu0 %5639
        %5641 = vrot.lane.b32.xlu0 %v5590, 127
        %v5642 = vpop.permute.xlu0 %5641
        %5643 = vrot.lane.b32.xlu0 %v5591, 127
        %v5644 = vpop.permute.xlu0 %5643
        %5645 = vrot.lane.b32.xlu0 %v5592, 127
        %v5646 = vpop.permute.xlu0 %5645
        %5647 = vrot.lane.b32.xlu0 %v5593, 127
        %v5648 = vpop.permute.xlu0 %5647
        %5649 = vrot.lane.b32.xlu0 %v5594, 127
        %v5650 = vpop.permute.xlu0 %5649
        %5651 = vrot.lane.b32.xlu0 %v5595, 127
        %v5652 = vpop.permute.xlu0 %5651
        %5653 = vrot.lane.b32.xlu0 %v5596, 127
        %v5654 = vpop.permute.xlu0 %5653
        %5655 = vrot.lane.b32.xlu0 %v5597, 127
        %v5656 = vpop.permute.xlu0 %5655
        %5657 = vrot.lane.b32.xlu0 %v5598, 127
        %v5658 = vpop.permute.xlu0 %5657
        %5659 = vrot.lane.b32.xlu0 %v5599, 127
        %v5660 = vpop.permute.xlu0 %5659
        %5661 = vrot.lane.b32.xlu0 %v5600, 127
        %v5662 = vpop.permute.xlu0 %5661
        %5663 = vrot.lane.b32.xlu0 %v5601, 127
        %v5664 = vpop.permute.xlu0 %5663
        %5665 = vrot.lane.b32.xlu0 %v5602, 127
        %v5666 = vpop.permute.xlu0 %5665
        %5667 = vrot.lane.b32.xlu0 %v5603, 127
        %v5668 = vpop.permute.xlu0 %5667
        %5669 = vrot.lane.b32.xlu0 %v5604, 127
        %v5670 = vpop.permute.xlu0 %5669
        %5671 = vrot.lane.b32.xlu0 %v5605, 127
        %v5672 = vpop.permute.xlu0 %5671
        %5673 = vrot.lane.b32.xlu0 %v5606, 127
        %v5674 = vpop.permute.xlu0 %5673
        %5675 = vrot.lane.b32.xlu0 %v5607, 127
        %v5676 = vpop.permute.xlu0 %5675
        %5677 = vrot.lane.b32.xlu0 %v5608, 127
        %v5678 = vpop.permute.xlu0 %5677
        %5679 = vrot.lane.b32.xlu0 %v5609, 127
        %v5680 = vpop.permute.xlu0 %5679
        %5681 = vrot.lane.b32.xlu0 %v5610, 127
        %v5682 = vpop.permute.xlu0 %5681
        %5707 = vmatprep.subr.mxu0 0.0
        %5708 = vmatpush1.msra.mxu0 %v5636
        %5709 = vmatprep.subr.mxu0 0.0
        %5710 = vmatpush1.msra.mxu0 %v5638
        %5711 = vmatprep.subr.mxu0 0.0
        %5712 = vmatpush1.msra.mxu0 %v5640
        %5713 = vmatprep.subr.mxu0 0.0
        %5714 = vmatpush1.msra.mxu0 %v5642
        %5715 = vmatprep.subr.mxu0 0.0
        %5716 = vmatpush1.msra.mxu0 %v5644
        %5717 = vmatprep.subr.mxu0 0.0
        %5718 = vmatpush1.msra.mxu0 %v5646
        %5719 = vmatprep.subr.mxu0 0.0
        %5720 = vmatpush1.msra.mxu0 %v5648
        %5721 = vmatprep.subr.mxu0 0.0
        %5722 = vmatpush1.msra.mxu0 %v5650
        %5723 = vmatprep.subr.mxu0 0.0
        %5724 = vmatpush1.msra.mxu0 %v5652
        %5725 = vmatprep.subr.mxu0 0.0
        %5726 = vmatpush1.msra.mxu0 %v5654
        %5727 = vmatprep.subr.mxu0 0.0
        %5728 = vmatpush1.msra.mxu0 %v5656
        %5729 = vmatprep.subr.mxu0 0.0
        %5730 = vmatpush1.msra.mxu0 %v5658
        %5731 = vmatprep.subr.mxu0 0.0
        %5732 = vmatpush1.msra.mxu0 %v5660
        %5733 = vmatprep.subr.mxu0 0.0
        %5734 = vmatpush1.msra.mxu0 %v5662
        %5735 = vmatprep.subr.mxu0 0.0
        %5736 = vmatpush1.msra.mxu0 %v5664
        %5737 = vmatprep.subr.mxu0 0.0
        %5738 = vmatpush1.msra.mxu0 %v5666
        %5739 = vmatprep.subr.mxu0 0.0
        %5740 = vmatpush1.msra.mxu0 %v5668
        %5741 = vmatprep.subr.mxu0 0.0
        %5742 = vmatpush1.msra.mxu0 %v5670
        %5743 = vmatprep.subr.mxu0 0.0
        %5744 = vmatpush1.msra.mxu0 %v5672
        %5745 = vmatprep.subr.mxu0 0.0
        %5746 = vmatpush1.msra.mxu0 %v5674
        %5747 = vmatprep.subr.mxu0 0.0
        %5748 = vmatpush1.msra.mxu0 %v5676
        %5749 = vmatprep.subr.mxu0 0.0
        %5750 = vmatpush1.msra.mxu0 %v5678
        %5751 = vmatprep.subr.mxu0 0.0
        %5752 = vmatpush1.msra.mxu0 %v5680
        %5753 = vmatprep.subr.mxu0 0.0
        %5754 = vmatpush1.msra.mxu0 %v5682
        %5755 = vmatprep.subr.mxu0 0.0
        %5756 = vmatpush1.msra.mxu0 0.0
        %5757 = vmatprep.subr.mxu0 0.0
        %5758 = vmatpush1.msra.mxu0 0.0
        %5759 = vmatprep.subr.mxu0 0.0
        %5760 = vmatpush1.msra.mxu0 0.0
        %5761 = vmatprep.subr.mxu0 0.0
        %5762 = vmatpush1.msra.mxu0 0.0
        %5763 = vmatprep.subr.mxu0 0.0
        %5764 = vmatpush1.msra.mxu0 0.0
        %5765 = vmatprep.subr.mxu0 0.0
        %5766 = vmatpush1.msra.mxu0 0.0
        %5767 = vmatprep.subr.mxu0 0.0
        %5768 = vmatpush1.msra.mxu0 0.0
        %5769 = vmatprep.subr.mxu0 0.0
        %5770 = vmatpush1.msra.mxu0 0.0
        %5771 = vmatprep.mubr.f32.mxu0 %v5069
        %5772 = vmatmul.mubr.f32.gmra.mrb[0].mxu0 %v4898
        %v5773 = vpop.f32.mrb[0].mxu0
        %v5774 = vadd.f32 0.0, %v5773
        %v5775 = vpop.f32.mrb[0].mxu0
        %5776 = vmatprep.mubr.f32.mxu0 %v5072
        %5777 = vmatmul.mubr.f32.gmra.mrb[0].mxu0 %v4900
        %v5778 = vpop.f32.mrb[0].mxu0
        %v5779 = vadd.f32 0.0, %v5778
        %v5780 = vpop.f32.mrb[0].mxu0
        %5781 = vmatprep.mubr.f32.mxu0 %v5075
        %5782 = vmatmul.mubr.f32.gmra.mrb[0].mxu0 %v4902
        %v5783 = vpop.f32.mrb[0].mxu0
        %v5784 = vadd.f32 0.0, %v5783
        %v5785 = vpop.f32.mrb[0].mxu0
        %5786 = vmatprep.mubr.f32.mxu0 %v5078
        %5787 = vmatmul.mubr.f32.gmra.mrb[0].mxu0 %v4904
        %v5788 = vpop.f32.mrb[0].mxu0
        %v5789 = vadd.f32 0.0, %v5788
        %v5790 = vpop.f32.mrb[0].mxu0
        %5791 = vmatprep.mubr.f32.mxu0 %v5081
        %5792 = vmatmul.mubr.f32.gmra.mrb[0].mxu0 %v4906
        %v5793 = vpop.f32.mrb[0].mxu0
        %v5794 = vadd.f32 0.0, %v5793
        %v5795 = vpop.f32.mrb[0].mxu0
        %5796 = vmatprep.mubr.f32.mxu0 %v5084
        %5797 = vmatmul.mubr.f32.gmra.mrb[0].mxu0 %v4908
        %v5798 = vpop.f32.mrb[0].mxu0
        %v5799 = vadd.f32 0.0, %v5798
        %v5800 = vpop.f32.mrb[0].mxu0
        %5801 = vmatprep.mubr.f32.mxu0 %v5087
        %5802 = vmatmul.mubr.f32.gmra.mrb[0].mxu0 %v4910
        %v5803 = vpop.f32.mrb[0].mxu0
        %v5804 = vadd.f32 0.0, %v5803
        %v5805 = vpop.f32.mrb[0].mxu0
        %5806 = vmatprep.mubr.f32.mxu0 %v5090
        %5807 = vmatmul.mubr.f32.gmra.mrb[0].mxu0 %v4912
        %v5808 = vpop.f32.mrb[0].mxu0
        %v5809 = vadd.f32 0.0, %v5808
        %v5810 = vpop.f32.mrb[0].mxu0
        %5811 = vdwg.mxu0
        %5812 = vmatprep.subr.mxu0 0.0
        %5813 = vmatpush1.msra.mxu0 %v5587
        %5814 = vmatprep.subr.mxu0 0.0
        %5815 = vmatpush1.msra.mxu0 %v5588
        %5816 = vmatprep.subr.mxu0 0.0
        %5817 = vmatpush1.msra.mxu0 %v5589
        %5818 = vmatprep.subr.mxu0 0.0
        %5819 = vmatpush1.msra.mxu0 %v5590
        %5820 = vmatprep.subr.mxu0 0.0
        %5821 = vmatpush1.msra.mxu0 %v5591
        %5822 = vmatprep.subr.mxu0 0.0
        %5823 = vmatpush1.msra.mxu0 %v5592
        %5824 = vmatprep.subr.mxu0 0.0
        %5825 = vmatpush1.msra.mxu0 %v5593
        %5826 = vmatprep.subr.mxu0 0.0
        %5827 = vmatpush1.msra.mxu0 %v5594
        %5828 = vmatprep.subr.mxu0 0.0
        %5829 = vmatpush1.msra.mxu0 %v5595
        %5830 = vmatprep.subr.mxu0 0.0
        %5831 = vmatpush1.msra.mxu0 %v5596
        %5832 = vmatprep.subr.mxu0 0.0
        %5833 = vmatpush1.msra.mxu0 %v5597
        %5834 = vmatprep.subr.mxu0 0.0
        %5835 = vmatpush1.msra.mxu0 %v5598
        %5836 = vmatprep.subr.mxu0 0.0
        %5837 = vmatpush1.msra.mxu0 %v5599
        %5838 = vmatprep.subr.mxu0 0.0
        %5839 = vmatpush1.msra.mxu0 %v5600
        %5840 = vmatprep.subr.mxu0 0.0
        %5841 = vmatpush1.msra.mxu0 %v5601
        %5842 = vmatprep.subr.mxu0 0.0
        %5843 = vmatpush1.msra.mxu0 %v5602
        %5844 = vmatprep.subr.mxu0 0.0
        %5845 = vmatpush1.msra.mxu0 %v5603
        %5846 = vmatprep.subr.mxu0 0.0
        %5847 = vmatpush1.msra.mxu0 %v5604
        %5848 = vmatprep.subr.mxu0 0.0
        %5849 = vmatpush1.msra.mxu0 %v5605
        %5850 = vmatprep.subr.mxu0 0.0
        %5851 = vmatpush1.msra.mxu0 %v5606
        %5852 = vmatprep.subr.mxu0 0.0
        %5853 = vmatpush1.msra.mxu0 %v5607
        %5854 = vmatprep.subr.mxu0 0.0
        %5855 = vmatpush1.msra.mxu0 %v5608
        %5856 = vmatprep.subr.mxu0 0.0
        %5857 = vmatpush1.msra.mxu0 %v5609
        %5858 = vmatprep.subr.mxu0 0.0
        %5859 = vmatpush1.msra.mxu0 %v5610
        %5860 = vmatprep.subr.mxu0 0.0
        %5861 = vmatpush1.msra.mxu0 0.0
        %5862 = vmatprep.subr.mxu0 0.0
        %5863 = vmatpush1.msra.mxu0 0.0
        %5864 = vmatprep.subr.mxu0 0.0
        %5865 = vmatpush1.msra.mxu0 0.0
        %5866 = vmatprep.subr.mxu0 0.0
        %5867 = vmatpush1.msra.mxu0 0.0
        %5868 = vmatprep.subr.mxu0 0.0
        %5869 = vmatpush1.msra.mxu0 0.0
        %5870 = vmatprep.subr.mxu0 0.0
        %5871 = vmatpush1.msra.mxu0 0.0
        %5872 = vmatprep.subr.mxu0 0.0
        %5873 = vmatpush1.msra.mxu0 0.0
        %5874 = vmatprep.subr.mxu0 0.0
        %5875 = vmatpush1.msra.mxu0 0.0
        %5876 = vmatprep.mubr.f32.mxu0 %v5198
        %5877 = vmatmul.mubr.f32.gmra.mrb[0].mxu0 %v4881
        %v5878 = vpop.f32.mrb[0].mxu0
        %v5879 = vadd.f32 %v5774, %v5878
        %v5880 = vpop.f32.mrb[0].mxu0
        %5881 = vmatprep.mubr.f32.mxu0 %v5201
        %5882 = vmatmul.mubr.f32.gmra.mrb[0].mxu0 %v4883
        %v5883 = vpop.f32.mrb[0].mxu0
        %v5884 = vadd.f32 %v5779, %v5883
        %v5885 = vpop.f32.mrb[0].mxu0
        %5886 = vmatprep.mubr.f32.mxu0 %v5204
        %5887 = vmatmul.mubr.f32.gmra.mrb[0].mxu0 %v4885
        %v5888 = vpop.f32.mrb[0].mxu0
        %v5889 = vadd.f32 %v5784, %v5888
        %v5890 = vpop.f32.mrb[0].mxu0
        %5891 = vmatprep.mubr.f32.mxu0 %v5207
        %5892 = vmatmul.mubr.f32.gmra.mrb[0].mxu0 %v4887
        %v5893 = vpop.f32.mrb[0].mxu0
        %v5894 = vadd.f32 %v5789, %v5893
        %v5895 = vpop.f32.mrb[0].mxu0
        %5896 = vmatprep.mubr.f32.mxu0 %v5210
        %5897 = vmatmul.mubr.f32.gmra.mrb[0].mxu0 %v4889
        %v5898 = vpop.f32.mrb[0].mxu0
        %v5899 = vadd.f32 %v5794, %v5898
        %v5900 = vpop.f32.mrb[0].mxu0
        %5901 = vmatprep.mubr.f32.mxu0 %v5213
        %5902 = vmatmul.mubr.f32.gmra.mrb[0].mxu0 %v4891
        %v5903 = vpop.f32.mrb[0].mxu0
        %v5904 = vadd.f32 %v5799, %v5903
        %v5905 = vpop.f32.mrb[0].mxu0
        %5906 = vmatprep.mubr.f32.mxu0 %v5216
        %5907 = vmatmul.mubr.f32.gmra.mrb[0].mxu0 %v4893
        %v5908 = vpop.f32.mrb[0].mxu0
        %v5909 = vadd.f32 %v5804, %v5908
        %v5910 = vpop.f32.mrb[0].mxu0
        %5911 = vmatprep.mubr.f32.mxu0 %v5219
        %5912 = vmatmul.mubr.f32.gmra.mrb[0].mxu0 %v4895
        %v5913 = vpop.f32.mrb[0].mxu0
        %v5914 = vadd.f32 %v5809, %v5913
        %v5915 = vpop.f32.mrb[0].mxu0
        %5916 = vdwg.mxu0
        %5917 = vrot.lane.b32.xlu0 %v5587, 126
        %v5918 = vpop.permute.xlu0 %5917
        %5919 = vrot.lane.b32.xlu0 %v5588, 126
        %v5920 = vpop.permute.xlu0 %5919
        %5921 = vrot.lane.b32.xlu0 %v5589, 126
        %v5922 = vpop.permute.xlu0 %5921
        %5923 = vrot.lane.b32.xlu0 %v5590, 126
        %v5924 = vpop.permute.xlu0 %5923
        %5925 = vrot.lane.b32.xlu0 %v5591, 126
        %v5926 = vpop.permute.xlu0 %5925
        %5927 = vrot.lane.b32.xlu0 %v5592, 126
        %v5928 = vpop.permute.xlu0 %5927
        %5929 = vrot.lane.b32.xlu0 %v5593, 126
        %v5930 = vpop.permute.xlu0 %5929
        %5931 = vrot.lane.b32.xlu0 %v5594, 126
        %v5932 = vpop.permute.xlu0 %5931
        %5933 = vrot.lane.b32.xlu0 %v5595, 126
        %v5934 = vpop.permute.xlu0 %5933
        %5935 = vrot.lane.b32.xlu0 %v5596, 126
        %v5936 = vpop.permute.xlu0 %5935
        %5937 = vrot.lane.b32.xlu0 %v5597, 126
        %v5938 = vpop.permute.xlu0 %5937
        %5939 = vrot.lane.b32.xlu0 %v5598, 126
        %v5940 = vpop.permute.xlu0 %5939
        %5941 = vrot.lane.b32.xlu0 %v5599, 126
        %v5942 = vpop.permute.xlu0 %5941
        %5943 = vrot.lane.b32.xlu0 %v5600, 126
        %v5944 = vpop.permute.xlu0 %5943
        %5945 = vrot.lane.b32.xlu0 %v5601, 126
        %v5946 = vpop.permute.xlu0 %5945
        %5947 = vrot.lane.b32.xlu0 %v5602, 126
        %v5948 = vpop.permute.xlu0 %5947
        %5949 = vrot.lane.b32.xlu0 %v5603, 126
        %v5950 = vpop.permute.xlu0 %5949
        %5951 = vrot.lane.b32.xlu0 %v5604, 126
        %v5952 = vpop.permute.xlu0 %5951
        %5953 = vrot.lane.b32.xlu0 %v5605, 126
        %v5954 = vpop.permute.xlu0 %5953
        %5955 = vrot.lane.b32.xlu0 %v5606, 126
        %v5956 = vpop.permute.xlu0 %5955
        %5957 = vrot.lane.b32.xlu0 %v5607, 126
        %v5958 = vpop.permute.xlu0 %5957
        %5959 = vrot.lane.b32.xlu0 %v5608, 126
        %v5960 = vpop.permute.xlu0 %5959
        %5961 = vrot.lane.b32.xlu0 %v5609, 126
        %v5962 = vpop.permute.xlu0 %5961
        %5963 = vrot.lane.b32.xlu0 %v5610, 126
        %v5964 = vpop.permute.xlu0 %5963
        %5989 = vmatprep.subr.mxu0 0.0
        %5990 = vmatpush1.msra.mxu0 %v5918
        %5991 = vmatprep.subr.mxu0 0.0
        %5992 = vmatpush1.msra.mxu0 %v5920
        %5993 = vmatprep.subr.mxu0 0.0
        %5994 = vmatpush1.msra.mxu0 %v5922
        %5995 = vmatprep.subr.mxu0 0.0
        %5996 = vmatpush1.msra.mxu0 %v5924
        %5997 = vmatprep.subr.mxu0 0.0
        %5998 = vmatpush1.msra.mxu0 %v5926
        %5999 = vmatprep.subr.mxu0 0.0
        %6000 = vmatpush1.msra.mxu0 %v5928
        %6001 = vmatprep.subr.mxu0 0.0
        %6002 = vmatpush1.msra.mxu0 %v5930
        %6003 = vmatprep.subr.mxu0 0.0
        %6004 = vmatpush1.msra.mxu0 %v5932
        %6005 = vmatprep.subr.mxu0 0.0
        %6006 = vmatpush1.msra.mxu0 %v5934
        %6007 = vmatprep.subr.mxu0 0.0
        %6008 = vmatpush1.msra.mxu0 %v5936
        %6009 = vmatprep.subr.mxu0 0.0
        %6010 = vmatpush1.msra.mxu0 %v5938
        %6011 = vmatprep.subr.mxu0 0.0
        %6012 = vmatpush1.msra.mxu0 %v5940
        %6013 = vmatprep.subr.mxu0 0.0
        %6014 = vmatpush1.msra.mxu0 %v5942
        %6015 = vmatprep.subr.mxu0 0.0
        %6016 = vmatpush1.msra.mxu0 %v5944
        %6017 = vmatprep.subr.mxu0 0.0
        %6018 = vmatpush1.msra.mxu0 %v5946
        %6019 = vmatprep.subr.mxu0 0.0
        %6020 = vmatpush1.msra.mxu0 %v5948
        %6021 = vmatprep.subr.mxu0 0.0
        %6022 = vmatpush1.msra.mxu0 %v5950
        %6023 = vmatprep.subr.mxu0 0.0
        %6024 = vmatpush1.msra.mxu0 %v5952
        %6025 = vmatprep.subr.mxu0 0.0
        %6026 = vmatpush1.msra.mxu0 %v5954
        %6027 = vmatprep.subr.mxu0 0.0
        %6028 = vmatpush1.msra.mxu0 %v5956
        %6029 = vmatprep.subr.mxu0 0.0
        %6030 = vmatpush1.msra.mxu0 %v5958
        %6031 = vmatprep.subr.mxu0 0.0
        %6032 = vmatpush1.msra.mxu0 %v5960
        %6033 = vmatprep.subr.mxu0 0.0
        %6034 = vmatpush1.msra.mxu0 %v5962
        %6035 = vmatprep.subr.mxu0 0.0
        %6036 = vmatpush1.msra.mxu0 %v5964
        %6037 = vmatprep.subr.mxu0 0.0
        %6038 = vmatpush1.msra.mxu0 0.0
        %6039 = vmatprep.subr.mxu0 0.0
        %6040 = vmatpush1.msra.mxu0 0.0
        %6041 = vmatprep.subr.mxu0 0.0
        %6042 = vmatpush1.msra.mxu0 0.0
        %6043 = vmatprep.subr.mxu0 0.0
        %6044 = vmatpush1.msra.mxu0 0.0
        %6045 = vmatprep.subr.mxu0 0.0
        %6046 = vmatpush1.msra.mxu0 0.0
        %6047 = vmatprep.subr.mxu0 0.0
        %6048 = vmatpush1.msra.mxu0 0.0
        %6049 = vmatprep.subr.mxu0 0.0
        %6050 = vmatpush1.msra.mxu0 0.0
        %6051 = vmatprep.subr.mxu0 0.0
        %6052 = vmatpush1.msra.mxu0 0.0
        %6053 = vmatprep.mubr.f32.mxu0 %v5399
        %6054 = vmatmul.mubr.f32.gmra.mrb[0].mxu0 %v4915
        %v6055 = vpop.f32.mrb[0].mxu0
        %v6056 = vadd.f32 0.0, %v6055
        %v6057 = vpop.f32.mrb[0].mxu0
        %6058 = vmatprep.mubr.f32.mxu0 %v5402
        %6059 = vmatmul.mubr.f32.gmra.mrb[0].mxu0 %v4917
        %v6060 = vpop.f32.mrb[0].mxu0
        %v6061 = vadd.f32 0.0, %v6060
        %v6062 = vpop.f32.mrb[0].mxu0
        %6063 = vmatprep.mubr.f32.mxu0 %v5405
        %6064 = vmatmul.mubr.f32.gmra.mrb[0].mxu0 %v4919
        %v6065 = vpop.f32.mrb[0].mxu0
        %v6066 = vadd.f32 0.0, %v6065
        %v6067 = vpop.f32.mrb[0].mxu0
        %6068 = vmatprep.mubr.f32.mxu0 %v5408
        %6069 = vmatmul.mubr.f32.gmra.mrb[0].mxu0 %v4921
        %v6070 = vpop.f32.mrb[0].mxu0
        %v6071 = vadd.f32 0.0, %v6070
        %v6072 = vpop.f32.mrb[0].mxu0
        %6073 = vmatprep.mubr.f32.mxu0 %v5411
        %6074 = vmatmul.mubr.f32.gmra.mrb[0].mxu0 %v4923
        %v6075 = vpop.f32.mrb[0].mxu0
        %v6076 = vadd.f32 0.0, %v6075
        %v6077 = vpop.f32.mrb[0].mxu0
        %6078 = vmatprep.mubr.f32.mxu0 %v5414
        %6079 = vmatmul.mubr.f32.gmra.mrb[0].mxu0 %v4925
        %v6080 = vpop.f32.mrb[0].mxu0
        %v6081 = vadd.f32 0.0, %v6080
        %v6082 = vpop.f32.mrb[0].mxu0
        %6083 = vmatprep.mubr.f32.mxu0 %v5417
        %6084 = vmatmul.mubr.f32.gmra.mrb[0].mxu0 %v4927
        %v6085 = vpop.f32.mrb[0].mxu0
        %v6086 = vadd.f32 0.0, %v6085
        %v6087 = vpop.f32.mrb[0].mxu0
        %6088 = vmatprep.mubr.f32.mxu0 %v5420
        %6089 = vmatmul.mubr.f32.gmra.mrb[0].mxu0 %v4929
        %v6090 = vpop.f32.mrb[0].mxu0
        %v6091 = vadd.f32 0.0, %v6090
        %v6092 = vpop.f32.mrb[0].mxu0
        %6093 = vdwg.mxu0
        %v6094 = vadd.f32 %v5879, %v6056
        %v6095 = vadd.f32 %v5884, %v6061
        %v6096 = vadd.f32 %v5889, %v6066
        %v6097 = vadd.f32 %v5894, %v6071
        %v6098 = vadd.f32 %v5899, %v6076
        %v6099 = vadd.f32 %v5904, %v6081
        %v6100 = vadd.f32 %v5909, %v6086
        %v6101 = vadd.f32 %v5914, %v6091
        %v6102 = vadd.f32 %v6094, %v5538
        %v6103 = vadd.f32 %v6095, %v5543
        %v6104 = vadd.f32 %v6096, %v5548
        %v6105 = vadd.f32 %v6097, %v5553
        %v6106 = vadd.f32 %v6098, %v5558
        %v6107 = vadd.f32 %v6099, %v5563
        %v6108 = vadd.f32 %v6100, %v5568
        %v6109 = vadd.f32 %v6101, %v5573
        %v6110 = vmax.f32 %v5575, %v6102
        %v6111 = vmax.f32 %v5576, %v6103
        %v6112 = vmax.f32 %v5577, %v6104
        %v6113 = vmax.f32 %v5578, %v6105
        %v6114 = vmax.f32 %v5579, %v6106
        %v6115 = vmax.f32 %v5580, %v6107
        %v6116 = vmax.f32 %v5581, %v6108
        %v6117 = vmax.f32 %v5582, %v6109
        %vm6118 = vcmask 31744
        %v6120 = vsel %vm6118, %v6110, 0
        %v6123 = vsel %vm6118, %v6111, 0
        %v6126 = vsel %vm6118, %v6112, 0
        %v6129 = vsel %vm6118, %v6113, 0
        %v6132 = vsel %vm6118, %v6114, 0
        %v6135 = vsel %vm6118, %v6115, 0
        %v6138 = vsel %vm6118, %v6116, 0
        %v6141 = vsel %vm6118, %v6117, 0
        %vm6143 = vcmask 1043456
        %v6145 = vsel %vm6143, %v875, 0
        %6147 = vmatprep.subr.mxu0 0.0
        %6148 = vmatpush1.msra.mxu0 %v6145
        %6149 = vmatprep.subr.mxu0 0.0
        %6150 = vmatpush1.msra.mxu0 0.0
        %6151 = vmatprep.subr.mxu0 0.0
        %6152 = vmatpush1.msra.mxu0 0.0
        %6153 = vmatprep.subr.mxu0 0.0
        %6154 = vmatpush1.msra.mxu0 0.0
        %6155 = vmatprep.subr.mxu0 0.0
        %6156 = vmatpush1.msra.mxu0 0.0
        %6157 = vmatprep.subr.mxu0 0.0
        %6158 = vmatpush1.msra.mxu0 0.0
        %6159 = vmatprep.subr.mxu0 0.0
        %6160 = vmatpush1.msra.mxu0 0.0
        %6161 = vmatprep.subr.mxu0 0.0
        %6162 = vmatpush1.msra.mxu0 0.0
        %6163 = vmatprep.subr.mxu0 0.0
        %6164 = vmatpush1.msra.mxu0 0.0
        %6165 = vmatprep.subr.mxu0 0.0
        %6166 = vmatpush1.msra.mxu0 0.0
        %6167 = vmatprep.subr.mxu0 0.0
        %6168 = vmatpush1.msra.mxu0 0.0
        %6169 = vmatprep.subr.mxu0 0.0
        %6170 = vmatpush1.msra.mxu0 0.0
        %6171 = vmatprep.subr.mxu0 0.0
        %6172 = vmatpush1.msra.mxu0 0.0
        %6173 = vmatprep.subr.mxu0 0.0
        %6174 = vmatpush1.msra.mxu0 0.0
        %6175 = vmatprep.subr.mxu0 0.0
        %6176 = vmatpush1.msra.mxu0 0.0
        %6177 = vmatprep.subr.mxu0 0.0
        %6178 = vmatpush1.msra.mxu0 0.0
        %6179 = vmatprep.subr.mxu0 0.0
        %6180 = vmatpush1.msra.mxu0 0.0
        %6181 = vmatprep.subr.mxu0 0.0
        %6182 = vmatpush1.msra.mxu0 0.0
        %6183 = vmatprep.subr.mxu0 0.0
        %6184 = vmatpush1.msra.mxu0 0.0
        %6185 = vmatprep.subr.mxu0 0.0
        %6186 = vmatpush1.msra.mxu0 0.0
        %6187 = vmatprep.subr.mxu0 0.0
        %6188 = vmatpush1.msra.mxu0 0.0
        %6189 = vmatprep.subr.mxu0 0.0
        %6190 = vmatpush1.msra.mxu0 0.0
        %6191 = vmatprep.subr.mxu0 0.0
        %6192 = vmatpush1.msra.mxu0 0.0
        %6193 = vmatprep.subr.mxu0 0.0
        %6194 = vmatpush1.msra.mxu0 0.0
        %6195 = vmatprep.subr.mxu0 0.0
        %6196 = vmatpush1.msra.mxu0 0.0
        %6197 = vmatprep.subr.mxu0 0.0
        %6198 = vmatpush1.msra.mxu0 0.0
        %6199 = vmatprep.subr.mxu0 0.0
        %6200 = vmatpush1.msra.mxu0 0.0
        %6201 = vmatprep.subr.mxu0 0.0
        %6202 = vmatpush1.msra.mxu0 0.0
        %6203 = vmatprep.subr.mxu0 0.0
        %6204 = vmatpush1.msra.mxu0 0.0
        %6205 = vmatprep.subr.mxu0 0.0
        %6206 = vmatpush1.msra.mxu0 0.0
        %6207 = vmatprep.subr.mxu0 0.0
        %6208 = vmatpush1.msra.mxu0 0.0
        %6209 = vmatprep.subr.mxu0 0.0
        %6210 = vmatpush1.msra.mxu0 0.0
        %6211 = vmatprep.mubr.f32.mxu0 0.0
        %6212 = vmatmul.mubr.f32.gmra.mrb[0].mxu0 %v6120
        %v6213 = vpop.f32.mrb[0].mxu0
        %v6214 = vadd.f32 0.0, %v6213
        %v6215 = vpop.f32.mrb[0].mxu0
        %6216 = vmatprep.mubr.f32.mxu0 0.0
        %6217 = vmatmul.mubr.f32.gmra.mrb[0].mxu0 %v6123
        %v6218 = vpop.f32.mrb[0].mxu0
        %v6219 = vadd.f32 0.0, %v6218
        %v6220 = vpop.f32.mrb[0].mxu0
        %6221 = vmatprep.mubr.f32.mxu0 0.0
        %6222 = vmatmul.mubr.f32.gmra.mrb[0].mxu0 %v6126
        %v6223 = vpop.f32.mrb[0].mxu0
        %v6224 = vadd.f32 0.0, %v6223
        %v6225 = vpop.f32.mrb[0].mxu0
        %6226 = vmatprep.mubr.f32.mxu0 0.0
        %6227 = vmatmul.mubr.f32.gmra.mrb[0].mxu0 %v6129
        %v6228 = vpop.f32.mrb[0].mxu0
        %v6229 = vadd.f32 0.0, %v6228
        %v6230 = vpop.f32.mrb[0].mxu0
        %6231 = vmatprep.mubr.f32.mxu0 0.0
        %6232 = vmatmul.mubr.f32.gmra.mrb[0].mxu0 %v6132
        %v6233 = vpop.f32.mrb[0].mxu0
        %v6234 = vadd.f32 0.0, %v6233
        %v6235 = vpop.f32.mrb[0].mxu0
        %6236 = vmatprep.mubr.f32.mxu0 0.0
        %6237 = vmatmul.mubr.f32.gmra.mrb[0].mxu0 %v6135
        %v6238 = vpop.f32.mrb[0].mxu0
        %v6239 = vadd.f32 0.0, %v6238
        %v6240 = vpop.f32.mrb[0].mxu0
        %6241 = vmatprep.mubr.f32.mxu0 0.0
        %6242 = vmatmul.mubr.f32.gmra.mrb[0].mxu0 %v6138
        %v6243 = vpop.f32.mrb[0].mxu0
        %v6244 = vadd.f32 0.0, %v6243
        %v6245 = vpop.f32.mrb[0].mxu0
        %6246 = vmatprep.mubr.f32.mxu0 0.0
        %6247 = vmatmul.mubr.f32.gmra.mrb[0].mxu0 %v6141
        %v6248 = vpop.f32.mrb[0].mxu0
        %v6249 = vadd.f32 0.0, %v6248
        %v6250 = vpop.f32.mrb[0].mxu0
        %6251 = vdwg.mxu0
        %v6253 = vsel %vm6143, %v924, 0
        %6255 = vmatprep.subr.mxu0 0.0
        %6256 = vmatpush1.msra.mxu0 %v6253
        %6257 = vmatprep.subr.mxu0 0.0
        %6258 = vmatpush1.msra.mxu0 0.0
        %6259 = vmatprep.subr.mxu0 0.0
        %6260 = vmatpush1.msra.mxu0 0.0
        %6261 = vmatprep.subr.mxu0 0.0
        %6262 = vmatpush1.msra.mxu0 0.0
        %6263 = vmatprep.subr.mxu0 0.0
        %6264 = vmatpush1.msra.mxu0 0.0
        %6265 = vmatprep.subr.mxu0 0.0
        %6266 = vmatpush1.msra.mxu0 0.0
        %6267 = vmatprep.subr.mxu0 0.0
        %6268 = vmatpush1.msra.mxu0 0.0
        %6269 = vmatprep.subr.mxu0 0.0
        %6270 = vmatpush1.msra.mxu0 0.0
        %6271 = vmatprep.subr.mxu0 0.0
        %6272 = vmatpush1.msra.mxu0 0.0
        %6273 = vmatprep.subr.mxu0 0.0
        %6274 = vmatpush1.msra.mxu0 0.0
        %6275 = vmatprep.subr.mxu0 0.0
        %6276 = vmatpush1.msra.mxu0 0.0
        %6277 = vmatprep.subr.mxu0 0.0
        %6278 = vmatpush1.msra.mxu0 0.0
        %6279 = vmatprep.subr.mxu0 0.0
        %6280 = vmatpush1.msra.mxu0 0.0
        %6281 = vmatprep.subr.mxu0 0.0
        %6282 = vmatpush1.msra.mxu0 0.0
        %6283 = vmatprep.subr.mxu0 0.0
        %6284 = vmatpush1.msra.mxu0 0.0
        %6285 = vmatprep.subr.mxu0 0.0
        %6286 = vmatpush1.msra.mxu0 0.0
        %6287 = vmatprep.subr.mxu0 0.0
        %6288 = vmatpush1.msra.mxu0 0.0
        %6289 = vmatprep.subr.mxu0 0.0
        %6290 = vmatpush1.msra.mxu0 0.0
        %6291 = vmatprep.subr.mxu0 0.0
        %6292 = vmatpush1.msra.mxu0 0.0
        %6293 = vmatprep.subr.mxu0 0.0
        %6294 = vmatpush1.msra.mxu0 0.0
        %6295 = vmatprep.subr.mxu0 0.0
        %6296 = vmatpush1.msra.mxu0 0.0
        %6297 = vmatprep.subr.mxu0 0.0
        %6298 = vmatpush1.msra.mxu0 0.0
        %6299 = vmatprep.subr.mxu0 0.0
        %6300 = vmatpush1.msra.mxu0 0.0
        %6301 = vmatprep.subr.mxu0 0.0
        %6302 = vmatpush1.msra.mxu0 0.0
        %6303 = vmatprep.subr.mxu0 0.0
        %6304 = vmatpush1.msra.mxu0 0.0
        %6305 = vmatprep.subr.mxu0 0.0
        %6306 = vmatpush1.msra.mxu0 0.0
        %6307 = vmatprep.subr.mxu0 0.0
        %6308 = vmatpush1.msra.mxu0 0.0
        %6309 = vmatprep.subr.mxu0 0.0
        %6310 = vmatpush1.msra.mxu0 0.0
        %6311 = vmatprep.subr.mxu0 0.0
        %6312 = vmatpush1.msra.mxu0 0.0
        %6313 = vmatprep.subr.mxu0 0.0
        %6314 = vmatpush1.msra.mxu0 0.0
        %6315 = vmatprep.subr.mxu0 0.0
        %6316 = vmatpush1.msra.mxu0 0.0
        %6317 = vmatprep.subr.mxu0 0.0
        %6318 = vmatpush1.msra.mxu0 0.0
        %6319 = vmatprep.mubr.f32.mxu0 0.0
        %6320 = vmatmul.mubr.f32.gmra.mrb[0].mxu0 %v6120
        %v6321 = vpop.f32.mrb[0].mxu0
        %v6322 = vadd.f32 0.0, %v6321
        %v6323 = vpop.f32.mrb[0].mxu0
        %6324 = vmatprep.mubr.f32.mxu0 0.0
        %6325 = vmatmul.mubr.f32.gmra.mrb[0].mxu0 %v6123
        %v6326 = vpop.f32.mrb[0].mxu0
        %v6327 = vadd.f32 0.0, %v6326
        %v6328 = vpop.f32.mrb[0].mxu0
        %6329 = vmatprep.mubr.f32.mxu0 0.0
        %6330 = vmatmul.mubr.f32.gmra.mrb[0].mxu0 %v6126
        %v6331 = vpop.f32.mrb[0].mxu0
        %v6332 = vadd.f32 0.0, %v6331
        %v6333 = vpop.f32.mrb[0].mxu0
        %6334 = vmatprep.mubr.f32.mxu0 0.0
        %6335 = vmatmul.mubr.f32.gmra.mrb[0].mxu0 %v6129
        %v6336 = vpop.f32.mrb[0].mxu0
        %v6337 = vadd.f32 0.0, %v6336
        %v6338 = vpop.f32.mrb[0].mxu0
        %6339 = vmatprep.mubr.f32.mxu0 0.0
        %6340 = vmatmul.mubr.f32.gmra.mrb[0].mxu0 %v6132
        %v6341 = vpop.f32.mrb[0].mxu0
        %v6342 = vadd.f32 0.0, %v6341
        %v6343 = vpop.f32.mrb[0].mxu0
        %6344 = vmatprep.mubr.f32.mxu0 0.0
        %6345 = vmatmul.mubr.f32.gmra.mrb[0].mxu0 %v6135
        %v6346 = vpop.f32.mrb[0].mxu0
        %v6347 = vadd.f32 0.0, %v6346
        %v6348 = vpop.f32.mrb[0].mxu0
        %6349 = vmatprep.mubr.f32.mxu0 0.0
        %6350 = vmatmul.mubr.f32.gmra.mrb[0].mxu0 %v6138
        %v6351 = vpop.f32.mrb[0].mxu0
        %v6352 = vadd.f32 0.0, %v6351
        %v6353 = vpop.f32.mrb[0].mxu0
        %6354 = vmatprep.mubr.f32.mxu0 0.0
        %6355 = vmatmul.mubr.f32.gmra.mrb[0].mxu0 %v6141
        %v6356 = vpop.f32.mrb[0].mxu0
        %v6357 = vadd.f32 0.0, %v6356
        %v6358 = vpop.f32.mrb[0].mxu0
        %6359 = vdwg.mxu0
        %v6360 = vmax.f32 %v6214, %v6322
        %v6361 = vmax.f32 %v6219, %v6327
        %v6362 = vmax.f32 %v6224, %v6332
        %v6363 = vmax.f32 %v6229, %v6337
        %v6364 = vmax.f32 %v6234, %v6342
        %v6365 = vmax.f32 %v6239, %v6347
        %v6366 = vmax.f32 %v6244, %v6352
        %v6367 = vmax.f32 %v6249, %v6357
        %v6368 = vmax.f32 %v6360, 0.0
        %v6369 = vmax.f32 %v6361, 0.0
        %v6370 = vmax.f32 %v6362, 0.0
        %v6371 = vmax.f32 %v6363, 0.0
        %v6372 = vmax.f32 %v6364, 0.0
        %v6373 = vmax.f32 %v6365, 0.0
        %v6374 = vmax.f32 %v6366, 0.0
        %v6375 = vmax.f32 %v6367, 0.0
        %s6376 = smul.u32 %s4940, 64
        %s6377 = scalar_lea.vmem [#allocation7], %s6376
        %vm6378 = vcmask 15360
        %6379 = vst.msk [vmem:[%s6377] sm:$0xff] %vm6378, %v6368
        %6380 = vst.msk [vmem:[%s6377 + $0x8] sm:$0xff] %vm6378, %v6369
        %6381 = vst.msk [vmem:[%s6377 + $0x10] sm:$0xff] %vm6378, %v6370
        %6382 = vst.msk [vmem:[%s6377 + $0x18] sm:$0xff] %vm6378, %v6371
        %6383 = vst.msk [vmem:[%s6377 + $0x20] sm:$0xff] %vm6378, %v6372
        %6384 = vst.msk [vmem:[%s6377 + $0x28] sm:$0xff] %vm6378, %v6373
        %6385 = vst.msk [vmem:[%s6377 + $0x30] sm:$0xff] %vm6378, %v6374
        %6386 = vst.msk [vmem:[%s6377 + $0x38] sm:$0xff] %vm6378, %v6375
      $region128: #{modelv0_forward.1} parent=87 // loop_footer
        %s4944 = sadd.s32 1, %s4940
      $region129: #{modelv0_forward.1} parent=87 // loop_footer_branch
        %4939 = sbr.rel target = $region125
      $region130: #{modelv0_forward.1} parent=87 // loop_exit
        _
      %v6387 = vld [vmem:[#allocation7] sm:$0xff]
      %v6388 = vld [vmem:[#allocation7 + $0x8] sm:$0xff]
      %v6389 = vld [vmem:[#allocation7 + $0x10] sm:$0xff]
      %v6390 = vld [vmem:[#allocation7 + $0x18] sm:$0xff]
      %v6391 = vld [vmem:[#allocation7 + $0x20] sm:$0xff]
      %v6392 = vld [vmem:[#allocation7 + $0x28] sm:$0xff]
      %v6393 = vld [vmem:[#allocation7 + $0x30] sm:$0xff]
      %v6394 = vld [vmem:[#allocation7 + $0x38] sm:$0xff]
      %v6395 = vld [vmem:[#allocation7 + $0x40] sm:$0xff]
      %v6396 = vld [vmem:[#allocation7 + $0x48] sm:$0xff]
      %v6397 = vld [vmem:[#allocation7 + $0x50] sm:$0xff]
      %v6398 = vld [vmem:[#allocation7 + $0x58] sm:$0xff]
      %v6399 = vld [vmem:[#allocation7 + $0x60] sm:$0xff]
      %v6400 = vld [vmem:[#allocation7 + $0x68] sm:$0xff]
      %v6401 = vld [vmem:[#allocation7 + $0x70] sm:$0xff]
      %v6402 = vld [vmem:[#allocation7 + $0x78] sm:$0xff]
      %v6403 = vld [vmem:[#allocation7 + $0x80] sm:$0xff]
      %v6404 = vld [vmem:[#allocation7 + $0x88] sm:$0xff]
      %v6405 = vld [vmem:[#allocation7 + $0x90] sm:$0xff]
      %v6406 = vld [vmem:[#allocation7 + $0x98] sm:$0xff]
      %v6407 = vld [vmem:[#allocation7 + $0xa0] sm:$0xff]
      %v6408 = vld [vmem:[#allocation7 + $0xa8] sm:$0xff]
      %v6409 = vld [vmem:[#allocation7 + $0xb0] sm:$0xff]
      %v6410 = vld [vmem:[#allocation7 + $0xb8] sm:$0xff]
      %v6411 = vld [vmem:[#allocation7 + $0xc0] sm:$0xff]
      %v6412 = vld [vmem:[#allocation7 + $0xc8] sm:$0xff]
      %v6413 = vld [vmem:[#allocation7 + $0xd0] sm:$0xff]
      %v6414 = vld [vmem:[#allocation7 + $0xd8] sm:$0xff]
      %v6415 = vld [vmem:[#allocation7 + $0xe0] sm:$0xff]
      %v6416 = vld [vmem:[#allocation7 + $0xe8] sm:$0xff]
      %v6417 = vld [vmem:[#allocation7 + $0xf0] sm:$0xff]
      %v6418 = vld [vmem:[#allocation7 + $0xf8] sm:$0xff]
      %6451 = vrot.lane.b32.xlu0 %v6387, 127
      %v6452 = vpop.permute.xlu0 %6451
      %6453 = vrot.lane.b32.xlu0 %v6388, 127
      %v6454 = vpop.permute.xlu0 %6453
      %6455 = vrot.lane.b32.xlu0 %v6389, 127
      %v6456 = vpop.permute.xlu0 %6455
      %6457 = vrot.lane.b32.xlu0 %v6390, 127
      %v6458 = vpop.permute.xlu0 %6457
      %6459 = vrot.lane.b32.xlu0 %v6391, 127
      %v6460 = vpop.permute.xlu0 %6459
      %6461 = vrot.lane.b32.xlu0 %v6392, 127
      %v6462 = vpop.permute.xlu0 %6461
      %6463 = vrot.lane.b32.xlu0 %v6393, 127
      %v6464 = vpop.permute.xlu0 %6463
      %6465 = vrot.lane.b32.xlu0 %v6394, 127
      %v6466 = vpop.permute.xlu0 %6465
      %6467 = vrot.lane.b32.xlu0 %v6395, 127
      %v6468 = vpop.permute.xlu0 %6467
      %6469 = vrot.lane.b32.xlu0 %v6396, 127
      %v6470 = vpop.permute.xlu0 %6469
      %6471 = vrot.lane.b32.xlu0 %v6397, 127
      %v6472 = vpop.permute.xlu0 %6471
      %6473 = vrot.lane.b32.xlu0 %v6398, 127
      %v6474 = vpop.permute.xlu0 %6473
      %6475 = vrot.lane.b32.xlu0 %v6399, 127
      %v6476 = vpop.permute.xlu0 %6475
      %6477 = vrot.lane.b32.xlu0 %v6400, 127
      %v6478 = vpop.permute.xlu0 %6477
      %6479 = vrot.lane.b32.xlu0 %v6401, 127
      %v6480 = vpop.permute.xlu0 %6479
      %6481 = vrot.lane.b32.xlu0 %v6402, 127
      %v6482 = vpop.permute.xlu0 %6481
      %6483 = vrot.lane.b32.xlu0 %v6403, 127
      %v6484 = vpop.permute.xlu0 %6483
      %6485 = vrot.lane.b32.xlu0 %v6404, 127
      %v6486 = vpop.permute.xlu0 %6485
      %6487 = vrot.lane.b32.xlu0 %v6405, 127
      %v6488 = vpop.permute.xlu0 %6487
      %6489 = vrot.lane.b32.xlu0 %v6406, 127
      %v6490 = vpop.permute.xlu0 %6489
      %6491 = vrot.lane.b32.xlu0 %v6407, 127
      %v6492 = vpop.permute.xlu0 %6491
      %6493 = vrot.lane.b32.xlu0 %v6408, 127
      %v6494 = vpop.permute.xlu0 %6493
      %6495 = vrot.lane.b32.xlu0 %v6409, 127
      %v6496 = vpop.permute.xlu0 %6495
      %6497 = vrot.lane.b32.xlu0 %v6410, 127
      %v6498 = vpop.permute.xlu0 %6497
      %6499 = vrot.lane.b32.xlu0 %v6411, 127
      %v6500 = vpop.permute.xlu0 %6499
      %6501 = vrot.lane.b32.xlu0 %v6412, 127
      %v6502 = vpop.permute.xlu0 %6501
      %6503 = vrot.lane.b32.xlu0 %v6413, 127
      %v6504 = vpop.permute.xlu0 %6503
      %6505 = vrot.lane.b32.xlu0 %v6414, 127
      %v6506 = vpop.permute.xlu0 %6505
      %6507 = vrot.lane.b32.xlu0 %v6415, 127
      %v6508 = vpop.permute.xlu0 %6507
      %6509 = vrot.lane.b32.xlu0 %v6416, 127
      %v6510 = vpop.permute.xlu0 %6509
      %6511 = vrot.lane.b32.xlu0 %v6417, 127
      %v6512 = vpop.permute.xlu0 %6511
      %6513 = vrot.lane.b32.xlu0 %v6418, 127
      %v6514 = vpop.permute.xlu0 %6513
      %v6547 = vld [vmem:[%s13] sm:$0xff]
      %v6548 = vld [vmem:[%s13 + $0x8] sm:$0xff]
      %v6549 = vld [vmem:[%s13 + $0x10] sm:$0xff]
      %v6550 = vld [vmem:[%s13 + $0x18] sm:$0xff]
      %v6551 = vld [vmem:[%s13 + $0x20] sm:$0xff]
      %v6552 = vld [vmem:[%s13 + $0x28] sm:$0xff]
      %v6553 = vld [vmem:[%s13 + $0x30] sm:$0xff]
      %v6554 = vld [vmem:[%s13 + $0x38] sm:$0xff]
      %v6555 = vld [vmem:[%s13 + $0x40] sm:$0xff]
      %v6556 = vld [vmem:[%s13 + $0x48] sm:$0xff]
      %v6557 = vld [vmem:[%s13 + $0x50] sm:$0xff]
      %v6558 = vld [vmem:[%s13 + $0x58] sm:$0xff]
      %v6559 = vld [vmem:[%s13 + $0x60] sm:$0xff]
      %v6560 = vld [vmem:[%s13 + $0x68] sm:$0xff]
      %v6561 = vld [vmem:[%s13 + $0x70] sm:$0xff]
      %v6562 = vld [vmem:[%s13 + $0x78] sm:$0xff]
      %v6563 = vld [vmem:[%s13 + $0x80] sm:$0xff]
      %v6564 = vld [vmem:[%s13 + $0x88] sm:$0xff]
      %v6565 = vld [vmem:[%s13 + $0x90] sm:$0xff]
      %v6566 = vld [vmem:[%s13 + $0x98] sm:$0xff]
      %v6567 = vld [vmem:[%s13 + $0xa0] sm:$0xff]
      %v6568 = vld [vmem:[%s13 + $0xa8] sm:$0xff]
      %v6569 = vld [vmem:[%s13 + $0xb0] sm:$0xff]
      %v6570 = vld [vmem:[%s13 + $0xb8] sm:$0xff]
      %v6571 = vld [vmem:[%s13 + $0xc0] sm:$0xff]
      %v6572 = vld [vmem:[%s13 + $0xc8] sm:$0xff]
      %v6573 = vld [vmem:[%s13 + $0xd0] sm:$0xff]
      %v6574 = vld [vmem:[%s13 + $0xd8] sm:$0xff]
      %v6575 = vld [vmem:[%s13 + $0xe0] sm:$0xff]
      %v6576 = vld [vmem:[%s13 + $0xe8] sm:$0xff]
      %v6577 = vld [vmem:[%s13 + $0xf0] sm:$0xff]
      %v6578 = vld [vmem:[%s13 + $0xf8] sm:$0xff]
      %v6579 = vld [vmem:[%s13 + $0x100] sm:$0xff]
      %v6580 = vld [vmem:[%s13 + $0x108] sm:$0xff]
      %v6581 = vld [vmem:[%s13 + $0x110] sm:$0xff]
      %v6582 = vld [vmem:[%s13 + $0x118] sm:$0xff]
      %v6583 = vld [vmem:[%s13 + $0x120] sm:$0xff]
      %v6584 = vld [vmem:[%s13 + $0x128] sm:$0xff]
      %v6585 = vld [vmem:[%s13 + $0x130] sm:$0xff]
      %v6586 = vld [vmem:[%s13 + $0x138] sm:$0xff]
      %v6587 = vld [vmem:[%s13 + $0x140] sm:$0xff]
      %v6588 = vld [vmem:[%s13 + $0x148] sm:$0xff]
      %v6589 = vld [vmem:[%s13 + $0x150] sm:$0xff]
      %v6590 = vld [vmem:[%s13 + $0x158] sm:$0xff]
      %v6591 = vld [vmem:[%s13 + $0x160] sm:$0xff]
      %v6592 = vld [vmem:[%s13 + $0x168] sm:$0xff]
      %v6593 = vld [vmem:[%s13 + $0x170] sm:$0xff]
      %v6594 = vld [vmem:[%s13 + $0x178] sm:$0xff]
      %v6595 = vld [vmem:[%s13 + $0x180] sm:$0xff]
      %v6596 = vld [vmem:[%s13 + $0x188] sm:$0xff]
      %v6597 = vld [vmem:[%s13 + $0x190] sm:$0xff]
      %v6598 = vld [vmem:[%s13 + $0x198] sm:$0xff]
      %v6599 = vld [vmem:[%s13 + $0x1a0] sm:$0xff]
      %v6600 = vld [vmem:[%s13 + $0x1a8] sm:$0xff]
      %v6601 = vld [vmem:[%s13 + $0x1b0] sm:$0xff]
      %v6602 = vld [vmem:[%s13 + $0x1b8] sm:$0xff]
      %v6603 = vld [vmem:[%s13 + $0x1c0] sm:$0xff]
      %v6604 = vld [vmem:[%s13 + $0x1c8] sm:$0xff]
      %v6605 = vld [vmem:[%s13 + $0x1d0] sm:$0xff]
      %v6606 = vld [vmem:[%s13 + $0x1d8] sm:$0xff]
      %v6607 = vld [vmem:[%s13 + $0x1e0] sm:$0xff]
      %v6608 = vld [vmem:[%s13 + $0x1e8] sm:$0xff]
      %v6609 = vld [vmem:[%s13 + $0x1f0] sm:$0xff]
      %v6610 = vld [vmem:[%s13 + $0x1f8] sm:$0xff]
      %v6611 = vld [vmem:[%s14] sm:$0xff]
      %v6612 = vld [vmem:[%s14 + $0x8] sm:$0xff]
      %v6613 = vld [vmem:[%s14 + $0x10] sm:$0xff]
      %v6614 = vld [vmem:[%s14 + $0x18] sm:$0xff]
      %v6615 = vld [vmem:[%s14 + $0x20] sm:$0xff]
      %v6616 = vld [vmem:[%s14 + $0x28] sm:$0xff]
      %v6617 = vld [vmem:[%s14 + $0x30] sm:$0xff]
      %v6618 = vld [vmem:[%s14 + $0x38] sm:$0xff]
      %v6619 = vld [vmem:[%s14 + $0x40] sm:$0xff]
      %v6620 = vld [vmem:[%s14 + $0x48] sm:$0xff]
      %v6621 = vld [vmem:[%s14 + $0x50] sm:$0xff]
      %v6622 = vld [vmem:[%s14 + $0x58] sm:$0xff]
      %v6623 = vld [vmem:[%s14 + $0x60] sm:$0xff]
      %v6624 = vld [vmem:[%s14 + $0x68] sm:$0xff]
      %v6625 = vld [vmem:[%s14 + $0x70] sm:$0xff]
      %v6626 = vld [vmem:[%s14 + $0x78] sm:$0xff]
      %6627 = vmatprep.subr.mxu0 0.0
      %6628 = vmatpush1.msra.mxu0 %v6387
      %6629 = vmatprep.subr.mxu0 0.0
      %6630 = vmatpush1.msra.mxu0 %v6388
      %6631 = vmatprep.subr.mxu0 0.0
      %6632 = vmatpush1.msra.mxu0 %v6389
      %6633 = vmatprep.subr.mxu0 0.0
      %6634 = vmatpush1.msra.mxu0 %v6390
      %6635 = vmatprep.subr.mxu0 0.0
      %6636 = vmatpush1.msra.mxu0 %v6391
      %6637 = vmatprep.subr.mxu0 0.0
      %6638 = vmatpush1.msra.mxu0 %v6392
      %6639 = vmatprep.subr.mxu0 0.0
      %6640 = vmatpush1.msra.mxu0 %v6393
      %6641 = vmatprep.subr.mxu0 0.0
      %6642 = vmatpush1.msra.mxu0 %v6394
      %6643 = vmatprep.subr.mxu0 0.0
      %6644 = vmatpush1.msra.mxu0 %v6395
      %6645 = vmatprep.subr.mxu0 0.0
      %6646 = vmatpush1.msra.mxu0 %v6396
      %6647 = vmatprep.subr.mxu0 0.0
      %6648 = vmatpush1.msra.mxu0 %v6397
      %6649 = vmatprep.subr.mxu0 0.0
      %6650 = vmatpush1.msra.mxu0 %v6398
      %6651 = vmatprep.subr.mxu0 0.0
      %6652 = vmatpush1.msra.mxu0 %v6399
      %6653 = vmatprep.subr.mxu0 0.0
      %6654 = vmatpush1.msra.mxu0 %v6400
      %6655 = vmatprep.subr.mxu0 0.0
      %6656 = vmatpush1.msra.mxu0 %v6401
      %6657 = vmatprep.subr.mxu0 0.0
      %6658 = vmatpush1.msra.mxu0 %v6402
      %6659 = vmatprep.subr.mxu0 0.0
      %6660 = vmatpush1.msra.mxu0 %v6403
      %6661 = vmatprep.subr.mxu0 0.0
      %6662 = vmatpush1.msra.mxu0 %v6404
      %6663 = vmatprep.subr.mxu0 0.0
      %6664 = vmatpush1.msra.mxu0 %v6405
      %6665 = vmatprep.subr.mxu0 0.0
      %6666 = vmatpush1.msra.mxu0 %v6406
      %6667 = vmatprep.subr.mxu0 0.0
      %6668 = vmatpush1.msra.mxu0 %v6407
      %6669 = vmatprep.subr.mxu0 0.0
      %6670 = vmatpush1.msra.mxu0 %v6408
      %6671 = vmatprep.subr.mxu0 0.0
      %6672 = vmatpush1.msra.mxu0 %v6409
      %6673 = vmatprep.subr.mxu0 0.0
      %6674 = vmatpush1.msra.mxu0 %v6410
      %6675 = vmatprep.subr.mxu0 0.0
      %6676 = vmatpush1.msra.mxu0 %v6411
      %6677 = vmatprep.subr.mxu0 0.0
      %6678 = vmatpush1.msra.mxu0 %v6412
      %6679 = vmatprep.subr.mxu0 0.0
      %6680 = vmatpush1.msra.mxu0 %v6413
      %6681 = vmatprep.subr.mxu0 0.0
      %6682 = vmatpush1.msra.mxu0 %v6414
      %6683 = vmatprep.subr.mxu0 0.0
      %6684 = vmatpush1.msra.mxu0 %v6415
      %6685 = vmatprep.subr.mxu0 0.0
      %6686 = vmatpush1.msra.mxu0 %v6416
      %6687 = vmatprep.subr.mxu0 0.0
      %6688 = vmatpush1.msra.mxu0 %v6417
      %6689 = vmatprep.subr.mxu0 0.0
      %6690 = vmatpush1.msra.mxu0 %v6418
      %6691 = vmatprep.mubr.f32.mxu0 %v6548
      %6692 = vmatmul.mubr.f32.gmra.mrb[0].mxu0 %v6547
      %v6693 = vpop.f32.mrb[0].mxu0
      %v6694 = vadd.f32 %v6611, %v6693
      %v6695 = vpop.f32.mrb[0].mxu0
      %6696 = vmatprep.mubr.f32.mxu0 %v6552
      %6697 = vmatmul.mubr.f32.gmra.mrb[0].mxu0 %v6551
      %v6698 = vpop.f32.mrb[0].mxu0
      %v6699 = vadd.f32 %v6612, %v6698
      %v6700 = vpop.f32.mrb[0].mxu0
      %6701 = vmatprep.mubr.f32.mxu0 %v6556
      %6702 = vmatmul.mubr.f32.gmra.mrb[0].mxu0 %v6555
      %v6703 = vpop.f32.mrb[0].mxu0
      %v6704 = vadd.f32 %v6613, %v6703
      %v6705 = vpop.f32.mrb[0].mxu0
      %6706 = vmatprep.mubr.f32.mxu0 %v6560
      %6707 = vmatmul.mubr.f32.gmra.mrb[0].mxu0 %v6559
      %v6708 = vpop.f32.mrb[0].mxu0
      %v6709 = vadd.f32 %v6614, %v6708
      %v6710 = vpop.f32.mrb[0].mxu0
      %6711 = vmatprep.mubr.f32.mxu0 %v6564
      %6712 = vmatmul.mubr.f32.gmra.mrb[0].mxu0 %v6563
      %v6713 = vpop.f32.mrb[0].mxu0
      %v6714 = vadd.f32 %v6615, %v6713
      %v6715 = vpop.f32.mrb[0].mxu0
      %6716 = vmatprep.mubr.f32.mxu0 %v6568
      %6717 = vmatmul.mubr.f32.gmra.mrb[0].mxu0 %v6567
      %v6718 = vpop.f32.mrb[0].mxu0
      %v6719 = vadd.f32 %v6616, %v6718
      %v6720 = vpop.f32.mrb[0].mxu0
      %6721 = vmatprep.mubr.f32.mxu0 %v6572
      %6722 = vmatmul.mubr.f32.gmra.mrb[0].mxu0 %v6571
      %v6723 = vpop.f32.mrb[0].mxu0
      %v6724 = vadd.f32 %v6617, %v6723
      %v6725 = vpop.f32.mrb[0].mxu0
      %6726 = vmatprep.mubr.f32.mxu0 %v6576
      %6727 = vmatmul.mubr.f32.gmra.mrb[0].mxu0 %v6575
      %v6728 = vpop.f32.mrb[0].mxu0
      %v6729 = vadd.f32 %v6618, %v6728
      %v6730 = vpop.f32.mrb[0].mxu0
      %6731 = vmatprep.mubr.f32.mxu0 %v6580
      %6732 = vmatmul.mubr.f32.gmra.mrb[0].mxu0 %v6579
      %v6733 = vpop.f32.mrb[0].mxu0
      %v6734 = vadd.f32 %v6619, %v6733
      %v6735 = vpop.f32.mrb[0].mxu0
      %6736 = vmatprep.mubr.f32.mxu0 %v6584
      %6737 = vmatmul.mubr.f32.gmra.mrb[0].mxu0 %v6583
      %v6738 = vpop.f32.mrb[0].mxu0
      %v6739 = vadd.f32 %v6620, %v6738
      %v6740 = vpop.f32.mrb[0].mxu0
      %6741 = vmatprep.mubr.f32.mxu0 %v6588
      %6742 = vmatmul.mubr.f32.gmra.mrb[0].mxu0 %v6587
      %v6743 = vpop.f32.mrb[0].mxu0
      %v6744 = vadd.f32 %v6621, %v6743
      %v6745 = vpop.f32.mrb[0].mxu0
      %6746 = vmatprep.mubr.f32.mxu0 %v6592
      %6747 = vmatmul.mubr.f32.gmra.mrb[0].mxu0 %v6591
      %v6748 = vpop.f32.mrb[0].mxu0
      %v6749 = vadd.f32 %v6622, %v6748
      %v6750 = vpop.f32.mrb[0].mxu0
      %6751 = vmatprep.mubr.f32.mxu0 %v6596
      %6752 = vmatmul.mubr.f32.gmra.mrb[0].mxu0 %v6595
      %v6753 = vpop.f32.mrb[0].mxu0
      %v6754 = vadd.f32 %v6623, %v6753
      %v6755 = vpop.f32.mrb[0].mxu0
      %6756 = vmatprep.mubr.f32.mxu0 %v6600
      %6757 = vmatmul.mubr.f32.gmra.mrb[0].mxu0 %v6599
      %v6758 = vpop.f32.mrb[0].mxu0
      %v6759 = vadd.f32 %v6624, %v6758
      %v6760 = vpop.f32.mrb[0].mxu0
      %6761 = vmatprep.mubr.f32.mxu0 %v6604
      %6762 = vmatmul.mubr.f32.gmra.mrb[0].mxu0 %v6603
      %v6763 = vpop.f32.mrb[0].mxu0
      %v6764 = vadd.f32 %v6625, %v6763
      %v6765 = vpop.f32.mrb[0].mxu0
      %6766 = vmatprep.mubr.f32.mxu0 %v6608
      %6767 = vmatmul.mubr.f32.gmra.mrb[0].mxu0 %v6607
      %v6768 = vpop.f32.mrb[0].mxu0
      %v6769 = vadd.f32 %v6626, %v6768
      %v6770 = vpop.f32.mrb[0].mxu0
      %6771 = vdwg.mxu0
      %6772 = vmatprep.subr.mxu0 0.0
      %6773 = vmatpush1.msra.mxu0 %v6452
      %6774 = vmatprep.subr.mxu0 0.0
      %6775 = vmatpush1.msra.mxu0 %v6454
      %6776 = vmatprep.subr.mxu0 0.0
      %6777 = vmatpush1.msra.mxu0 %v6456
      %6778 = vmatprep.subr.mxu0 0.0
      %6779 = vmatpush1.msra.mxu0 %v6458
      %6780 = vmatprep.subr.mxu0 0.0
      %6781 = vmatpush1.msra.mxu0 %v6460
      %6782 = vmatprep.subr.mxu0 0.0
      %6783 = vmatpush1.msra.mxu0 %v6462
      %6784 = vmatprep.subr.mxu0 0.0
      %6785 = vmatpush1.msra.mxu0 %v6464
      %6786 = vmatprep.subr.mxu0 0.0
      %6787 = vmatpush1.msra.mxu0 %v6466
      %6788 = vmatprep.subr.mxu0 0.0
      %6789 = vmatpush1.msra.mxu0 %v6468
      %6790 = vmatprep.subr.mxu0 0.0
      %6791 = vmatpush1.msra.mxu0 %v6470
      %6792 = vmatprep.subr.mxu0 0.0
      %6793 = vmatpush1.msra.mxu0 %v6472
      %6794 = vmatprep.subr.mxu0 0.0
      %6795 = vmatpush1.msra.mxu0 %v6474
      %6796 = vmatprep.subr.mxu0 0.0
      %6797 = vmatpush1.msra.mxu0 %v6476
      %6798 = vmatprep.subr.mxu0 0.0
      %6799 = vmatpush1.msra.mxu0 %v6478
      %6800 = vmatprep.subr.mxu0 0.0
      %6801 = vmatpush1.msra.mxu0 %v6480
      %6802 = vmatprep.subr.mxu0 0.0
      %6803 = vmatpush1.msra.mxu0 %v6482
      %6804 = vmatprep.subr.mxu0 0.0
      %6805 = vmatpush1.msra.mxu0 %v6484
      %6806 = vmatprep.subr.mxu0 0.0
      %6807 = vmatpush1.msra.mxu0 %v6486
      %6808 = vmatprep.subr.mxu0 0.0
      %6809 = vmatpush1.msra.mxu0 %v6488
      %6810 = vmatprep.subr.mxu0 0.0
      %6811 = vmatpush1.msra.mxu0 %v6490
      %6812 = vmatprep.subr.mxu0 0.0
      %6813 = vmatpush1.msra.mxu0 %v6492
      %6814 = vmatprep.subr.mxu0 0.0
      %6815 = vmatpush1.msra.mxu0 %v6494
      %6816 = vmatprep.subr.mxu0 0.0
      %6817 = vmatpush1.msra.mxu0 %v6496
      %6818 = vmatprep.subr.mxu0 0.0
      %6819 = vmatpush1.msra.mxu0 %v6498
      %6820 = vmatprep.subr.mxu0 0.0
      %6821 = vmatpush1.msra.mxu0 %v6500
      %6822 = vmatprep.subr.mxu0 0.0
      %6823 = vmatpush1.msra.mxu0 %v6502
      %6824 = vmatprep.subr.mxu0 0.0
      %6825 = vmatpush1.msra.mxu0 %v6504
      %6826 = vmatprep.subr.mxu0 0.0
      %6827 = vmatpush1.msra.mxu0 %v6506
      %6828 = vmatprep.subr.mxu0 0.0
      %6829 = vmatpush1.msra.mxu0 %v6508
      %6830 = vmatprep.subr.mxu0 0.0
      %6831 = vmatpush1.msra.mxu0 %v6510
      %6832 = vmatprep.subr.mxu0 0.0
      %6833 = vmatpush1.msra.mxu0 %v6512
      %6834 = vmatprep.subr.mxu0 0.0
      %6835 = vmatpush1.msra.mxu0 %v6514
      %6836 = vmatprep.mubr.f32.mxu0 %v6550
      %6837 = vmatmul.mubr.f32.gmra.mrb[0].mxu0 %v6549
      %v6838 = vpop.f32.mrb[0].mxu0
      %v6839 = vadd.f32 %v6694, %v6838
      %v6840 = vpop.f32.mrb[0].mxu0
      %6841 = vmatprep.mubr.f32.mxu0 %v6554
      %6842 = vmatmul.mubr.f32.gmra.mrb[0].mxu0 %v6553
      %v6843 = vpop.f32.mrb[0].mxu0
      %v6844 = vadd.f32 %v6699, %v6843
      %v6845 = vpop.f32.mrb[0].mxu0
      %6846 = vmatprep.mubr.f32.mxu0 %v6558
      %6847 = vmatmul.mubr.f32.gmra.mrb[0].mxu0 %v6557
      %v6848 = vpop.f32.mrb[0].mxu0
      %v6849 = vadd.f32 %v6704, %v6848
      %v6850 = vpop.f32.mrb[0].mxu0
      %6851 = vmatprep.mubr.f32.mxu0 %v6562
      %6852 = vmatmul.mubr.f32.gmra.mrb[0].mxu0 %v6561
      %v6853 = vpop.f32.mrb[0].mxu0
      %v6854 = vadd.f32 %v6709, %v6853
      %v6855 = vpop.f32.mrb[0].mxu0
      %6856 = vmatprep.mubr.f32.mxu0 %v6566
      %6857 = vmatmul.mubr.f32.gmra.mrb[0].mxu0 %v6565
      %v6858 = vpop.f32.mrb[0].mxu0
      %v6859 = vadd.f32 %v6714, %v6858
      %v6860 = vpop.f32.mrb[0].mxu0
      %6861 = vmatprep.mubr.f32.mxu0 %v6570
      %6862 = vmatmul.mubr.f32.gmra.mrb[0].mxu0 %v6569
      %v6863 = vpop.f32.mrb[0].mxu0
      %v6864 = vadd.f32 %v6719, %v6863
      %v6865 = vpop.f32.mrb[0].mxu0
      %6866 = vmatprep.mubr.f32.mxu0 %v6574
      %6867 = vmatmul.mubr.f32.gmra.mrb[0].mxu0 %v6573
      %v6868 = vpop.f32.mrb[0].mxu0
      %v6869 = vadd.f32 %v6724, %v6868
      %v6870 = vpop.f32.mrb[0].mxu0
      %6871 = vmatprep.mubr.f32.mxu0 %v6578
      %6872 = vmatmul.mubr.f32.gmra.mrb[0].mxu0 %v6577
      %v6873 = vpop.f32.mrb[0].mxu0
      %v6874 = vadd.f32 %v6729, %v6873
      %v6875 = vpop.f32.mrb[0].mxu0
      %6876 = vmatprep.mubr.f32.mxu0 %v6582
      %6877 = vmatmul.mubr.f32.gmra.mrb[0].mxu0 %v6581
      %v6878 = vpop.f32.mrb[0].mxu0
      %v6879 = vadd.f32 %v6734, %v6878
      %v6880 = vpop.f32.mrb[0].mxu0
      %6881 = vmatprep.mubr.f32.mxu0 %v6586
      %6882 = vmatmul.mubr.f32.gmra.mrb[0].mxu0 %v6585
      %v6883 = vpop.f32.mrb[0].mxu0
      %v6884 = vadd.f32 %v6739, %v6883
      %v6885 = vpop.f32.mrb[0].mxu0
      %6886 = vmatprep.mubr.f32.mxu0 %v6590
      %6887 = vmatmul.mubr.f32.gmra.mrb[0].mxu0 %v6589
      %v6888 = vpop.f32.mrb[0].mxu0
      %v6889 = vadd.f32 %v6744, %v6888
      %v6890 = vpop.f32.mrb[0].mxu0
      %6891 = vmatprep.mubr.f32.mxu0 %v6594
      %6892 = vmatmul.mubr.f32.gmra.mrb[0].mxu0 %v6593
      %v6893 = vpop.f32.mrb[0].mxu0
      %v6894 = vadd.f32 %v6749, %v6893
      %v6895 = vpop.f32.mrb[0].mxu0
      %6896 = vmatprep.mubr.f32.mxu0 %v6598
      %6897 = vmatmul.mubr.f32.gmra.mrb[0].mxu0 %v6597
      %v6898 = vpop.f32.mrb[0].mxu0
      %v6899 = vadd.f32 %v6754, %v6898
      %v6900 = vpop.f32.mrb[0].mxu0
      %6901 = vmatprep.mubr.f32.mxu0 %v6602
      %6902 = vmatmul.mubr.f32.gmra.mrb[0].mxu0 %v6601
      %v6903 = vpop.f32.mrb[0].mxu0
      %v6904 = vadd.f32 %v6759, %v6903
      %v6905 = vpop.f32.mrb[0].mxu0
      %6906 = vmatprep.mubr.f32.mxu0 %v6606
      %6907 = vmatmul.mubr.f32.gmra.mrb[0].mxu0 %v6605
      %v6908 = vpop.f32.mrb[0].mxu0
      %v6909 = vadd.f32 %v6764, %v6908
      %v6910 = vpop.f32.mrb[0].mxu0
      %6911 = vmatprep.mubr.f32.mxu0 %v6610
      %6912 = vmatmul.mubr.f32.gmra.mrb[0].mxu0 %v6609
      %v6913 = vpop.f32.mrb[0].mxu0
      %v6914 = vadd.f32 %v6769, %v6913
      %v6915 = vpop.f32.mrb[0].mxu0
      %6916 = vdwg.mxu0
      %v6917 = vmax.f32 %v6839, 0.0
      %v6918 = vmax.f32 %v6844, 0.0
      %v6919 = vmax.f32 %v6849, 0.0
      %v6920 = vmax.f32 %v6854, 0.0
      %v6921 = vmax.f32 %v6859, 0.0
      %v6922 = vmax.f32 %v6864, 0.0
      %v6923 = vmax.f32 %v6869, 0.0
      %v6924 = vmax.f32 %v6874, 0.0
      %v6925 = vmax.f32 %v6879, 0.0
      %v6926 = vmax.f32 %v6884, 0.0
      %v6927 = vmax.f32 %v6889, 0.0
      %v6928 = vmax.f32 %v6894, 0.0
      %v6929 = vmax.f32 %v6899, 0.0
      %v6930 = vmax.f32 %v6904, 0.0
      %v6931 = vmax.f32 %v6909, 0.0
      %v6932 = vmax.f32 %v6914, 0.0
      %v6933 = vld [vmem:[%s15] sm:$0x3]
      %v6934 = vld [vmem:[%s16] sm:$0x3]
      %6935 = vmatprep.subr.mxu0 0.0
      %6936 = vmatpush1.msra.mxu0 %v6917
      %6937 = vmatprep.subr.mxu0 0.0
      %6938 = vmatpush1.msra.mxu0 %v6918
      %6939 = vmatprep.subr.mxu0 0.0
      %6940 = vmatpush1.msra.mxu0 %v6919
      %6941 = vmatprep.subr.mxu0 0.0
      %6942 = vmatpush1.msra.mxu0 %v6920
      %6943 = vmatprep.subr.mxu0 0.0
      %6944 = vmatpush1.msra.mxu0 %v6921
      %6945 = vmatprep.subr.mxu0 0.0
      %6946 = vmatpush1.msra.mxu0 %v6922
      %6947 = vmatprep.subr.mxu0 0.0
      %6948 = vmatpush1.msra.mxu0 %v6923
      %6949 = vmatprep.subr.mxu0 0.0
      %6950 = vmatpush1.msra.mxu0 %v6924
      %6951 = vmatprep.subr.mxu0 0.0
      %6952 = vmatpush1.msra.mxu0 %v6925
      %6953 = vmatprep.subr.mxu0 0.0
      %6954 = vmatpush1.msra.mxu0 %v6926
      %6955 = vmatprep.subr.mxu0 0.0
      %6956 = vmatpush1.msra.mxu0 %v6927
      %6957 = vmatprep.subr.mxu0 0.0
      %6958 = vmatpush1.msra.mxu0 %v6928
      %6959 = vmatprep.subr.mxu0 0.0
      %6960 = vmatpush1.msra.mxu0 %v6929
      %6961 = vmatprep.subr.mxu0 0.0
      %6962 = vmatpush1.msra.mxu0 %v6930
      %6963 = vmatprep.subr.mxu0 0.0
      %6964 = vmatpush1.msra.mxu0 %v6931
      %6965 = vmatprep.subr.mxu0 0.0
      %6966 = vmatpush1.msra.mxu0 %v6932
      %6967 = vmatprep.subr.mxu0 0.0
      %6968 = vmatpush1.msra.mxu0 0.0
      %6969 = vmatprep.subr.mxu0 0.0
      %6970 = vmatpush1.msra.mxu0 0.0
      %6971 = vmatprep.subr.mxu0 0.0
      %6972 = vmatpush1.msra.mxu0 0.0
      %6973 = vmatprep.subr.mxu0 0.0
      %6974 = vmatpush1.msra.mxu0 0.0
      %6975 = vmatprep.subr.mxu0 0.0
      %6976 = vmatpush1.msra.mxu0 0.0
      %6977 = vmatprep.subr.mxu0 0.0
      %6978 = vmatpush1.msra.mxu0 0.0
      %6979 = vmatprep.subr.mxu0 0.0
      %6980 = vmatpush1.msra.mxu0 0.0
      %6981 = vmatprep.subr.mxu0 0.0
      %6982 = vmatpush1.msra.mxu0 0.0
      %6983 = vmatprep.subr.mxu0 0.0
      %6984 = vmatpush1.msra.mxu0 0.0
      %6985 = vmatprep.subr.mxu0 0.0
      %6986 = vmatpush1.msra.mxu0 0.0
      %6987 = vmatprep.subr.mxu0 0.0
      %6988 = vmatpush1.msra.mxu0 0.0
      %6989 = vmatprep.subr.mxu0 0.0
      %6990 = vmatpush1.msra.mxu0 0.0
      %6991 = vmatprep.subr.mxu0 0.0
      %6992 = vmatpush1.msra.mxu0 0.0
      %6993 = vmatprep.subr.mxu0 0.0
      %6994 = vmatpush1.msra.mxu0 0.0
      %6995 = vmatprep.subr.mxu0 0.0
      %6996 = vmatpush1.msra.mxu0 0.0
      %6997 = vmatprep.subr.mxu0 0.0
      %6998 = vmatpush1.msra.mxu0 0.0
      %6999 = vmatprep.mubr.f32.mxu0 0.0
      %7000 = vmatmul.mubr.f32.gmra.mrb[0].mxu0 %v6933
      %v7001 = vpop.f32.mrb[0].mxu0
      %v7002 = vadd.f32 %v6934, %v7001
      %v7003 = vpop.f32.mrb[0].mxu0
      %7004 = vdwg.mxu0
      %v7005 = vmax.f32 %v7002, 0.0
      %v7007 = vrot.slane %v7002, 1
      %7008 = vrot.lane.b32.xlu0 %v7007, 1
      %v7009 = vpop.permute.xlu0 %7008
      %vm7011 = vcmask 7168
      %v7012 = vsel %vm7011, %v7005, %v7009
      %vm7013 = vcmask 8192
      %7014 = vst.msk [vmem:[%s544] sm:$0x1] %vm7013, %v7012
      %p7015 = scmp.lt.s32.totalorder %s28, 1
      %s7016 = scalar_select %p7015, %s28, 1
      %s7017 = scalar_lea.vmem %s17, %s7016
      // Predicated region
      $region131: #{modelv0_forward.1} parent=87 // pred_check
        %p7018 = pneg %p408
      $region132: #{modelv0_forward.1} parent=87 // pred_check_branch
        %7020 = sbr.rel (%p7018) target = $region134
      $region133: #{modelv0_forward.1} parent=87 // pred_region
        _
      $region134: #{modelv0_forward.1} parent=87 // pred_fallthru
        _
    $region88: #{modelv0_forward.1} parent=5 // pred_fallthru
      _
    %p7021 = scmp.le.s32.totalorder 2, %s23
    // Predicated region
    $region135: #{modelv0_forward.1} parent=5 // pred_check
      %p7022 = pneg %p7021
    $region136: #{modelv0_forward.1} parent=5 // pred_check_branch
      %7024 = sbr.rel (%p7022) target = $region138
    $region137: #{modelv0_forward.1} parent=5 // pred_region
      %s7025 = ssub.s32 %s23, 2
      // Predicated region
      $region139: #{modelv0_forward.1} parent=137 // pred_check
        %p7026 = pneg %p414
      $region140: #{modelv0_forward.1} parent=137 // pred_check_branch
        %7028 = sbr.rel (%p7026) target = $region142
      $region141: #{modelv0_forward.1} parent=137 // pred_region
        %p7029 = scmp.lt.s32.totalorder %s29, 1
        %s7030 = scalar_select %p7029, %s29, 1
        %s7031 = scalar_lea.vmem %s17, %s7030
      $region142: #{modelv0_forward.1} parent=137 // pred_fallthru
        _
    $region138: #{modelv0_forward.1} parent=5 // pred_fallthru
      _
  $region6: #{modelv0_forward.1} parent=0 // loop_footer
    %s27 = sadd.s32 1, %s23
  $region7: #{modelv0_forward.1} parent=0 // loop_footer_branch
    %22 = sbr.rel target = $region3
  $region8: #{modelv0_forward.1} parent=0 // loop_exit
    _

</llo_original>
